<compile_context>
chip_gen: v7x
topology: tpu7x:2x2x1
jax: 0.10.0
libtpu: 0.0.40
codegen_flags: <defaults>
</compile_context>

<pallas_src>
from functools import partial

import numpy as np
import jax
import jax.numpy as jnp
from jax.experimental import pallas as pl
from jax.experimental.pallas import tpu as pltpu

K = 5  # Conv1d kernel size of every cnn_liu block


def _pooled_len(l):
    return (l - K + 1) // 2


# ----------------------------------------------------------------------------
# The fused kernel: 4 x (conv1 -> conv2 -> conv3 -> flatten -> fc1/fc2/fc3+skip)
#                   -> concat -> binding head, all in VMEM, whole batch at once.
# ----------------------------------------------------------------------------
def _fused_kernel(
    batch,
    enc_abc_ref, enc_r_ref,
    c1w_abc_ref, c1b_abc_ref, c1w_r_ref, c1b_r_ref,
    c2w_ref, c2b_ref, c3w_ref, c3b_ref,
    f1w_ref, f1b_ref, f2w_ref, f2b_ref, f3w_ref, f3b_ref,
    s1_ref, s2_ref, s3_ref,
    hw1_ref, hb1_ref, hw2_ref, hb2_ref, hw3_ref, hb3_ref,
    out_ref,
):
    BF = jnp.bfloat16
    W0 = enc_r_ref.shape[1]                      # batch * L (batch along lanes)
    L = W0 // batch
    l1 = _pooled_len(L)
    l2 = _pooled_len(l1)
    l3 = _pooled_len(l2)

    s1, s2, s3 = s1_ref[...], s2_ref[...], s3_ref[...]

    def pool_relu(y, sel):
        # y: (C_out, batch*W - K + 1) f32.  Window-start columns that straddle
        # a batch boundary are garbage; the 0/1 selector never picks them.
        m = jnp.maximum(y[:, :-1], y[:, 1:])                 # MaxPool pair max
        pooled = jnp.dot(m.astype(BF), sel, preferred_element_type=jnp.float32)
        return jnp.maximum(pooled, 0.0)                      # ReLU

    def conv_im2col(x, w_col, b_col):
        # x: (C_in, W) f32,  w_col: (C_out, K*C_in) bf16,  b_col: (C_out, 1) f32
        v = x.shape[1] - K + 1
        x_col = jnp.concatenate([x[:, k:k + v] for k in range(K)], axis=0)
        return jnp.dot(w_col, x_col.astype(BF),
                       preferred_element_type=jnp.float32) + b_col

    feats = []
    for i in range(4):                           # branches: a, b, c, receptor
        # ---- conv1 ---------------------------------------------------------
        if i < 3:
            y = conv_im2col(enc_abc_ref[i], c1w_abc_ref[i], c1b_abc_ref[i])
        else:
            # Receptor conv1: accumulated sum of K shifted matmuls (no im2col
            # buffer build -- the copies, not the MXU, are the cost here).
            xr = enc_r_ref[...]
            v = W0 - K + 1
            y = None
            for k in range(K):
                t = jnp.dot(c1w_r_ref[k], xr[:, k:k + v].astype(BF),
                            preferred_element_type=jnp.float32)
                y = t if y is None else y + t
            y = y + c1b_r_ref[...]
        a1 = pool_relu(y, s1)                                    # (64, batch*l1)

        # ---- conv2 / conv3 --------------------------------------------------
        a2 = pool_relu(conv_im2col(a1, c2w_ref[i], c2b_ref[i]), s2)  # (32,B*l2)
        a3 = pool_relu(conv_im2col(a2, c3w_ref[i], c3b_ref[i]), s3)  # (32,B*l3)

        # ---- flatten folded into fc1 (lane-dense (batch, feat) rows) --------
        # flat[b, l*32 + c] = a3[c, b*l3 + l]; instead of building `flat` with
        # lane-unaligned concats we accumulate fc1 over the l3 positions.
        # f1w was host-permuted to the l-major order and transposed to (in,out).
        a3t = jnp.transpose(a3)                                  # (batch*l3, 32)
        f1w_i = f1w_ref[i]                                       # (32*l3, 128)
        sk = None
        for l in range(l3):
            rows = jnp.concatenate(
                [a3t[b * l3 + l: b * l3 + l + 1, :] for b in range(batch)],
                axis=0)                                          # (batch, 32)
            t = jnp.dot(rows.astype(BF), f1w_i[l * 32:(l + 1) * 32, :],
                        preferred_element_type=jnp.float32)
            sk = t if sk is None else sk + t
        sk = jnp.maximum(sk + f1b_ref[i], 0.0)                   # (batch, 128)
        h = jnp.dot(sk.astype(BF), f2w_ref[i],
                    preferred_element_type=jnp.float32) + f2b_ref[i]
        h = jnp.dot(h.astype(BF), f3w_ref[i],
                    preferred_element_type=jnp.float32) + f3b_ref[i]
        feats.append(h + sk)                                     # (batch, 128)

    # ---- binding head (runs once for the whole batch) ------------------------
    cat = jnp.concatenate(feats, axis=1)                         # (batch, 512)
    g = jnp.maximum(
        jnp.dot(cat.astype(BF), hw1_ref[...],
                preferred_element_type=jnp.float32) + hb1_ref[...], 0.0)
    g = jnp.maximum(
        jnp.dot(g.astype(BF), hw2_ref[...],
                preferred_element_type=jnp.float32) + hb2_ref[...], 0.0)
    out_ref[...] = jnp.dot(g.astype(BF), hw3_ref[...],
                           preferred_element_type=jnp.float32) + hb3_ref[...]


# ----------------------------------------------------------------------------
# Host-side weight packing (done once, outside jit)
# ----------------------------------------------------------------------------
def _conv_w_col(w, c_in_pad=None):
    # PyTorch (C_out, C_in, K) -> (C_out, K*C_in[_pad]), rows ordered k-major.
    c_out, c_in, _ = w.shape
    if c_in_pad is not None and c_in_pad > c_in:
        w = jnp.pad(w, ((0, 0), (0, c_in_pad - c_in), (0, 0)))
    return jnp.transpose(w, (0, 2, 1)).reshape(c_out, -1)


def _conv_w_shift(w):
    # PyTorch (C_out, C_in, K) -> (K, C_out, C_in) for the shifted-sum form.
    return jnp.transpose(w, (2, 0, 1))


def _fc1_lmajor_t(w, channels, l3):
    # PyTorch fc1 expects a c-major flatten of (channels, l3); the kernel
    # produces l-major (batch, l3*channels) rows, so permute the input columns
    # accordingly and transpose to (in, out).
    out = w.shape[0]
    return w.reshape(out, channels, l3).transpose(0, 2, 1).reshape(out, -1).T


def _pool_selector(in_width, batch):
    # 0/1 matrix implementing MaxPool1d(2,2) column selection on the batched
    # (lane-concatenated) conv output; windows that straddle a batch boundary
    # are never selected.
    l_conv = in_width - K + 1
    l_pool = l_conv // 2
    s = np.zeros((batch * in_width - K, batch * l_pool), np.float32)
    for b in range(batch):
        for p in range(l_pool):
            s[b * in_width + 2 * p, b * l_pool + p] = 1.0
    return jnp.asarray(s)


def _col(v):
    return v.reshape(-1, 1)


def _row(v):
    return v.reshape(1, -1)


def pack_params(params, L, batch, c_in_abc_pad):
    bf = jnp.bfloat16
    l1 = _pooled_len(L)
    l2 = _pooled_len(l1)
    l3 = _pooled_len(l2)
    cnns = [params["cnn1"], params["cnn2"], params["cnn3"], params["cnn4"]]
    head = params["head"]
    return dict(
        c1w_abc=jnp.stack([_conv_w_col(p["c1w"], c_in_abc_pad)
                           for p in cnns[:3]]).astype(bf),
        c1b_abc=jnp.stack([_col(p["c1b"]) for p in cnns[:3]]),
        c1w_r=_conv_w_shift(cnns[3]["c1w"]).astype(bf),
        c1b_r=_col(cnns[3]["c1b"]),
        c2w=jnp.stack([_conv_w_col(p["c2w"]) for p in cnns]).astype(bf),
        c2b=jnp.stack([_col(p["c2b"]) for p in cnns]),
        c3w=jnp.stack([_conv_w_col(p["c3w"]) for p in cnns]).astype(bf),
        c3b=jnp.stack([_col(p["c3b"]) for p in cnns]),
        f1w=jnp.stack([_fc1_lmajor_t(p["f1w"], 32, l3) for p in cnns]).astype(bf),
        f1b=jnp.stack([_row(p["f1b"]) for p in cnns]),
        f2w=jnp.stack([p["f2w"].T for p in cnns]).astype(bf),
        f2b=jnp.stack([_row(p["f2b"]) for p in cnns]),
        f3w=jnp.stack([p["f3w"].T for p in cnns]).astype(bf),
        f3b=jnp.stack([_row(p["f3b"]) for p in cnns]),
        s1=_pool_selector(L, batch).astype(bf),
        s2=_pool_selector(l1, batch).astype(bf),
        s3=_pool_selector(l2, batch).astype(bf),
        hw1=head["w1"].T.astype(bf), hb1=_row(head["b1"]),
        hw2=head["w2"].T.astype(bf), hb2=_row(head["b2"]),
        hw3=head["w3"].T.astype(bf), hb3=_row(head["b3"]),
    )


@jax.jit
def bert_binding_forward(packed, enc_a, enc_b, enc_c, enc_r):
    B, c_abc, L = enc_a.shape
    c_pad = packed["c1w_abc"].shape[2] // K
    # Lay the batch out along the length (lane) axis: every array becomes
    # (C, B*L) so all in-kernel matmuls cover the whole batch at once.
    enc_abc = jnp.stack([enc_a, enc_b, enc_c])                   # (3, B, 18, L)
    enc_abc = jnp.pad(enc_abc, ((0, 0), (0, 0), (0, c_pad - c_abc), (0, 0)))
    enc_abc = jnp.transpose(enc_abc, (0, 2, 1, 3)).reshape(3, c_pad, B * L)
    enc_rc = jnp.transpose(enc_r, (1, 0, 2)).reshape(enc_r.shape[1], B * L)

    args = (
        enc_abc, enc_rc,
        packed["c1w_abc"], packed["c1b_abc"], packed["c1w_r"], packed["c1b_r"],
        packed["c2w"], packed["c2b"], packed["c3w"], packed["c3b"],
        packed["f1w"], packed["f1b"], packed["f2w"], packed["f2b"],
        packed["f3w"], packed["f3b"],
        packed["s1"], packed["s2"], packed["s3"],
        packed["hw1"], packed["hb1"], packed["hw2"], packed["hb2"],
        packed["hw3"], packed["hb3"],
    )
    vmem = pl.BlockSpec(memory_space=pltpu.MemorySpace.VMEM)
    return pl.pallas_call(
        partial(_fused_kernel, B),
        out_shape=jax.ShapeDtypeStruct((B, 1), jnp.float32),
        in_specs=[vmem] * len(args),
        out_specs=vmem,
        cost_estimate=pl.CostEstimate(
            flops=24_000_000, transcendentals=0, bytes_accessed=800_000),
    )(*args)


# ----------------------------------------------------------------------------
# Parameter init (deterministic, PyTorch-style uniform(-1/sqrt(fan_in), ...))
# ----------------------------------------------------------------------------
def init_linear(key, in_f, out_f):
    kw, kb = jax.random.split(key)
    bound = 1.0 / in_f ** 0.5
    w = jax.random.uniform(kw, (out_f, in_f), jnp.float32, -bound, bound)
    b = jax.random.uniform(kb, (out_f,), jnp.float32, -bound, bound)
    return w, b


def init_conv(key, c_out, c_in):
    kw, kb = jax.random.split(key)
    bound = 1.0 / (c_in * K) ** 0.5
    w = jax.random.uniform(kw, (c_out, c_in, K), jnp.float32, -bound, bound)
    b = jax.random.uniform(kb, (c_out,), jnp.float32, -bound, bound)
    return w, b


def init_mf_cnn(key, in_channel, L):
    ks = jax.random.split(key, 6)
    flat = 32 * _pooled_len(_pooled_len(_pooled_len(L)))
    p = {}
    p["c1w"], p["c1b"] = init_conv(ks[0], 64, in_channel)
    p["c2w"], p["c2b"] = init_conv(ks[1], 32, 64)
    p["c3w"], p["c3b"] = init_conv(ks[2], 32, 32)
    p["f1w"], p["f1b"] = init_linear(ks[3], flat, 128)
    p["f2w"], p["f2b"] = init_linear(ks[4], 128, 128)
    p["f3w"], p["f3b"] = init_linear(ks[5], 128, 128)
    return p


# ----------------------------------------------------------------------------
# Pure-JAX reference (structural correctness check of the fused kernel)
# ----------------------------------------------------------------------------
def _ref_cnn_liu(x, w, b):
    y = jax.lax.conv_general_dilated(
        x, w, window_strides=(1,), padding="VALID",
        dimension_numbers=("NCH", "OIH", "NCH"))
    y = y + b[None, :, None]
    n, c, l = y.shape
    y = y[:, :, : (l // 2) * 2].reshape(n, c, l // 2, 2).max(axis=-1)
    return jax.nn.relu(y)


def _ref_mf_cnn(p, x):
    x = _ref_cnn_liu(x, p["c1w"], p["c1b"])
    x = _ref_cnn_liu(x, p["c2w"], p["c2b"])
    x = _ref_cnn_liu(x, p["c3w"], p["c3b"])
    x = x.reshape(x.shape[0], -1)
    sk = jax.nn.relu(x @ p["f1w"].T + p["f1b"])
    h = sk @ p["f2w"].T + p["f2b"]
    h = h @ p["f3w"].T + p["f3b"]
    return h + sk


def _ref_forward(params, enc_a, enc_b, enc_c, enc_r):
    feats = [
        _ref_mf_cnn(params["cnn1"], enc_a),
        _ref_mf_cnn(params["cnn2"], enc_b),
        _ref_mf_cnn(params["cnn3"], enc_c),
        _ref_mf_cnn(params["cnn4"], enc_r),
    ]
    x = jnp.concatenate(feats, axis=1)
    h = params["head"]
    x = jax.nn.relu(x @ h["w1"].T + h["b1"])
    x = jax.nn.relu(x @ h["w2"].T + h["b2"])
    return x @ h["w3"].T + h["b3"]


if __name__ == "__main__":
    B = 2
    L = 60          # stand-in for the BERT hidden size (Conv1d "length" axis)
    emb_dim = 32
    C_ABC, C_R = 18, 120
    C_ABC_PAD = 24  # pad antibody channels to a multiple of 8 (aligned im2col)

    root = jax.random.PRNGKey(0)
    ks = jax.random.split(root, 12)

    # BERT last_hidden_state stand-ins (seq_len acts as Conv1d channels).
    enc_a = jax.random.normal(ks[0], (B, C_ABC, L), jnp.float32)
    enc_b = jax.random.normal(ks[1], (B, C_ABC, L), jnp.float32)
    enc_c = jax.random.normal(ks[2], (B, C_ABC, L), jnp.float32)
    enc_r = jax.random.normal(ks[3], (B, C_R, L), jnp.float32)

    params = {
        "cnn1": init_mf_cnn(ks[4], C_ABC, L),
        "cnn2": init_mf_cnn(ks[5], C_ABC, L),
        "cnn3": init_mf_cnn(ks[6], C_ABC, L),
        "cnn4": init_mf_cnn(ks[7], C_R, L),
    }
    hw1, hb1 = init_linear(ks[8], 128 * 4, emb_dim)
    hw2, hb2 = init_linear(ks[9], emb_dim, emb_dim)
    hw3, hb3 = init_linear(ks[10], emb_dim, 1)
    params["head"] = {"w1": hw1, "b1": hb1, "w2": hw2, "b2": hb2,
                      "w3": hw3, "b3": hb3}

    packed = pack_params(params, L, B, C_ABC_PAD)

    out = jax.block_until_ready(
        bert_binding_forward(packed, enc_a, enc_b, enc_c, enc_r))
    assert out.shape == (B, 1), out.shape
    assert bool(jnp.all(jnp.isfinite(out)))

    # Structural check against the pure-JAX (XLA) reference; tolerance covers
    # the bf16 weight storage and TPU default matmul precision.
    ref = jax.jit(_ref_forward)(params, enc_a, enc_b, enc_c, enc_r)
    err = float(jnp.max(jnp.abs(out - ref)))
    assert err < 6e-2, err

    print("KERNEL_OK")
</pallas_src>

<mosaic_0001>
module attributes {stable_mosaic.version = 11 : i64} {
  func.func @_fused_kernel(%arg0: memref<3x24x120xf32, #tpu.memory_space<vmem>>, %arg1: memref<120x120xf32, #tpu.memory_space<vmem>>, %arg2: memref<3x64x120xbf16, #tpu.memory_space<vmem>>, %arg3: memref<3x64x1xf32, #tpu.memory_space<vmem>>, %arg4: memref<5x64x120xbf16, #tpu.memory_space<vmem>>, %arg5: memref<64x1xf32, #tpu.memory_space<vmem>>, %arg6: memref<4x32x320xbf16, #tpu.memory_space<vmem>>, %arg7: memref<4x32x1xf32, #tpu.memory_space<vmem>>, %arg8: memref<4x32x160xbf16, #tpu.memory_space<vmem>>, %arg9: memref<4x32x1xf32, #tpu.memory_space<vmem>>, %arg10: memref<4x128x128xbf16, #tpu.memory_space<vmem>>, %arg11: memref<4x1x128xf32, #tpu.memory_space<vmem>>, %arg12: memref<4x128x128xbf16, #tpu.memory_space<vmem>>, %arg13: memref<4x1x128xf32, #tpu.memory_space<vmem>>, %arg14: memref<4x128x128xbf16, #tpu.memory_space<vmem>>, %arg15: memref<4x1x128xf32, #tpu.memory_space<vmem>>, %arg16: memref<115x56xbf16, #tpu.memory_space<vmem>>, %arg17: memref<51x24xbf16, #tpu.memory_space<vmem>>, %arg18: memref<19x8xbf16, #tpu.memory_space<vmem>>, %arg19: memref<512x32xbf16, #tpu.memory_space<vmem>>, %arg20: memref<1x32xf32, #tpu.memory_space<vmem>>, %arg21: memref<32x32xbf16, #tpu.memory_space<vmem>>, %arg22: memref<1x32xf32, #tpu.memory_space<vmem>>, %arg23: memref<32x1xbf16, #tpu.memory_space<vmem>>, %arg24: memref<1x1xf32, #tpu.memory_space<vmem>>, %arg25: memref<2x1xf32, #tpu.memory_space<vmem>>) attributes {dimension_semantics = [], scalar_prefetch = 0 : i64, scratch_operands = 0 : i64, tpu.core_type = #tpu.core_type<tc>} {
    %c0 = arith.constant 0 : index
    %c0_0 = arith.constant 0 : index
    %0 = vector.load %arg16[%c0, %c0_0] : memref<115x56xbf16, #tpu.memory_space<vmem>>, vector<115x56xbf16>
    %c0_1 = arith.constant 0 : index
    %c0_2 = arith.constant 0 : index
    %1 = vector.load %arg17[%c0_1, %c0_2] : memref<51x24xbf16, #tpu.memory_space<vmem>>, vector<51x24xbf16>
    %c0_3 = arith.constant 0 : index
    %c0_4 = arith.constant 0 : index
    %2 = vector.load %arg18[%c0_3, %c0_4] : memref<19x8xbf16, #tpu.memory_space<vmem>>, vector<19x8xbf16>
    %c0_5 = arith.constant 0 : index
    %c0_6 = arith.constant 0 : index
    %c0_7 = arith.constant 0 : index
    %3 = vector.load %arg0[%c0_5, %c0_6, %c0_7] : memref<3x24x120xf32, #tpu.memory_space<vmem>>, vector<1x24x120xf32>
    %4 = vector.shape_cast %3 : vector<1x24x120xf32> to vector<24x120xf32>
    %c0_8 = arith.constant 0 : index
    %c0_9 = arith.constant 0 : index
    %c0_10 = arith.constant 0 : index
    %5 = vector.load %arg2[%c0_8, %c0_9, %c0_10] : memref<3x64x120xbf16, #tpu.memory_space<vmem>>, vector<1x64x120xbf16>
    %6 = vector.shape_cast %5 : vector<1x64x120xbf16> to vector<64x120xbf16>
    %c0_11 = arith.constant 0 : index
    %c0_12 = arith.constant 0 : index
    %c0_13 = arith.constant 0 : index
    %7 = vector.load %arg3[%c0_11, %c0_12, %c0_13] : memref<3x64x1xf32, #tpu.memory_space<vmem>>, vector<1x64x1xf32>
    %8 = vector.shape_cast %7 : vector<1x64x1xf32> to vector<64x1xf32>
    %9 = vector.extract_strided_slice %4 {offsets = [0, 0], sizes = [24, 116], strides = [1, 1]} : vector<24x120xf32> to vector<24x116xf32>
    %10 = vector.extract_strided_slice %4 {offsets = [0, 1], sizes = [24, 116], strides = [1, 1]} : vector<24x120xf32> to vector<24x116xf32>
    %11 = vector.extract_strided_slice %4 {offsets = [0, 2], sizes = [24, 116], strides = [1, 1]} : vector<24x120xf32> to vector<24x116xf32>
    %12 = vector.extract_strided_slice %4 {offsets = [0, 3], sizes = [24, 116], strides = [1, 1]} : vector<24x120xf32> to vector<24x116xf32>
    %13 = vector.extract_strided_slice %4 {offsets = [0, 4], sizes = [24, 116], strides = [1, 1]} : vector<24x120xf32> to vector<24x116xf32>
    %14 = tpu.concatenate %9, %10, %11, %12, %13 in 0 : vector<24x116xf32>, vector<24x116xf32>, vector<24x116xf32>, vector<24x116xf32>, vector<24x116xf32> -> vector<120x116xf32>
    %15 = arith.truncf %14 : vector<120x116xf32> to vector<120x116xbf16>
    %cst = arith.constant dense<0.000000e+00> : vector<64x116xf32>
    %16 = tpu.matmul %6, %15, %cst {dimension_numbers = #tpu.dot_dimension_numbers<[1], [0], [0], [1], [0, 0, 1, 1], [], []>} : vector<64x120xbf16>, vector<120x116xbf16>, vector<64x116xf32> -> vector<64x116xf32>
    %17 = vector.broadcast %8 : vector<64x1xf32> to vector<64x116xf32>
    %18 = arith.addf %16, %17 : vector<64x116xf32>
    %19 = vector.extract_strided_slice %18 {offsets = [0, 0], sizes = [64, 115], strides = [1, 1]} : vector<64x116xf32> to vector<64x115xf32>
    %20 = vector.extract_strided_slice %18 {offsets = [0, 1], sizes = [64, 115], strides = [1, 1]} : vector<64x116xf32> to vector<64x115xf32>
    %21 = arith.maximumf %19, %20 : vector<64x115xf32>
    %22 = arith.truncf %21 : vector<64x115xf32> to vector<64x115xbf16>
    %cst_14 = arith.constant dense<0.000000e+00> : vector<64x56xf32>
    %23 = tpu.matmul %22, %0, %cst_14 {dimension_numbers = #tpu.dot_dimension_numbers<[1], [0], [0], [1], [0, 0, 1, 1], [], []>} : vector<64x115xbf16>, vector<115x56xbf16>, vector<64x56xf32> -> vector<64x56xf32>
    %cst_15 = arith.constant 0.000000e+00 : f32
    %24 = vector.broadcast %cst_15 : f32 to vector<64x56xf32>
    %25 = arith.maximumf %23, %24 : vector<64x56xf32>
    %c0_16 = arith.constant 0 : index
    %c0_17 = arith.constant 0 : index
    %c0_18 = arith.constant 0 : index
    %26 = vector.load %arg6[%c0_16, %c0_17, %c0_18] : memref<4x32x320xbf16, #tpu.memory_space<vmem>>, vector<1x32x320xbf16>
    %27 = vector.shape_cast %26 : vector<1x32x320xbf16> to vector<32x320xbf16>
    %c0_19 = arith.constant 0 : index
    %c0_20 = arith.constant 0 : index
    %c0_21 = arith.constant 0 : index
    %28 = vector.load %arg7[%c0_19, %c0_20, %c0_21] : memref<4x32x1xf32, #tpu.memory_space<vmem>>, vector<1x32x1xf32>
    %29 = vector.shape_cast %28 : vector<1x32x1xf32> to vector<32x1xf32>
    %30 = vector.extract_strided_slice %25 {offsets = [0, 0], sizes = [64, 52], strides = [1, 1]} : vector<64x56xf32> to vector<64x52xf32>
    %31 = vector.extract_strided_slice %25 {offsets = [0, 1], sizes = [64, 52], strides = [1, 1]} : vector<64x56xf32> to vector<64x52xf32>
    %32 = vector.extract_strided_slice %25 {offsets = [0, 2], sizes = [64, 52], strides = [1, 1]} : vector<64x56xf32> to vector<64x52xf32>
    %33 = vector.extract_strided_slice %25 {offsets = [0, 3], sizes = [64, 52], strides = [1, 1]} : vector<64x56xf32> to vector<64x52xf32>
    %34 = vector.extract_strided_slice %25 {offsets = [0, 4], sizes = [64, 52], strides = [1, 1]} : vector<64x56xf32> to vector<64x52xf32>
    %35 = tpu.concatenate %30, %31, %32, %33, %34 in 0 : vector<64x52xf32>, vector<64x52xf32>, vector<64x52xf32>, vector<64x52xf32>, vector<64x52xf32> -> vector<320x52xf32>
    %36 = arith.truncf %35 : vector<320x52xf32> to vector<320x52xbf16>
    %cst_22 = arith.constant dense<0.000000e+00> : vector<32x52xf32>
    %37 = tpu.matmul %27, %36, %cst_22 {dimension_numbers = #tpu.dot_dimension_numbers<[1], [0], [0], [1], [0, 0, 1, 1], [], []>} : vector<32x320xbf16>, vector<320x52xbf16>, vector<32x52xf32> -> vector<32x52xf32>
    %38 = vector.broadcast %29 : vector<32x1xf32> to vector<32x52xf32>
    %39 = arith.addf %37, %38 : vector<32x52xf32>
    %40 = vector.extract_strided_slice %39 {offsets = [0, 0], sizes = [32, 51], strides = [1, 1]} : vector<32x52xf32> to vector<32x51xf32>
    %41 = vector.extract_strided_slice %39 {offsets = [0, 1], sizes = [32, 51], strides = [1, 1]} : vector<32x52xf32> to vector<32x51xf32>
    %42 = arith.maximumf %40, %41 : vector<32x51xf32>
    %43 = arith.truncf %42 : vector<32x51xf32> to vector<32x51xbf16>
    %cst_23 = arith.constant dense<0.000000e+00> : vector<32x24xf32>
    %44 = tpu.matmul %43, %1, %cst_23 {dimension_numbers = #tpu.dot_dimension_numbers<[1], [0], [0], [1], [0, 0, 1, 1], [], []>} : vector<32x51xbf16>, vector<51x24xbf16>, vector<32x24xf32> -> vector<32x24xf32>
    %cst_24 = arith.constant 0.000000e+00 : f32
    %45 = vector.broadcast %cst_24 : f32 to vector<32x24xf32>
    %46 = arith.maximumf %44, %45 : vector<32x24xf32>
    %c0_25 = arith.constant 0 : index
    %c0_26 = arith.constant 0 : index
    %c0_27 = arith.constant 0 : index
    %47 = vector.load %arg8[%c0_25, %c0_26, %c0_27] : memref<4x32x160xbf16, #tpu.memory_space<vmem>>, vector<1x32x160xbf16>
    %48 = vector.shape_cast %47 : vector<1x32x160xbf16> to vector<32x160xbf16>
    %c0_28 = arith.constant 0 : index
    %c0_29 = arith.constant 0 : index
    %c0_30 = arith.constant 0 : index
    %49 = vector.load %arg9[%c0_28, %c0_29, %c0_30] : memref<4x32x1xf32, #tpu.memory_space<vmem>>, vector<1x32x1xf32>
    %50 = vector.shape_cast %49 : vector<1x32x1xf32> to vector<32x1xf32>
    %51 = vector.extract_strided_slice %46 {offsets = [0, 0], sizes = [32, 20], strides = [1, 1]} : vector<32x24xf32> to vector<32x20xf32>
    %52 = vector.extract_strided_slice %46 {offsets = [0, 1], sizes = [32, 20], strides = [1, 1]} : vector<32x24xf32> to vector<32x20xf32>
    %53 = vector.extract_strided_slice %46 {offsets = [0, 2], sizes = [32, 20], strides = [1, 1]} : vector<32x24xf32> to vector<32x20xf32>
    %54 = vector.extract_strided_slice %46 {offsets = [0, 3], sizes = [32, 20], strides = [1, 1]} : vector<32x24xf32> to vector<32x20xf32>
    %55 = vector.extract_strided_slice %46 {offsets = [0, 4], sizes = [32, 20], strides = [1, 1]} : vector<32x24xf32> to vector<32x20xf32>
    %56 = tpu.concatenate %51, %52, %53, %54, %55 in 0 : vector<32x20xf32>, vector<32x20xf32>, vector<32x20xf32>, vector<32x20xf32>, vector<32x20xf32> -> vector<160x20xf32>
    %57 = arith.truncf %56 : vector<160x20xf32> to vector<160x20xbf16>
    %cst_31 = arith.constant dense<0.000000e+00> : vector<32x20xf32>
    %58 = tpu.matmul %48, %57, %cst_31 {dimension_numbers = #tpu.dot_dimension_numbers<[1], [0], [0], [1], [0, 0, 1, 1], [], []>} : vector<32x160xbf16>, vector<160x20xbf16>, vector<32x20xf32> -> vector<32x20xf32>
    %59 = vector.broadcast %50 : vector<32x1xf32> to vector<32x20xf32>
    %60 = arith.addf %58, %59 : vector<32x20xf32>
    %61 = vector.extract_strided_slice %60 {offsets = [0, 0], sizes = [32, 19], strides = [1, 1]} : vector<32x20xf32> to vector<32x19xf32>
    %62 = vector.extract_strided_slice %60 {offsets = [0, 1], sizes = [32, 19], strides = [1, 1]} : vector<32x20xf32> to vector<32x19xf32>
    %63 = arith.maximumf %61, %62 : vector<32x19xf32>
    %64 = arith.truncf %63 : vector<32x19xf32> to vector<32x19xbf16>
    %cst_32 = arith.constant dense<0.000000e+00> : vector<32x8xf32>
    %65 = tpu.matmul %64, %2, %cst_32 {dimension_numbers = #tpu.dot_dimension_numbers<[1], [0], [0], [1], [0, 0, 1, 1], [], []>} : vector<32x19xbf16>, vector<19x8xbf16>, vector<32x8xf32> -> vector<32x8xf32>
    %cst_33 = arith.constant 0.000000e+00 : f32
    %66 = vector.broadcast %cst_33 : f32 to vector<32x8xf32>
    %67 = arith.maximumf %65, %66 : vector<32x8xf32>
    %68 = tpu.transpose %67, [1, 0] : vector<32x8xf32> -> vector<8x32xf32>
    %c0_34 = arith.constant 0 : index
    %c0_35 = arith.constant 0 : index
    %c0_36 = arith.constant 0 : index
    %69 = vector.load %arg10[%c0_34, %c0_35, %c0_36] : memref<4x128x128xbf16, #tpu.memory_space<vmem>>, vector<1x128x128xbf16>
    %70 = vector.shape_cast %69 : vector<1x128x128xbf16> to vector<128x128xbf16>
    %71 = vector.extract_strided_slice %68 {offsets = [0, 0], sizes = [1, 32], strides = [1, 1]} : vector<8x32xf32> to vector<1x32xf32>
    %72 = vector.extract_strided_slice %68 {offsets = [4, 0], sizes = [1, 32], strides = [1, 1]} : vector<8x32xf32> to vector<1x32xf32>
    %73 = tpu.concatenate %71, %72 in 0 : vector<1x32xf32>, vector<1x32xf32> -> vector<2x32xf32>
    %74 = arith.truncf %73 : vector<2x32xf32> to vector<2x32xbf16>
    %75 = vector.extract_strided_slice %70 {offsets = [0, 0], sizes = [32, 128], strides = [1, 1]} : vector<128x128xbf16> to vector<32x128xbf16>
    %cst_37 = arith.constant dense<0.000000e+00> : vector<2x128xf32>
    %76 = tpu.matmul %74, %75, %cst_37 {dimension_numbers = #tpu.dot_dimension_numbers<[1], [0], [0], [1], [0, 0, 1, 1], [], []>} : vector<2x32xbf16>, vector<32x128xbf16>, vector<2x128xf32> -> vector<2x128xf32>
    %77 = vector.extract_strided_slice %68 {offsets = [1, 0], sizes = [1, 32], strides = [1, 1]} : vector<8x32xf32> to vector<1x32xf32>
    %78 = vector.extract_strided_slice %68 {offsets = [5, 0], sizes = [1, 32], strides = [1, 1]} : vector<8x32xf32> to vector<1x32xf32>
    %79 = tpu.concatenate %77, %78 in 0 : vector<1x32xf32>, vector<1x32xf32> -> vector<2x32xf32>
    %80 = arith.truncf %79 : vector<2x32xf32> to vector<2x32xbf16>
    %81 = vector.extract_strided_slice %70 {offsets = [32, 0], sizes = [32, 128], strides = [1, 1]} : vector<128x128xbf16> to vector<32x128xbf16>
    %cst_38 = arith.constant dense<0.000000e+00> : vector<2x128xf32>
    %82 = tpu.matmul %80, %81, %cst_38 {dimension_numbers = #tpu.dot_dimension_numbers<[1], [0], [0], [1], [0, 0, 1, 1], [], []>} : vector<2x32xbf16>, vector<32x128xbf16>, vector<2x128xf32> -> vector<2x128xf32>
    %83 = arith.addf %76, %82 : vector<2x128xf32>
    %84 = vector.extract_strided_slice %68 {offsets = [2, 0], sizes = [1, 32], strides = [1, 1]} : vector<8x32xf32> to vector<1x32xf32>
    %85 = vector.extract_strided_slice %68 {offsets = [6, 0], sizes = [1, 32], strides = [1, 1]} : vector<8x32xf32> to vector<1x32xf32>
    %86 = tpu.concatenate %84, %85 in 0 : vector<1x32xf32>, vector<1x32xf32> -> vector<2x32xf32>
    %87 = arith.truncf %86 : vector<2x32xf32> to vector<2x32xbf16>
    %88 = vector.extract_strided_slice %70 {offsets = [64, 0], sizes = [32, 128], strides = [1, 1]} : vector<128x128xbf16> to vector<32x128xbf16>
    %cst_39 = arith.constant dense<0.000000e+00> : vector<2x128xf32>
    %89 = tpu.matmul %87, %88, %cst_39 {dimension_numbers = #tpu.dot_dimension_numbers<[1], [0], [0], [1], [0, 0, 1, 1], [], []>} : vector<2x32xbf16>, vector<32x128xbf16>, vector<2x128xf32> -> vector<2x128xf32>
    %90 = arith.addf %83, %89 : vector<2x128xf32>
    %91 = vector.extract_strided_slice %68 {offsets = [3, 0], sizes = [1, 32], strides = [1, 1]} : vector<8x32xf32> to vector<1x32xf32>
    %92 = vector.extract_strided_slice %68 {offsets = [7, 0], sizes = [1, 32], strides = [1, 1]} : vector<8x32xf32> to vector<1x32xf32>
    %93 = tpu.concatenate %91, %92 in 0 : vector<1x32xf32>, vector<1x32xf32> -> vector<2x32xf32>
    %94 = arith.truncf %93 : vector<2x32xf32> to vector<2x32xbf16>
    %95 = vector.extract_strided_slice %70 {offsets = [96, 0], sizes = [32, 128], strides = [1, 1]} : vector<128x128xbf16> to vector<32x128xbf16>
    %cst_40 = arith.constant dense<0.000000e+00> : vector<2x128xf32>
    %96 = tpu.matmul %94, %95, %cst_40 {dimension_numbers = #tpu.dot_dimension_numbers<[1], [0], [0], [1], [0, 0, 1, 1], [], []>} : vector<2x32xbf16>, vector<32x128xbf16>, vector<2x128xf32> -> vector<2x128xf32>
    %97 = arith.addf %90, %96 : vector<2x128xf32>
    %c0_41 = arith.constant 0 : index
    %c0_42 = arith.constant 0 : index
    %c0_43 = arith.constant 0 : index
    %98 = vector.load %arg11[%c0_41, %c0_42, %c0_43] : memref<4x1x128xf32, #tpu.memory_space<vmem>>, vector<1x1x128xf32>
    %99 = vector.shape_cast %98 : vector<1x1x128xf32> to vector<1x128xf32>
    %100 = vector.broadcast %99 : vector<1x128xf32> to vector<2x128xf32>
    %101 = arith.addf %97, %100 : vector<2x128xf32>
    %cst_44 = arith.constant 0.000000e+00 : f32
    %102 = vector.broadcast %cst_44 : f32 to vector<2x128xf32>
    %103 = arith.maximumf %101, %102 : vector<2x128xf32>
    %104 = arith.truncf %103 : vector<2x128xf32> to vector<2x128xbf16>
    %c0_45 = arith.constant 0 : index
    %c0_46 = arith.constant 0 : index
    %c0_47 = arith.constant 0 : index
    %105 = vector.load %arg12[%c0_45, %c0_46, %c0_47] : memref<4x128x128xbf16, #tpu.memory_space<vmem>>, vector<1x128x128xbf16>
    %106 = vector.shape_cast %105 : vector<1x128x128xbf16> to vector<128x128xbf16>
    %cst_48 = arith.constant dense<0.000000e+00> : vector<2x128xf32>
    %107 = tpu.matmul %104, %106, %cst_48 {dimension_numbers = #tpu.dot_dimension_numbers<[1], [0], [0], [1], [0, 0, 1, 1], [], []>} : vector<2x128xbf16>, vector<128x128xbf16>, vector<2x128xf32> -> vector<2x128xf32>
    %c0_49 = arith.constant 0 : index
    %c0_50 = arith.constant 0 : index
    %c0_51 = arith.constant 0 : index
    %108 = vector.load %arg13[%c0_49, %c0_50, %c0_51] : memref<4x1x128xf32, #tpu.memory_space<vmem>>, vector<1x1x128xf32>
    %109 = vector.shape_cast %108 : vector<1x1x128xf32> to vector<1x128xf32>
    %110 = vector.broadcast %109 : vector<1x128xf32> to vector<2x128xf32>
    %111 = arith.addf %107, %110 : vector<2x128xf32>
    %112 = arith.truncf %111 : vector<2x128xf32> to vector<2x128xbf16>
    %c0_52 = arith.constant 0 : index
    %c0_53 = arith.constant 0 : index
    %c0_54 = arith.constant 0 : index
    %113 = vector.load %arg14[%c0_52, %c0_53, %c0_54] : memref<4x128x128xbf16, #tpu.memory_space<vmem>>, vector<1x128x128xbf16>
    %114 = vector.shape_cast %113 : vector<1x128x128xbf16> to vector<128x128xbf16>
    %cst_55 = arith.constant dense<0.000000e+00> : vector<2x128xf32>
    %115 = tpu.matmul %112, %114, %cst_55 {dimension_numbers = #tpu.dot_dimension_numbers<[1], [0], [0], [1], [0, 0, 1, 1], [], []>} : vector<2x128xbf16>, vector<128x128xbf16>, vector<2x128xf32> -> vector<2x128xf32>
    %c0_56 = arith.constant 0 : index
    %c0_57 = arith.constant 0 : index
    %c0_58 = arith.constant 0 : index
    %116 = vector.load %arg15[%c0_56, %c0_57, %c0_58] : memref<4x1x128xf32, #tpu.memory_space<vmem>>, vector<1x1x128xf32>
    %117 = vector.shape_cast %116 : vector<1x1x128xf32> to vector<1x128xf32>
    %118 = vector.broadcast %117 : vector<1x128xf32> to vector<2x128xf32>
    %119 = arith.addf %115, %118 : vector<2x128xf32>
    %120 = arith.addf %119, %103 : vector<2x128xf32>
    %c1 = arith.constant 1 : index
    %c0_59 = arith.constant 0 : index
    %c0_60 = arith.constant 0 : index
    %121 = vector.load %arg0[%c1, %c0_59, %c0_60] : memref<3x24x120xf32, #tpu.memory_space<vmem>>, vector<1x24x120xf32>
    %122 = vector.shape_cast %121 : vector<1x24x120xf32> to vector<24x120xf32>
    %c1_61 = arith.constant 1 : index
    %c0_62 = arith.constant 0 : index
    %c0_63 = arith.constant 0 : index
    %123 = vector.load %arg2[%c1_61, %c0_62, %c0_63] : memref<3x64x120xbf16, #tpu.memory_space<vmem>>, vector<1x64x120xbf16>
    %124 = vector.shape_cast %123 : vector<1x64x120xbf16> to vector<64x120xbf16>
    %c1_64 = arith.constant 1 : index
    %c0_65 = arith.constant 0 : index
    %c0_66 = arith.constant 0 : index
    %125 = vector.load %arg3[%c1_64, %c0_65, %c0_66] : memref<3x64x1xf32, #tpu.memory_space<vmem>>, vector<1x64x1xf32>
    %126 = vector.shape_cast %125 : vector<1x64x1xf32> to vector<64x1xf32>
    %127 = vector.extract_strided_slice %122 {offsets = [0, 0], sizes = [24, 116], strides = [1, 1]} : vector<24x120xf32> to vector<24x116xf32>
    %128 = vector.extract_strided_slice %122 {offsets = [0, 1], sizes = [24, 116], strides = [1, 1]} : vector<24x120xf32> to vector<24x116xf32>
    %129 = vector.extract_strided_slice %122 {offsets = [0, 2], sizes = [24, 116], strides = [1, 1]} : vector<24x120xf32> to vector<24x116xf32>
    %130 = vector.extract_strided_slice %122 {offsets = [0, 3], sizes = [24, 116], strides = [1, 1]} : vector<24x120xf32> to vector<24x116xf32>
    %131 = vector.extract_strided_slice %122 {offsets = [0, 4], sizes = [24, 116], strides = [1, 1]} : vector<24x120xf32> to vector<24x116xf32>
    %132 = tpu.concatenate %127, %128, %129, %130, %131 in 0 : vector<24x116xf32>, vector<24x116xf32>, vector<24x116xf32>, vector<24x116xf32>, vector<24x116xf32> -> vector<120x116xf32>
    %133 = arith.truncf %132 : vector<120x116xf32> to vector<120x116xbf16>
    %cst_67 = arith.constant dense<0.000000e+00> : vector<64x116xf32>
    %134 = tpu.matmul %124, %133, %cst_67 {dimension_numbers = #tpu.dot_dimension_numbers<[1], [0], [0], [1], [0, 0, 1, 1], [], []>} : vector<64x120xbf16>, vector<120x116xbf16>, vector<64x116xf32> -> vector<64x116xf32>
    %135 = vector.broadcast %126 : vector<64x1xf32> to vector<64x116xf32>
    %136 = arith.addf %134, %135 : vector<64x116xf32>
    %137 = vector.extract_strided_slice %136 {offsets = [0, 0], sizes = [64, 115], strides = [1, 1]} : vector<64x116xf32> to vector<64x115xf32>
    %138 = vector.extract_strided_slice %136 {offsets = [0, 1], sizes = [64, 115], strides = [1, 1]} : vector<64x116xf32> to vector<64x115xf32>
    %139 = arith.maximumf %137, %138 : vector<64x115xf32>
    %140 = arith.truncf %139 : vector<64x115xf32> to vector<64x115xbf16>
    %cst_68 = arith.constant dense<0.000000e+00> : vector<64x56xf32>
    %141 = tpu.matmul %140, %0, %cst_68 {dimension_numbers = #tpu.dot_dimension_numbers<[1], [0], [0], [1], [0, 0, 1, 1], [], []>} : vector<64x115xbf16>, vector<115x56xbf16>, vector<64x56xf32> -> vector<64x56xf32>
    %cst_69 = arith.constant 0.000000e+00 : f32
    %142 = vector.broadcast %cst_69 : f32 to vector<64x56xf32>
    %143 = arith.maximumf %141, %142 : vector<64x56xf32>
    %c1_70 = arith.constant 1 : index
    %c0_71 = arith.constant 0 : index
    %c0_72 = arith.constant 0 : index
    %144 = vector.load %arg6[%c1_70, %c0_71, %c0_72] : memref<4x32x320xbf16, #tpu.memory_space<vmem>>, vector<1x32x320xbf16>
    %145 = vector.shape_cast %144 : vector<1x32x320xbf16> to vector<32x320xbf16>
    %c1_73 = arith.constant 1 : index
    %c0_74 = arith.constant 0 : index
    %c0_75 = arith.constant 0 : index
    %146 = vector.load %arg7[%c1_73, %c0_74, %c0_75] : memref<4x32x1xf32, #tpu.memory_space<vmem>>, vector<1x32x1xf32>
    %147 = vector.shape_cast %146 : vector<1x32x1xf32> to vector<32x1xf32>
    %148 = vector.extract_strided_slice %143 {offsets = [0, 0], sizes = [64, 52], strides = [1, 1]} : vector<64x56xf32> to vector<64x52xf32>
    %149 = vector.extract_strided_slice %143 {offsets = [0, 1], sizes = [64, 52], strides = [1, 1]} : vector<64x56xf32> to vector<64x52xf32>
    %150 = vector.extract_strided_slice %143 {offsets = [0, 2], sizes = [64, 52], strides = [1, 1]} : vector<64x56xf32> to vector<64x52xf32>
    %151 = vector.extract_strided_slice %143 {offsets = [0, 3], sizes = [64, 52], strides = [1, 1]} : vector<64x56xf32> to vector<64x52xf32>
    %152 = vector.extract_strided_slice %143 {offsets = [0, 4], sizes = [64, 52], strides = [1, 1]} : vector<64x56xf32> to vector<64x52xf32>
    %153 = tpu.concatenate %148, %149, %150, %151, %152 in 0 : vector<64x52xf32>, vector<64x52xf32>, vector<64x52xf32>, vector<64x52xf32>, vector<64x52xf32> -> vector<320x52xf32>
    %154 = arith.truncf %153 : vector<320x52xf32> to vector<320x52xbf16>
    %cst_76 = arith.constant dense<0.000000e+00> : vector<32x52xf32>
    %155 = tpu.matmul %145, %154, %cst_76 {dimension_numbers = #tpu.dot_dimension_numbers<[1], [0], [0], [1], [0, 0, 1, 1], [], []>} : vector<32x320xbf16>, vector<320x52xbf16>, vector<32x52xf32> -> vector<32x52xf32>
    %156 = vector.broadcast %147 : vector<32x1xf32> to vector<32x52xf32>
    %157 = arith.addf %155, %156 : vector<32x52xf32>
    %158 = vector.extract_strided_slice %157 {offsets = [0, 0], sizes = [32, 51], strides = [1, 1]} : vector<32x52xf32> to vector<32x51xf32>
    %159 = vector.extract_strided_slice %157 {offsets = [0, 1], sizes = [32, 51], strides = [1, 1]} : vector<32x52xf32> to vector<32x51xf32>
    %160 = arith.maximumf %158, %159 : vector<32x51xf32>
    %161 = arith.truncf %160 : vector<32x51xf32> to vector<32x51xbf16>
    %cst_77 = arith.constant dense<0.000000e+00> : vector<32x24xf32>
    %162 = tpu.matmul %161, %1, %cst_77 {dimension_numbers = #tpu.dot_dimension_numbers<[1], [0], [0], [1], [0, 0, 1, 1], [], []>} : vector<32x51xbf16>, vector<51x24xbf16>, vector<32x24xf32> -> vector<32x24xf32>
    %cst_78 = arith.constant 0.000000e+00 : f32
    %163 = vector.broadcast %cst_78 : f32 to vector<32x24xf32>
    %164 = arith.maximumf %162, %163 : vector<32x24xf32>
    %c1_79 = arith.constant 1 : index
    %c0_80 = arith.constant 0 : index
    %c0_81 = arith.constant 0 : index
    %165 = vector.load %arg8[%c1_79, %c0_80, %c0_81] : memref<4x32x160xbf16, #tpu.memory_space<vmem>>, vector<1x32x160xbf16>
    %166 = vector.shape_cast %165 : vector<1x32x160xbf16> to vector<32x160xbf16>
    %c1_82 = arith.constant 1 : index
    %c0_83 = arith.constant 0 : index
    %c0_84 = arith.constant 0 : index
    %167 = vector.load %arg9[%c1_82, %c0_83, %c0_84] : memref<4x32x1xf32, #tpu.memory_space<vmem>>, vector<1x32x1xf32>
    %168 = vector.shape_cast %167 : vector<1x32x1xf32> to vector<32x1xf32>
    %169 = vector.extract_strided_slice %164 {offsets = [0, 0], sizes = [32, 20], strides = [1, 1]} : vector<32x24xf32> to vector<32x20xf32>
    %170 = vector.extract_strided_slice %164 {offsets = [0, 1], sizes = [32, 20], strides = [1, 1]} : vector<32x24xf32> to vector<32x20xf32>
    %171 = vector.extract_strided_slice %164 {offsets = [0, 2], sizes = [32, 20], strides = [1, 1]} : vector<32x24xf32> to vector<32x20xf32>
    %172 = vector.extract_strided_slice %164 {offsets = [0, 3], sizes = [32, 20], strides = [1, 1]} : vector<32x24xf32> to vector<32x20xf32>
    %173 = vector.extract_strided_slice %164 {offsets = [0, 4], sizes = [32, 20], strides = [1, 1]} : vector<32x24xf32> to vector<32x20xf32>
    %174 = tpu.concatenate %169, %170, %171, %172, %173 in 0 : vector<32x20xf32>, vector<32x20xf32>, vector<32x20xf32>, vector<32x20xf32>, vector<32x20xf32> -> vector<160x20xf32>
    %175 = arith.truncf %174 : vector<160x20xf32> to vector<160x20xbf16>
    %cst_85 = arith.constant dense<0.000000e+00> : vector<32x20xf32>
    %176 = tpu.matmul %166, %175, %cst_85 {dimension_numbers = #tpu.dot_dimension_numbers<[1], [0], [0], [1], [0, 0, 1, 1], [], []>} : vector<32x160xbf16>, vector<160x20xbf16>, vector<32x20xf32> -> vector<32x20xf32>
    %177 = vector.broadcast %168 : vector<32x1xf32> to vector<32x20xf32>
    %178 = arith.addf %176, %177 : vector<32x20xf32>
    %179 = vector.extract_strided_slice %178 {offsets = [0, 0], sizes = [32, 19], strides = [1, 1]} : vector<32x20xf32> to vector<32x19xf32>
    %180 = vector.extract_strided_slice %178 {offsets = [0, 1], sizes = [32, 19], strides = [1, 1]} : vector<32x20xf32> to vector<32x19xf32>
    %181 = arith.maximumf %179, %180 : vector<32x19xf32>
    %182 = arith.truncf %181 : vector<32x19xf32> to vector<32x19xbf16>
    %cst_86 = arith.constant dense<0.000000e+00> : vector<32x8xf32>
    %183 = tpu.matmul %182, %2, %cst_86 {dimension_numbers = #tpu.dot_dimension_numbers<[1], [0], [0], [1], [0, 0, 1, 1], [], []>} : vector<32x19xbf16>, vector<19x8xbf16>, vector<32x8xf32> -> vector<32x8xf32>
    %cst_87 = arith.constant 0.000000e+00 : f32
    %184 = vector.broadcast %cst_87 : f32 to vector<32x8xf32>
    %185 = arith.maximumf %183, %184 : vector<32x8xf32>
    %186 = tpu.transpose %185, [1, 0] : vector<32x8xf32> -> vector<8x32xf32>
    %c1_88 = arith.constant 1 : index
    %c0_89 = arith.constant 0 : index
    %c0_90 = arith.constant 0 : index
    %187 = vector.load %arg10[%c1_88, %c0_89, %c0_90] : memref<4x128x128xbf16, #tpu.memory_space<vmem>>, vector<1x128x128xbf16>
    %188 = vector.shape_cast %187 : vector<1x128x128xbf16> to vector<128x128xbf16>
    %189 = vector.extract_strided_slice %186 {offsets = [0, 0], sizes = [1, 32], strides = [1, 1]} : vector<8x32xf32> to vector<1x32xf32>
    %190 = vector.extract_strided_slice %186 {offsets = [4, 0], sizes = [1, 32], strides = [1, 1]} : vector<8x32xf32> to vector<1x32xf32>
    %191 = tpu.concatenate %189, %190 in 0 : vector<1x32xf32>, vector<1x32xf32> -> vector<2x32xf32>
    %192 = arith.truncf %191 : vector<2x32xf32> to vector<2x32xbf16>
    %193 = vector.extract_strided_slice %188 {offsets = [0, 0], sizes = [32, 128], strides = [1, 1]} : vector<128x128xbf16> to vector<32x128xbf16>
    %cst_91 = arith.constant dense<0.000000e+00> : vector<2x128xf32>
    %194 = tpu.matmul %192, %193, %cst_91 {dimension_numbers = #tpu.dot_dimension_numbers<[1], [0], [0], [1], [0, 0, 1, 1], [], []>} : vector<2x32xbf16>, vector<32x128xbf16>, vector<2x128xf32> -> vector<2x128xf32>
    %195 = vector.extract_strided_slice %186 {offsets = [1, 0], sizes = [1, 32], strides = [1, 1]} : vector<8x32xf32> to vector<1x32xf32>
    %196 = vector.extract_strided_slice %186 {offsets = [5, 0], sizes = [1, 32], strides = [1, 1]} : vector<8x32xf32> to vector<1x32xf32>
    %197 = tpu.concatenate %195, %196 in 0 : vector<1x32xf32>, vector<1x32xf32> -> vector<2x32xf32>
    %198 = arith.truncf %197 : vector<2x32xf32> to vector<2x32xbf16>
    %199 = vector.extract_strided_slice %188 {offsets = [32, 0], sizes = [32, 128], strides = [1, 1]} : vector<128x128xbf16> to vector<32x128xbf16>
    %cst_92 = arith.constant dense<0.000000e+00> : vector<2x128xf32>
    %200 = tpu.matmul %198, %199, %cst_92 {dimension_numbers = #tpu.dot_dimension_numbers<[1], [0], [0], [1], [0, 0, 1, 1], [], []>} : vector<2x32xbf16>, vector<32x128xbf16>, vector<2x128xf32> -> vector<2x128xf32>
    %201 = arith.addf %194, %200 : vector<2x128xf32>
    %202 = vector.extract_strided_slice %186 {offsets = [2, 0], sizes = [1, 32], strides = [1, 1]} : vector<8x32xf32> to vector<1x32xf32>
    %203 = vector.extract_strided_slice %186 {offsets = [6, 0], sizes = [1, 32], strides = [1, 1]} : vector<8x32xf32> to vector<1x32xf32>
    %204 = tpu.concatenate %202, %203 in 0 : vector<1x32xf32>, vector<1x32xf32> -> vector<2x32xf32>
    %205 = arith.truncf %204 : vector<2x32xf32> to vector<2x32xbf16>
    %206 = vector.extract_strided_slice %188 {offsets = [64, 0], sizes = [32, 128], strides = [1, 1]} : vector<128x128xbf16> to vector<32x128xbf16>
    %cst_93 = arith.constant dense<0.000000e+00> : vector<2x128xf32>
    %207 = tpu.matmul %205, %206, %cst_93 {dimension_numbers = #tpu.dot_dimension_numbers<[1], [0], [0], [1], [0, 0, 1, 1], [], []>} : vector<2x32xbf16>, vector<32x128xbf16>, vector<2x128xf32> -> vector<2x128xf32>
    %208 = arith.addf %201, %207 : vector<2x128xf32>
    %209 = vector.extract_strided_slice %186 {offsets = [3, 0], sizes = [1, 32], strides = [1, 1]} : vector<8x32xf32> to vector<1x32xf32>
    %210 = vector.extract_strided_slice %186 {offsets = [7, 0], sizes = [1, 32], strides = [1, 1]} : vector<8x32xf32> to vector<1x32xf32>
    %211 = tpu.concatenate %209, %210 in 0 : vector<1x32xf32>, vector<1x32xf32> -> vector<2x32xf32>
    %212 = arith.truncf %211 : vector<2x32xf32> to vector<2x32xbf16>
    %213 = vector.extract_strided_slice %188 {offsets = [96, 0], sizes = [32, 128], strides = [1, 1]} : vector<128x128xbf16> to vector<32x128xbf16>
    %cst_94 = arith.constant dense<0.000000e+00> : vector<2x128xf32>
    %214 = tpu.matmul %212, %213, %cst_94 {dimension_numbers = #tpu.dot_dimension_numbers<[1], [0], [0], [1], [0, 0, 1, 1], [], []>} : vector<2x32xbf16>, vector<32x128xbf16>, vector<2x128xf32> -> vector<2x128xf32>
    %215 = arith.addf %208, %214 : vector<2x128xf32>
    %c1_95 = arith.constant 1 : index
    %c0_96 = arith.constant 0 : index
    %c0_97 = arith.constant 0 : index
    %216 = vector.load %arg11[%c1_95, %c0_96, %c0_97] : memref<4x1x128xf32, #tpu.memory_space<vmem>>, vector<1x1x128xf32>
    %217 = vector.shape_cast %216 : vector<1x1x128xf32> to vector<1x128xf32>
    %218 = vector.broadcast %217 : vector<1x128xf32> to vector<2x128xf32>
    %219 = arith.addf %215, %218 : vector<2x128xf32>
    %cst_98 = arith.constant 0.000000e+00 : f32
    %220 = vector.broadcast %cst_98 : f32 to vector<2x128xf32>
    %221 = arith.maximumf %219, %220 : vector<2x128xf32>
    %222 = arith.truncf %221 : vector<2x128xf32> to vector<2x128xbf16>
    %c1_99 = arith.constant 1 : index
    %c0_100 = arith.constant 0 : index
    %c0_101 = arith.constant 0 : index
    %223 = vector.load %arg12[%c1_99, %c0_100, %c0_101] : memref<4x128x128xbf16, #tpu.memory_space<vmem>>, vector<1x128x128xbf16>
    %224 = vector.shape_cast %223 : vector<1x128x128xbf16> to vector<128x128xbf16>
    %cst_102 = arith.constant dense<0.000000e+00> : vector<2x128xf32>
    %225 = tpu.matmul %222, %224, %cst_102 {dimension_numbers = #tpu.dot_dimension_numbers<[1], [0], [0], [1], [0, 0, 1, 1], [], []>} : vector<2x128xbf16>, vector<128x128xbf16>, vector<2x128xf32> -> vector<2x128xf32>
    %c1_103 = arith.constant 1 : index
    %c0_104 = arith.constant 0 : index
    %c0_105 = arith.constant 0 : index
    %226 = vector.load %arg13[%c1_103, %c0_104, %c0_105] : memref<4x1x128xf32, #tpu.memory_space<vmem>>, vector<1x1x128xf32>
    %227 = vector.shape_cast %226 : vector<1x1x128xf32> to vector<1x128xf32>
    %228 = vector.broadcast %227 : vector<1x128xf32> to vector<2x128xf32>
    %229 = arith.addf %225, %228 : vector<2x128xf32>
    %230 = arith.truncf %229 : vector<2x128xf32> to vector<2x128xbf16>
    %c1_106 = arith.constant 1 : index
    %c0_107 = arith.constant 0 : index
    %c0_108 = arith.constant 0 : index
    %231 = vector.load %arg14[%c1_106, %c0_107, %c0_108] : memref<4x128x128xbf16, #tpu.memory_space<vmem>>, vector<1x128x128xbf16>
    %232 = vector.shape_cast %231 : vector<1x128x128xbf16> to vector<128x128xbf16>
    %cst_109 = arith.constant dense<0.000000e+00> : vector<2x128xf32>
    %233 = tpu.matmul %230, %232, %cst_109 {dimension_numbers = #tpu.dot_dimension_numbers<[1], [0], [0], [1], [0, 0, 1, 1], [], []>} : vector<2x128xbf16>, vector<128x128xbf16>, vector<2x128xf32> -> vector<2x128xf32>
    %c1_110 = arith.constant 1 : index
    %c0_111 = arith.constant 0 : index
    %c0_112 = arith.constant 0 : index
    %234 = vector.load %arg15[%c1_110, %c0_111, %c0_112] : memref<4x1x128xf32, #tpu.memory_space<vmem>>, vector<1x1x128xf32>
    %235 = vector.shape_cast %234 : vector<1x1x128xf32> to vector<1x128xf32>
    %236 = vector.broadcast %235 : vector<1x128xf32> to vector<2x128xf32>
    %237 = arith.addf %233, %236 : vector<2x128xf32>
    %238 = arith.addf %237, %221 : vector<2x128xf32>
    %c2 = arith.constant 2 : index
    %c0_113 = arith.constant 0 : index
    %c0_114 = arith.constant 0 : index
    %239 = vector.load %arg0[%c2, %c0_113, %c0_114] : memref<3x24x120xf32, #tpu.memory_space<vmem>>, vector<1x24x120xf32>
    %240 = vector.shape_cast %239 : vector<1x24x120xf32> to vector<24x120xf32>
    %c2_115 = arith.constant 2 : index
    %c0_116 = arith.constant 0 : index
    %c0_117 = arith.constant 0 : index
    %241 = vector.load %arg2[%c2_115, %c0_116, %c0_117] : memref<3x64x120xbf16, #tpu.memory_space<vmem>>, vector<1x64x120xbf16>
    %242 = vector.shape_cast %241 : vector<1x64x120xbf16> to vector<64x120xbf16>
    %c2_118 = arith.constant 2 : index
    %c0_119 = arith.constant 0 : index
    %c0_120 = arith.constant 0 : index
    %243 = vector.load %arg3[%c2_118, %c0_119, %c0_120] : memref<3x64x1xf32, #tpu.memory_space<vmem>>, vector<1x64x1xf32>
    %244 = vector.shape_cast %243 : vector<1x64x1xf32> to vector<64x1xf32>
    %245 = vector.extract_strided_slice %240 {offsets = [0, 0], sizes = [24, 116], strides = [1, 1]} : vector<24x120xf32> to vector<24x116xf32>
    %246 = vector.extract_strided_slice %240 {offsets = [0, 1], sizes = [24, 116], strides = [1, 1]} : vector<24x120xf32> to vector<24x116xf32>
    %247 = vector.extract_strided_slice %240 {offsets = [0, 2], sizes = [24, 116], strides = [1, 1]} : vector<24x120xf32> to vector<24x116xf32>
    %248 = vector.extract_strided_slice %240 {offsets = [0, 3], sizes = [24, 116], strides = [1, 1]} : vector<24x120xf32> to vector<24x116xf32>
    %249 = vector.extract_strided_slice %240 {offsets = [0, 4], sizes = [24, 116], strides = [1, 1]} : vector<24x120xf32> to vector<24x116xf32>
    %250 = tpu.concatenate %245, %246, %247, %248, %249 in 0 : vector<24x116xf32>, vector<24x116xf32>, vector<24x116xf32>, vector<24x116xf32>, vector<24x116xf32> -> vector<120x116xf32>
    %251 = arith.truncf %250 : vector<120x116xf32> to vector<120x116xbf16>
    %cst_121 = arith.constant dense<0.000000e+00> : vector<64x116xf32>
    %252 = tpu.matmul %242, %251, %cst_121 {dimension_numbers = #tpu.dot_dimension_numbers<[1], [0], [0], [1], [0, 0, 1, 1], [], []>} : vector<64x120xbf16>, vector<120x116xbf16>, vector<64x116xf32> -> vector<64x116xf32>
    %253 = vector.broadcast %244 : vector<64x1xf32> to vector<64x116xf32>
    %254 = arith.addf %252, %253 : vector<64x116xf32>
    %255 = vector.extract_strided_slice %254 {offsets = [0, 0], sizes = [64, 115], strides = [1, 1]} : vector<64x116xf32> to vector<64x115xf32>
    %256 = vector.extract_strided_slice %254 {offsets = [0, 1], sizes = [64, 115], strides = [1, 1]} : vector<64x116xf32> to vector<64x115xf32>
    %257 = arith.maximumf %255, %256 : vector<64x115xf32>
    %258 = arith.truncf %257 : vector<64x115xf32> to vector<64x115xbf16>
    %cst_122 = arith.constant dense<0.000000e+00> : vector<64x56xf32>
    %259 = tpu.matmul %258, %0, %cst_122 {dimension_numbers = #tpu.dot_dimension_numbers<[1], [0], [0], [1], [0, 0, 1, 1], [], []>} : vector<64x115xbf16>, vector<115x56xbf16>, vector<64x56xf32> -> vector<64x56xf32>
    %cst_123 = arith.constant 0.000000e+00 : f32
    %260 = vector.broadcast %cst_123 : f32 to vector<64x56xf32>
    %261 = arith.maximumf %259, %260 : vector<64x56xf32>
    %c2_124 = arith.constant 2 : index
    %c0_125 = arith.constant 0 : index
    %c0_126 = arith.constant 0 : index
    %262 = vector.load %arg6[%c2_124, %c0_125, %c0_126] : memref<4x32x320xbf16, #tpu.memory_space<vmem>>, vector<1x32x320xbf16>
    %263 = vector.shape_cast %262 : vector<1x32x320xbf16> to vector<32x320xbf16>
    %c2_127 = arith.constant 2 : index
    %c0_128 = arith.constant 0 : index
    %c0_129 = arith.constant 0 : index
    %264 = vector.load %arg7[%c2_127, %c0_128, %c0_129] : memref<4x32x1xf32, #tpu.memory_space<vmem>>, vector<1x32x1xf32>
    %265 = vector.shape_cast %264 : vector<1x32x1xf32> to vector<32x1xf32>
    %266 = vector.extract_strided_slice %261 {offsets = [0, 0], sizes = [64, 52], strides = [1, 1]} : vector<64x56xf32> to vector<64x52xf32>
    %267 = vector.extract_strided_slice %261 {offsets = [0, 1], sizes = [64, 52], strides = [1, 1]} : vector<64x56xf32> to vector<64x52xf32>
    %268 = vector.extract_strided_slice %261 {offsets = [0, 2], sizes = [64, 52], strides = [1, 1]} : vector<64x56xf32> to vector<64x52xf32>
    %269 = vector.extract_strided_slice %261 {offsets = [0, 3], sizes = [64, 52], strides = [1, 1]} : vector<64x56xf32> to vector<64x52xf32>
    %270 = vector.extract_strided_slice %261 {offsets = [0, 4], sizes = [64, 52], strides = [1, 1]} : vector<64x56xf32> to vector<64x52xf32>
    %271 = tpu.concatenate %266, %267, %268, %269, %270 in 0 : vector<64x52xf32>, vector<64x52xf32>, vector<64x52xf32>, vector<64x52xf32>, vector<64x52xf32> -> vector<320x52xf32>
    %272 = arith.truncf %271 : vector<320x52xf32> to vector<320x52xbf16>
    %cst_130 = arith.constant dense<0.000000e+00> : vector<32x52xf32>
    %273 = tpu.matmul %263, %272, %cst_130 {dimension_numbers = #tpu.dot_dimension_numbers<[1], [0], [0], [1], [0, 0, 1, 1], [], []>} : vector<32x320xbf16>, vector<320x52xbf16>, vector<32x52xf32> -> vector<32x52xf32>
    %274 = vector.broadcast %265 : vector<32x1xf32> to vector<32x52xf32>
    %275 = arith.addf %273, %274 : vector<32x52xf32>
    %276 = vector.extract_strided_slice %275 {offsets = [0, 0], sizes = [32, 51], strides = [1, 1]} : vector<32x52xf32> to vector<32x51xf32>
    %277 = vector.extract_strided_slice %275 {offsets = [0, 1], sizes = [32, 51], strides = [1, 1]} : vector<32x52xf32> to vector<32x51xf32>
    %278 = arith.maximumf %276, %277 : vector<32x51xf32>
    %279 = arith.truncf %278 : vector<32x51xf32> to vector<32x51xbf16>
    %cst_131 = arith.constant dense<0.000000e+00> : vector<32x24xf32>
    %280 = tpu.matmul %279, %1, %cst_131 {dimension_numbers = #tpu.dot_dimension_numbers<[1], [0], [0], [1], [0, 0, 1, 1], [], []>} : vector<32x51xbf16>, vector<51x24xbf16>, vector<32x24xf32> -> vector<32x24xf32>
    %cst_132 = arith.constant 0.000000e+00 : f32
    %281 = vector.broadcast %cst_132 : f32 to vector<32x24xf32>
    %282 = arith.maximumf %280, %281 : vector<32x24xf32>
    %c2_133 = arith.constant 2 : index
    %c0_134 = arith.constant 0 : index
    %c0_135 = arith.constant 0 : index
    %283 = vector.load %arg8[%c2_133, %c0_134, %c0_135] : memref<4x32x160xbf16, #tpu.memory_space<vmem>>, vector<1x32x160xbf16>
    %284 = vector.shape_cast %283 : vector<1x32x160xbf16> to vector<32x160xbf16>
    %c2_136 = arith.constant 2 : index
    %c0_137 = arith.constant 0 : index
    %c0_138 = arith.constant 0 : index
    %285 = vector.load %arg9[%c2_136, %c0_137, %c0_138] : memref<4x32x1xf32, #tpu.memory_space<vmem>>, vector<1x32x1xf32>
    %286 = vector.shape_cast %285 : vector<1x32x1xf32> to vector<32x1xf32>
    %287 = vector.extract_strided_slice %282 {offsets = [0, 0], sizes = [32, 20], strides = [1, 1]} : vector<32x24xf32> to vector<32x20xf32>
    %288 = vector.extract_strided_slice %282 {offsets = [0, 1], sizes = [32, 20], strides = [1, 1]} : vector<32x24xf32> to vector<32x20xf32>
    %289 = vector.extract_strided_slice %282 {offsets = [0, 2], sizes = [32, 20], strides = [1, 1]} : vector<32x24xf32> to vector<32x20xf32>
    %290 = vector.extract_strided_slice %282 {offsets = [0, 3], sizes = [32, 20], strides = [1, 1]} : vector<32x24xf32> to vector<32x20xf32>
    %291 = vector.extract_strided_slice %282 {offsets = [0, 4], sizes = [32, 20], strides = [1, 1]} : vector<32x24xf32> to vector<32x20xf32>
    %292 = tpu.concatenate %287, %288, %289, %290, %291 in 0 : vector<32x20xf32>, vector<32x20xf32>, vector<32x20xf32>, vector<32x20xf32>, vector<32x20xf32> -> vector<160x20xf32>
    %293 = arith.truncf %292 : vector<160x20xf32> to vector<160x20xbf16>
    %cst_139 = arith.constant dense<0.000000e+00> : vector<32x20xf32>
    %294 = tpu.matmul %284, %293, %cst_139 {dimension_numbers = #tpu.dot_dimension_numbers<[1], [0], [0], [1], [0, 0, 1, 1], [], []>} : vector<32x160xbf16>, vector<160x20xbf16>, vector<32x20xf32> -> vector<32x20xf32>
    %295 = vector.broadcast %286 : vector<32x1xf32> to vector<32x20xf32>
    %296 = arith.addf %294, %295 : vector<32x20xf32>
    %297 = vector.extract_strided_slice %296 {offsets = [0, 0], sizes = [32, 19], strides = [1, 1]} : vector<32x20xf32> to vector<32x19xf32>
    %298 = vector.extract_strided_slice %296 {offsets = [0, 1], sizes = [32, 19], strides = [1, 1]} : vector<32x20xf32> to vector<32x19xf32>
    %299 = arith.maximumf %297, %298 : vector<32x19xf32>
    %300 = arith.truncf %299 : vector<32x19xf32> to vector<32x19xbf16>
    %cst_140 = arith.constant dense<0.000000e+00> : vector<32x8xf32>
    %301 = tpu.matmul %300, %2, %cst_140 {dimension_numbers = #tpu.dot_dimension_numbers<[1], [0], [0], [1], [0, 0, 1, 1], [], []>} : vector<32x19xbf16>, vector<19x8xbf16>, vector<32x8xf32> -> vector<32x8xf32>
    %cst_141 = arith.constant 0.000000e+00 : f32
    %302 = vector.broadcast %cst_141 : f32 to vector<32x8xf32>
    %303 = arith.maximumf %301, %302 : vector<32x8xf32>
    %304 = tpu.transpose %303, [1, 0] : vector<32x8xf32> -> vector<8x32xf32>
    %c2_142 = arith.constant 2 : index
    %c0_143 = arith.constant 0 : index
    %c0_144 = arith.constant 0 : index
    %305 = vector.load %arg10[%c2_142, %c0_143, %c0_144] : memref<4x128x128xbf16, #tpu.memory_space<vmem>>, vector<1x128x128xbf16>
    %306 = vector.shape_cast %305 : vector<1x128x128xbf16> to vector<128x128xbf16>
    %307 = vector.extract_strided_slice %304 {offsets = [0, 0], sizes = [1, 32], strides = [1, 1]} : vector<8x32xf32> to vector<1x32xf32>
    %308 = vector.extract_strided_slice %304 {offsets = [4, 0], sizes = [1, 32], strides = [1, 1]} : vector<8x32xf32> to vector<1x32xf32>
    %309 = tpu.concatenate %307, %308 in 0 : vector<1x32xf32>, vector<1x32xf32> -> vector<2x32xf32>
    %310 = arith.truncf %309 : vector<2x32xf32> to vector<2x32xbf16>
    %311 = vector.extract_strided_slice %306 {offsets = [0, 0], sizes = [32, 128], strides = [1, 1]} : vector<128x128xbf16> to vector<32x128xbf16>
    %cst_145 = arith.constant dense<0.000000e+00> : vector<2x128xf32>
    %312 = tpu.matmul %310, %311, %cst_145 {dimension_numbers = #tpu.dot_dimension_numbers<[1], [0], [0], [1], [0, 0, 1, 1], [], []>} : vector<2x32xbf16>, vector<32x128xbf16>, vector<2x128xf32> -> vector<2x128xf32>
    %313 = vector.extract_strided_slice %304 {offsets = [1, 0], sizes = [1, 32], strides = [1, 1]} : vector<8x32xf32> to vector<1x32xf32>
    %314 = vector.extract_strided_slice %304 {offsets = [5, 0], sizes = [1, 32], strides = [1, 1]} : vector<8x32xf32> to vector<1x32xf32>
    %315 = tpu.concatenate %313, %314 in 0 : vector<1x32xf32>, vector<1x32xf32> -> vector<2x32xf32>
    %316 = arith.truncf %315 : vector<2x32xf32> to vector<2x32xbf16>
    %317 = vector.extract_strided_slice %306 {offsets = [32, 0], sizes = [32, 128], strides = [1, 1]} : vector<128x128xbf16> to vector<32x128xbf16>
    %cst_146 = arith.constant dense<0.000000e+00> : vector<2x128xf32>
    %318 = tpu.matmul %316, %317, %cst_146 {dimension_numbers = #tpu.dot_dimension_numbers<[1], [0], [0], [1], [0, 0, 1, 1], [], []>} : vector<2x32xbf16>, vector<32x128xbf16>, vector<2x128xf32> -> vector<2x128xf32>
    %319 = arith.addf %312, %318 : vector<2x128xf32>
    %320 = vector.extract_strided_slice %304 {offsets = [2, 0], sizes = [1, 32], strides = [1, 1]} : vector<8x32xf32> to vector<1x32xf32>
    %321 = vector.extract_strided_slice %304 {offsets = [6, 0], sizes = [1, 32], strides = [1, 1]} : vector<8x32xf32> to vector<1x32xf32>
    %322 = tpu.concatenate %320, %321 in 0 : vector<1x32xf32>, vector<1x32xf32> -> vector<2x32xf32>
    %323 = arith.truncf %322 : vector<2x32xf32> to vector<2x32xbf16>
    %324 = vector.extract_strided_slice %306 {offsets = [64, 0], sizes = [32, 128], strides = [1, 1]} : vector<128x128xbf16> to vector<32x128xbf16>
    %cst_147 = arith.constant dense<0.000000e+00> : vector<2x128xf32>
    %325 = tpu.matmul %323, %324, %cst_147 {dimension_numbers = #tpu.dot_dimension_numbers<[1], [0], [0], [1], [0, 0, 1, 1], [], []>} : vector<2x32xbf16>, vector<32x128xbf16>, vector<2x128xf32> -> vector<2x128xf32>
    %326 = arith.addf %319, %325 : vector<2x128xf32>
    %327 = vector.extract_strided_slice %304 {offsets = [3, 0], sizes = [1, 32], strides = [1, 1]} : vector<8x32xf32> to vector<1x32xf32>
    %328 = vector.extract_strided_slice %304 {offsets = [7, 0], sizes = [1, 32], strides = [1, 1]} : vector<8x32xf32> to vector<1x32xf32>
    %329 = tpu.concatenate %327, %328 in 0 : vector<1x32xf32>, vector<1x32xf32> -> vector<2x32xf32>
    %330 = arith.truncf %329 : vector<2x32xf32> to vector<2x32xbf16>
    %331 = vector.extract_strided_slice %306 {offsets = [96, 0], sizes = [32, 128], strides = [1, 1]} : vector<128x128xbf16> to vector<32x128xbf16>
    %cst_148 = arith.constant dense<0.000000e+00> : vector<2x128xf32>
    %332 = tpu.matmul %330, %331, %cst_148 {dimension_numbers = #tpu.dot_dimension_numbers<[1], [0], [0], [1], [0, 0, 1, 1], [], []>} : vector<2x32xbf16>, vector<32x128xbf16>, vector<2x128xf32> -> vector<2x128xf32>
    %333 = arith.addf %326, %332 : vector<2x128xf32>
    %c2_149 = arith.constant 2 : index
    %c0_150 = arith.constant 0 : index
    %c0_151 = arith.constant 0 : index
    %334 = vector.load %arg11[%c2_149, %c0_150, %c0_151] : memref<4x1x128xf32, #tpu.memory_space<vmem>>, vector<1x1x128xf32>
    %335 = vector.shape_cast %334 : vector<1x1x128xf32> to vector<1x128xf32>
    %336 = vector.broadcast %335 : vector<1x128xf32> to vector<2x128xf32>
    %337 = arith.addf %333, %336 : vector<2x128xf32>
    %cst_152 = arith.constant 0.000000e+00 : f32
    %338 = vector.broadcast %cst_152 : f32 to vector<2x128xf32>
    %339 = arith.maximumf %337, %338 : vector<2x128xf32>
    %340 = arith.truncf %339 : vector<2x128xf32> to vector<2x128xbf16>
    %c2_153 = arith.constant 2 : index
    %c0_154 = arith.constant 0 : index
    %c0_155 = arith.constant 0 : index
    %341 = vector.load %arg12[%c2_153, %c0_154, %c0_155] : memref<4x128x128xbf16, #tpu.memory_space<vmem>>, vector<1x128x128xbf16>
    %342 = vector.shape_cast %341 : vector<1x128x128xbf16> to vector<128x128xbf16>
    %cst_156 = arith.constant dense<0.000000e+00> : vector<2x128xf32>
    %343 = tpu.matmul %340, %342, %cst_156 {dimension_numbers = #tpu.dot_dimension_numbers<[1], [0], [0], [1], [0, 0, 1, 1], [], []>} : vector<2x128xbf16>, vector<128x128xbf16>, vector<2x128xf32> -> vector<2x128xf32>
    %c2_157 = arith.constant 2 : index
    %c0_158 = arith.constant 0 : index
    %c0_159 = arith.constant 0 : index
    %344 = vector.load %arg13[%c2_157, %c0_158, %c0_159] : memref<4x1x128xf32, #tpu.memory_space<vmem>>, vector<1x1x128xf32>
    %345 = vector.shape_cast %344 : vector<1x1x128xf32> to vector<1x128xf32>
    %346 = vector.broadcast %345 : vector<1x128xf32> to vector<2x128xf32>
    %347 = arith.addf %343, %346 : vector<2x128xf32>
    %348 = arith.truncf %347 : vector<2x128xf32> to vector<2x128xbf16>
    %c2_160 = arith.constant 2 : index
    %c0_161 = arith.constant 0 : index
    %c0_162 = arith.constant 0 : index
    %349 = vector.load %arg14[%c2_160, %c0_161, %c0_162] : memref<4x128x128xbf16, #tpu.memory_space<vmem>>, vector<1x128x128xbf16>
    %350 = vector.shape_cast %349 : vector<1x128x128xbf16> to vector<128x128xbf16>
    %cst_163 = arith.constant dense<0.000000e+00> : vector<2x128xf32>
    %351 = tpu.matmul %348, %350, %cst_163 {dimension_numbers = #tpu.dot_dimension_numbers<[1], [0], [0], [1], [0, 0, 1, 1], [], []>} : vector<2x128xbf16>, vector<128x128xbf16>, vector<2x128xf32> -> vector<2x128xf32>
    %c2_164 = arith.constant 2 : index
    %c0_165 = arith.constant 0 : index
    %c0_166 = arith.constant 0 : index
    %352 = vector.load %arg15[%c2_164, %c0_165, %c0_166] : memref<4x1x128xf32, #tpu.memory_space<vmem>>, vector<1x1x128xf32>
    %353 = vector.shape_cast %352 : vector<1x1x128xf32> to vector<1x128xf32>
    %354 = vector.broadcast %353 : vector<1x128xf32> to vector<2x128xf32>
    %355 = arith.addf %351, %354 : vector<2x128xf32>
    %356 = arith.addf %355, %339 : vector<2x128xf32>
    %c0_167 = arith.constant 0 : index
    %c0_168 = arith.constant 0 : index
    %357 = vector.load %arg1[%c0_167, %c0_168] : memref<120x120xf32, #tpu.memory_space<vmem>>, vector<120x120xf32>
    %c0_169 = arith.constant 0 : index
    %c0_170 = arith.constant 0 : index
    %c0_171 = arith.constant 0 : index
    %358 = vector.load %arg4[%c0_169, %c0_170, %c0_171] : memref<5x64x120xbf16, #tpu.memory_space<vmem>>, vector<1x64x120xbf16>
    %359 = vector.shape_cast %358 : vector<1x64x120xbf16> to vector<64x120xbf16>
    %360 = vector.extract_strided_slice %357 {offsets = [0, 0], sizes = [120, 116], strides = [1, 1]} : vector<120x120xf32> to vector<120x116xf32>
    %361 = arith.truncf %360 : vector<120x116xf32> to vector<120x116xbf16>
    %cst_172 = arith.constant dense<0.000000e+00> : vector<64x116xf32>
    %362 = tpu.matmul %359, %361, %cst_172 {dimension_numbers = #tpu.dot_dimension_numbers<[1], [0], [0], [1], [0, 0, 1, 1], [], []>} : vector<64x120xbf16>, vector<120x116xbf16>, vector<64x116xf32> -> vector<64x116xf32>
    %c1_173 = arith.constant 1 : index
    %c0_174 = arith.constant 0 : index
    %c0_175 = arith.constant 0 : index
    %363 = vector.load %arg4[%c1_173, %c0_174, %c0_175] : memref<5x64x120xbf16, #tpu.memory_space<vmem>>, vector<1x64x120xbf16>
    %364 = vector.shape_cast %363 : vector<1x64x120xbf16> to vector<64x120xbf16>
    %365 = vector.extract_strided_slice %357 {offsets = [0, 1], sizes = [120, 116], strides = [1, 1]} : vector<120x120xf32> to vector<120x116xf32>
    %366 = arith.truncf %365 : vector<120x116xf32> to vector<120x116xbf16>
    %cst_176 = arith.constant dense<0.000000e+00> : vector<64x116xf32>
    %367 = tpu.matmul %364, %366, %cst_176 {dimension_numbers = #tpu.dot_dimension_numbers<[1], [0], [0], [1], [0, 0, 1, 1], [], []>} : vector<64x120xbf16>, vector<120x116xbf16>, vector<64x116xf32> -> vector<64x116xf32>
    %368 = arith.addf %362, %367 : vector<64x116xf32>
    %c2_177 = arith.constant 2 : index
    %c0_178 = arith.constant 0 : index
    %c0_179 = arith.constant 0 : index
    %369 = vector.load %arg4[%c2_177, %c0_178, %c0_179] : memref<5x64x120xbf16, #tpu.memory_space<vmem>>, vector<1x64x120xbf16>
    %370 = vector.shape_cast %369 : vector<1x64x120xbf16> to vector<64x120xbf16>
    %371 = vector.extract_strided_slice %357 {offsets = [0, 2], sizes = [120, 116], strides = [1, 1]} : vector<120x120xf32> to vector<120x116xf32>
    %372 = arith.truncf %371 : vector<120x116xf32> to vector<120x116xbf16>
    %cst_180 = arith.constant dense<0.000000e+00> : vector<64x116xf32>
    %373 = tpu.matmul %370, %372, %cst_180 {dimension_numbers = #tpu.dot_dimension_numbers<[1], [0], [0], [1], [0, 0, 1, 1], [], []>} : vector<64x120xbf16>, vector<120x116xbf16>, vector<64x116xf32> -> vector<64x116xf32>
    %374 = arith.addf %368, %373 : vector<64x116xf32>
    %c3 = arith.constant 3 : index
    %c0_181 = arith.constant 0 : index
    %c0_182 = arith.constant 0 : index
    %375 = vector.load %arg4[%c3, %c0_181, %c0_182] : memref<5x64x120xbf16, #tpu.memory_space<vmem>>, vector<1x64x120xbf16>
    %376 = vector.shape_cast %375 : vector<1x64x120xbf16> to vector<64x120xbf16>
    %377 = vector.extract_strided_slice %357 {offsets = [0, 3], sizes = [120, 116], strides = [1, 1]} : vector<120x120xf32> to vector<120x116xf32>
    %378 = arith.truncf %377 : vector<120x116xf32> to vector<120x116xbf16>
    %cst_183 = arith.constant dense<0.000000e+00> : vector<64x116xf32>
    %379 = tpu.matmul %376, %378, %cst_183 {dimension_numbers = #tpu.dot_dimension_numbers<[1], [0], [0], [1], [0, 0, 1, 1], [], []>} : vector<64x120xbf16>, vector<120x116xbf16>, vector<64x116xf32> -> vector<64x116xf32>
    %380 = arith.addf %374, %379 : vector<64x116xf32>
    %c4 = arith.constant 4 : index
    %c0_184 = arith.constant 0 : index
    %c0_185 = arith.constant 0 : index
    %381 = vector.load %arg4[%c4, %c0_184, %c0_185] : memref<5x64x120xbf16, #tpu.memory_space<vmem>>, vector<1x64x120xbf16>
    %382 = vector.shape_cast %381 : vector<1x64x120xbf16> to vector<64x120xbf16>
    %383 = vector.extract_strided_slice %357 {offsets = [0, 4], sizes = [120, 116], strides = [1, 1]} : vector<120x120xf32> to vector<120x116xf32>
    %384 = arith.truncf %383 : vector<120x116xf32> to vector<120x116xbf16>
    %cst_186 = arith.constant dense<0.000000e+00> : vector<64x116xf32>
    %385 = tpu.matmul %382, %384, %cst_186 {dimension_numbers = #tpu.dot_dimension_numbers<[1], [0], [0], [1], [0, 0, 1, 1], [], []>} : vector<64x120xbf16>, vector<120x116xbf16>, vector<64x116xf32> -> vector<64x116xf32>
    %386 = arith.addf %380, %385 : vector<64x116xf32>
    %c0_187 = arith.constant 0 : index
    %c0_188 = arith.constant 0 : index
    %387 = vector.load %arg5[%c0_187, %c0_188] : memref<64x1xf32, #tpu.memory_space<vmem>>, vector<64x1xf32>
    %388 = vector.broadcast %387 : vector<64x1xf32> to vector<64x116xf32>
    %389 = arith.addf %386, %388 : vector<64x116xf32>
    %390 = vector.extract_strided_slice %389 {offsets = [0, 0], sizes = [64, 115], strides = [1, 1]} : vector<64x116xf32> to vector<64x115xf32>
    %391 = vector.extract_strided_slice %389 {offsets = [0, 1], sizes = [64, 115], strides = [1, 1]} : vector<64x116xf32> to vector<64x115xf32>
    %392 = arith.maximumf %390, %391 : vector<64x115xf32>
    %393 = arith.truncf %392 : vector<64x115xf32> to vector<64x115xbf16>
    %cst_189 = arith.constant dense<0.000000e+00> : vector<64x56xf32>
    %394 = tpu.matmul %393, %0, %cst_189 {dimension_numbers = #tpu.dot_dimension_numbers<[1], [0], [0], [1], [0, 0, 1, 1], [], []>} : vector<64x115xbf16>, vector<115x56xbf16>, vector<64x56xf32> -> vector<64x56xf32>
    %cst_190 = arith.constant 0.000000e+00 : f32
    %395 = vector.broadcast %cst_190 : f32 to vector<64x56xf32>
    %396 = arith.maximumf %394, %395 : vector<64x56xf32>
    %c3_191 = arith.constant 3 : index
    %c0_192 = arith.constant 0 : index
    %c0_193 = arith.constant 0 : index
    %397 = vector.load %arg6[%c3_191, %c0_192, %c0_193] : memref<4x32x320xbf16, #tpu.memory_space<vmem>>, vector<1x32x320xbf16>
    %398 = vector.shape_cast %397 : vector<1x32x320xbf16> to vector<32x320xbf16>
    %c3_194 = arith.constant 3 : index
    %c0_195 = arith.constant 0 : index
    %c0_196 = arith.constant 0 : index
    %399 = vector.load %arg7[%c3_194, %c0_195, %c0_196] : memref<4x32x1xf32, #tpu.memory_space<vmem>>, vector<1x32x1xf32>
    %400 = vector.shape_cast %399 : vector<1x32x1xf32> to vector<32x1xf32>
    %401 = vector.extract_strided_slice %396 {offsets = [0, 0], sizes = [64, 52], strides = [1, 1]} : vector<64x56xf32> to vector<64x52xf32>
    %402 = vector.extract_strided_slice %396 {offsets = [0, 1], sizes = [64, 52], strides = [1, 1]} : vector<64x56xf32> to vector<64x52xf32>
    %403 = vector.extract_strided_slice %396 {offsets = [0, 2], sizes = [64, 52], strides = [1, 1]} : vector<64x56xf32> to vector<64x52xf32>
    %404 = vector.extract_strided_slice %396 {offsets = [0, 3], sizes = [64, 52], strides = [1, 1]} : vector<64x56xf32> to vector<64x52xf32>
    %405 = vector.extract_strided_slice %396 {offsets = [0, 4], sizes = [64, 52], strides = [1, 1]} : vector<64x56xf32> to vector<64x52xf32>
    %406 = tpu.concatenate %401, %402, %403, %404, %405 in 0 : vector<64x52xf32>, vector<64x52xf32>, vector<64x52xf32>, vector<64x52xf32>, vector<64x52xf32> -> vector<320x52xf32>
    %407 = arith.truncf %406 : vector<320x52xf32> to vector<320x52xbf16>
    %cst_197 = arith.constant dense<0.000000e+00> : vector<32x52xf32>
    %408 = tpu.matmul %398, %407, %cst_197 {dimension_numbers = #tpu.dot_dimension_numbers<[1], [0], [0], [1], [0, 0, 1, 1], [], []>} : vector<32x320xbf16>, vector<320x52xbf16>, vector<32x52xf32> -> vector<32x52xf32>
    %409 = vector.broadcast %400 : vector<32x1xf32> to vector<32x52xf32>
    %410 = arith.addf %408, %409 : vector<32x52xf32>
    %411 = vector.extract_strided_slice %410 {offsets = [0, 0], sizes = [32, 51], strides = [1, 1]} : vector<32x52xf32> to vector<32x51xf32>
    %412 = vector.extract_strided_slice %410 {offsets = [0, 1], sizes = [32, 51], strides = [1, 1]} : vector<32x52xf32> to vector<32x51xf32>
    %413 = arith.maximumf %411, %412 : vector<32x51xf32>
    %414 = arith.truncf %413 : vector<32x51xf32> to vector<32x51xbf16>
    %cst_198 = arith.constant dense<0.000000e+00> : vector<32x24xf32>
    %415 = tpu.matmul %414, %1, %cst_198 {dimension_numbers = #tpu.dot_dimension_numbers<[1], [0], [0], [1], [0, 0, 1, 1], [], []>} : vector<32x51xbf16>, vector<51x24xbf16>, vector<32x24xf32> -> vector<32x24xf32>
    %cst_199 = arith.constant 0.000000e+00 : f32
    %416 = vector.broadcast %cst_199 : f32 to vector<32x24xf32>
    %417 = arith.maximumf %415, %416 : vector<32x24xf32>
    %c3_200 = arith.constant 3 : index
    %c0_201 = arith.constant 0 : index
    %c0_202 = arith.constant 0 : index
    %418 = vector.load %arg8[%c3_200, %c0_201, %c0_202] : memref<4x32x160xbf16, #tpu.memory_space<vmem>>, vector<1x32x160xbf16>
    %419 = vector.shape_cast %418 : vector<1x32x160xbf16> to vector<32x160xbf16>
    %c3_203 = arith.constant 3 : index
    %c0_204 = arith.constant 0 : index
    %c0_205 = arith.constant 0 : index
    %420 = vector.load %arg9[%c3_203, %c0_204, %c0_205] : memref<4x32x1xf32, #tpu.memory_space<vmem>>, vector<1x32x1xf32>
    %421 = vector.shape_cast %420 : vector<1x32x1xf32> to vector<32x1xf32>
    %422 = vector.extract_strided_slice %417 {offsets = [0, 0], sizes = [32, 20], strides = [1, 1]} : vector<32x24xf32> to vector<32x20xf32>
    %423 = vector.extract_strided_slice %417 {offsets = [0, 1], sizes = [32, 20], strides = [1, 1]} : vector<32x24xf32> to vector<32x20xf32>
    %424 = vector.extract_strided_slice %417 {offsets = [0, 2], sizes = [32, 20], strides = [1, 1]} : vector<32x24xf32> to vector<32x20xf32>
    %425 = vector.extract_strided_slice %417 {offsets = [0, 3], sizes = [32, 20], strides = [1, 1]} : vector<32x24xf32> to vector<32x20xf32>
    %426 = vector.extract_strided_slice %417 {offsets = [0, 4], sizes = [32, 20], strides = [1, 1]} : vector<32x24xf32> to vector<32x20xf32>
    %427 = tpu.concatenate %422, %423, %424, %425, %426 in 0 : vector<32x20xf32>, vector<32x20xf32>, vector<32x20xf32>, vector<32x20xf32>, vector<32x20xf32> -> vector<160x20xf32>
    %428 = arith.truncf %427 : vector<160x20xf32> to vector<160x20xbf16>
    %cst_206 = arith.constant dense<0.000000e+00> : vector<32x20xf32>
    %429 = tpu.matmul %419, %428, %cst_206 {dimension_numbers = #tpu.dot_dimension_numbers<[1], [0], [0], [1], [0, 0, 1, 1], [], []>} : vector<32x160xbf16>, vector<160x20xbf16>, vector<32x20xf32> -> vector<32x20xf32>
    %430 = vector.broadcast %421 : vector<32x1xf32> to vector<32x20xf32>
    %431 = arith.addf %429, %430 : vector<32x20xf32>
    %432 = vector.extract_strided_slice %431 {offsets = [0, 0], sizes = [32, 19], strides = [1, 1]} : vector<32x20xf32> to vector<32x19xf32>
    %433 = vector.extract_strided_slice %431 {offsets = [0, 1], sizes = [32, 19], strides = [1, 1]} : vector<32x20xf32> to vector<32x19xf32>
    %434 = arith.maximumf %432, %433 : vector<32x19xf32>
    %435 = arith.truncf %434 : vector<32x19xf32> to vector<32x19xbf16>
    %cst_207 = arith.constant dense<0.000000e+00> : vector<32x8xf32>
    %436 = tpu.matmul %435, %2, %cst_207 {dimension_numbers = #tpu.dot_dimension_numbers<[1], [0], [0], [1], [0, 0, 1, 1], [], []>} : vector<32x19xbf16>, vector<19x8xbf16>, vector<32x8xf32> -> vector<32x8xf32>
    %cst_208 = arith.constant 0.000000e+00 : f32
    %437 = vector.broadcast %cst_208 : f32 to vector<32x8xf32>
    %438 = arith.maximumf %436, %437 : vector<32x8xf32>
    %439 = tpu.transpose %438, [1, 0] : vector<32x8xf32> -> vector<8x32xf32>
    %c3_209 = arith.constant 3 : index
    %c0_210 = arith.constant 0 : index
    %c0_211 = arith.constant 0 : index
    %440 = vector.load %arg10[%c3_209, %c0_210, %c0_211] : memref<4x128x128xbf16, #tpu.memory_space<vmem>>, vector<1x128x128xbf16>
    %441 = vector.shape_cast %440 : vector<1x128x128xbf16> to vector<128x128xbf16>
    %442 = vector.extract_strided_slice %439 {offsets = [0, 0], sizes = [1, 32], strides = [1, 1]} : vector<8x32xf32> to vector<1x32xf32>
    %443 = vector.extract_strided_slice %439 {offsets = [4, 0], sizes = [1, 32], strides = [1, 1]} : vector<8x32xf32> to vector<1x32xf32>
    %444 = tpu.concatenate %442, %443 in 0 : vector<1x32xf32>, vector<1x32xf32> -> vector<2x32xf32>
    %445 = arith.truncf %444 : vector<2x32xf32> to vector<2x32xbf16>
    %446 = vector.extract_strided_slice %441 {offsets = [0, 0], sizes = [32, 128], strides = [1, 1]} : vector<128x128xbf16> to vector<32x128xbf16>
    %cst_212 = arith.constant dense<0.000000e+00> : vector<2x128xf32>
    %447 = tpu.matmul %445, %446, %cst_212 {dimension_numbers = #tpu.dot_dimension_numbers<[1], [0], [0], [1], [0, 0, 1, 1], [], []>} : vector<2x32xbf16>, vector<32x128xbf16>, vector<2x128xf32> -> vector<2x128xf32>
    %448 = vector.extract_strided_slice %439 {offsets = [1, 0], sizes = [1, 32], strides = [1, 1]} : vector<8x32xf32> to vector<1x32xf32>
    %449 = vector.extract_strided_slice %439 {offsets = [5, 0], sizes = [1, 32], strides = [1, 1]} : vector<8x32xf32> to vector<1x32xf32>
    %450 = tpu.concatenate %448, %449 in 0 : vector<1x32xf32>, vector<1x32xf32> -> vector<2x32xf32>
    %451 = arith.truncf %450 : vector<2x32xf32> to vector<2x32xbf16>
    %452 = vector.extract_strided_slice %441 {offsets = [32, 0], sizes = [32, 128], strides = [1, 1]} : vector<128x128xbf16> to vector<32x128xbf16>
    %cst_213 = arith.constant dense<0.000000e+00> : vector<2x128xf32>
    %453 = tpu.matmul %451, %452, %cst_213 {dimension_numbers = #tpu.dot_dimension_numbers<[1], [0], [0], [1], [0, 0, 1, 1], [], []>} : vector<2x32xbf16>, vector<32x128xbf16>, vector<2x128xf32> -> vector<2x128xf32>
    %454 = arith.addf %447, %453 : vector<2x128xf32>
    %455 = vector.extract_strided_slice %439 {offsets = [2, 0], sizes = [1, 32], strides = [1, 1]} : vector<8x32xf32> to vector<1x32xf32>
    %456 = vector.extract_strided_slice %439 {offsets = [6, 0], sizes = [1, 32], strides = [1, 1]} : vector<8x32xf32> to vector<1x32xf32>
    %457 = tpu.concatenate %455, %456 in 0 : vector<1x32xf32>, vector<1x32xf32> -> vector<2x32xf32>
    %458 = arith.truncf %457 : vector<2x32xf32> to vector<2x32xbf16>
    %459 = vector.extract_strided_slice %441 {offsets = [64, 0], sizes = [32, 128], strides = [1, 1]} : vector<128x128xbf16> to vector<32x128xbf16>
    %cst_214 = arith.constant dense<0.000000e+00> : vector<2x128xf32>
    %460 = tpu.matmul %458, %459, %cst_214 {dimension_numbers = #tpu.dot_dimension_numbers<[1], [0], [0], [1], [0, 0, 1, 1], [], []>} : vector<2x32xbf16>, vector<32x128xbf16>, vector<2x128xf32> -> vector<2x128xf32>
    %461 = arith.addf %454, %460 : vector<2x128xf32>
    %462 = vector.extract_strided_slice %439 {offsets = [3, 0], sizes = [1, 32], strides = [1, 1]} : vector<8x32xf32> to vector<1x32xf32>
    %463 = vector.extract_strided_slice %439 {offsets = [7, 0], sizes = [1, 32], strides = [1, 1]} : vector<8x32xf32> to vector<1x32xf32>
    %464 = tpu.concatenate %462, %463 in 0 : vector<1x32xf32>, vector<1x32xf32> -> vector<2x32xf32>
    %465 = arith.truncf %464 : vector<2x32xf32> to vector<2x32xbf16>
    %466 = vector.extract_strided_slice %441 {offsets = [96, 0], sizes = [32, 128], strides = [1, 1]} : vector<128x128xbf16> to vector<32x128xbf16>
    %cst_215 = arith.constant dense<0.000000e+00> : vector<2x128xf32>
    %467 = tpu.matmul %465, %466, %cst_215 {dimension_numbers = #tpu.dot_dimension_numbers<[1], [0], [0], [1], [0, 0, 1, 1], [], []>} : vector<2x32xbf16>, vector<32x128xbf16>, vector<2x128xf32> -> vector<2x128xf32>
    %468 = arith.addf %461, %467 : vector<2x128xf32>
    %c3_216 = arith.constant 3 : index
    %c0_217 = arith.constant 0 : index
    %c0_218 = arith.constant 0 : index
    %469 = vector.load %arg11[%c3_216, %c0_217, %c0_218] : memref<4x1x128xf32, #tpu.memory_space<vmem>>, vector<1x1x128xf32>
    %470 = vector.shape_cast %469 : vector<1x1x128xf32> to vector<1x128xf32>
    %471 = vector.broadcast %470 : vector<1x128xf32> to vector<2x128xf32>
    %472 = arith.addf %468, %471 : vector<2x128xf32>
    %cst_219 = arith.constant 0.000000e+00 : f32
    %473 = vector.broadcast %cst_219 : f32 to vector<2x128xf32>
    %474 = arith.maximumf %472, %473 : vector<2x128xf32>
    %475 = arith.truncf %474 : vector<2x128xf32> to vector<2x128xbf16>
    %c3_220 = arith.constant 3 : index
    %c0_221 = arith.constant 0 : index
    %c0_222 = arith.constant 0 : index
    %476 = vector.load %arg12[%c3_220, %c0_221, %c0_222] : memref<4x128x128xbf16, #tpu.memory_space<vmem>>, vector<1x128x128xbf16>
    %477 = vector.shape_cast %476 : vector<1x128x128xbf16> to vector<128x128xbf16>
    %cst_223 = arith.constant dense<0.000000e+00> : vector<2x128xf32>
    %478 = tpu.matmul %475, %477, %cst_223 {dimension_numbers = #tpu.dot_dimension_numbers<[1], [0], [0], [1], [0, 0, 1, 1], [], []>} : vector<2x128xbf16>, vector<128x128xbf16>, vector<2x128xf32> -> vector<2x128xf32>
    %c3_224 = arith.constant 3 : index
    %c0_225 = arith.constant 0 : index
    %c0_226 = arith.constant 0 : index
    %479 = vector.load %arg13[%c3_224, %c0_225, %c0_226] : memref<4x1x128xf32, #tpu.memory_space<vmem>>, vector<1x1x128xf32>
    %480 = vector.shape_cast %479 : vector<1x1x128xf32> to vector<1x128xf32>
    %481 = vector.broadcast %480 : vector<1x128xf32> to vector<2x128xf32>
    %482 = arith.addf %478, %481 : vector<2x128xf32>
    %483 = arith.truncf %482 : vector<2x128xf32> to vector<2x128xbf16>
    %c3_227 = arith.constant 3 : index
    %c0_228 = arith.constant 0 : index
    %c0_229 = arith.constant 0 : index
    %484 = vector.load %arg14[%c3_227, %c0_228, %c0_229] : memref<4x128x128xbf16, #tpu.memory_space<vmem>>, vector<1x128x128xbf16>
    %485 = vector.shape_cast %484 : vector<1x128x128xbf16> to vector<128x128xbf16>
    %cst_230 = arith.constant dense<0.000000e+00> : vector<2x128xf32>
    %486 = tpu.matmul %483, %485, %cst_230 {dimension_numbers = #tpu.dot_dimension_numbers<[1], [0], [0], [1], [0, 0, 1, 1], [], []>} : vector<2x128xbf16>, vector<128x128xbf16>, vector<2x128xf32> -> vector<2x128xf32>
    %c3_231 = arith.constant 3 : index
    %c0_232 = arith.constant 0 : index
    %c0_233 = arith.constant 0 : index
    %487 = vector.load %arg15[%c3_231, %c0_232, %c0_233] : memref<4x1x128xf32, #tpu.memory_space<vmem>>, vector<1x1x128xf32>
    %488 = vector.shape_cast %487 : vector<1x1x128xf32> to vector<1x128xf32>
    %489 = vector.broadcast %488 : vector<1x128xf32> to vector<2x128xf32>
    %490 = arith.addf %486, %489 : vector<2x128xf32>
    %491 = arith.addf %490, %474 : vector<2x128xf32>
    %492 = tpu.concatenate %120, %238, %356, %491 in 1 : vector<2x128xf32>, vector<2x128xf32>, vector<2x128xf32>, vector<2x128xf32> -> vector<2x512xf32>
    %493 = arith.truncf %492 : vector<2x512xf32> to vector<2x512xbf16>
    %c0_234 = arith.constant 0 : index
    %c0_235 = arith.constant 0 : index
    %494 = vector.load %arg19[%c0_234, %c0_235] : memref<512x32xbf16, #tpu.memory_space<vmem>>, vector<512x32xbf16>
    %cst_236 = arith.constant dense<0.000000e+00> : vector<2x32xf32>
    %495 = tpu.matmul %493, %494, %cst_236 {dimension_numbers = #tpu.dot_dimension_numbers<[1], [0], [0], [1], [0, 0, 1, 1], [], []>} : vector<2x512xbf16>, vector<512x32xbf16>, vector<2x32xf32> -> vector<2x32xf32>
    %c0_237 = arith.constant 0 : index
    %c0_238 = arith.constant 0 : index
    %496 = vector.load %arg20[%c0_237, %c0_238] : memref<1x32xf32, #tpu.memory_space<vmem>>, vector<1x32xf32>
    %497 = vector.broadcast %496 : vector<1x32xf32> to vector<2x32xf32>
    %498 = arith.addf %495, %497 : vector<2x32xf32>
    %cst_239 = arith.constant 0.000000e+00 : f32
    %499 = vector.broadcast %cst_239 : f32 to vector<2x32xf32>
    %500 = arith.maximumf %498, %499 : vector<2x32xf32>
    %501 = arith.truncf %500 : vector<2x32xf32> to vector<2x32xbf16>
    %c0_240 = arith.constant 0 : index
    %c0_241 = arith.constant 0 : index
    %502 = vector.load %arg21[%c0_240, %c0_241] : memref<32x32xbf16, #tpu.memory_space<vmem>>, vector<32x32xbf16>
    %cst_242 = arith.constant dense<0.000000e+00> : vector<2x32xf32>
    %503 = tpu.matmul %501, %502, %cst_242 {dimension_numbers = #tpu.dot_dimension_numbers<[1], [0], [0], [1], [0, 0, 1, 1], [], []>} : vector<2x32xbf16>, vector<32x32xbf16>, vector<2x32xf32> -> vector<2x32xf32>
    %c0_243 = arith.constant 0 : index
    %c0_244 = arith.constant 0 : index
    %504 = vector.load %arg22[%c0_243, %c0_244] : memref<1x32xf32, #tpu.memory_space<vmem>>, vector<1x32xf32>
    %505 = vector.broadcast %504 : vector<1x32xf32> to vector<2x32xf32>
    %506 = arith.addf %503, %505 : vector<2x32xf32>
    %cst_245 = arith.constant 0.000000e+00 : f32
    %507 = vector.broadcast %cst_245 : f32 to vector<2x32xf32>
    %508 = arith.maximumf %506, %507 : vector<2x32xf32>
    %509 = arith.truncf %508 : vector<2x32xf32> to vector<2x32xbf16>
    %c0_246 = arith.constant 0 : index
    %c0_247 = arith.constant 0 : index
    %510 = vector.load %arg23[%c0_246, %c0_247] : memref<32x1xbf16, #tpu.memory_space<vmem>>, vector<32x1xbf16>
    %cst_248 = arith.constant dense<0.000000e+00> : vector<2x1xf32>
    %511 = tpu.matmul %509, %510, %cst_248 {dimension_numbers = #tpu.dot_dimension_numbers<[1], [0], [0], [1], [0, 0, 1, 1], [], []>} : vector<2x32xbf16>, vector<32x1xbf16>, vector<2x1xf32> -> vector<2x1xf32>
    %c0_249 = arith.constant 0 : index
    %c0_250 = arith.constant 0 : index
    %512 = vector.load %arg24[%c0_249, %c0_250] : memref<1x1xf32, #tpu.memory_space<vmem>>, vector<1x1xf32>
    %513 = vector.broadcast %512 : vector<1x1xf32> to vector<2x1xf32>
    %514 = arith.addf %511, %513 : vector<2x1xf32>
    %c0_251 = arith.constant 0 : index
    %c0_252 = arith.constant 0 : index
    %515 = vector.load %arg25[%c0_251, %c0_252] : memref<2x1xf32, #tpu.memory_space<vmem>>, vector<2x1xf32>
    tpu.vector_store %arg25[%c0_251, %c0_252], %514 {strides = array<i32>} : memref<2x1xf32, #tpu.memory_space<vmem>>, vector<2x1xf32>,
    return
  }
}

</mosaic_0001>

<llo_original>
// kernel: bert_binding_forward.1
$region0: #{bert_binding_forward.1}
  #allocation0 [shape = 'u32[]', space=smem, size = 0x4, offset = 0x4, fixed_abs, tag = 'smem constant byte address 0x4 - core index']
  #allocation1 [shape = 'u32[144,128]{1,0:T(1,128)}', space=vmem, size = 0x12000, scoped, tag = 'internal scratch']
  #allocation2 [shape = 'f32[1,1]{1,0:T(1,128)S(1)}', space=vmem, size = 0x200, scoped, tag = 'scoped memory for bert_binding_forward.1']
  %s0 = inlined_call_operand.vmem [shape: f32[3,24,120], index: 0, kind: input, shape index: {}]
  %s1 = inlined_call_operand.vmem [shape: f32[120,120], index: 1, kind: input, shape index: {}]
  %s2 = inlined_call_operand.vmem [shape: bf16[3,64,120], index: 2, kind: input, shape index: {}]
  %s3 = inlined_call_operand.vmem [shape: f32[3,64,1], index: 3, kind: input, shape index: {}]
  %s4 = inlined_call_operand.vmem [shape: bf16[5,64,120], index: 4, kind: input, shape index: {}]
  %s5 = inlined_call_operand.vmem [shape: f32[64,1], index: 5, kind: input, shape index: {}]
  %s6 = inlined_call_operand.vmem [shape: bf16[4,32,320], index: 6, kind: input, shape index: {}]
  %s7 = inlined_call_operand.vmem [shape: f32[4,32,1], index: 7, kind: input, shape index: {}]
  %s8 = inlined_call_operand.vmem [shape: bf16[4,32,160], index: 8, kind: input, shape index: {}]
  %s9 = inlined_call_operand.vmem [shape: f32[4,32,1], index: 9, kind: input, shape index: {}]
  %s10 = inlined_call_operand.vmem [shape: bf16[4,128,128], index: 10, kind: input, shape index: {}]
  %s11 = inlined_call_operand.vmem [shape: f32[4,1,128], index: 11, kind: input, shape index: {}]
  %s12 = inlined_call_operand.vmem [shape: bf16[4,128,128], index: 12, kind: input, shape index: {}]
  %s13 = inlined_call_operand.vmem [shape: f32[4,1,128], index: 13, kind: input, shape index: {}]
  %s14 = inlined_call_operand.vmem [shape: bf16[4,128,128], index: 14, kind: input, shape index: {}]
  %s15 = inlined_call_operand.vmem [shape: f32[4,1,128], index: 15, kind: input, shape index: {}]
  %s16 = inlined_call_operand.vmem [shape: bf16[115,56], index: 16, kind: input, shape index: {}]
  %s17 = inlined_call_operand.vmem [shape: bf16[51,24], index: 17, kind: input, shape index: {}]
  %s18 = inlined_call_operand.vmem [shape: bf16[19,8], index: 18, kind: input, shape index: {}]
  %s19 = inlined_call_operand.vmem [shape: bf16[512,32], index: 19, kind: input, shape index: {}]
  %s20 = inlined_call_operand.vmem [shape: f32[1,32], index: 20, kind: input, shape index: {}]
  %s21 = inlined_call_operand.vmem [shape: bf16[32,32], index: 21, kind: input, shape index: {}]
  %s22 = inlined_call_operand.vmem [shape: f32[1,32], index: 22, kind: input, shape index: {}]
  %s23 = inlined_call_operand.vmem [shape: bf16[32,1], index: 23, kind: input, shape index: {}]
  %s24 = inlined_call_operand.<no memory space> [shape: f32[1,1], index: 24, kind: input, shape index: {}]
  %s25 = inlined_call_operand.vmem [shape: f32[2,1], index: 25, kind: output, shape index: {}]
  %s26 = sld [smem:[#allocation0]]
  $region110: #{bert_binding_forward.1} parent=0
    _
  %s28 = ssub.s32 1, %s26
  %s29 = scalar_select 0, %s28, %s26
  %v30 = vstv %s24
  %31 = vst [vmem:[#allocation2] sm:$0x1] %v30
  // Predicated region
  $region2: #{bert_binding_forward.1} parent=0 // pred_check
    _
  $region3: #{bert_binding_forward.1} parent=0 // pred_check_branch
    %33 = sbr.rel (0) target = $region5
  $region4: #{bert_binding_forward.1} parent=0 // pred_region
    _
  $region5: #{bert_binding_forward.1} parent=0 // pred_fallthru
    _
  // Predicated region
  $region6: #{bert_binding_forward.1} parent=0 // pred_check
    _
  $region7: #{bert_binding_forward.1} parent=0 // pred_check_branch
    %35 = sbr.rel (0) target = $region9
  $region8: #{bert_binding_forward.1} parent=0 // pred_region
    _
  $region9: #{bert_binding_forward.1} parent=0 // pred_fallthru
    _
  // Predicated region
  $region10: #{bert_binding_forward.1} parent=0 // pred_check
    _
  $region11: #{bert_binding_forward.1} parent=0 // pred_check_branch
    %37 = sbr.rel (0) target = $region13
  $region12: #{bert_binding_forward.1} parent=0 // pred_region
    _
  $region13: #{bert_binding_forward.1} parent=0 // pred_fallthru
    _
  // Predicated region
  $region14: #{bert_binding_forward.1} parent=0 // pred_check
    _
  $region15: #{bert_binding_forward.1} parent=0 // pred_check_branch
    %39 = sbr.rel (0) target = $region17
  $region16: #{bert_binding_forward.1} parent=0 // pred_region
    _
  $region17: #{bert_binding_forward.1} parent=0 // pred_fallthru
    _
  // Predicated region
  $region18: #{bert_binding_forward.1} parent=0 // pred_check
    _
  $region19: #{bert_binding_forward.1} parent=0 // pred_check_branch
    %41 = sbr.rel (0) target = $region21
  $region20: #{bert_binding_forward.1} parent=0 // pred_region
    _
  $region21: #{bert_binding_forward.1} parent=0 // pred_fallthru
    _
  // Predicated region
  $region22: #{bert_binding_forward.1} parent=0 // pred_check
    _
  $region23: #{bert_binding_forward.1} parent=0 // pred_check_branch
    %43 = sbr.rel (0) target = $region25
  $region24: #{bert_binding_forward.1} parent=0 // pred_region
    _
  $region25: #{bert_binding_forward.1} parent=0 // pred_fallthru
    _
  // Predicated region
  $region26: #{bert_binding_forward.1} parent=0 // pred_check
    _
  $region27: #{bert_binding_forward.1} parent=0 // pred_check_branch
    %45 = sbr.rel (0) target = $region29
  $region28: #{bert_binding_forward.1} parent=0 // pred_region
    _
  $region29: #{bert_binding_forward.1} parent=0 // pred_fallthru
    _
  // Predicated region
  $region30: #{bert_binding_forward.1} parent=0 // pred_check
    _
  $region31: #{bert_binding_forward.1} parent=0 // pred_check_branch
    %47 = sbr.rel (0) target = $region33
  $region32: #{bert_binding_forward.1} parent=0 // pred_region
    _
  $region33: #{bert_binding_forward.1} parent=0 // pred_fallthru
    _
  // Predicated region
  $region34: #{bert_binding_forward.1} parent=0 // pred_check
    _
  $region35: #{bert_binding_forward.1} parent=0 // pred_check_branch
    %49 = sbr.rel (0) target = $region37
  $region36: #{bert_binding_forward.1} parent=0 // pred_region
    _
  $region37: #{bert_binding_forward.1} parent=0 // pred_fallthru
    _
  // Predicated region
  $region38: #{bert_binding_forward.1} parent=0 // pred_check
    _
  $region39: #{bert_binding_forward.1} parent=0 // pred_check_branch
    %51 = sbr.rel (0) target = $region41
  $region40: #{bert_binding_forward.1} parent=0 // pred_region
    _
  $region41: #{bert_binding_forward.1} parent=0 // pred_fallthru
    _
  // Predicated region
  $region42: #{bert_binding_forward.1} parent=0 // pred_check
    _
  $region43: #{bert_binding_forward.1} parent=0 // pred_check_branch
    %53 = sbr.rel (0) target = $region45
  $region44: #{bert_binding_forward.1} parent=0 // pred_region
    _
  $region45: #{bert_binding_forward.1} parent=0 // pred_fallthru
    _
  // Predicated region
  $region46: #{bert_binding_forward.1} parent=0 // pred_check
    _
  $region47: #{bert_binding_forward.1} parent=0 // pred_check_branch
    %55 = sbr.rel (0) target = $region49
  $region48: #{bert_binding_forward.1} parent=0 // pred_region
    _
  $region49: #{bert_binding_forward.1} parent=0 // pred_fallthru
    _
  // Predicated region
  $region50: #{bert_binding_forward.1} parent=0 // pred_check
    _
  $region51: #{bert_binding_forward.1} parent=0 // pred_check_branch
    %57 = sbr.rel (0) target = $region53
  $region52: #{bert_binding_forward.1} parent=0 // pred_region
    _
  $region53: #{bert_binding_forward.1} parent=0 // pred_fallthru
    _
  // Predicated region
  $region54: #{bert_binding_forward.1} parent=0 // pred_check
    _
  $region55: #{bert_binding_forward.1} parent=0 // pred_check_branch
    %59 = sbr.rel (0) target = $region57
  $region56: #{bert_binding_forward.1} parent=0 // pred_region
    _
  $region57: #{bert_binding_forward.1} parent=0 // pred_fallthru
    _
  // Predicated region
  $region58: #{bert_binding_forward.1} parent=0 // pred_check
    _
  $region59: #{bert_binding_forward.1} parent=0 // pred_check_branch
    %61 = sbr.rel (0) target = $region61
  $region60: #{bert_binding_forward.1} parent=0 // pred_region
    _
  $region61: #{bert_binding_forward.1} parent=0 // pred_fallthru
    _
  // Predicated region
  $region62: #{bert_binding_forward.1} parent=0 // pred_check
    _
  $region63: #{bert_binding_forward.1} parent=0 // pred_check_branch
    %63 = sbr.rel (0) target = $region65
  $region64: #{bert_binding_forward.1} parent=0 // pred_region
    _
  $region65: #{bert_binding_forward.1} parent=0 // pred_fallthru
    _
  // Predicated region
  $region66: #{bert_binding_forward.1} parent=0 // pred_check
    _
  $region67: #{bert_binding_forward.1} parent=0 // pred_check_branch
    %65 = sbr.rel (0) target = $region69
  $region68: #{bert_binding_forward.1} parent=0 // pred_region
    _
  $region69: #{bert_binding_forward.1} parent=0 // pred_fallthru
    _
  // Predicated region
  $region70: #{bert_binding_forward.1} parent=0 // pred_check
    _
  $region71: #{bert_binding_forward.1} parent=0 // pred_check_branch
    %67 = sbr.rel (0) target = $region73
  $region72: #{bert_binding_forward.1} parent=0 // pred_region
    _
  $region73: #{bert_binding_forward.1} parent=0 // pred_fallthru
    _
  // Predicated region
  $region74: #{bert_binding_forward.1} parent=0 // pred_check
    _
  $region75: #{bert_binding_forward.1} parent=0 // pred_check_branch
    %69 = sbr.rel (0) target = $region77
  $region76: #{bert_binding_forward.1} parent=0 // pred_region
    _
  $region77: #{bert_binding_forward.1} parent=0 // pred_fallthru
    _
  // Predicated region
  $region78: #{bert_binding_forward.1} parent=0 // pred_check
    _
  $region79: #{bert_binding_forward.1} parent=0 // pred_check_branch
    %71 = sbr.rel (0) target = $region81
  $region80: #{bert_binding_forward.1} parent=0 // pred_region
    _
  $region81: #{bert_binding_forward.1} parent=0 // pred_fallthru
    _
  // Predicated region
  $region82: #{bert_binding_forward.1} parent=0 // pred_check
    _
  $region83: #{bert_binding_forward.1} parent=0 // pred_check_branch
    %73 = sbr.rel (0) target = $region85
  $region84: #{bert_binding_forward.1} parent=0 // pred_region
    _
  $region85: #{bert_binding_forward.1} parent=0 // pred_fallthru
    _
  // Predicated region
  $region86: #{bert_binding_forward.1} parent=0 // pred_check
    _
  $region87: #{bert_binding_forward.1} parent=0 // pred_check_branch
    %75 = sbr.rel (0) target = $region89
  $region88: #{bert_binding_forward.1} parent=0 // pred_region
    _
  $region89: #{bert_binding_forward.1} parent=0 // pred_fallthru
    _
  // Predicated region
  $region90: #{bert_binding_forward.1} parent=0 // pred_check
    _
  $region91: #{bert_binding_forward.1} parent=0 // pred_check_branch
    %77 = sbr.rel (0) target = $region93
  $region92: #{bert_binding_forward.1} parent=0 // pred_region
    _
  $region93: #{bert_binding_forward.1} parent=0 // pred_fallthru
    _
  // Predicated region
  $region94: #{bert_binding_forward.1} parent=0 // pred_check
    _
  $region95: #{bert_binding_forward.1} parent=0 // pred_check_branch
    %79 = sbr.rel (0) target = $region97
  $region96: #{bert_binding_forward.1} parent=0 // pred_region
    _
  $region97: #{bert_binding_forward.1} parent=0 // pred_fallthru
    _
  // Predicated region
  $region98: #{bert_binding_forward.1} parent=0 // pred_check
    _
  $region99: #{bert_binding_forward.1} parent=0 // pred_check_branch
    %81 = sbr.rel (0) target = $region101
  $region100: #{bert_binding_forward.1} parent=0 // pred_region
    _
  $region101: #{bert_binding_forward.1} parent=0 // pred_fallthru
    _
  %v83 = vld [vmem:[%s16] sm:$0xf]
  %v84 = vld [vmem:[%s16 + $0x4] sm:$0xf]
  %v85 = vld [vmem:[%s16 + $0x8] sm:$0xf]
  %v86 = vld [vmem:[%s16 + $0xc] sm:$0xf]
  %v87 = vld [vmem:[%s16 + $0x10] sm:$0xf]
  %v88 = vld [vmem:[%s16 + $0x14] sm:$0xf]
  %v89 = vld [vmem:[%s16 + $0x18] sm:$0xf]
  %v90 = vld [vmem:[%s16 + $0x1c] sm:$0xf]
  %v91 = vld [vmem:[%s16 + $0x20] sm:$0xf]
  %v92 = vld [vmem:[%s16 + $0x24] sm:$0xf]
  %v93 = vld [vmem:[%s16 + $0x28] sm:$0xf]
  %v94 = vld [vmem:[%s16 + $0x2c] sm:$0xf]
  %v95 = vld [vmem:[%s16 + $0x30] sm:$0xf]
  %v96 = vld [vmem:[%s16 + $0x34] sm:$0xf]
  %v97 = vld [vmem:[%s16 + $0x38] sm:$0x3]
  %v98 = vld [vmem:[%s17] sm:$0xf]
  %v99 = vld [vmem:[%s17 + $0x4] sm:$0xf]
  %v100 = vld [vmem:[%s17 + $0x8] sm:$0xf]
  %v101 = vld [vmem:[%s17 + $0xc] sm:$0xf]
  %v102 = vld [vmem:[%s17 + $0x10] sm:$0xf]
  %v103 = vld [vmem:[%s17 + $0x14] sm:$0xf]
  %v104 = vld [vmem:[%s17 + $0x18] sm:$0x3]
  %v105 = vld [vmem:[%s18] sm:$0xf]
  %v106 = vld [vmem:[%s18 + $0x4] sm:$0xf]
  %v107 = vld [vmem:[%s18 + $0x8] sm:$0x3]
  %v108 = vld [vmem:[%s0] sm:$0xff]
  %v109 = vld [vmem:[%s0 + $0x8] sm:$0xff]
  %v110 = vld [vmem:[%s0 + $0x10] sm:$0xff]
  %v111 = vld [vmem:[%s2] sm:$0xf]
  %v112 = vld [vmem:[%s2 + $0x4] sm:$0xf]
  %v113 = vld [vmem:[%s2 + $0x8] sm:$0xf]
  %v114 = vld [vmem:[%s2 + $0xc] sm:$0xf]
  %v115 = vld [vmem:[%s2 + $0x10] sm:$0xf]
  %v116 = vld [vmem:[%s2 + $0x14] sm:$0xf]
  %v117 = vld [vmem:[%s2 + $0x18] sm:$0xf]
  %v118 = vld [vmem:[%s2 + $0x1c] sm:$0xf]
  %v119 = vld [vmem:[%s3] sm:$0xff]
  %v120 = vld [vmem:[%s3 + $0x8] sm:$0xff]
  %v121 = vld [vmem:[%s3 + $0x10] sm:$0xff]
  %v122 = vld [vmem:[%s3 + $0x18] sm:$0xff]
  %v123 = vld [vmem:[%s3 + $0x20] sm:$0xff]
  %v124 = vld [vmem:[%s3 + $0x28] sm:$0xff]
  %v125 = vld [vmem:[%s3 + $0x30] sm:$0xff]
  %v126 = vld [vmem:[%s3 + $0x38] sm:$0xff]
  %130 = vrot.lane.b32.xlu0 %v108, 127
  %v131 = vpop.permute.xlu0 %130
  %132 = vrot.lane.b32.xlu0 %v109, 127
  %v133 = vpop.permute.xlu0 %132
  %134 = vrot.lane.b32.xlu0 %v110, 127
  %v135 = vpop.permute.xlu0 %134
  %139 = vrot.lane.b32.xlu0 %v108, 126
  %v140 = vpop.permute.xlu0 %139
  %141 = vrot.lane.b32.xlu0 %v109, 126
  %v142 = vpop.permute.xlu0 %141
  %143 = vrot.lane.b32.xlu0 %v110, 126
  %v144 = vpop.permute.xlu0 %143
  %148 = vrot.lane.b32.xlu0 %v108, 125
  %v149 = vpop.permute.xlu0 %148
  %150 = vrot.lane.b32.xlu0 %v109, 125
  %v151 = vpop.permute.xlu0 %150
  %152 = vrot.lane.b32.xlu0 %v110, 125
  %v153 = vpop.permute.xlu0 %152
  %157 = vrot.lane.b32.xlu0 %v108, 124
  %v158 = vpop.permute.xlu0 %157
  %159 = vrot.lane.b32.xlu0 %v109, 124
  %v160 = vpop.permute.xlu0 %159
  %161 = vrot.lane.b32.xlu0 %v110, 124
  %v162 = vpop.permute.xlu0 %161
  %v166 = vpack.c.bf16 %v109, %v108
  %v167 = vpack.c.bf16 %v131, %v110
  %v168 = vpack.c.bf16 %v135, %v133
  %v169 = vpack.c.bf16 %v142, %v140
  %v170 = vpack.c.bf16 %v149, %v144
  %v171 = vpack.c.bf16 %v153, %v151
  %v172 = vpack.c.bf16 %v160, %v158
  %v173 = vpack.c.bf16 %v162, %v162
  %175 = vset.pattern.permute.xlu0 0
  %176 = vperm.xlu0 %175, %v119
  %v177 = vpop.permute.xlu0 %176
  %180 = vset.pattern.permute.xlu0 0
  %181 = vperm.xlu0 %180, %v120
  %v182 = vpop.permute.xlu0 %181
  %185 = vset.pattern.permute.xlu0 0
  %186 = vperm.xlu0 %185, %v121
  %v187 = vpop.permute.xlu0 %186
  %190 = vset.pattern.permute.xlu0 0
  %191 = vperm.xlu0 %190, %v122
  %v192 = vpop.permute.xlu0 %191
  %195 = vset.pattern.permute.xlu0 0
  %196 = vperm.xlu0 %195, %v123
  %v197 = vpop.permute.xlu0 %196
  %200 = vset.pattern.permute.xlu0 0
  %201 = vperm.xlu0 %200, %v124
  %v202 = vpop.permute.xlu0 %201
  %205 = vset.pattern.permute.xlu0 0
  %206 = vperm.xlu0 %205, %v125
  %v207 = vpop.permute.xlu0 %206
  %210 = vset.pattern.permute.xlu0 0
  %211 = vperm.xlu0 %210, %v126
  %v212 = vpop.permute.xlu0 %211
  %v222 = vunpack.c.l.b16 %v111
  %v223 = vunpack.c.l.b16 %v112
  %v224 = vunpack.c.l.b16 %v113
  %v225 = vunpack.c.l.b16 %v114
  %v226 = vunpack.c.l.b16 %v115
  %v227 = vunpack.c.l.b16 %v116
  %v228 = vunpack.c.l.b16 %v117
  %v229 = vunpack.c.l.b16 %v118
  %v230 = vpack.c.b16 %v223, %v222
  %v231 = vpack.c.b16 %v225, %v224
  %v232 = vpack.c.b16 %v227, %v226
  %v233 = vpack.c.b16 %v229, %v228
  %vm234 = vcmask 982016
  %v236 = vsel %vm234, %v230, 0
  %v239 = vsel %vm234, %v231, 0
  %v242 = vsel %vm234, %v232, 0
  %v245 = vsel %vm234, %v233, 0
  %vm247 = vcmask 1043456
  %v249 = vsel %vm247, %v173, 0
  %251 = vmatprep.subr.bf16.mxu0 0
  %252 = vmatpush1.bf16.msra.mxu0 %v166
  %253 = vmatprep.subr.bf16.mxu0 0
  %254 = vmatpush1.bf16.msra.mxu0 %v167
  %255 = vmatprep.subr.bf16.mxu0 0
  %256 = vmatpush1.bf16.msra.mxu0 %v168
  %257 = vmatprep.subr.bf16.mxu0 0
  %258 = vmatpush1.bf16.msra.mxu0 %v169
  %259 = vmatprep.subr.bf16.mxu0 0
  %260 = vmatpush1.bf16.msra.mxu0 %v170
  %261 = vmatprep.subr.bf16.mxu0 0
  %262 = vmatpush1.bf16.msra.mxu0 %v171
  %263 = vmatprep.subr.bf16.mxu0 0
  %264 = vmatpush1.bf16.msra.mxu0 %v172
  %265 = vmatprep.subr.bf16.mxu0 0
  %266 = vmatpush1.bf16.msra.mxu0 %v249
  %267 = vmatprep.subr.bf16.mxu0 0
  %268 = vmatpush1.bf16.msra.mxu0 0
  %269 = vmatprep.subr.bf16.mxu0 0
  %270 = vmatpush1.bf16.msra.mxu0 0
  %271 = vmatprep.subr.bf16.mxu0 0
  %272 = vmatpush1.bf16.msra.mxu0 0
  %273 = vmatprep.subr.bf16.mxu0 0
  %274 = vmatpush1.bf16.msra.mxu0 0
  %275 = vmatprep.subr.bf16.mxu0 0
  %276 = vmatpush1.bf16.msra.mxu0 0
  %277 = vmatprep.subr.bf16.mxu0 0
  %278 = vmatpush1.bf16.msra.mxu0 0
  %279 = vmatprep.subr.bf16.mxu0 0
  %280 = vmatpush1.bf16.msra.mxu0 0
  %281 = vmatprep.subr.bf16.mxu0 0
  %282 = vmatpush1.bf16.msra.mxu0 0
  %283 = vmatprep.mubr.bf16.mxu0 0
  %284 = vmatmul.mubr.bf16.gmra.mrb[0].mxu0 %v236
  %v285 = vpop.f32.mrb[0].mxu0
  %v286 = vadd.f32 %v177, %v285
  %v287 = vpop.f32.mrb[0].mxu0
  %v288 = vpop.f32.mrb[0].mxu0
  %v289 = vadd.f32 %v182, %v288
  %v290 = vpop.f32.mrb[0].mxu0
  %291 = vmatprep.mubr.bf16.mxu0 0
  %292 = vmatmul.mubr.bf16.gmra.mrb[0].mxu0 %v239
  %v293 = vpop.f32.mrb[0].mxu0
  %v294 = vadd.f32 %v187, %v293
  %v295 = vpop.f32.mrb[0].mxu0
  %v296 = vpop.f32.mrb[0].mxu0
  %v297 = vadd.f32 %v192, %v296
  %v298 = vpop.f32.mrb[0].mxu0
  %299 = vmatprep.mubr.bf16.mxu0 0
  %300 = vmatmul.mubr.bf16.gmra.mrb[0].mxu0 %v242
  %v301 = vpop.f32.mrb[0].mxu0
  %v302 = vadd.f32 %v197, %v301
  %v303 = vpop.f32.mrb[0].mxu0
  %v304 = vpop.f32.mrb[0].mxu0
  %v305 = vadd.f32 %v202, %v304
  %v306 = vpop.f32.mrb[0].mxu0
  %307 = vmatprep.mubr.bf16.mxu0 0
  %308 = vmatmul.mubr.bf16.gmra.mrb[0].mxu0 %v245
  %v309 = vpop.f32.mrb[0].mxu0
  %v310 = vadd.f32 %v207, %v309
  %v311 = vpop.f32.mrb[0].mxu0
  %v312 = vpop.f32.mrb[0].mxu0
  %v313 = vadd.f32 %v212, %v312
  %v314 = vpop.f32.mrb[0].mxu0
  %315 = vdwg.mxu0
  %324 = vrot.lane.b32.xlu0 %v286, 127
  %v325 = vpop.permute.xlu0 %324
  %326 = vrot.lane.b32.xlu0 %v289, 127
  %v327 = vpop.permute.xlu0 %326
  %328 = vrot.lane.b32.xlu0 %v294, 127
  %v329 = vpop.permute.xlu0 %328
  %330 = vrot.lane.b32.xlu0 %v297, 127
  %v331 = vpop.permute.xlu0 %330
  %332 = vrot.lane.b32.xlu0 %v302, 127
  %v333 = vpop.permute.xlu0 %332
  %334 = vrot.lane.b32.xlu0 %v305, 127
  %v335 = vpop.permute.xlu0 %334
  %336 = vrot.lane.b32.xlu0 %v310, 127
  %v337 = vpop.permute.xlu0 %336
  %338 = vrot.lane.b32.xlu0 %v313, 127
  %v339 = vpop.permute.xlu0 %338
  %v348 = vmax.f32 %v286, %v325
  %v349 = vmax.f32 %v289, %v327
  %v350 = vmax.f32 %v294, %v329
  %v351 = vmax.f32 %v297, %v331
  %v352 = vmax.f32 %v302, %v333
  %v353 = vmax.f32 %v305, %v335
  %v354 = vmax.f32 %v310, %v337
  %v355 = vmax.f32 %v313, %v339
  %v356 = vpack.c.bf16 %v349, %v348
  %v357 = vpack.c.bf16 %v351, %v350
  %v358 = vpack.c.bf16 %v353, %v352
  %v359 = vpack.c.bf16 %v355, %v354
  %v375 = vunpack.c.l.b16 %v83
  %v376 = vunpack.c.l.b16 %v84
  %v377 = vunpack.c.l.b16 %v85
  %v378 = vunpack.c.l.b16 %v86
  %v379 = vunpack.c.l.b16 %v87
  %v380 = vunpack.c.l.b16 %v88
  %v381 = vunpack.c.l.b16 %v89
  %v382 = vunpack.c.l.b16 %v90
  %v383 = vunpack.c.l.b16 %v91
  %v384 = vunpack.c.l.b16 %v92
  %v385 = vunpack.c.l.b16 %v93
  %v386 = vunpack.c.l.b16 %v94
  %v387 = vunpack.c.l.b16 %v95
  %v388 = vunpack.c.l.b16 %v96
  %v389 = vunpack.c.l.b16 %v97
  %v390 = vpack.c.b16 %v376, %v375
  %v391 = vpack.c.b16 %v378, %v377
  %v392 = vpack.c.b16 %v380, %v379
  %v393 = vpack.c.b16 %v382, %v381
  %v394 = vpack.c.b16 %v384, %v383
  %v395 = vpack.c.b16 %v386, %v385
  %v396 = vpack.c.b16 %v388, %v387
  %v397 = vpack.c.b16 %v389, %v389
  %vm405 = vcmask 941056
  %v407 = vsel %vm405, %v356, 0
  %v410 = vsel %vm405, %v357, 0
  %v413 = vsel %vm405, %v358, 0
  %v416 = vsel %vm405, %v359, 0
  %vm418 = vcmask 1040384
  %vm419 = vcmask 1041408
  %v420 = vsel %vm418, 4294967295, 65535
  %v421 = vsel %vm419, %v420, 0
  %v423 = vand.u32 %v397, %v421
  %425 = vmatprep.subr.bf16.mxu0 0
  %426 = vmatpush1.bf16.msra.mxu0 %v390
  %427 = vmatprep.subr.bf16.mxu0 0
  %428 = vmatpush1.bf16.msra.mxu0 %v391
  %429 = vmatprep.subr.bf16.mxu0 0
  %430 = vmatpush1.bf16.msra.mxu0 %v392
  %431 = vmatprep.subr.bf16.mxu0 0
  %432 = vmatpush1.bf16.msra.mxu0 %v393
  %433 = vmatprep.subr.bf16.mxu0 0
  %434 = vmatpush1.bf16.msra.mxu0 %v394
  %435 = vmatprep.subr.bf16.mxu0 0
  %436 = vmatpush1.bf16.msra.mxu0 %v395
  %437 = vmatprep.subr.bf16.mxu0 0
  %438 = vmatpush1.bf16.msra.mxu0 %v396
  %439 = vmatprep.subr.bf16.mxu0 0
  %440 = vmatpush1.bf16.msra.mxu0 %v423
  %441 = vmatprep.subr.bf16.mxu0 0
  %442 = vmatpush1.bf16.msra.mxu0 0
  %443 = vmatprep.subr.bf16.mxu0 0
  %444 = vmatpush1.bf16.msra.mxu0 0
  %445 = vmatprep.subr.bf16.mxu0 0
  %446 = vmatpush1.bf16.msra.mxu0 0
  %447 = vmatprep.subr.bf16.mxu0 0
  %448 = vmatpush1.bf16.msra.mxu0 0
  %449 = vmatprep.subr.bf16.mxu0 0
  %450 = vmatpush1.bf16.msra.mxu0 0
  %451 = vmatprep.subr.bf16.mxu0 0
  %452 = vmatpush1.bf16.msra.mxu0 0
  %453 = vmatprep.subr.bf16.mxu0 0
  %454 = vmatpush1.bf16.msra.mxu0 0
  %455 = vmatprep.subr.bf16.mxu0 0
  %456 = vmatpush1.bf16.msra.mxu0 0
  %457 = vmatprep.mubr.bf16.mxu0 0
  %458 = vmatmul.mubr.bf16.gmra.mrb[0].mxu0 %v407
  %v459 = vpop.f32.mrb[0].mxu0
  %v460 = vadd.f32 0.0, %v459
  %v461 = vpop.f32.mrb[0].mxu0
  %v462 = vpop.f32.mrb[0].mxu0
  %v463 = vadd.f32 0.0, %v462
  %v464 = vpop.f32.mrb[0].mxu0
  %465 = vmatprep.mubr.bf16.mxu0 0
  %466 = vmatmul.mubr.bf16.gmra.mrb[0].mxu0 %v410
  %v467 = vpop.f32.mrb[0].mxu0
  %v468 = vadd.f32 0.0, %v467
  %v469 = vpop.f32.mrb[0].mxu0
  %v470 = vpop.f32.mrb[0].mxu0
  %v471 = vadd.f32 0.0, %v470
  %v472 = vpop.f32.mrb[0].mxu0
  %473 = vmatprep.mubr.bf16.mxu0 0
  %474 = vmatmul.mubr.bf16.gmra.mrb[0].mxu0 %v413
  %v475 = vpop.f32.mrb[0].mxu0
  %v476 = vadd.f32 0.0, %v475
  %v477 = vpop.f32.mrb[0].mxu0
  %v478 = vpop.f32.mrb[0].mxu0
  %v479 = vadd.f32 0.0, %v478
  %v480 = vpop.f32.mrb[0].mxu0
  %481 = vmatprep.mubr.bf16.mxu0 0
  %482 = vmatmul.mubr.bf16.gmra.mrb[0].mxu0 %v416
  %v483 = vpop.f32.mrb[0].mxu0
  %v484 = vadd.f32 0.0, %v483
  %v485 = vpop.f32.mrb[0].mxu0
  %v486 = vpop.f32.mrb[0].mxu0
  %v487 = vadd.f32 0.0, %v486
  %v488 = vpop.f32.mrb[0].mxu0
  %489 = vdwg.mxu0
  %v490 = vmax.f32 %v460, 0.0
  %v491 = vmax.f32 %v463, 0.0
  %v492 = vmax.f32 %v468, 0.0
  %v493 = vmax.f32 %v471, 0.0
  %v494 = vmax.f32 %v476, 0.0
  %v495 = vmax.f32 %v479, 0.0
  %v496 = vmax.f32 %v484, 0.0
  %v497 = vmax.f32 %v487, 0.0
  %v498 = vld [vmem:[%s6] sm:$0xff]
  %v499 = vld [vmem:[%s6 + $0x8] sm:$0xf]
  %v500 = vld [vmem:[%s6 + $0xc] sm:$0xff]
  %v501 = vld [vmem:[%s6 + $0x14] sm:$0xf]
  %v502 = vld [vmem:[%s6 + $0x18] sm:$0xff]
  %v503 = vld [vmem:[%s6 + $0x20] sm:$0xf]
  %v504 = vld [vmem:[%s6 + $0x24] sm:$0xff]
  %v505 = vld [vmem:[%s6 + $0x2c] sm:$0xf]
  %v506 = vld [vmem:[%s7] sm:$0xff]
  %v507 = vld [vmem:[%s7 + $0x8] sm:$0xff]
  %v508 = vld [vmem:[%s7 + $0x10] sm:$0xff]
  %v509 = vld [vmem:[%s7 + $0x18] sm:$0xff]
  %518 = vrot.lane.b32.xlu0 %v490, 127
  %v519 = vpop.permute.xlu0 %518
  %520 = vrot.lane.b32.xlu0 %v491, 127
  %v521 = vpop.permute.xlu0 %520
  %522 = vrot.lane.b32.xlu0 %v492, 127
  %v523 = vpop.permute.xlu0 %522
  %524 = vrot.lane.b32.xlu0 %v493, 127
  %v525 = vpop.permute.xlu0 %524
  %526 = vrot.lane.b32.xlu0 %v494, 127
  %v527 = vpop.permute.xlu0 %526
  %528 = vrot.lane.b32.xlu0 %v495, 127
  %v529 = vpop.permute.xlu0 %528
  %530 = vrot.lane.b32.xlu0 %v496, 127
  %v531 = vpop.permute.xlu0 %530
  %532 = vrot.lane.b32.xlu0 %v497, 127
  %v533 = vpop.permute.xlu0 %532
  %542 = vrot.lane.b32.xlu0 %v490, 126
  %v543 = vpop.permute.xlu0 %542
  %544 = vrot.lane.b32.xlu0 %v491, 126
  %v545 = vpop.permute.xlu0 %544
  %546 = vrot.lane.b32.xlu0 %v492, 126
  %v547 = vpop.permute.xlu0 %546
  %548 = vrot.lane.b32.xlu0 %v493, 126
  %v549 = vpop.permute.xlu0 %548
  %550 = vrot.lane.b32.xlu0 %v494, 126
  %v551 = vpop.permute.xlu0 %550
  %552 = vrot.lane.b32.xlu0 %v495, 126
  %v553 = vpop.permute.xlu0 %552
  %554 = vrot.lane.b32.xlu0 %v496, 126
  %v555 = vpop.permute.xlu0 %554
  %556 = vrot.lane.b32.xlu0 %v497, 126
  %v557 = vpop.permute.xlu0 %556
  %566 = vrot.lane.b32.xlu0 %v490, 125
  %v567 = vpop.permute.xlu0 %566
  %568 = vrot.lane.b32.xlu0 %v491, 125
  %v569 = vpop.permute.xlu0 %568
  %570 = vrot.lane.b32.xlu0 %v492, 125
  %v571 = vpop.permute.xlu0 %570
  %572 = vrot.lane.b32.xlu0 %v493, 125
  %v573 = vpop.permute.xlu0 %572
  %574 = vrot.lane.b32.xlu0 %v494, 125
  %v575 = vpop.permute.xlu0 %574
  %576 = vrot.lane.b32.xlu0 %v495, 125
  %v577 = vpop.permute.xlu0 %576
  %578 = vrot.lane.b32.xlu0 %v496, 125
  %v579 = vpop.permute.xlu0 %578
  %580 = vrot.lane.b32.xlu0 %v497, 125
  %v581 = vpop.permute.xlu0 %580
  %590 = vrot.lane.b32.xlu0 %v490, 124
  %v591 = vpop.permute.xlu0 %590
  %592 = vrot.lane.b32.xlu0 %v491, 124
  %v593 = vpop.permute.xlu0 %592
  %594 = vrot.lane.b32.xlu0 %v492, 124
  %v595 = vpop.permute.xlu0 %594
  %596 = vrot.lane.b32.xlu0 %v493, 124
  %v597 = vpop.permute.xlu0 %596
  %598 = vrot.lane.b32.xlu0 %v494, 124
  %v599 = vpop.permute.xlu0 %598
  %600 = vrot.lane.b32.xlu0 %v495, 124
  %v601 = vpop.permute.xlu0 %600
  %602 = vrot.lane.b32.xlu0 %v496, 124
  %v603 = vpop.permute.xlu0 %602
  %604 = vrot.lane.b32.xlu0 %v497, 124
  %v605 = vpop.permute.xlu0 %604
  %v614 = vpack.c.bf16 %v491, %v490
  %v615 = vpack.c.bf16 %v493, %v492
  %v616 = vpack.c.bf16 %v495, %v494
  %v617 = vpack.c.bf16 %v497, %v496
  %v618 = vpack.c.bf16 %v521, %v519
  %v619 = vpack.c.bf16 %v525, %v523
  %v620 = vpack.c.bf16 %v529, %v527
  %v621 = vpack.c.bf16 %v533, %v531
  %v622 = vpack.c.bf16 %v545, %v543
  %v623 = vpack.c.bf16 %v549, %v547
  %v624 = vpack.c.bf16 %v553, %v551
  %v625 = vpack.c.bf16 %v557, %v555
  %v626 = vpack.c.bf16 %v569, %v567
  %v627 = vpack.c.bf16 %v573, %v571
  %v628 = vpack.c.bf16 %v577, %v575
  %v629 = vpack.c.bf16 %v581, %v579
  %v630 = vpack.c.bf16 %v593, %v591
  %v631 = vpack.c.bf16 %v597, %v595
  %v632 = vpack.c.bf16 %v601, %v599
  %v633 = vpack.c.bf16 %v605, %v603
  %635 = vset.pattern.permute.xlu0 0
  %636 = vperm.xlu0 %635, %v506
  %v637 = vpop.permute.xlu0 %636
  %640 = vset.pattern.permute.xlu0 0
  %641 = vperm.xlu0 %640, %v507
  %v642 = vpop.permute.xlu0 %641
  %645 = vset.pattern.permute.xlu0 0
  %646 = vperm.xlu0 %645, %v508
  %v647 = vpop.permute.xlu0 %646
  %650 = vset.pattern.permute.xlu0 0
  %651 = vperm.xlu0 %650, %v509
  %v652 = vpop.permute.xlu0 %651
  %v662 = vunpack.c.l.b16 %v498
  %v663 = vunpack.c.h.b16 %v498
  %v664 = vunpack.c.l.b16 %v499
  %v665 = vunpack.c.l.b16 %v500
  %v666 = vunpack.c.h.b16 %v500
  %v667 = vunpack.c.l.b16 %v501
  %v668 = vunpack.c.l.b16 %v502
  %v669 = vunpack.c.h.b16 %v502
  %v670 = vunpack.c.l.b16 %v503
  %v671 = vunpack.c.l.b16 %v504
  %v672 = vunpack.c.h.b16 %v504
  %v673 = vunpack.c.l.b16 %v505
  %v674 = vpack.c.b16 %v665, %v662
  %v675 = vpack.c.b16 %v666, %v663
  %v676 = vpack.c.b16 %v667, %v664
  %v677 = vpack.c.b16 %v671, %v668
  %v678 = vpack.c.b16 %v672, %v669
  %v679 = vpack.c.b16 %v673, %v670
  %vm684 = vcmask 523264
  %v686 = vsel %vm684, %v676, 0
  %v689 = vsel %vm684, %v679, 0
  %691 = vmatprep.subr.bf16.mxu0 0
  %692 = vmatpush1.bf16.msra.mxu0 %v614
  %693 = vmatprep.subr.bf16.mxu0 0
  %694 = vmatpush1.bf16.msra.mxu0 %v615
  %695 = vmatprep.subr.bf16.mxu0 0
  %696 = vmatpush1.bf16.msra.mxu0 %v616
  %697 = vmatprep.subr.bf16.mxu0 0
  %698 = vmatpush1.bf16.msra.mxu0 %v617
  %699 = vmatprep.subr.bf16.mxu0 0
  %700 = vmatpush1.bf16.msra.mxu0 %v618
  %701 = vmatprep.subr.bf16.mxu0 0
  %702 = vmatpush1.bf16.msra.mxu0 %v619
  %703 = vmatprep.subr.bf16.mxu0 0
  %704 = vmatpush1.bf16.msra.mxu0 %v620
  %705 = vmatprep.subr.bf16.mxu0 0
  %706 = vmatpush1.bf16.msra.mxu0 %v621
  %707 = vmatprep.subr.bf16.mxu0 0
  %708 = vmatpush1.bf16.msra.mxu0 %v622
  %709 = vmatprep.subr.bf16.mxu0 0
  %710 = vmatpush1.bf16.msra.mxu0 %v623
  %711 = vmatprep.subr.bf16.mxu0 0
  %712 = vmatpush1.bf16.msra.mxu0 %v624
  %713 = vmatprep.subr.bf16.mxu0 0
  %714 = vmatpush1.bf16.msra.mxu0 %v625
  %715 = vmatprep.subr.bf16.mxu0 0
  %716 = vmatpush1.bf16.msra.mxu0 %v626
  %717 = vmatprep.subr.bf16.mxu0 0
  %718 = vmatpush1.bf16.msra.mxu0 %v627
  %719 = vmatprep.subr.bf16.mxu0 0
  %720 = vmatpush1.bf16.msra.mxu0 %v628
  %721 = vmatprep.subr.bf16.mxu0 0
  %722 = vmatpush1.bf16.msra.mxu0 %v629
  %723 = vmatprep.mubr.bf16.mxu0 %v675
  %724 = vmatmul.mubr.bf16.gmra.mrb[0].mxu0 %v674
  %v725 = vpop.f32.mrb[0].mxu0
  %v726 = vadd.f32 %v637, %v725
  %v727 = vpop.f32.mrb[0].mxu0
  %v728 = vpop.f32.mrb[0].mxu0
  %v729 = vadd.f32 %v642, %v728
  %v730 = vpop.f32.mrb[0].mxu0
  %731 = vmatprep.mubr.bf16.mxu0 %v678
  %732 = vmatmul.mubr.bf16.gmra.mrb[0].mxu0 %v677
  %v733 = vpop.f32.mrb[0].mxu0
  %v734 = vadd.f32 %v647, %v733
  %v735 = vpop.f32.mrb[0].mxu0
  %v736 = vpop.f32.mrb[0].mxu0
  %v737 = vadd.f32 %v652, %v736
  %v738 = vpop.f32.mrb[0].mxu0
  %739 = vdwg.mxu0
  %740 = vmatprep.subr.bf16.mxu0 0
  %741 = vmatpush1.bf16.msra.mxu0 %v630
  %742 = vmatprep.subr.bf16.mxu0 0
  %743 = vmatpush1.bf16.msra.mxu0 %v631
  %744 = vmatprep.subr.bf16.mxu0 0
  %745 = vmatpush1.bf16.msra.mxu0 %v632
  %746 = vmatprep.subr.bf16.mxu0 0
  %747 = vmatpush1.bf16.msra.mxu0 %v633
  %748 = vmatprep.subr.bf16.mxu0 0
  %749 = vmatpush1.bf16.msra.mxu0 0
  %750 = vmatprep.subr.bf16.mxu0 0
  %751 = vmatpush1.bf16.msra.mxu0 0
  %752 = vmatprep.subr.bf16.mxu0 0
  %753 = vmatpush1.bf16.msra.mxu0 0
  %754 = vmatprep.subr.bf16.mxu0 0
  %755 = vmatpush1.bf16.msra.mxu0 0
  %756 = vmatprep.subr.bf16.mxu0 0
  %757 = vmatpush1.bf16.msra.mxu0 0
  %758 = vmatprep.subr.bf16.mxu0 0
  %759 = vmatpush1.bf16.msra.mxu0 0
  %760 = vmatprep.subr.bf16.mxu0 0
  %761 = vmatpush1.bf16.msra.mxu0 0
  %762 = vmatprep.subr.bf16.mxu0 0
  %763 = vmatpush1.bf16.msra.mxu0 0
  %764 = vmatprep.subr.bf16.mxu0 0
  %765 = vmatpush1.bf16.msra.mxu0 0
  %766 = vmatprep.subr.bf16.mxu0 0
  %767 = vmatpush1.bf16.msra.mxu0 0
  %768 = vmatprep.subr.bf16.mxu0 0
  %769 = vmatpush1.bf16.msra.mxu0 0
  %770 = vmatprep.subr.bf16.mxu0 0
  %771 = vmatpush1.bf16.msra.mxu0 0
  %772 = vmatprep.mubr.bf16.mxu0 0
  %773 = vmatmul.mubr.bf16.gmra.mrb[0].mxu0 %v686
  %v774 = vpop.f32.mrb[0].mxu0
  %v775 = vadd.f32 %v726, %v774
  %v776 = vpop.f32.mrb[0].mxu0
  %v777 = vpop.f32.mrb[0].mxu0
  %v778 = vadd.f32 %v729, %v777
  %v779 = vpop.f32.mrb[0].mxu0
  %780 = vmatprep.mubr.bf16.mxu0 0
  %781 = vmatmul.mubr.bf16.gmra.mrb[0].mxu0 %v689
  %v782 = vpop.f32.mrb[0].mxu0
  %v783 = vadd.f32 %v734, %v782
  %v784 = vpop.f32.mrb[0].mxu0
  %v785 = vpop.f32.mrb[0].mxu0
  %v786 = vadd.f32 %v737, %v785
  %v787 = vpop.f32.mrb[0].mxu0
  %788 = vdwg.mxu0
  %793 = vrot.lane.b32.xlu0 %v775, 127
  %v794 = vpop.permute.xlu0 %793
  %795 = vrot.lane.b32.xlu0 %v778, 127
  %v796 = vpop.permute.xlu0 %795
  %797 = vrot.lane.b32.xlu0 %v783, 127
  %v798 = vpop.permute.xlu0 %797
  %799 = vrot.lane.b32.xlu0 %v786, 127
  %v800 = vpop.permute.xlu0 %799
  %v805 = vmax.f32 %v775, %v794
  %v806 = vmax.f32 %v778, %v796
  %v807 = vmax.f32 %v783, %v798
  %v808 = vmax.f32 %v786, %v800
  %v809 = vpack.c.bf16 %v806, %v805
  %v810 = vpack.c.bf16 %v808, %v807
  %v818 = vunpack.c.l.b16 %v98
  %v819 = vunpack.c.l.b16 %v99
  %v820 = vunpack.c.l.b16 %v100
  %v821 = vunpack.c.l.b16 %v101
  %v822 = vunpack.c.l.b16 %v102
  %v823 = vunpack.c.l.b16 %v103
  %v824 = vunpack.c.l.b16 %v104
  %v825 = vpack.c.b16 %v819, %v818
  %v826 = vpack.c.b16 %v821, %v820
  %v827 = vpack.c.b16 %v823, %v822
  %v828 = vpack.c.b16 %v824, %v824
  %vm832 = vcmask 416768
  %v834 = vsel %vm832, %v809, 0
  %v837 = vsel %vm832, %v810, 0
  %v840 = vand.u32 %v828, %v421
  %842 = vmatprep.subr.bf16.mxu0 0
  %843 = vmatpush1.bf16.msra.mxu0 %v825
  %844 = vmatprep.subr.bf16.mxu0 0
  %845 = vmatpush1.bf16.msra.mxu0 %v826
  %846 = vmatprep.subr.bf16.mxu0 0
  %847 = vmatpush1.bf16.msra.mxu0 %v827
  %848 = vmatprep.subr.bf16.mxu0 0
  %849 = vmatpush1.bf16.msra.mxu0 %v840
  %850 = vmatprep.subr.bf16.mxu0 0
  %851 = vmatpush1.bf16.msra.mxu0 0
  %852 = vmatprep.subr.bf16.mxu0 0
  %853 = vmatpush1.bf16.msra.mxu0 0
  %854 = vmatprep.subr.bf16.mxu0 0
  %855 = vmatpush1.bf16.msra.mxu0 0
  %856 = vmatprep.subr.bf16.mxu0 0
  %857 = vmatpush1.bf16.msra.mxu0 0
  %858 = vmatprep.subr.bf16.mxu0 0
  %859 = vmatpush1.bf16.msra.mxu0 0
  %860 = vmatprep.subr.bf16.mxu0 0
  %861 = vmatpush1.bf16.msra.mxu0 0
  %862 = vmatprep.subr.bf16.mxu0 0
  %863 = vmatpush1.bf16.msra.mxu0 0
  %864 = vmatprep.subr.bf16.mxu0 0
  %865 = vmatpush1.bf16.msra.mxu0 0
  %866 = vmatprep.subr.bf16.mxu0 0
  %867 = vmatpush1.bf16.msra.mxu0 0
  %868 = vmatprep.subr.bf16.mxu0 0
  %869 = vmatpush1.bf16.msra.mxu0 0
  %870 = vmatprep.subr.bf16.mxu0 0
  %871 = vmatpush1.bf16.msra.mxu0 0
  %872 = vmatprep.subr.bf16.mxu0 0
  %873 = vmatpush1.bf16.msra.mxu0 0
  %874 = vmatprep.mubr.bf16.mxu0 0
  %875 = vmatmul.mubr.bf16.gmra.mrb[0].mxu0 %v834
  %v876 = vpop.f32.mrb[0].mxu0
  %v877 = vadd.f32 0.0, %v876
  %v878 = vpop.f32.mrb[0].mxu0
  %v879 = vpop.f32.mrb[0].mxu0
  %v880 = vadd.f32 0.0, %v879
  %v881 = vpop.f32.mrb[0].mxu0
  %882 = vmatprep.mubr.bf16.mxu0 0
  %883 = vmatmul.mubr.bf16.gmra.mrb[0].mxu0 %v837
  %v884 = vpop.f32.mrb[0].mxu0
  %v885 = vadd.f32 0.0, %v884
  %v886 = vpop.f32.mrb[0].mxu0
  %v887 = vpop.f32.mrb[0].mxu0
  %v888 = vadd.f32 0.0, %v887
  %v889 = vpop.f32.mrb[0].mxu0
  %890 = vdwg.mxu0
  %v891 = vmax.f32 %v877, 0.0
  %v892 = vmax.f32 %v880, 0.0
  %v893 = vmax.f32 %v885, 0.0
  %v894 = vmax.f32 %v888, 0.0
  %v895 = vld [vmem:[%s8] sm:$0xff]
  %v896 = vld [vmem:[%s8 + $0x8] sm:$0xff]
  %v897 = vld [vmem:[%s8 + $0x10] sm:$0xff]
  %v898 = vld [vmem:[%s8 + $0x18] sm:$0xff]
  %v899 = vld [vmem:[%s9] sm:$0xff]
  %v900 = vld [vmem:[%s9 + $0x8] sm:$0xff]
  %v901 = vld [vmem:[%s9 + $0x10] sm:$0xff]
  %v902 = vld [vmem:[%s9 + $0x18] sm:$0xff]
  %907 = vrot.lane.b32.xlu0 %v891, 127
  %v908 = vpop.permute.xlu0 %907
  %909 = vrot.lane.b32.xlu0 %v892, 127
  %v910 = vpop.permute.xlu0 %909
  %911 = vrot.lane.b32.xlu0 %v893, 127
  %v912 = vpop.permute.xlu0 %911
  %913 = vrot.lane.b32.xlu0 %v894, 127
  %v914 = vpop.permute.xlu0 %913
  %919 = vrot.lane.b32.xlu0 %v891, 126
  %v920 = vpop.permute.xlu0 %919
  %921 = vrot.lane.b32.xlu0 %v892, 126
  %v922 = vpop.permute.xlu0 %921
  %923 = vrot.lane.b32.xlu0 %v893, 126
  %v924 = vpop.permute.xlu0 %923
  %925 = vrot.lane.b32.xlu0 %v894, 126
  %v926 = vpop.permute.xlu0 %925
  %931 = vrot.lane.b32.xlu0 %v891, 125
  %v932 = vpop.permute.xlu0 %931
  %933 = vrot.lane.b32.xlu0 %v892, 125
  %v934 = vpop.permute.xlu0 %933
  %935 = vrot.lane.b32.xlu0 %v893, 125
  %v936 = vpop.permute.xlu0 %935
  %937 = vrot.lane.b32.xlu0 %v894, 125
  %v938 = vpop.permute.xlu0 %937
  %943 = vrot.lane.b32.xlu0 %v891, 124
  %v944 = vpop.permute.xlu0 %943
  %945 = vrot.lane.b32.xlu0 %v892, 124
  %v946 = vpop.permute.xlu0 %945
  %947 = vrot.lane.b32.xlu0 %v893, 124
  %v948 = vpop.permute.xlu0 %947
  %949 = vrot.lane.b32.xlu0 %v894, 124
  %v950 = vpop.permute.xlu0 %949
  %v955 = vpack.c.bf16 %v892, %v891
  %v956 = vpack.c.bf16 %v894, %v893
  %v957 = vpack.c.bf16 %v910, %v908
  %v958 = vpack.c.bf16 %v914, %v912
  %v959 = vpack.c.bf16 %v922, %v920
  %v960 = vpack.c.bf16 %v926, %v924
  %v961 = vpack.c.bf16 %v934, %v932
  %v962 = vpack.c.bf16 %v938, %v936
  %v963 = vpack.c.bf16 %v946, %v944
  %v964 = vpack.c.bf16 %v950, %v948
  %966 = vset.pattern.permute.xlu0 0
  %967 = vperm.xlu0 %966, %v899
  %v968 = vpop.permute.xlu0 %967
  %971 = vset.pattern.permute.xlu0 0
  %972 = vperm.xlu0 %971, %v900
  %v973 = vpop.permute.xlu0 %972
  %976 = vset.pattern.permute.xlu0 0
  %977 = vperm.xlu0 %976, %v901
  %v978 = vpop.permute.xlu0 %977
  %981 = vset.pattern.permute.xlu0 0
  %982 = vperm.xlu0 %981, %v902
  %v983 = vpop.permute.xlu0 %982
  %v989 = vunpack.c.l.b16 %v895
  %v990 = vunpack.c.h.b16 %v895
  %v991 = vunpack.c.l.b16 %v896
  %v992 = vunpack.c.h.b16 %v896
  %v993 = vunpack.c.l.b16 %v897
  %v994 = vunpack.c.h.b16 %v897
  %v995 = vunpack.c.l.b16 %v898
  %v996 = vunpack.c.h.b16 %v898
  %v997 = vpack.c.b16 %v991, %v989
  %v998 = vpack.c.b16 %v992, %v990
  %v999 = vpack.c.b16 %v995, %v993
  %v1000 = vpack.c.b16 %v996, %v994
  %vm1003 = vcmask 261120
  %v1005 = vsel %vm1003, %v998, 0
  %v1008 = vsel %vm1003, %v1000, 0
  %1010 = vmatprep.subr.bf16.mxu0 0
  %1011 = vmatpush1.bf16.msra.mxu0 %v955
  %1012 = vmatprep.subr.bf16.mxu0 0
  %1013 = vmatpush1.bf16.msra.mxu0 %v956
  %1014 = vmatprep.subr.bf16.mxu0 0
  %1015 = vmatpush1.bf16.msra.mxu0 %v957
  %1016 = vmatprep.subr.bf16.mxu0 0
  %1017 = vmatpush1.bf16.msra.mxu0 %v958
  %1018 = vmatprep.subr.bf16.mxu0 0
  %1019 = vmatpush1.bf16.msra.mxu0 %v959
  %1020 = vmatprep.subr.bf16.mxu0 0
  %1021 = vmatpush1.bf16.msra.mxu0 %v960
  %1022 = vmatprep.subr.bf16.mxu0 0
  %1023 = vmatpush1.bf16.msra.mxu0 %v961
  %1024 = vmatprep.subr.bf16.mxu0 0
  %1025 = vmatpush1.bf16.msra.mxu0 %v962
  %1026 = vmatprep.subr.bf16.mxu0 0
  %1027 = vmatpush1.bf16.msra.mxu0 %v963
  %1028 = vmatprep.subr.bf16.mxu0 0
  %1029 = vmatpush1.bf16.msra.mxu0 %v964
  %1030 = vmatprep.subr.bf16.mxu0 0
  %1031 = vmatpush1.bf16.msra.mxu0 0
  %1032 = vmatprep.subr.bf16.mxu0 0
  %1033 = vmatpush1.bf16.msra.mxu0 0
  %1034 = vmatprep.subr.bf16.mxu0 0
  %1035 = vmatpush1.bf16.msra.mxu0 0
  %1036 = vmatprep.subr.bf16.mxu0 0
  %1037 = vmatpush1.bf16.msra.mxu0 0
  %1038 = vmatprep.subr.bf16.mxu0 0
  %1039 = vmatpush1.bf16.msra.mxu0 0
  %1040 = vmatprep.subr.bf16.mxu0 0
  %1041 = vmatpush1.bf16.msra.mxu0 0
  %1042 = vmatprep.mubr.bf16.mxu0 %v1005
  %1043 = vmatmul.mubr.bf16.gmra.mrb[0].mxu0 %v997
  %v1044 = vpop.f32.mrb[0].mxu0
  %v1045 = vadd.f32 %v968, %v1044
  %v1046 = vpop.f32.mrb[0].mxu0
  %v1047 = vpop.f32.mrb[0].mxu0
  %v1048 = vadd.f32 %v973, %v1047
  %v1049 = vpop.f32.mrb[0].mxu0
  %1050 = vmatprep.mubr.bf16.mxu0 %v1008
  %1051 = vmatmul.mubr.bf16.gmra.mrb[0].mxu0 %v999
  %v1052 = vpop.f32.mrb[0].mxu0
  %v1053 = vadd.f32 %v978, %v1052
  %v1054 = vpop.f32.mrb[0].mxu0
  %v1055 = vpop.f32.mrb[0].mxu0
  %v1056 = vadd.f32 %v983, %v1055
  %v1057 = vpop.f32.mrb[0].mxu0
  %1058 = vdwg.mxu0
  %1063 = vrot.lane.b32.xlu0 %v1045, 127
  %v1064 = vpop.permute.xlu0 %1063
  %1065 = vrot.lane.b32.xlu0 %v1048, 127
  %v1066 = vpop.permute.xlu0 %1065
  %1067 = vrot.lane.b32.xlu0 %v1053, 127
  %v1068 = vpop.permute.xlu0 %1067
  %1069 = vrot.lane.b32.xlu0 %v1056, 127
  %v1070 = vpop.permute.xlu0 %1069
  %v1075 = vmax.f32 %v1045, %v1064
  %v1076 = vmax.f32 %v1048, %v1066
  %v1077 = vmax.f32 %v1053, %v1068
  %v1078 = vmax.f32 %v1056, %v1070
  %v1079 = vpack.c.bf16 %v1076, %v1075
  %v1080 = vpack.c.bf16 %v1078, %v1077
  %v1084 = vunpack.c.l.b16 %v105
  %v1085 = vunpack.c.l.b16 %v106
  %v1086 = vunpack.c.l.b16 %v107
  %v1087 = vpack.c.b16 %v1085, %v1084
  %v1088 = vpack.c.b16 %v1086, %v1086
  %vm1090 = vcmask 154624
  %v1092 = vsel %vm1090, %v1079, 0
  %v1095 = vsel %vm1090, %v1080, 0
  %v1098 = vand.u32 %v1088, %v421
  %1100 = vmatprep.subr.bf16.mxu0 0
  %1101 = vmatpush1.bf16.msra.mxu0 %v1087
  %1102 = vmatprep.subr.bf16.mxu0 0
  %1103 = vmatpush1.bf16.msra.mxu0 %v1098
  %1104 = vmatprep.subr.bf16.mxu0 0
  %1105 = vmatpush1.bf16.msra.mxu0 0
  %1106 = vmatprep.subr.bf16.mxu0 0
  %1107 = vmatpush1.bf16.msra.mxu0 0
  %1108 = vmatprep.subr.bf16.mxu0 0
  %1109 = vmatpush1.bf16.msra.mxu0 0
  %1110 = vmatprep.subr.bf16.mxu0 0
  %1111 = vmatpush1.bf16.msra.mxu0 0
  %1112 = vmatprep.subr.bf16.mxu0 0
  %1113 = vmatpush1.bf16.msra.mxu0 0
  %1114 = vmatprep.subr.bf16.mxu0 0
  %1115 = vmatpush1.bf16.msra.mxu0 0
  %1116 = vmatprep.subr.bf16.mxu0 0
  %1117 = vmatpush1.bf16.msra.mxu0 0
  %1118 = vmatprep.subr.bf16.mxu0 0
  %1119 = vmatpush1.bf16.msra.mxu0 0
  %1120 = vmatprep.subr.bf16.mxu0 0
  %1121 = vmatpush1.bf16.msra.mxu0 0
  %1122 = vmatprep.subr.bf16.mxu0 0
  %1123 = vmatpush1.bf16.msra.mxu0 0
  %1124 = vmatprep.subr.bf16.mxu0 0
  %1125 = vmatpush1.bf16.msra.mxu0 0
  %1126 = vmatprep.subr.bf16.mxu0 0
  %1127 = vmatpush1.bf16.msra.mxu0 0
  %1128 = vmatprep.subr.bf16.mxu0 0
  %1129 = vmatpush1.bf16.msra.mxu0 0
  %1130 = vmatprep.subr.bf16.mxu0 0
  %1131 = vmatpush1.bf16.msra.mxu0 0
  %1132 = vmatprep.mubr.bf16.mxu0 0
  %1133 = vmatmul.mubr.bf16.gmra.mrb[0].mxu0 %v1092
  %v1134 = vpop.f32.mrb[0].mxu0
  %v1135 = vadd.f32 0.0, %v1134
  %v1136 = vpop.f32.mrb[0].mxu0
  %v1137 = vpop.f32.mrb[0].mxu0
  %v1138 = vadd.f32 0.0, %v1137
  %v1139 = vpop.f32.mrb[0].mxu0
  %1140 = vmatprep.mubr.bf16.mxu0 0
  %1141 = vmatmul.mubr.bf16.gmra.mrb[0].mxu0 %v1095
  %v1142 = vpop.f32.mrb[0].mxu0
  %v1143 = vadd.f32 0.0, %v1142
  %v1144 = vpop.f32.mrb[0].mxu0
  %v1145 = vpop.f32.mrb[0].mxu0
  %v1146 = vadd.f32 0.0, %v1145
  %v1147 = vpop.f32.mrb[0].mxu0
  %1148 = vdwg.mxu0
  %v1149 = vmax.f32 %v1135, 0.0
  %v1150 = vmax.f32 %v1138, 0.0
  %v1151 = vmax.f32 %v1143, 0.0
  %v1152 = vmax.f32 %v1146, 0.0
  %1153 = vxpose.xlu0.b32.start [1/16] %v1149, 128
  %1154 = vxpose.xlu0.b32.cont [2/16] %v1150, 128
  %1155 = vxpose.xlu0.b32.cont [3/16] %v1151, 128
  %1156 = vxpose.xlu0.b32.cont [4/16] %v1152, 128
  %1157 = vxpose.xlu0.b32.cont [5/16] 0.0, 128
  %1158 = vxpose.xlu0.b32.cont [6/16] 0.0, 128
  %1159 = vxpose.xlu0.b32.cont [7/16] 0.0, 128
  %1160 = vxpose.xlu0.b32.cont [8/16] 0.0, 128
  %1161 = vxpose.xlu0.b32.cont [9/16] 0.0, 128
  %1162 = vxpose.xlu0.b32.cont [10/16] 0.0, 128
  %1163 = vxpose.xlu0.b32.cont [11/16] 0.0, 128
  %1164 = vxpose.xlu0.b32.cont [12/16] 0.0, 128
  %1165 = vxpose.xlu0.b32.cont [13/16] 0.0, 128
  %1166 = vxpose.xlu0.b32.cont [14/16] 0.0, 128
  %1167 = vxpose.xlu0.b32.cont [15/16] 0.0, 128
  %1168 = vxpose.xlu0.b32.end [16/16] 0.0, 128
  %v1169 = vpop.trf.xlu0
  %v1170 = vpop.trf.xlu0
  %v1171 = vpop.trf.xlu0
  %v1172 = vpop.trf.xlu0
  %v1173 = vpop.trf.xlu0
  %v1174 = vpop.trf.xlu0
  %v1175 = vpop.trf.xlu0
  %v1176 = vpop.trf.xlu0
  %v1177 = vpop.trf.xlu0
  %v1178 = vpop.trf.xlu0
  %v1179 = vpop.trf.xlu0
  %v1180 = vpop.trf.xlu0
  %v1181 = vpop.trf.xlu0
  %v1182 = vpop.trf.xlu0
  %v1183 = vpop.trf.xlu0
  %v1184 = vpop.trf.xlu0
  %v1185 = vld [vmem:[%s10] sm:$0xf]
  %v1186 = vld [vmem:[%s10 + $0x4] sm:$0xf]
  %v1187 = vld [vmem:[%s10 + $0x8] sm:$0xf]
  %v1188 = vld [vmem:[%s10 + $0xc] sm:$0xf]
  %v1189 = vld [vmem:[%s10 + $0x10] sm:$0xf]
  %v1190 = vld [vmem:[%s10 + $0x14] sm:$0xf]
  %v1191 = vld [vmem:[%s10 + $0x18] sm:$0xf]
  %v1192 = vld [vmem:[%s10 + $0x1c] sm:$0xf]
  %v1193 = vld [vmem:[%s10 + $0x20] sm:$0xf]
  %v1194 = vld [vmem:[%s10 + $0x24] sm:$0xf]
  %v1195 = vld [vmem:[%s10 + $0x28] sm:$0xf]
  %v1196 = vld [vmem:[%s10 + $0x2c] sm:$0xf]
  %v1197 = vld [vmem:[%s10 + $0x30] sm:$0xf]
  %v1198 = vld [vmem:[%s10 + $0x34] sm:$0xf]
  %v1199 = vld [vmem:[%s10 + $0x38] sm:$0xf]
  %v1200 = vld [vmem:[%s10 + $0x3c] sm:$0xf]
  %v1202 = vrot.slane %v1169, 3
  %v1204 = vsel %vm418, %v1169, %v1202
  %v1205 = vpack.c.bf16 %v1204, %v1204
  %v1206 = vrot.slane %v1169, 1
  %v1208 = vrot.slane %v1169, 4
  %v1210 = vsel %vm418, %v1206, %v1208
  %v1211 = vpack.c.bf16 %v1210, %v1210
  %v1216 = vunpack.c.l.b16 %v1189
  %v1217 = vunpack.c.l.b16 %v1190
  %v1218 = vunpack.c.l.b16 %v1191
  %v1219 = vunpack.c.l.b16 %v1192
  %v1220 = vpack.c.b16 %v1217, %v1216
  %v1221 = vpack.c.b16 %v1219, %v1218
  %v1225 = vsel %vm1003, %v1211, 0
  %1227 = vmatprep.subr.bf16.mxu0 0
  %1228 = vmatpush1.bf16.msra.mxu0 %v1220
  %1229 = vmatprep.subr.bf16.mxu0 0
  %1230 = vmatpush1.bf16.msra.mxu0 %v1221
  %1231 = vmatprep.subr.bf16.mxu0 0
  %1232 = vmatpush1.bf16.msra.mxu0 0
  %1233 = vmatprep.subr.bf16.mxu0 0
  %1234 = vmatpush1.bf16.msra.mxu0 0
  %1235 = vmatprep.subr.bf16.mxu0 0
  %1236 = vmatpush1.bf16.msra.mxu0 0
  %1237 = vmatprep.subr.bf16.mxu0 0
  %1238 = vmatpush1.bf16.msra.mxu0 0
  %1239 = vmatprep.subr.bf16.mxu0 0
  %1240 = vmatpush1.bf16.msra.mxu0 0
  %1241 = vmatprep.subr.bf16.mxu0 0
  %1242 = vmatpush1.bf16.msra.mxu0 0
  %1243 = vmatprep.subr.bf16.mxu0 0
  %1244 = vmatpush1.bf16.msra.mxu0 0
  %1245 = vmatprep.subr.bf16.mxu0 0
  %1246 = vmatpush1.bf16.msra.mxu0 0
  %1247 = vmatprep.subr.bf16.mxu0 0
  %1248 = vmatpush1.bf16.msra.mxu0 0
  %1249 = vmatprep.subr.bf16.mxu0 0
  %1250 = vmatpush1.bf16.msra.mxu0 0
  %1251 = vmatprep.subr.bf16.mxu0 0
  %1252 = vmatpush1.bf16.msra.mxu0 0
  %1253 = vmatprep.subr.bf16.mxu0 0
  %1254 = vmatpush1.bf16.msra.mxu0 0
  %1255 = vmatprep.subr.bf16.mxu0 0
  %1256 = vmatpush1.bf16.msra.mxu0 0
  %1257 = vmatprep.subr.bf16.mxu0 0
  %1258 = vmatpush1.bf16.msra.mxu0 0
  %1259 = vmatprep.mubr.bf16.mxu0 0
  %1260 = vmatmul.mubr.bf16.gmra.mrb[0].mxu0 %v1225
  %v1261 = vpop.f32.mrb[0].mxu0
  %v1262 = vadd.f32 0.0, %v1261
  %v1263 = vpop.f32.mrb[0].mxu0
  %v1264 = vpop.f32.mrb[0].mxu0
  %v1265 = vpop.f32.mrb[0].mxu0
  %1266 = vdwg.mxu0
  %v1271 = vunpack.c.l.b16 %v1185
  %v1272 = vunpack.c.l.b16 %v1186
  %v1273 = vunpack.c.l.b16 %v1187
  %v1274 = vunpack.c.l.b16 %v1188
  %v1275 = vpack.c.b16 %v1272, %v1271
  %v1276 = vpack.c.b16 %v1274, %v1273
  %v1280 = vsel %vm1003, %v1205, 0
  %1282 = vmatprep.subr.bf16.mxu0 0
  %1283 = vmatpush1.bf16.msra.mxu0 %v1275
  %1284 = vmatprep.subr.bf16.mxu0 0
  %1285 = vmatpush1.bf16.msra.mxu0 %v1276
  %1286 = vmatprep.subr.bf16.mxu0 0
  %1287 = vmatpush1.bf16.msra.mxu0 0
  %1288 = vmatprep.subr.bf16.mxu0 0
  %1289 = vmatpush1.bf16.msra.mxu0 0
  %1290 = vmatprep.subr.bf16.mxu0 0
  %1291 = vmatpush1.bf16.msra.mxu0 0
  %1292 = vmatprep.subr.bf16.mxu0 0
  %1293 = vmatpush1.bf16.msra.mxu0 0
  %1294 = vmatprep.subr.bf16.mxu0 0
  %1295 = vmatpush1.bf16.msra.mxu0 0
  %1296 = vmatprep.subr.bf16.mxu0 0
  %1297 = vmatpush1.bf16.msra.mxu0 0
  %1298 = vmatprep.subr.bf16.mxu0 0
  %1299 = vmatpush1.bf16.msra.mxu0 0
  %1300 = vmatprep.subr.bf16.mxu0 0
  %1301 = vmatpush1.bf16.msra.mxu0 0
  %1302 = vmatprep.subr.bf16.mxu0 0
  %1303 = vmatpush1.bf16.msra.mxu0 0
  %1304 = vmatprep.subr.bf16.mxu0 0
  %1305 = vmatpush1.bf16.msra.mxu0 0
  %1306 = vmatprep.subr.bf16.mxu0 0
  %1307 = vmatpush1.bf16.msra.mxu0 0
  %1308 = vmatprep.subr.bf16.mxu0 0
  %1309 = vmatpush1.bf16.msra.mxu0 0
  %1310 = vmatprep.subr.bf16.mxu0 0
  %1311 = vmatpush1.bf16.msra.mxu0 0
  %1312 = vmatprep.subr.bf16.mxu0 0
  %1313 = vmatpush1.bf16.msra.mxu0 0
  %1314 = vmatprep.mubr.bf16.mxu0 0
  %1315 = vmatmul.mubr.bf16.gmra.mrb[0].mxu0 %v1280
  %v1316 = vpop.f32.mrb[0].mxu0
  %v1317 = vadd.f32 %v1262, %v1316
  %v1318 = vpop.f32.mrb[0].mxu0
  %v1319 = vpop.f32.mrb[0].mxu0
  %v1320 = vpop.f32.mrb[0].mxu0
  %1321 = vdwg.mxu0
  %v1322 = vrot.slane %v1169, 2
  %v1324 = vrot.slane %v1169, 5
  %v1326 = vsel %vm418, %v1322, %v1324
  %v1327 = vpack.c.bf16 %v1326, %v1326
  %v1332 = vunpack.c.l.b16 %v1193
  %v1333 = vunpack.c.l.b16 %v1194
  %v1334 = vunpack.c.l.b16 %v1195
  %v1335 = vunpack.c.l.b16 %v1196
  %v1336 = vpack.c.b16 %v1333, %v1332
  %v1337 = vpack.c.b16 %v1335, %v1334
  %v1341 = vsel %vm1003, %v1327, 0
  %1343 = vmatprep.subr.bf16.mxu0 0
  %1344 = vmatpush1.bf16.msra.mxu0 %v1336
  %1345 = vmatprep.subr.bf16.mxu0 0
  %1346 = vmatpush1.bf16.msra.mxu0 %v1337
  %1347 = vmatprep.subr.bf16.mxu0 0
  %1348 = vmatpush1.bf16.msra.mxu0 0
  %1349 = vmatprep.subr.bf16.mxu0 0
  %1350 = vmatpush1.bf16.msra.mxu0 0
  %1351 = vmatprep.subr.bf16.mxu0 0
  %1352 = vmatpush1.bf16.msra.mxu0 0
  %1353 = vmatprep.subr.bf16.mxu0 0
  %1354 = vmatpush1.bf16.msra.mxu0 0
  %1355 = vmatprep.subr.bf16.mxu0 0
  %1356 = vmatpush1.bf16.msra.mxu0 0
  %1357 = vmatprep.subr.bf16.mxu0 0
  %1358 = vmatpush1.bf16.msra.mxu0 0
  %1359 = vmatprep.subr.bf16.mxu0 0
  %1360 = vmatpush1.bf16.msra.mxu0 0
  %1361 = vmatprep.subr.bf16.mxu0 0
  %1362 = vmatpush1.bf16.msra.mxu0 0
  %1363 = vmatprep.subr.bf16.mxu0 0
  %1364 = vmatpush1.bf16.msra.mxu0 0
  %1365 = vmatprep.subr.bf16.mxu0 0
  %1366 = vmatpush1.bf16.msra.mxu0 0
  %1367 = vmatprep.subr.bf16.mxu0 0
  %1368 = vmatpush1.bf16.msra.mxu0 0
  %1369 = vmatprep.subr.bf16.mxu0 0
  %1370 = vmatpush1.bf16.msra.mxu0 0
  %1371 = vmatprep.subr.bf16.mxu0 0
  %1372 = vmatpush1.bf16.msra.mxu0 0
  %1373 = vmatprep.subr.bf16.mxu0 0
  %1374 = vmatpush1.bf16.msra.mxu0 0
  %1375 = vmatprep.mubr.bf16.mxu0 0
  %1376 = vmatmul.mubr.bf16.gmra.mrb[0].mxu0 %v1341
  %v1377 = vpop.f32.mrb[0].mxu0
  %v1378 = vadd.f32 0.0, %v1377
  %v1379 = vpop.f32.mrb[0].mxu0
  %v1380 = vpop.f32.mrb[0].mxu0
  %v1381 = vpop.f32.mrb[0].mxu0
  %1382 = vdwg.mxu0
  %v1383 = vadd.f32 %v1317, %v1378
  %v1384 = vrot.slane %v1169, 6
  %v1386 = vsel %vm418, %v1202, %v1384
  %v1387 = vpack.c.bf16 %v1386, %v1386
  %v1392 = vunpack.c.l.b16 %v1197
  %v1393 = vunpack.c.l.b16 %v1198
  %v1394 = vunpack.c.l.b16 %v1199
  %v1395 = vunpack.c.l.b16 %v1200
  %v1396 = vpack.c.b16 %v1393, %v1392
  %v1397 = vpack.c.b16 %v1395, %v1394
  %v1401 = vsel %vm1003, %v1387, 0
  %1403 = vmatprep.subr.bf16.mxu0 0
  %1404 = vmatpush1.bf16.msra.mxu0 %v1396
  %1405 = vmatprep.subr.bf16.mxu0 0
  %1406 = vmatpush1.bf16.msra.mxu0 %v1397
  %1407 = vmatprep.subr.bf16.mxu0 0
  %1408 = vmatpush1.bf16.msra.mxu0 0
  %1409 = vmatprep.subr.bf16.mxu0 0
  %1410 = vmatpush1.bf16.msra.mxu0 0
  %1411 = vmatprep.subr.bf16.mxu0 0
  %1412 = vmatpush1.bf16.msra.mxu0 0
  %1413 = vmatprep.subr.bf16.mxu0 0
  %1414 = vmatpush1.bf16.msra.mxu0 0
  %1415 = vmatprep.subr.bf16.mxu0 0
  %1416 = vmatpush1.bf16.msra.mxu0 0
  %1417 = vmatprep.subr.bf16.mxu0 0
  %1418 = vmatpush1.bf16.msra.mxu0 0
  %1419 = vmatprep.subr.bf16.mxu0 0
  %1420 = vmatpush1.bf16.msra.mxu0 0
  %1421 = vmatprep.subr.bf16.mxu0 0
  %1422 = vmatpush1.bf16.msra.mxu0 0
  %1423 = vmatprep.subr.bf16.mxu0 0
  %1424 = vmatpush1.bf16.msra.mxu0 0
  %1425 = vmatprep.subr.bf16.mxu0 0
  %1426 = vmatpush1.bf16.msra.mxu0 0
  %1427 = vmatprep.subr.bf16.mxu0 0
  %1428 = vmatpush1.bf16.msra.mxu0 0
  %1429 = vmatprep.subr.bf16.mxu0 0
  %1430 = vmatpush1.bf16.msra.mxu0 0
  %1431 = vmatprep.subr.bf16.mxu0 0
  %1432 = vmatpush1.bf16.msra.mxu0 0
  %1433 = vmatprep.subr.bf16.mxu0 0
  %1434 = vmatpush1.bf16.msra.mxu0 0
  %1435 = vmatprep.mubr.bf16.mxu0 0
  %1436 = vmatmul.mubr.bf16.gmra.mrb[0].mxu0 %v1401
  %v1437 = vpop.f32.mrb[0].mxu0
  %v1438 = vadd.f32 0.0, %v1437
  %v1439 = vpop.f32.mrb[0].mxu0
  %v1440 = vpop.f32.mrb[0].mxu0
  %v1441 = vpop.f32.mrb[0].mxu0
  %1442 = vdwg.mxu0
  %v1443 = vadd.f32 %v1383, %v1438
  %v1444 = vld [vmem:[%s11] sm:$0x1]
  %v1446 = vlaneseq
  %v1447 = vshrl.u32 %v1446, 7
  %v1448 = vsub.s32 0, %v1447
  %v1449 = vrot.slane %v1444, %v1448
  %v1451 = vadd.f32 %v1443, %v1449
  %v1452 = vmax.f32 %v1451, 0.0
  %v1453 = vpack.c.bf16 %v1452, %v1452
  %v1454 = vld [vmem:[%s12] sm:$0xf]
  %v1455 = vld [vmem:[%s12 + $0x4] sm:$0xf]
  %v1456 = vld [vmem:[%s12 + $0x8] sm:$0xf]
  %v1457 = vld [vmem:[%s12 + $0xc] sm:$0xf]
  %v1458 = vld [vmem:[%s12 + $0x10] sm:$0xf]
  %v1459 = vld [vmem:[%s12 + $0x14] sm:$0xf]
  %v1460 = vld [vmem:[%s12 + $0x18] sm:$0xf]
  %v1461 = vld [vmem:[%s12 + $0x1c] sm:$0xf]
  %v1462 = vld [vmem:[%s12 + $0x20] sm:$0xf]
  %v1463 = vld [vmem:[%s12 + $0x24] sm:$0xf]
  %v1464 = vld [vmem:[%s12 + $0x28] sm:$0xf]
  %v1465 = vld [vmem:[%s12 + $0x2c] sm:$0xf]
  %v1466 = vld [vmem:[%s12 + $0x30] sm:$0xf]
  %v1467 = vld [vmem:[%s12 + $0x34] sm:$0xf]
  %v1468 = vld [vmem:[%s12 + $0x38] sm:$0xf]
  %v1469 = vld [vmem:[%s12 + $0x3c] sm:$0xf]
  %v1470 = vld [vmem:[%s13] sm:$0x1]
  %v1472 = vlaneseq
  %v1473 = vshrl.u32 %v1472, 7
  %v1474 = vsub.s32 0, %v1473
  %v1475 = vrot.slane %v1470, %v1474
  %v1493 = vunpack.c.l.b16 %v1454
  %v1494 = vunpack.c.l.b16 %v1455
  %v1495 = vunpack.c.l.b16 %v1456
  %v1496 = vunpack.c.l.b16 %v1457
  %v1497 = vunpack.c.l.b16 %v1458
  %v1498 = vunpack.c.l.b16 %v1459
  %v1499 = vunpack.c.l.b16 %v1460
  %v1500 = vunpack.c.l.b16 %v1461
  %v1501 = vunpack.c.l.b16 %v1462
  %v1502 = vunpack.c.l.b16 %v1463
  %v1503 = vunpack.c.l.b16 %v1464
  %v1504 = vunpack.c.l.b16 %v1465
  %v1505 = vunpack.c.l.b16 %v1466
  %v1506 = vunpack.c.l.b16 %v1467
  %v1507 = vunpack.c.l.b16 %v1468
  %v1508 = vunpack.c.l.b16 %v1469
  %v1509 = vpack.c.b16 %v1494, %v1493
  %v1510 = vpack.c.b16 %v1496, %v1495
  %v1511 = vpack.c.b16 %v1498, %v1497
  %v1512 = vpack.c.b16 %v1500, %v1499
  %v1513 = vpack.c.b16 %v1502, %v1501
  %v1514 = vpack.c.b16 %v1504, %v1503
  %v1515 = vpack.c.b16 %v1506, %v1505
  %v1516 = vpack.c.b16 %v1508, %v1507
  %1525 = vmatprep.subr.bf16.mxu0 0
  %1526 = vmatpush1.bf16.msra.mxu0 %v1509
  %1527 = vmatprep.subr.bf16.mxu0 0
  %1528 = vmatpush1.bf16.msra.mxu0 %v1510
  %1529 = vmatprep.subr.bf16.mxu0 0
  %1530 = vmatpush1.bf16.msra.mxu0 %v1511
  %1531 = vmatprep.subr.bf16.mxu0 0
  %1532 = vmatpush1.bf16.msra.mxu0 %v1512
  %1533 = vmatprep.subr.bf16.mxu0 0
  %1534 = vmatpush1.bf16.msra.mxu0 %v1513
  %1535 = vmatprep.subr.bf16.mxu0 0
  %1536 = vmatpush1.bf16.msra.mxu0 %v1514
  %1537 = vmatprep.subr.bf16.mxu0 0
  %1538 = vmatpush1.bf16.msra.mxu0 %v1515
  %1539 = vmatprep.subr.bf16.mxu0 0
  %1540 = vmatpush1.bf16.msra.mxu0 %v1516
  %1541 = vmatprep.subr.bf16.mxu0 0
  %1542 = vmatpush1.bf16.msra.mxu0 0
  %1543 = vmatprep.subr.bf16.mxu0 0
  %1544 = vmatpush1.bf16.msra.mxu0 0
  %1545 = vmatprep.subr.bf16.mxu0 0
  %1546 = vmatpush1.bf16.msra.mxu0 0
  %1547 = vmatprep.subr.bf16.mxu0 0
  %1548 = vmatpush1.bf16.msra.mxu0 0
  %1549 = vmatprep.subr.bf16.mxu0 0
  %1550 = vmatpush1.bf16.msra.mxu0 0
  %1551 = vmatprep.subr.bf16.mxu0 0
  %1552 = vmatpush1.bf16.msra.mxu0 0
  %1553 = vmatprep.subr.bf16.mxu0 0
  %1554 = vmatpush1.bf16.msra.mxu0 0
  %1555 = vmatprep.subr.bf16.mxu0 0
  %1556 = vmatpush1.bf16.msra.mxu0 0
  %1557 = vmatprep.mubr.bf16.mxu0 0
  %1558 = vmatmul.mubr.bf16.gmra.mrb[0].mxu0 %v1453
  %v1559 = vpop.f32.mrb[0].mxu0
  %v1560 = vadd.f32 %v1475, %v1559
  %v1561 = vpop.f32.mrb[0].mxu0
  %v1562 = vpop.f32.mrb[0].mxu0
  %v1563 = vpop.f32.mrb[0].mxu0
  %1564 = vdwg.mxu0
  %v1565 = vpack.c.bf16 %v1560, %v1560
  %v1566 = vld [vmem:[%s14] sm:$0xf]
  %v1567 = vld [vmem:[%s14 + $0x4] sm:$0xf]
  %v1568 = vld [vmem:[%s14 + $0x8] sm:$0xf]
  %v1569 = vld [vmem:[%s14 + $0xc] sm:$0xf]
  %v1570 = vld [vmem:[%s14 + $0x10] sm:$0xf]
  %v1571 = vld [vmem:[%s14 + $0x14] sm:$0xf]
  %v1572 = vld [vmem:[%s14 + $0x18] sm:$0xf]
  %v1573 = vld [vmem:[%s14 + $0x1c] sm:$0xf]
  %v1574 = vld [vmem:[%s14 + $0x20] sm:$0xf]
  %v1575 = vld [vmem:[%s14 + $0x24] sm:$0xf]
  %v1576 = vld [vmem:[%s14 + $0x28] sm:$0xf]
  %v1577 = vld [vmem:[%s14 + $0x2c] sm:$0xf]
  %v1578 = vld [vmem:[%s14 + $0x30] sm:$0xf]
  %v1579 = vld [vmem:[%s14 + $0x34] sm:$0xf]
  %v1580 = vld [vmem:[%s14 + $0x38] sm:$0xf]
  %v1581 = vld [vmem:[%s14 + $0x3c] sm:$0xf]
  %v1582 = vld [vmem:[%s15] sm:$0x1]
  %v1584 = vlaneseq
  %v1585 = vshrl.u32 %v1584, 7
  %v1586 = vsub.s32 0, %v1585
  %v1587 = vrot.slane %v1582, %v1586
  %v1605 = vunpack.c.l.b16 %v1566
  %v1606 = vunpack.c.l.b16 %v1567
  %v1607 = vunpack.c.l.b16 %v1568
  %v1608 = vunpack.c.l.b16 %v1569
  %v1609 = vunpack.c.l.b16 %v1570
  %v1610 = vunpack.c.l.b16 %v1571
  %v1611 = vunpack.c.l.b16 %v1572
  %v1612 = vunpack.c.l.b16 %v1573
  %v1613 = vunpack.c.l.b16 %v1574
  %v1614 = vunpack.c.l.b16 %v1575
  %v1615 = vunpack.c.l.b16 %v1576
  %v1616 = vunpack.c.l.b16 %v1577
  %v1617 = vunpack.c.l.b16 %v1578
  %v1618 = vunpack.c.l.b16 %v1579
  %v1619 = vunpack.c.l.b16 %v1580
  %v1620 = vunpack.c.l.b16 %v1581
  %v1621 = vpack.c.b16 %v1606, %v1605
  %v1622 = vpack.c.b16 %v1608, %v1607
  %v1623 = vpack.c.b16 %v1610, %v1609
  %v1624 = vpack.c.b16 %v1612, %v1611
  %v1625 = vpack.c.b16 %v1614, %v1613
  %v1626 = vpack.c.b16 %v1616, %v1615
  %v1627 = vpack.c.b16 %v1618, %v1617
  %v1628 = vpack.c.b16 %v1620, %v1619
  %1637 = vmatprep.subr.bf16.mxu0 0
  %1638 = vmatpush1.bf16.msra.mxu0 %v1621
  %1639 = vmatprep.subr.bf16.mxu0 0
  %1640 = vmatpush1.bf16.msra.mxu0 %v1622
  %1641 = vmatprep.subr.bf16.mxu0 0
  %1642 = vmatpush1.bf16.msra.mxu0 %v1623
  %1643 = vmatprep.subr.bf16.mxu0 0
  %1644 = vmatpush1.bf16.msra.mxu0 %v1624
  %1645 = vmatprep.subr.bf16.mxu0 0
  %1646 = vmatpush1.bf16.msra.mxu0 %v1625
  %1647 = vmatprep.subr.bf16.mxu0 0
  %1648 = vmatpush1.bf16.msra.mxu0 %v1626
  %1649 = vmatprep.subr.bf16.mxu0 0
  %1650 = vmatpush1.bf16.msra.mxu0 %v1627
  %1651 = vmatprep.subr.bf16.mxu0 0
  %1652 = vmatpush1.bf16.msra.mxu0 %v1628
  %1653 = vmatprep.subr.bf16.mxu0 0
  %1654 = vmatpush1.bf16.msra.mxu0 0
  %1655 = vmatprep.subr.bf16.mxu0 0
  %1656 = vmatpush1.bf16.msra.mxu0 0
  %1657 = vmatprep.subr.bf16.mxu0 0
  %1658 = vmatpush1.bf16.msra.mxu0 0
  %1659 = vmatprep.subr.bf16.mxu0 0
  %1660 = vmatpush1.bf16.msra.mxu0 0
  %1661 = vmatprep.subr.bf16.mxu0 0
  %1662 = vmatpush1.bf16.msra.mxu0 0
  %1663 = vmatprep.subr.bf16.mxu0 0
  %1664 = vmatpush1.bf16.msra.mxu0 0
  %1665 = vmatprep.subr.bf16.mxu0 0
  %1666 = vmatpush1.bf16.msra.mxu0 0
  %1667 = vmatprep.subr.bf16.mxu0 0
  %1668 = vmatpush1.bf16.msra.mxu0 0
  %1669 = vmatprep.mubr.bf16.mxu0 0
  %1670 = vmatmul.mubr.bf16.gmra.mrb[0].mxu0 %v1565
  %v1671 = vpop.f32.mrb[0].mxu0
  %v1672 = vadd.f32 %v1587, %v1671
  %v1673 = vpop.f32.mrb[0].mxu0
  %v1674 = vpop.f32.mrb[0].mxu0
  %v1675 = vpop.f32.mrb[0].mxu0
  %1676 = vdwg.mxu0
  %v1677 = vadd.f32 %v1672, %v1452
  %s1678 = scalar_lea.vmem %s0, 24
  %v1679 = vld [vmem:[%s1678] sm:$0xff]
  %v1680 = vld [vmem:[%s1678 + $0x8] sm:$0xff]
  %v1681 = vld [vmem:[%s1678 + $0x10] sm:$0xff]
  %s1682 = scalar_lea.vmem %s2, 32
  %v1683 = vld [vmem:[%s1682] sm:$0xf]
  %v1684 = vld [vmem:[%s1682 + $0x4] sm:$0xf]
  %v1685 = vld [vmem:[%s1682 + $0x8] sm:$0xf]
  %v1686 = vld [vmem:[%s1682 + $0xc] sm:$0xf]
  %v1687 = vld [vmem:[%s1682 + $0x10] sm:$0xf]
  %v1688 = vld [vmem:[%s1682 + $0x14] sm:$0xf]
  %v1689 = vld [vmem:[%s1682 + $0x18] sm:$0xf]
  %v1690 = vld [vmem:[%s1682 + $0x1c] sm:$0xf]
  %s1691 = scalar_lea.vmem %s3, 64
  %v1692 = vld [vmem:[%s1691] sm:$0xff]
  %v1693 = vld [vmem:[%s1691 + $0x8] sm:$0xff]
  %v1694 = vld [vmem:[%s1691 + $0x10] sm:$0xff]
  %v1695 = vld [vmem:[%s1691 + $0x18] sm:$0xff]
  %v1696 = vld [vmem:[%s1691 + $0x20] sm:$0xff]
  %v1697 = vld [vmem:[%s1691 + $0x28] sm:$0xff]
  %v1698 = vld [vmem:[%s1691 + $0x30] sm:$0xff]
  %v1699 = vld [vmem:[%s1691 + $0x38] sm:$0xff]
  %1703 = vrot.lane.b32.xlu0 %v1679, 127
  %v1704 = vpop.permute.xlu0 %1703
  %1705 = vrot.lane.b32.xlu0 %v1680, 127
  %v1706 = vpop.permute.xlu0 %1705
  %1707 = vrot.lane.b32.xlu0 %v1681, 127
  %v1708 = vpop.permute.xlu0 %1707
  %1712 = vrot.lane.b32.xlu0 %v1679, 126
  %v1713 = vpop.permute.xlu0 %1712
  %1714 = vrot.lane.b32.xlu0 %v1680, 126
  %v1715 = vpop.permute.xlu0 %1714
  %1716 = vrot.lane.b32.xlu0 %v1681, 126
  %v1717 = vpop.permute.xlu0 %1716
  %1721 = vrot.lane.b32.xlu0 %v1679, 125
  %v1722 = vpop.permute.xlu0 %1721
  %1723 = vrot.lane.b32.xlu0 %v1680, 125
  %v1724 = vpop.permute.xlu0 %1723
  %1725 = vrot.lane.b32.xlu0 %v1681, 125
  %v1726 = vpop.permute.xlu0 %1725
  %1730 = vrot.lane.b32.xlu0 %v1679, 124
  %v1731 = vpop.permute.xlu0 %1730
  %1732 = vrot.lane.b32.xlu0 %v1680, 124
  %v1733 = vpop.permute.xlu0 %1732
  %1734 = vrot.lane.b32.xlu0 %v1681, 124
  %v1735 = vpop.permute.xlu0 %1734
  %v1739 = vpack.c.bf16 %v1680, %v1679
  %v1740 = vpack.c.bf16 %v1704, %v1681
  %v1741 = vpack.c.bf16 %v1708, %v1706
  %v1742 = vpack.c.bf16 %v1715, %v1713
  %v1743 = vpack.c.bf16 %v1722, %v1717
  %v1744 = vpack.c.bf16 %v1726, %v1724
  %v1745 = vpack.c.bf16 %v1733, %v1731
  %v1746 = vpack.c.bf16 %v1735, %v1735
  %1748 = vset.pattern.permute.xlu0 0
  %1749 = vperm.xlu0 %1748, %v1692
  %v1750 = vpop.permute.xlu0 %1749
  %1753 = vset.pattern.permute.xlu0 0
  %1754 = vperm.xlu0 %1753, %v1693
  %v1755 = vpop.permute.xlu0 %1754
  %1758 = vset.pattern.permute.xlu0 0
  %1759 = vperm.xlu0 %1758, %v1694
  %v1760 = vpop.permute.xlu0 %1759
  %1763 = vset.pattern.permute.xlu0 0
  %1764 = vperm.xlu0 %1763, %v1695
  %v1765 = vpop.permute.xlu0 %1764
  %1768 = vset.pattern.permute.xlu0 0
  %1769 = vperm.xlu0 %1768, %v1696
  %v1770 = vpop.permute.xlu0 %1769
  %1773 = vset.pattern.permute.xlu0 0
  %1774 = vperm.xlu0 %1773, %v1697
  %v1775 = vpop.permute.xlu0 %1774
  %1778 = vset.pattern.permute.xlu0 0
  %1779 = vperm.xlu0 %1778, %v1698
  %v1780 = vpop.permute.xlu0 %1779
  %1783 = vset.pattern.permute.xlu0 0
  %1784 = vperm.xlu0 %1783, %v1699
  %v1785 = vpop.permute.xlu0 %1784
  %v1795 = vunpack.c.l.b16 %v1683
  %v1796 = vunpack.c.l.b16 %v1684
  %v1797 = vunpack.c.l.b16 %v1685
  %v1798 = vunpack.c.l.b16 %v1686
  %v1799 = vunpack.c.l.b16 %v1687
  %v1800 = vunpack.c.l.b16 %v1688
  %v1801 = vunpack.c.l.b16 %v1689
  %v1802 = vunpack.c.l.b16 %v1690
  %v1803 = vpack.c.b16 %v1796, %v1795
  %v1804 = vpack.c.b16 %v1798, %v1797
  %v1805 = vpack.c.b16 %v1800, %v1799
  %v1806 = vpack.c.b16 %v1802, %v1801
  %v1808 = vsel %vm234, %v1803, 0
  %v1811 = vsel %vm234, %v1804, 0
  %v1814 = vsel %vm234, %v1805, 0
  %v1817 = vsel %vm234, %v1806, 0
  %v1820 = vsel %vm247, %v1746, 0
  %1822 = vmatprep.subr.bf16.mxu0 0
  %1823 = vmatpush1.bf16.msra.mxu0 %v1739
  %1824 = vmatprep.subr.bf16.mxu0 0
  %1825 = vmatpush1.bf16.msra.mxu0 %v1740
  %1826 = vmatprep.subr.bf16.mxu0 0
  %1827 = vmatpush1.bf16.msra.mxu0 %v1741
  %1828 = vmatprep.subr.bf16.mxu0 0
  %1829 = vmatpush1.bf16.msra.mxu0 %v1742
  %1830 = vmatprep.subr.bf16.mxu0 0
  %1831 = vmatpush1.bf16.msra.mxu0 %v1743
  %1832 = vmatprep.subr.bf16.mxu0 0
  %1833 = vmatpush1.bf16.msra.mxu0 %v1744
  %1834 = vmatprep.subr.bf16.mxu0 0
  %1835 = vmatpush1.bf16.msra.mxu0 %v1745
  %1836 = vmatprep.subr.bf16.mxu0 0
  %1837 = vmatpush1.bf16.msra.mxu0 %v1820
  %1838 = vmatprep.subr.bf16.mxu0 0
  %1839 = vmatpush1.bf16.msra.mxu0 0
  %1840 = vmatprep.subr.bf16.mxu0 0
  %1841 = vmatpush1.bf16.msra.mxu0 0
  %1842 = vmatprep.subr.bf16.mxu0 0
  %1843 = vmatpush1.bf16.msra.mxu0 0
  %1844 = vmatprep.subr.bf16.mxu0 0
  %1845 = vmatpush1.bf16.msra.mxu0 0
  %1846 = vmatprep.subr.bf16.mxu0 0
  %1847 = vmatpush1.bf16.msra.mxu0 0
  %1848 = vmatprep.subr.bf16.mxu0 0
  %1849 = vmatpush1.bf16.msra.mxu0 0
  %1850 = vmatprep.subr.bf16.mxu0 0
  %1851 = vmatpush1.bf16.msra.mxu0 0
  %1852 = vmatprep.subr.bf16.mxu0 0
  %1853 = vmatpush1.bf16.msra.mxu0 0
  %1854 = vmatprep.mubr.bf16.mxu0 0
  %1855 = vmatmul.mubr.bf16.gmra.mrb[0].mxu0 %v1808
  %v1856 = vpop.f32.mrb[0].mxu0
  %v1857 = vadd.f32 %v1750, %v1856
  %v1858 = vpop.f32.mrb[0].mxu0
  %v1859 = vpop.f32.mrb[0].mxu0
  %v1860 = vadd.f32 %v1755, %v1859
  %v1861 = vpop.f32.mrb[0].mxu0
  %1862 = vmatprep.mubr.bf16.mxu0 0
  %1863 = vmatmul.mubr.bf16.gmra.mrb[0].mxu0 %v1811
  %v1864 = vpop.f32.mrb[0].mxu0
  %v1865 = vadd.f32 %v1760, %v1864
  %v1866 = vpop.f32.mrb[0].mxu0
  %v1867 = vpop.f32.mrb[0].mxu0
  %v1868 = vadd.f32 %v1765, %v1867
  %v1869 = vpop.f32.mrb[0].mxu0
  %1870 = vmatprep.mubr.bf16.mxu0 0
  %1871 = vmatmul.mubr.bf16.gmra.mrb[0].mxu0 %v1814
  %v1872 = vpop.f32.mrb[0].mxu0
  %v1873 = vadd.f32 %v1770, %v1872
  %v1874 = vpop.f32.mrb[0].mxu0
  %v1875 = vpop.f32.mrb[0].mxu0
  %v1876 = vadd.f32 %v1775, %v1875
  %v1877 = vpop.f32.mrb[0].mxu0
  %1878 = vmatprep.mubr.bf16.mxu0 0
  %1879 = vmatmul.mubr.bf16.gmra.mrb[0].mxu0 %v1817
  %v1880 = vpop.f32.mrb[0].mxu0
  %v1881 = vadd.f32 %v1780, %v1880
  %v1882 = vpop.f32.mrb[0].mxu0
  %v1883 = vpop.f32.mrb[0].mxu0
  %v1884 = vadd.f32 %v1785, %v1883
  %v1885 = vpop.f32.mrb[0].mxu0
  %1886 = vdwg.mxu0
  %1895 = vrot.lane.b32.xlu0 %v1857, 127
  %v1896 = vpop.permute.xlu0 %1895
  %1897 = vrot.lane.b32.xlu0 %v1860, 127
  %v1898 = vpop.permute.xlu0 %1897
  %1899 = vrot.lane.b32.xlu0 %v1865, 127
  %v1900 = vpop.permute.xlu0 %1899
  %1901 = vrot.lane.b32.xlu0 %v1868, 127
  %v1902 = vpop.permute.xlu0 %1901
  %1903 = vrot.lane.b32.xlu0 %v1873, 127
  %v1904 = vpop.permute.xlu0 %1903
  %1905 = vrot.lane.b32.xlu0 %v1876, 127
  %v1906 = vpop.permute.xlu0 %1905
  %1907 = vrot.lane.b32.xlu0 %v1881, 127
  %v1908 = vpop.permute.xlu0 %1907
  %1909 = vrot.lane.b32.xlu0 %v1884, 127
  %v1910 = vpop.permute.xlu0 %1909
  %v1919 = vmax.f32 %v1857, %v1896
  %v1920 = vmax.f32 %v1860, %v1898
  %v1921 = vmax.f32 %v1865, %v1900
  %v1922 = vmax.f32 %v1868, %v1902
  %v1923 = vmax.f32 %v1873, %v1904
  %v1924 = vmax.f32 %v1876, %v1906
  %v1925 = vmax.f32 %v1881, %v1908
  %v1926 = vmax.f32 %v1884, %v1910
  %v1927 = vpack.c.bf16 %v1920, %v1919
  %v1928 = vpack.c.bf16 %v1922, %v1921
  %v1929 = vpack.c.bf16 %v1924, %v1923
  %v1930 = vpack.c.bf16 %v1926, %v1925
  %v1932 = vsel %vm405, %v1927, 0
  %v1935 = vsel %vm405, %v1928, 0
  %v1938 = vsel %vm405, %v1929, 0
  %v1941 = vsel %vm405, %v1930, 0
  %1943 = vmatprep.subr.bf16.mxu0 0
  %1944 = vmatpush1.bf16.msra.mxu0 %v390
  %1945 = vmatprep.subr.bf16.mxu0 0
  %1946 = vmatpush1.bf16.msra.mxu0 %v391
  %1947 = vmatprep.subr.bf16.mxu0 0
  %1948 = vmatpush1.bf16.msra.mxu0 %v392
  %1949 = vmatprep.subr.bf16.mxu0 0
  %1950 = vmatpush1.bf16.msra.mxu0 %v393
  %1951 = vmatprep.subr.bf16.mxu0 0
  %1952 = vmatpush1.bf16.msra.mxu0 %v394
  %1953 = vmatprep.subr.bf16.mxu0 0
  %1954 = vmatpush1.bf16.msra.mxu0 %v395
  %1955 = vmatprep.subr.bf16.mxu0 0
  %1956 = vmatpush1.bf16.msra.mxu0 %v396
  %1957 = vmatprep.subr.bf16.mxu0 0
  %1958 = vmatpush1.bf16.msra.mxu0 %v423
  %1959 = vmatprep.subr.bf16.mxu0 0
  %1960 = vmatpush1.bf16.msra.mxu0 0
  %1961 = vmatprep.subr.bf16.mxu0 0
  %1962 = vmatpush1.bf16.msra.mxu0 0
  %1963 = vmatprep.subr.bf16.mxu0 0
  %1964 = vmatpush1.bf16.msra.mxu0 0
  %1965 = vmatprep.subr.bf16.mxu0 0
  %1966 = vmatpush1.bf16.msra.mxu0 0
  %1967 = vmatprep.subr.bf16.mxu0 0
  %1968 = vmatpush1.bf16.msra.mxu0 0
  %1969 = vmatprep.subr.bf16.mxu0 0
  %1970 = vmatpush1.bf16.msra.mxu0 0
  %1971 = vmatprep.subr.bf16.mxu0 0
  %1972 = vmatpush1.bf16.msra.mxu0 0
  %1973 = vmatprep.subr.bf16.mxu0 0
  %1974 = vmatpush1.bf16.msra.mxu0 0
  %1975 = vmatprep.mubr.bf16.mxu0 0
  %1976 = vmatmul.mubr.bf16.gmra.mrb[0].mxu0 %v1932
  %v1977 = vpop.f32.mrb[0].mxu0
  %v1978 = vadd.f32 0.0, %v1977
  %v1979 = vpop.f32.mrb[0].mxu0
  %v1980 = vpop.f32.mrb[0].mxu0
  %v1981 = vadd.f32 0.0, %v1980
  %v1982 = vpop.f32.mrb[0].mxu0
  %1983 = vmatprep.mubr.bf16.mxu0 0
  %1984 = vmatmul.mubr.bf16.gmra.mrb[0].mxu0 %v1935
  %v1985 = vpop.f32.mrb[0].mxu0
  %v1986 = vadd.f32 0.0, %v1985
  %v1987 = vpop.f32.mrb[0].mxu0
  %v1988 = vpop.f32.mrb[0].mxu0
  %v1989 = vadd.f32 0.0, %v1988
  %v1990 = vpop.f32.mrb[0].mxu0
  %1991 = vmatprep.mubr.bf16.mxu0 0
  %1992 = vmatmul.mubr.bf16.gmra.mrb[0].mxu0 %v1938
  %v1993 = vpop.f32.mrb[0].mxu0
  %v1994 = vadd.f32 0.0, %v1993
  %v1995 = vpop.f32.mrb[0].mxu0
  %v1996 = vpop.f32.mrb[0].mxu0
  %v1997 = vadd.f32 0.0, %v1996
  %v1998 = vpop.f32.mrb[0].mxu0
  %1999 = vmatprep.mubr.bf16.mxu0 0
  %2000 = vmatmul.mubr.bf16.gmra.mrb[0].mxu0 %v1941
  %v2001 = vpop.f32.mrb[0].mxu0
  %v2002 = vadd.f32 0.0, %v2001
  %v2003 = vpop.f32.mrb[0].mxu0
  %v2004 = vpop.f32.mrb[0].mxu0
  %v2005 = vadd.f32 0.0, %v2004
  %v2006 = vpop.f32.mrb[0].mxu0
  %2007 = vdwg.mxu0
  %v2008 = vmax.f32 %v1978, 0.0
  %v2009 = vmax.f32 %v1981, 0.0
  %v2010 = vmax.f32 %v1986, 0.0
  %v2011 = vmax.f32 %v1989, 0.0
  %v2012 = vmax.f32 %v1994, 0.0
  %v2013 = vmax.f32 %v1997, 0.0
  %v2014 = vmax.f32 %v2002, 0.0
  %v2015 = vmax.f32 %v2005, 0.0
  %s2016 = scalar_lea.vmem %s6, 48
  %v2017 = vld [vmem:[%s2016] sm:$0xff]
  %v2018 = vld [vmem:[%s2016 + $0x8] sm:$0xf]
  %v2019 = vld [vmem:[%s2016 + $0xc] sm:$0xff]
  %v2020 = vld [vmem:[%s2016 + $0x14] sm:$0xf]
  %v2021 = vld [vmem:[%s2016 + $0x18] sm:$0xff]
  %v2022 = vld [vmem:[%s2016 + $0x20] sm:$0xf]
  %v2023 = vld [vmem:[%s2016 + $0x24] sm:$0xff]
  %v2024 = vld [vmem:[%s2016 + $0x2c] sm:$0xf]
  %s2025 = scalar_lea.vmem %s7, 32
  %v2026 = vld [vmem:[%s2025] sm:$0xff]
  %v2027 = vld [vmem:[%s2025 + $0x8] sm:$0xff]
  %v2028 = vld [vmem:[%s2025 + $0x10] sm:$0xff]
  %v2029 = vld [vmem:[%s2025 + $0x18] sm:$0xff]
  %2038 = vrot.lane.b32.xlu0 %v2008, 127
  %v2039 = vpop.permute.xlu0 %2038
  %2040 = vrot.lane.b32.xlu0 %v2009, 127
  %v2041 = vpop.permute.xlu0 %2040
  %2042 = vrot.lane.b32.xlu0 %v2010, 127
  %v2043 = vpop.permute.xlu0 %2042
  %2044 = vrot.lane.b32.xlu0 %v2011, 127
  %v2045 = vpop.permute.xlu0 %2044
  %2046 = vrot.lane.b32.xlu0 %v2012, 127
  %v2047 = vpop.permute.xlu0 %2046
  %2048 = vrot.lane.b32.xlu0 %v2013, 127
  %v2049 = vpop.permute.xlu0 %2048
  %2050 = vrot.lane.b32.xlu0 %v2014, 127
  %v2051 = vpop.permute.xlu0 %2050
  %2052 = vrot.lane.b32.xlu0 %v2015, 127
  %v2053 = vpop.permute.xlu0 %2052
  %2062 = vrot.lane.b32.xlu0 %v2008, 126
  %v2063 = vpop.permute.xlu0 %2062
  %2064 = vrot.lane.b32.xlu0 %v2009, 126
  %v2065 = vpop.permute.xlu0 %2064
  %2066 = vrot.lane.b32.xlu0 %v2010, 126
  %v2067 = vpop.permute.xlu0 %2066
  %2068 = vrot.lane.b32.xlu0 %v2011, 126
  %v2069 = vpop.permute.xlu0 %2068
  %2070 = vrot.lane.b32.xlu0 %v2012, 126
  %v2071 = vpop.permute.xlu0 %2070
  %2072 = vrot.lane.b32.xlu0 %v2013, 126
  %v2073 = vpop.permute.xlu0 %2072
  %2074 = vrot.lane.b32.xlu0 %v2014, 126
  %v2075 = vpop.permute.xlu0 %2074
  %2076 = vrot.lane.b32.xlu0 %v2015, 126
  %v2077 = vpop.permute.xlu0 %2076
  %2086 = vrot.lane.b32.xlu0 %v2008, 125
  %v2087 = vpop.permute.xlu0 %2086
  %2088 = vrot.lane.b32.xlu0 %v2009, 125
  %v2089 = vpop.permute.xlu0 %2088
  %2090 = vrot.lane.b32.xlu0 %v2010, 125
  %v2091 = vpop.permute.xlu0 %2090
  %2092 = vrot.lane.b32.xlu0 %v2011, 125
  %v2093 = vpop.permute.xlu0 %2092
  %2094 = vrot.lane.b32.xlu0 %v2012, 125
  %v2095 = vpop.permute.xlu0 %2094
  %2096 = vrot.lane.b32.xlu0 %v2013, 125
  %v2097 = vpop.permute.xlu0 %2096
  %2098 = vrot.lane.b32.xlu0 %v2014, 125
  %v2099 = vpop.permute.xlu0 %2098
  %2100 = vrot.lane.b32.xlu0 %v2015, 125
  %v2101 = vpop.permute.xlu0 %2100
  %2110 = vrot.lane.b32.xlu0 %v2008, 124
  %v2111 = vpop.permute.xlu0 %2110
  %2112 = vrot.lane.b32.xlu0 %v2009, 124
  %v2113 = vpop.permute.xlu0 %2112
  %2114 = vrot.lane.b32.xlu0 %v2010, 124
  %v2115 = vpop.permute.xlu0 %2114
  %2116 = vrot.lane.b32.xlu0 %v2011, 124
  %v2117 = vpop.permute.xlu0 %2116
  %2118 = vrot.lane.b32.xlu0 %v2012, 124
  %v2119 = vpop.permute.xlu0 %2118
  %2120 = vrot.lane.b32.xlu0 %v2013, 124
  %v2121 = vpop.permute.xlu0 %2120
  %2122 = vrot.lane.b32.xlu0 %v2014, 124
  %v2123 = vpop.permute.xlu0 %2122
  %2124 = vrot.lane.b32.xlu0 %v2015, 124
  %v2125 = vpop.permute.xlu0 %2124
  %v2134 = vpack.c.bf16 %v2009, %v2008
  %v2135 = vpack.c.bf16 %v2011, %v2010
  %v2136 = vpack.c.bf16 %v2013, %v2012
  %v2137 = vpack.c.bf16 %v2015, %v2014
  %v2138 = vpack.c.bf16 %v2041, %v2039
  %v2139 = vpack.c.bf16 %v2045, %v2043
  %v2140 = vpack.c.bf16 %v2049, %v2047
  %v2141 = vpack.c.bf16 %v2053, %v2051
  %v2142 = vpack.c.bf16 %v2065, %v2063
  %v2143 = vpack.c.bf16 %v2069, %v2067
  %v2144 = vpack.c.bf16 %v2073, %v2071
  %v2145 = vpack.c.bf16 %v2077, %v2075
  %v2146 = vpack.c.bf16 %v2089, %v2087
  %v2147 = vpack.c.bf16 %v2093, %v2091
  %v2148 = vpack.c.bf16 %v2097, %v2095
  %v2149 = vpack.c.bf16 %v2101, %v2099
  %v2150 = vpack.c.bf16 %v2113, %v2111
  %v2151 = vpack.c.bf16 %v2117, %v2115
  %v2152 = vpack.c.bf16 %v2121, %v2119
  %v2153 = vpack.c.bf16 %v2125, %v2123
  %2155 = vset.pattern.permute.xlu0 0
  %2156 = vperm.xlu0 %2155, %v2026
  %v2157 = vpop.permute.xlu0 %2156
  %2160 = vset.pattern.permute.xlu0 0
  %2161 = vperm.xlu0 %2160, %v2027
  %v2162 = vpop.permute.xlu0 %2161
  %2165 = vset.pattern.permute.xlu0 0
  %2166 = vperm.xlu0 %2165, %v2028
  %v2167 = vpop.permute.xlu0 %2166
  %2170 = vset.pattern.permute.xlu0 0
  %2171 = vperm.xlu0 %2170, %v2029
  %v2172 = vpop.permute.xlu0 %2171
  %v2182 = vunpack.c.l.b16 %v2017
  %v2183 = vunpack.c.h.b16 %v2017
  %v2184 = vunpack.c.l.b16 %v2018
  %v2185 = vunpack.c.l.b16 %v2019
  %v2186 = vunpack.c.h.b16 %v2019
  %v2187 = vunpack.c.l.b16 %v2020
  %v2188 = vunpack.c.l.b16 %v2021
  %v2189 = vunpack.c.h.b16 %v2021
  %v2190 = vunpack.c.l.b16 %v2022
  %v2191 = vunpack.c.l.b16 %v2023
  %v2192 = vunpack.c.h.b16 %v2023
  %v2193 = vunpack.c.l.b16 %v2024
  %v2194 = vpack.c.b16 %v2185, %v2182
  %v2195 = vpack.c.b16 %v2186, %v2183
  %v2196 = vpack.c.b16 %v2187, %v2184
  %v2197 = vpack.c.b16 %v2191, %v2188
  %v2198 = vpack.c.b16 %v2192, %v2189
  %v2199 = vpack.c.b16 %v2193, %v2190
  %v2205 = vsel %vm684, %v2196, 0
  %v2208 = vsel %vm684, %v2199, 0
  %2210 = vmatprep.subr.bf16.mxu0 0
  %2211 = vmatpush1.bf16.msra.mxu0 %v2134
  %2212 = vmatprep.subr.bf16.mxu0 0
  %2213 = vmatpush1.bf16.msra.mxu0 %v2135
  %2214 = vmatprep.subr.bf16.mxu0 0
  %2215 = vmatpush1.bf16.msra.mxu0 %v2136
  %2216 = vmatprep.subr.bf16.mxu0 0
  %2217 = vmatpush1.bf16.msra.mxu0 %v2137
  %2218 = vmatprep.subr.bf16.mxu0 0
  %2219 = vmatpush1.bf16.msra.mxu0 %v2138
  %2220 = vmatprep.subr.bf16.mxu0 0
  %2221 = vmatpush1.bf16.msra.mxu0 %v2139
  %2222 = vmatprep.subr.bf16.mxu0 0
  %2223 = vmatpush1.bf16.msra.mxu0 %v2140
  %2224 = vmatprep.subr.bf16.mxu0 0
  %2225 = vmatpush1.bf16.msra.mxu0 %v2141
  %2226 = vmatprep.subr.bf16.mxu0 0
  %2227 = vmatpush1.bf16.msra.mxu0 %v2142
  %2228 = vmatprep.subr.bf16.mxu0 0
  %2229 = vmatpush1.bf16.msra.mxu0 %v2143
  %2230 = vmatprep.subr.bf16.mxu0 0
  %2231 = vmatpush1.bf16.msra.mxu0 %v2144
  %2232 = vmatprep.subr.bf16.mxu0 0
  %2233 = vmatpush1.bf16.msra.mxu0 %v2145
  %2234 = vmatprep.subr.bf16.mxu0 0
  %2235 = vmatpush1.bf16.msra.mxu0 %v2146
  %2236 = vmatprep.subr.bf16.mxu0 0
  %2237 = vmatpush1.bf16.msra.mxu0 %v2147
  %2238 = vmatprep.subr.bf16.mxu0 0
  %2239 = vmatpush1.bf16.msra.mxu0 %v2148
  %2240 = vmatprep.subr.bf16.mxu0 0
  %2241 = vmatpush1.bf16.msra.mxu0 %v2149
  %2242 = vmatprep.mubr.bf16.mxu0 %v2195
  %2243 = vmatmul.mubr.bf16.gmra.mrb[0].mxu0 %v2194
  %v2244 = vpop.f32.mrb[0].mxu0
  %v2245 = vadd.f32 %v2157, %v2244
  %v2246 = vpop.f32.mrb[0].mxu0
  %v2247 = vpop.f32.mrb[0].mxu0
  %v2248 = vadd.f32 %v2162, %v2247
  %v2249 = vpop.f32.mrb[0].mxu0
  %2250 = vmatprep.mubr.bf16.mxu0 %v2198
  %2251 = vmatmul.mubr.bf16.gmra.mrb[0].mxu0 %v2197
  %v2252 = vpop.f32.mrb[0].mxu0
  %v2253 = vadd.f32 %v2167, %v2252
  %v2254 = vpop.f32.mrb[0].mxu0
  %v2255 = vpop.f32.mrb[0].mxu0
  %v2256 = vadd.f32 %v2172, %v2255
  %v2257 = vpop.f32.mrb[0].mxu0
  %2258 = vdwg.mxu0
  %2259 = vmatprep.subr.bf16.mxu0 0
  %2260 = vmatpush1.bf16.msra.mxu0 %v2150
  %2261 = vmatprep.subr.bf16.mxu0 0
  %2262 = vmatpush1.bf16.msra.mxu0 %v2151
  %2263 = vmatprep.subr.bf16.mxu0 0
  %2264 = vmatpush1.bf16.msra.mxu0 %v2152
  %2265 = vmatprep.subr.bf16.mxu0 0
  %2266 = vmatpush1.bf16.msra.mxu0 %v2153
  %2267 = vmatprep.subr.bf16.mxu0 0
  %2268 = vmatpush1.bf16.msra.mxu0 0
  %2269 = vmatprep.subr.bf16.mxu0 0
  %2270 = vmatpush1.bf16.msra.mxu0 0
  %2271 = vmatprep.subr.bf16.mxu0 0
  %2272 = vmatpush1.bf16.msra.mxu0 0
  %2273 = vmatprep.subr.bf16.mxu0 0
  %2274 = vmatpush1.bf16.msra.mxu0 0
  %2275 = vmatprep.subr.bf16.mxu0 0
  %2276 = vmatpush1.bf16.msra.mxu0 0
  %2277 = vmatprep.subr.bf16.mxu0 0
  %2278 = vmatpush1.bf16.msra.mxu0 0
  %2279 = vmatprep.subr.bf16.mxu0 0
  %2280 = vmatpush1.bf16.msra.mxu0 0
  %2281 = vmatprep.subr.bf16.mxu0 0
  %2282 = vmatpush1.bf16.msra.mxu0 0
  %2283 = vmatprep.subr.bf16.mxu0 0
  %2284 = vmatpush1.bf16.msra.mxu0 0
  %2285 = vmatprep.subr.bf16.mxu0 0
  %2286 = vmatpush1.bf16.msra.mxu0 0
  %2287 = vmatprep.subr.bf16.mxu0 0
  %2288 = vmatpush1.bf16.msra.mxu0 0
  %2289 = vmatprep.subr.bf16.mxu0 0
  %2290 = vmatpush1.bf16.msra.mxu0 0
  %2291 = vmatprep.mubr.bf16.mxu0 0
  %2292 = vmatmul.mubr.bf16.gmra.mrb[0].mxu0 %v2205
  %v2293 = vpop.f32.mrb[0].mxu0
  %v2294 = vadd.f32 %v2245, %v2293
  %v2295 = vpop.f32.mrb[0].mxu0
  %v2296 = vpop.f32.mrb[0].mxu0
  %v2297 = vadd.f32 %v2248, %v2296
  %v2298 = vpop.f32.mrb[0].mxu0
  %2299 = vmatprep.mubr.bf16.mxu0 0
  %2300 = vmatmul.mubr.bf16.gmra.mrb[0].mxu0 %v2208
  %v2301 = vpop.f32.mrb[0].mxu0
  %v2302 = vadd.f32 %v2253, %v2301
  %v2303 = vpop.f32.mrb[0].mxu0
  %v2304 = vpop.f32.mrb[0].mxu0
  %v2305 = vadd.f32 %v2256, %v2304
  %v2306 = vpop.f32.mrb[0].mxu0
  %2307 = vdwg.mxu0
  %2312 = vrot.lane.b32.xlu0 %v2294, 127
  %v2313 = vpop.permute.xlu0 %2312
  %2314 = vrot.lane.b32.xlu0 %v2297, 127
  %v2315 = vpop.permute.xlu0 %2314
  %2316 = vrot.lane.b32.xlu0 %v2302, 127
  %v2317 = vpop.permute.xlu0 %2316
  %2318 = vrot.lane.b32.xlu0 %v2305, 127
  %v2319 = vpop.permute.xlu0 %2318
  %v2324 = vmax.f32 %v2294, %v2313
  %v2325 = vmax.f32 %v2297, %v2315
  %v2326 = vmax.f32 %v2302, %v2317
  %v2327 = vmax.f32 %v2305, %v2319
  %v2328 = vpack.c.bf16 %v2325, %v2324
  %v2329 = vpack.c.bf16 %v2327, %v2326
  %v2331 = vsel %vm832, %v2328, 0
  %v2334 = vsel %vm832, %v2329, 0
  %2336 = vmatprep.subr.bf16.mxu0 0
  %2337 = vmatpush1.bf16.msra.mxu0 %v825
  %2338 = vmatprep.subr.bf16.mxu0 0
  %2339 = vmatpush1.bf16.msra.mxu0 %v826
  %2340 = vmatprep.subr.bf16.mxu0 0
  %2341 = vmatpush1.bf16.msra.mxu0 %v827
  %2342 = vmatprep.subr.bf16.mxu0 0
  %2343 = vmatpush1.bf16.msra.mxu0 %v840
  %2344 = vmatprep.subr.bf16.mxu0 0
  %2345 = vmatpush1.bf16.msra.mxu0 0
  %2346 = vmatprep.subr.bf16.mxu0 0
  %2347 = vmatpush1.bf16.msra.mxu0 0
  %2348 = vmatprep.subr.bf16.mxu0 0
  %2349 = vmatpush1.bf16.msra.mxu0 0
  %2350 = vmatprep.subr.bf16.mxu0 0
  %2351 = vmatpush1.bf16.msra.mxu0 0
  %2352 = vmatprep.subr.bf16.mxu0 0
  %2353 = vmatpush1.bf16.msra.mxu0 0
  %2354 = vmatprep.subr.bf16.mxu0 0
  %2355 = vmatpush1.bf16.msra.mxu0 0
  %2356 = vmatprep.subr.bf16.mxu0 0
  %2357 = vmatpush1.bf16.msra.mxu0 0
  %2358 = vmatprep.subr.bf16.mxu0 0
  %2359 = vmatpush1.bf16.msra.mxu0 0
  %2360 = vmatprep.subr.bf16.mxu0 0
  %2361 = vmatpush1.bf16.msra.mxu0 0
  %2362 = vmatprep.subr.bf16.mxu0 0
  %2363 = vmatpush1.bf16.msra.mxu0 0
  %2364 = vmatprep.subr.bf16.mxu0 0
  %2365 = vmatpush1.bf16.msra.mxu0 0
  %2366 = vmatprep.subr.bf16.mxu0 0
  %2367 = vmatpush1.bf16.msra.mxu0 0
  %2368 = vmatprep.mubr.bf16.mxu0 0
  %2369 = vmatmul.mubr.bf16.gmra.mrb[0].mxu0 %v2331
  %v2370 = vpop.f32.mrb[0].mxu0
  %v2371 = vadd.f32 0.0, %v2370
  %v2372 = vpop.f32.mrb[0].mxu0
  %v2373 = vpop.f32.mrb[0].mxu0
  %v2374 = vadd.f32 0.0, %v2373
  %v2375 = vpop.f32.mrb[0].mxu0
  %2376 = vmatprep.mubr.bf16.mxu0 0
  %2377 = vmatmul.mubr.bf16.gmra.mrb[0].mxu0 %v2334
  %v2378 = vpop.f32.mrb[0].mxu0
  %v2379 = vadd.f32 0.0, %v2378
  %v2380 = vpop.f32.mrb[0].mxu0
  %v2381 = vpop.f32.mrb[0].mxu0
  %v2382 = vadd.f32 0.0, %v2381
  %v2383 = vpop.f32.mrb[0].mxu0
  %2384 = vdwg.mxu0
  %v2385 = vmax.f32 %v2371, 0.0
  %v2386 = vmax.f32 %v2374, 0.0
  %v2387 = vmax.f32 %v2379, 0.0
  %v2388 = vmax.f32 %v2382, 0.0
  %s2389 = scalar_lea.vmem %s8, 32
  %v2390 = vld [vmem:[%s2389] sm:$0xff]
  %v2391 = vld [vmem:[%s2389 + $0x8] sm:$0xff]
  %v2392 = vld [vmem:[%s2389 + $0x10] sm:$0xff]
  %v2393 = vld [vmem:[%s2389 + $0x18] sm:$0xff]
  %s2394 = scalar_lea.vmem %s9, 32
  %v2395 = vld [vmem:[%s2394] sm:$0xff]
  %v2396 = vld [vmem:[%s2394 + $0x8] sm:$0xff]
  %v2397 = vld [vmem:[%s2394 + $0x10] sm:$0xff]
  %v2398 = vld [vmem:[%s2394 + $0x18] sm:$0xff]
  %2403 = vrot.lane.b32.xlu0 %v2385, 127
  %v2404 = vpop.permute.xlu0 %2403
  %2405 = vrot.lane.b32.xlu0 %v2386, 127
  %v2406 = vpop.permute.xlu0 %2405
  %2407 = vrot.lane.b32.xlu0 %v2387, 127
  %v2408 = vpop.permute.xlu0 %2407
  %2409 = vrot.lane.b32.xlu0 %v2388, 127
  %v2410 = vpop.permute.xlu0 %2409
  %2415 = vrot.lane.b32.xlu0 %v2385, 126
  %v2416 = vpop.permute.xlu0 %2415
  %2417 = vrot.lane.b32.xlu0 %v2386, 126
  %v2418 = vpop.permute.xlu0 %2417
  %2419 = vrot.lane.b32.xlu0 %v2387, 126
  %v2420 = vpop.permute.xlu0 %2419
  %2421 = vrot.lane.b32.xlu0 %v2388, 126
  %v2422 = vpop.permute.xlu0 %2421
  %2427 = vrot.lane.b32.xlu0 %v2385, 125
  %v2428 = vpop.permute.xlu0 %2427
  %2429 = vrot.lane.b32.xlu0 %v2386, 125
  %v2430 = vpop.permute.xlu0 %2429
  %2431 = vrot.lane.b32.xlu0 %v2387, 125
  %v2432 = vpop.permute.xlu0 %2431
  %2433 = vrot.lane.b32.xlu0 %v2388, 125
  %v2434 = vpop.permute.xlu0 %2433
  %2439 = vrot.lane.b32.xlu0 %v2385, 124
  %v2440 = vpop.permute.xlu0 %2439
  %2441 = vrot.lane.b32.xlu0 %v2386, 124
  %v2442 = vpop.permute.xlu0 %2441
  %2443 = vrot.lane.b32.xlu0 %v2387, 124
  %v2444 = vpop.permute.xlu0 %2443
  %2445 = vrot.lane.b32.xlu0 %v2388, 124
  %v2446 = vpop.permute.xlu0 %2445
  %v2451 = vpack.c.bf16 %v2386, %v2385
  %v2452 = vpack.c.bf16 %v2388, %v2387
  %v2453 = vpack.c.bf16 %v2406, %v2404
  %v2454 = vpack.c.bf16 %v2410, %v2408
  %v2455 = vpack.c.bf16 %v2418, %v2416
  %v2456 = vpack.c.bf16 %v2422, %v2420
  %v2457 = vpack.c.bf16 %v2430, %v2428
  %v2458 = vpack.c.bf16 %v2434, %v2432
  %v2459 = vpack.c.bf16 %v2442, %v2440
  %v2460 = vpack.c.bf16 %v2446, %v2444
  %2462 = vset.pattern.permute.xlu0 0
  %2463 = vperm.xlu0 %2462, %v2395
  %v2464 = vpop.permute.xlu0 %2463
  %2467 = vset.pattern.permute.xlu0 0
  %2468 = vperm.xlu0 %2467, %v2396
  %v2469 = vpop.permute.xlu0 %2468
  %2472 = vset.pattern.permute.xlu0 0
  %2473 = vperm.xlu0 %2472, %v2397
  %v2474 = vpop.permute.xlu0 %2473
  %2477 = vset.pattern.permute.xlu0 0
  %2478 = vperm.xlu0 %2477, %v2398
  %v2479 = vpop.permute.xlu0 %2478
  %v2485 = vunpack.c.l.b16 %v2390
  %v2486 = vunpack.c.h.b16 %v2390
  %v2487 = vunpack.c.l.b16 %v2391
  %v2488 = vunpack.c.h.b16 %v2391
  %v2489 = vunpack.c.l.b16 %v2392
  %v2490 = vunpack.c.h.b16 %v2392
  %v2491 = vunpack.c.l.b16 %v2393
  %v2492 = vunpack.c.h.b16 %v2393
  %v2493 = vpack.c.b16 %v2487, %v2485
  %v2494 = vpack.c.b16 %v2488, %v2486
  %v2495 = vpack.c.b16 %v2491, %v2489
  %v2496 = vpack.c.b16 %v2492, %v2490
  %v2500 = vsel %vm1003, %v2494, 0
  %v2503 = vsel %vm1003, %v2496, 0
  %2505 = vmatprep.subr.bf16.mxu0 0
  %2506 = vmatpush1.bf16.msra.mxu0 %v2451
  %2507 = vmatprep.subr.bf16.mxu0 0
  %2508 = vmatpush1.bf16.msra.mxu0 %v2452
  %2509 = vmatprep.subr.bf16.mxu0 0
  %2510 = vmatpush1.bf16.msra.mxu0 %v2453
  %2511 = vmatprep.subr.bf16.mxu0 0
  %2512 = vmatpush1.bf16.msra.mxu0 %v2454
  %2513 = vmatprep.subr.bf16.mxu0 0
  %2514 = vmatpush1.bf16.msra.mxu0 %v2455
  %2515 = vmatprep.subr.bf16.mxu0 0
  %2516 = vmatpush1.bf16.msra.mxu0 %v2456
  %2517 = vmatprep.subr.bf16.mxu0 0
  %2518 = vmatpush1.bf16.msra.mxu0 %v2457
  %2519 = vmatprep.subr.bf16.mxu0 0
  %2520 = vmatpush1.bf16.msra.mxu0 %v2458
  %2521 = vmatprep.subr.bf16.mxu0 0
  %2522 = vmatpush1.bf16.msra.mxu0 %v2459
  %2523 = vmatprep.subr.bf16.mxu0 0
  %2524 = vmatpush1.bf16.msra.mxu0 %v2460
  %2525 = vmatprep.subr.bf16.mxu0 0
  %2526 = vmatpush1.bf16.msra.mxu0 0
  %2527 = vmatprep.subr.bf16.mxu0 0
  %2528 = vmatpush1.bf16.msra.mxu0 0
  %2529 = vmatprep.subr.bf16.mxu0 0
  %2530 = vmatpush1.bf16.msra.mxu0 0
  %2531 = vmatprep.subr.bf16.mxu0 0
  %2532 = vmatpush1.bf16.msra.mxu0 0
  %2533 = vmatprep.subr.bf16.mxu0 0
  %2534 = vmatpush1.bf16.msra.mxu0 0
  %2535 = vmatprep.subr.bf16.mxu0 0
  %2536 = vmatpush1.bf16.msra.mxu0 0
  %2537 = vmatprep.mubr.bf16.mxu0 %v2500
  %2538 = vmatmul.mubr.bf16.gmra.mrb[0].mxu0 %v2493
  %v2539 = vpop.f32.mrb[0].mxu0
  %v2540 = vadd.f32 %v2464, %v2539
  %v2541 = vpop.f32.mrb[0].mxu0
  %v2542 = vpop.f32.mrb[0].mxu0
  %v2543 = vadd.f32 %v2469, %v2542
  %v2544 = vpop.f32.mrb[0].mxu0
  %2545 = vmatprep.mubr.bf16.mxu0 %v2503
  %2546 = vmatmul.mubr.bf16.gmra.mrb[0].mxu0 %v2495
  %v2547 = vpop.f32.mrb[0].mxu0
  %v2548 = vadd.f32 %v2474, %v2547
  %v2549 = vpop.f32.mrb[0].mxu0
  %v2550 = vpop.f32.mrb[0].mxu0
  %v2551 = vadd.f32 %v2479, %v2550
  %v2552 = vpop.f32.mrb[0].mxu0
  %2553 = vdwg.mxu0
  %2558 = vrot.lane.b32.xlu0 %v2540, 127
  %v2559 = vpop.permute.xlu0 %2558
  %2560 = vrot.lane.b32.xlu0 %v2543, 127
  %v2561 = vpop.permute.xlu0 %2560
  %2562 = vrot.lane.b32.xlu0 %v2548, 127
  %v2563 = vpop.permute.xlu0 %2562
  %2564 = vrot.lane.b32.xlu0 %v2551, 127
  %v2565 = vpop.permute.xlu0 %2564
  %v2570 = vmax.f32 %v2540, %v2559
  %v2571 = vmax.f32 %v2543, %v2561
  %v2572 = vmax.f32 %v2548, %v2563
  %v2573 = vmax.f32 %v2551, %v2565
  %v2574 = vpack.c.bf16 %v2571, %v2570
  %v2575 = vpack.c.bf16 %v2573, %v2572
  %v2577 = vsel %vm1090, %v2574, 0
  %v2580 = vsel %vm1090, %v2575, 0
  %2582 = vmatprep.subr.bf16.mxu0 0
  %2583 = vmatpush1.bf16.msra.mxu0 %v1087
  %2584 = vmatprep.subr.bf16.mxu0 0
  %2585 = vmatpush1.bf16.msra.mxu0 %v1098
  %2586 = vmatprep.subr.bf16.mxu0 0
  %2587 = vmatpush1.bf16.msra.mxu0 0
  %2588 = vmatprep.subr.bf16.mxu0 0
  %2589 = vmatpush1.bf16.msra.mxu0 0
  %2590 = vmatprep.subr.bf16.mxu0 0
  %2591 = vmatpush1.bf16.msra.mxu0 0
  %2592 = vmatprep.subr.bf16.mxu0 0
  %2593 = vmatpush1.bf16.msra.mxu0 0
  %2594 = vmatprep.subr.bf16.mxu0 0
  %2595 = vmatpush1.bf16.msra.mxu0 0
  %2596 = vmatprep.subr.bf16.mxu0 0
  %2597 = vmatpush1.bf16.msra.mxu0 0
  %2598 = vmatprep.subr.bf16.mxu0 0
  %2599 = vmatpush1.bf16.msra.mxu0 0
  %2600 = vmatprep.subr.bf16.mxu0 0
  %2601 = vmatpush1.bf16.msra.mxu0 0
  %2602 = vmatprep.subr.bf16.mxu0 0
  %2603 = vmatpush1.bf16.msra.mxu0 0
  %2604 = vmatprep.subr.bf16.mxu0 0
  %2605 = vmatpush1.bf16.msra.mxu0 0
  %2606 = vmatprep.subr.bf16.mxu0 0
  %2607 = vmatpush1.bf16.msra.mxu0 0
  %2608 = vmatprep.subr.bf16.mxu0 0
  %2609 = vmatpush1.bf16.msra.mxu0 0
  %2610 = vmatprep.subr.bf16.mxu0 0
  %2611 = vmatpush1.bf16.msra.mxu0 0
  %2612 = vmatprep.subr.bf16.mxu0 0
  %2613 = vmatpush1.bf16.msra.mxu0 0
  %2614 = vmatprep.mubr.bf16.mxu0 0
  %2615 = vmatmul.mubr.bf16.gmra.mrb[0].mxu0 %v2577
  %v2616 = vpop.f32.mrb[0].mxu0
  %v2617 = vadd.f32 0.0, %v2616
  %v2618 = vpop.f32.mrb[0].mxu0
  %v2619 = vpop.f32.mrb[0].mxu0
  %v2620 = vadd.f32 0.0, %v2619
  %v2621 = vpop.f32.mrb[0].mxu0
  %2622 = vmatprep.mubr.bf16.mxu0 0
  %2623 = vmatmul.mubr.bf16.gmra.mrb[0].mxu0 %v2580
  %v2624 = vpop.f32.mrb[0].mxu0
  %v2625 = vadd.f32 0.0, %v2624
  %v2626 = vpop.f32.mrb[0].mxu0
  %v2627 = vpop.f32.mrb[0].mxu0
  %v2628 = vadd.f32 0.0, %v2627
  %v2629 = vpop.f32.mrb[0].mxu0
  %2630 = vdwg.mxu0
  %v2631 = vmax.f32 %v2617, 0.0
  %v2632 = vmax.f32 %v2620, 0.0
  %v2633 = vmax.f32 %v2625, 0.0
  %v2634 = vmax.f32 %v2628, 0.0
  %2635 = vxpose.xlu0.b32.start [1/16] %v2631, 128
  %2636 = vxpose.xlu0.b32.cont [2/16] %v2632, 128
  %2637 = vxpose.xlu0.b32.cont [3/16] %v2633, 128
  %2638 = vxpose.xlu0.b32.cont [4/16] %v2634, 128
  %2639 = vxpose.xlu0.b32.cont [5/16] 0.0, 128
  %2640 = vxpose.xlu0.b32.cont [6/16] 0.0, 128
  %2641 = vxpose.xlu0.b32.cont [7/16] 0.0, 128
  %2642 = vxpose.xlu0.b32.cont [8/16] 0.0, 128
  %2643 = vxpose.xlu0.b32.cont [9/16] 0.0, 128
  %2644 = vxpose.xlu0.b32.cont [10/16] 0.0, 128
  %2645 = vxpose.xlu0.b32.cont [11/16] 0.0, 128
  %2646 = vxpose.xlu0.b32.cont [12/16] 0.0, 128
  %2647 = vxpose.xlu0.b32.cont [13/16] 0.0, 128
  %2648 = vxpose.xlu0.b32.cont [14/16] 0.0, 128
  %2649 = vxpose.xlu0.b32.cont [15/16] 0.0, 128
  %2650 = vxpose.xlu0.b32.end [16/16] 0.0, 128
  %v2651 = vpop.trf.xlu0
  %v2652 = vpop.trf.xlu0
  %v2653 = vpop.trf.xlu0
  %v2654 = vpop.trf.xlu0
  %v2655 = vpop.trf.xlu0
  %v2656 = vpop.trf.xlu0
  %v2657 = vpop.trf.xlu0
  %v2658 = vpop.trf.xlu0
  %v2659 = vpop.trf.xlu0
  %v2660 = vpop.trf.xlu0
  %v2661 = vpop.trf.xlu0
  %v2662 = vpop.trf.xlu0
  %v2663 = vpop.trf.xlu0
  %v2664 = vpop.trf.xlu0
  %v2665 = vpop.trf.xlu0
  %v2666 = vpop.trf.xlu0
  %s2667 = scalar_lea.vmem %s10, 64
  %v2668 = vld [vmem:[%s2667] sm:$0xf]
  %v2669 = vld [vmem:[%s2667 + $0x4] sm:$0xf]
  %v2670 = vld [vmem:[%s2667 + $0x8] sm:$0xf]
  %v2671 = vld [vmem:[%s2667 + $0xc] sm:$0xf]
  %v2672 = vld [vmem:[%s2667 + $0x10] sm:$0xf]
  %v2673 = vld [vmem:[%s2667 + $0x14] sm:$0xf]
  %v2674 = vld [vmem:[%s2667 + $0x18] sm:$0xf]
  %v2675 = vld [vmem:[%s2667 + $0x1c] sm:$0xf]
  %v2676 = vld [vmem:[%s2667 + $0x20] sm:$0xf]
  %v2677 = vld [vmem:[%s2667 + $0x24] sm:$0xf]
  %v2678 = vld [vmem:[%s2667 + $0x28] sm:$0xf]
  %v2679 = vld [vmem:[%s2667 + $0x2c] sm:$0xf]
  %v2680 = vld [vmem:[%s2667 + $0x30] sm:$0xf]
  %v2681 = vld [vmem:[%s2667 + $0x34] sm:$0xf]
  %v2682 = vld [vmem:[%s2667 + $0x38] sm:$0xf]
  %v2683 = vld [vmem:[%s2667 + $0x3c] sm:$0xf]
  %v2685 = vrot.slane %v2651, 3
  %v2687 = vsel %vm418, %v2651, %v2685
  %v2688 = vpack.c.bf16 %v2687, %v2687
  %v2689 = vrot.slane %v2651, 1
  %v2691 = vrot.slane %v2651, 4
  %v2693 = vsel %vm418, %v2689, %v2691
  %v2694 = vpack.c.bf16 %v2693, %v2693
  %v2699 = vunpack.c.l.b16 %v2672
  %v2700 = vunpack.c.l.b16 %v2673
  %v2701 = vunpack.c.l.b16 %v2674
  %v2702 = vunpack.c.l.b16 %v2675
  %v2703 = vpack.c.b16 %v2700, %v2699
  %v2704 = vpack.c.b16 %v2702, %v2701
  %v2708 = vsel %vm1003, %v2694, 0
  %2710 = vmatprep.subr.bf16.mxu0 0
  %2711 = vmatpush1.bf16.msra.mxu0 %v2703
  %2712 = vmatprep.subr.bf16.mxu0 0
  %2713 = vmatpush1.bf16.msra.mxu0 %v2704
  %2714 = vmatprep.subr.bf16.mxu0 0
  %2715 = vmatpush1.bf16.msra.mxu0 0
  %2716 = vmatprep.subr.bf16.mxu0 0
  %2717 = vmatpush1.bf16.msra.mxu0 0
  %2718 = vmatprep.subr.bf16.mxu0 0
  %2719 = vmatpush1.bf16.msra.mxu0 0
  %2720 = vmatprep.subr.bf16.mxu0 0
  %2721 = vmatpush1.bf16.msra.mxu0 0
  %2722 = vmatprep.subr.bf16.mxu0 0
  %2723 = vmatpush1.bf16.msra.mxu0 0
  %2724 = vmatprep.subr.bf16.mxu0 0
  %2725 = vmatpush1.bf16.msra.mxu0 0
  %2726 = vmatprep.subr.bf16.mxu0 0
  %2727 = vmatpush1.bf16.msra.mxu0 0
  %2728 = vmatprep.subr.bf16.mxu0 0
  %2729 = vmatpush1.bf16.msra.mxu0 0
  %2730 = vmatprep.subr.bf16.mxu0 0
  %2731 = vmatpush1.bf16.msra.mxu0 0
  %2732 = vmatprep.subr.bf16.mxu0 0
  %2733 = vmatpush1.bf16.msra.mxu0 0
  %2734 = vmatprep.subr.bf16.mxu0 0
  %2735 = vmatpush1.bf16.msra.mxu0 0
  %2736 = vmatprep.subr.bf16.mxu0 0
  %2737 = vmatpush1.bf16.msra.mxu0 0
  %2738 = vmatprep.subr.bf16.mxu0 0
  %2739 = vmatpush1.bf16.msra.mxu0 0
  %2740 = vmatprep.subr.bf16.mxu0 0
  %2741 = vmatpush1.bf16.msra.mxu0 0
  %2742 = vmatprep.mubr.bf16.mxu0 0
  %2743 = vmatmul.mubr.bf16.gmra.mrb[0].mxu0 %v2708
  %v2744 = vpop.f32.mrb[0].mxu0
  %v2745 = vadd.f32 0.0, %v2744
  %v2746 = vpop.f32.mrb[0].mxu0
  %v2747 = vpop.f32.mrb[0].mxu0
  %v2748 = vpop.f32.mrb[0].mxu0
  %2749 = vdwg.mxu0
  %v2754 = vunpack.c.l.b16 %v2668
  %v2755 = vunpack.c.l.b16 %v2669
  %v2756 = vunpack.c.l.b16 %v2670
  %v2757 = vunpack.c.l.b16 %v2671
  %v2758 = vpack.c.b16 %v2755, %v2754
  %v2759 = vpack.c.b16 %v2757, %v2756
  %v2763 = vsel %vm1003, %v2688, 0
  %2765 = vmatprep.subr.bf16.mxu0 0
  %2766 = vmatpush1.bf16.msra.mxu0 %v2758
  %2767 = vmatprep.subr.bf16.mxu0 0
  %2768 = vmatpush1.bf16.msra.mxu0 %v2759
  %2769 = vmatprep.subr.bf16.mxu0 0
  %2770 = vmatpush1.bf16.msra.mxu0 0
  %2771 = vmatprep.subr.bf16.mxu0 0
  %2772 = vmatpush1.bf16.msra.mxu0 0
  %2773 = vmatprep.subr.bf16.mxu0 0
  %2774 = vmatpush1.bf16.msra.mxu0 0
  %2775 = vmatprep.subr.bf16.mxu0 0
  %2776 = vmatpush1.bf16.msra.mxu0 0
  %2777 = vmatprep.subr.bf16.mxu0 0
  %2778 = vmatpush1.bf16.msra.mxu0 0
  %2779 = vmatprep.subr.bf16.mxu0 0
  %2780 = vmatpush1.bf16.msra.mxu0 0
  %2781 = vmatprep.subr.bf16.mxu0 0
  %2782 = vmatpush1.bf16.msra.mxu0 0
  %2783 = vmatprep.subr.bf16.mxu0 0
  %2784 = vmatpush1.bf16.msra.mxu0 0
  %2785 = vmatprep.subr.bf16.mxu0 0
  %2786 = vmatpush1.bf16.msra.mxu0 0
  %2787 = vmatprep.subr.bf16.mxu0 0
  %2788 = vmatpush1.bf16.msra.mxu0 0
  %2789 = vmatprep.subr.bf16.mxu0 0
  %2790 = vmatpush1.bf16.msra.mxu0 0
  %2791 = vmatprep.subr.bf16.mxu0 0
  %2792 = vmatpush1.bf16.msra.mxu0 0
  %2793 = vmatprep.subr.bf16.mxu0 0
  %2794 = vmatpush1.bf16.msra.mxu0 0
  %2795 = vmatprep.subr.bf16.mxu0 0
  %2796 = vmatpush1.bf16.msra.mxu0 0
  %2797 = vmatprep.mubr.bf16.mxu0 0
  %2798 = vmatmul.mubr.bf16.gmra.mrb[0].mxu0 %v2763
  %v2799 = vpop.f32.mrb[0].mxu0
  %v2800 = vadd.f32 %v2745, %v2799
  %v2801 = vpop.f32.mrb[0].mxu0
  %v2802 = vpop.f32.mrb[0].mxu0
  %v2803 = vpop.f32.mrb[0].mxu0
  %2804 = vdwg.mxu0
  %v2805 = vrot.slane %v2651, 2
  %v2807 = vrot.slane %v2651, 5
  %v2809 = vsel %vm418, %v2805, %v2807
  %v2810 = vpack.c.bf16 %v2809, %v2809
  %v2815 = vunpack.c.l.b16 %v2676
  %v2816 = vunpack.c.l.b16 %v2677
  %v2817 = vunpack.c.l.b16 %v2678
  %v2818 = vunpack.c.l.b16 %v2679
  %v2819 = vpack.c.b16 %v2816, %v2815
  %v2820 = vpack.c.b16 %v2818, %v2817
  %v2824 = vsel %vm1003, %v2810, 0
  %2826 = vmatprep.subr.bf16.mxu0 0
  %2827 = vmatpush1.bf16.msra.mxu0 %v2819
  %2828 = vmatprep.subr.bf16.mxu0 0
  %2829 = vmatpush1.bf16.msra.mxu0 %v2820
  %2830 = vmatprep.subr.bf16.mxu0 0
  %2831 = vmatpush1.bf16.msra.mxu0 0
  %2832 = vmatprep.subr.bf16.mxu0 0
  %2833 = vmatpush1.bf16.msra.mxu0 0
  %2834 = vmatprep.subr.bf16.mxu0 0
  %2835 = vmatpush1.bf16.msra.mxu0 0
  %2836 = vmatprep.subr.bf16.mxu0 0
  %2837 = vmatpush1.bf16.msra.mxu0 0
  %2838 = vmatprep.subr.bf16.mxu0 0
  %2839 = vmatpush1.bf16.msra.mxu0 0
  %2840 = vmatprep.subr.bf16.mxu0 0
  %2841 = vmatpush1.bf16.msra.mxu0 0
  %2842 = vmatprep.subr.bf16.mxu0 0
  %2843 = vmatpush1.bf16.msra.mxu0 0
  %2844 = vmatprep.subr.bf16.mxu0 0
  %2845 = vmatpush1.bf16.msra.mxu0 0
  %2846 = vmatprep.subr.bf16.mxu0 0
  %2847 = vmatpush1.bf16.msra.mxu0 0
  %2848 = vmatprep.subr.bf16.mxu0 0
  %2849 = vmatpush1.bf16.msra.mxu0 0
  %2850 = vmatprep.subr.bf16.mxu0 0
  %2851 = vmatpush1.bf16.msra.mxu0 0
  %2852 = vmatprep.subr.bf16.mxu0 0
  %2853 = vmatpush1.bf16.msra.mxu0 0
  %2854 = vmatprep.subr.bf16.mxu0 0
  %2855 = vmatpush1.bf16.msra.mxu0 0
  %2856 = vmatprep.subr.bf16.mxu0 0
  %2857 = vmatpush1.bf16.msra.mxu0 0
  %2858 = vmatprep.mubr.bf16.mxu0 0
  %2859 = vmatmul.mubr.bf16.gmra.mrb[0].mxu0 %v2824
  %v2860 = vpop.f32.mrb[0].mxu0
  %v2861 = vadd.f32 0.0, %v2860
  %v2862 = vpop.f32.mrb[0].mxu0
  %v2863 = vpop.f32.mrb[0].mxu0
  %v2864 = vpop.f32.mrb[0].mxu0
  %2865 = vdwg.mxu0
  %v2866 = vadd.f32 %v2800, %v2861
  %v2867 = vrot.slane %v2651, 6
  %v2869 = vsel %vm418, %v2685, %v2867
  %v2870 = vpack.c.bf16 %v2869, %v2869
  %v2875 = vunpack.c.l.b16 %v2680
  %v2876 = vunpack.c.l.b16 %v2681
  %v2877 = vunpack.c.l.b16 %v2682
  %v2878 = vunpack.c.l.b16 %v2683
  %v2879 = vpack.c.b16 %v2876, %v2875
  %v2880 = vpack.c.b16 %v2878, %v2877
  %v2884 = vsel %vm1003, %v2870, 0
  %2886 = vmatprep.subr.bf16.mxu0 0
  %2887 = vmatpush1.bf16.msra.mxu0 %v2879
  %2888 = vmatprep.subr.bf16.mxu0 0
  %2889 = vmatpush1.bf16.msra.mxu0 %v2880
  %2890 = vmatprep.subr.bf16.mxu0 0
  %2891 = vmatpush1.bf16.msra.mxu0 0
  %2892 = vmatprep.subr.bf16.mxu0 0
  %2893 = vmatpush1.bf16.msra.mxu0 0
  %2894 = vmatprep.subr.bf16.mxu0 0
  %2895 = vmatpush1.bf16.msra.mxu0 0
  %2896 = vmatprep.subr.bf16.mxu0 0
  %2897 = vmatpush1.bf16.msra.mxu0 0
  %2898 = vmatprep.subr.bf16.mxu0 0
  %2899 = vmatpush1.bf16.msra.mxu0 0
  %2900 = vmatprep.subr.bf16.mxu0 0
  %2901 = vmatpush1.bf16.msra.mxu0 0
  %2902 = vmatprep.subr.bf16.mxu0 0
  %2903 = vmatpush1.bf16.msra.mxu0 0
  %2904 = vmatprep.subr.bf16.mxu0 0
  %2905 = vmatpush1.bf16.msra.mxu0 0
  %2906 = vmatprep.subr.bf16.mxu0 0
  %2907 = vmatpush1.bf16.msra.mxu0 0
  %2908 = vmatprep.subr.bf16.mxu0 0
  %2909 = vmatpush1.bf16.msra.mxu0 0
  %2910 = vmatprep.subr.bf16.mxu0 0
  %2911 = vmatpush1.bf16.msra.mxu0 0
  %2912 = vmatprep.subr.bf16.mxu0 0
  %2913 = vmatpush1.bf16.msra.mxu0 0
  %2914 = vmatprep.subr.bf16.mxu0 0
  %2915 = vmatpush1.bf16.msra.mxu0 0
  %2916 = vmatprep.subr.bf16.mxu0 0
  %2917 = vmatpush1.bf16.msra.mxu0 0
  %2918 = vmatprep.mubr.bf16.mxu0 0
  %2919 = vmatmul.mubr.bf16.gmra.mrb[0].mxu0 %v2884
  %v2920 = vpop.f32.mrb[0].mxu0
  %v2921 = vadd.f32 0.0, %v2920
  %v2922 = vpop.f32.mrb[0].mxu0
  %v2923 = vpop.f32.mrb[0].mxu0
  %v2924 = vpop.f32.mrb[0].mxu0
  %2925 = vdwg.mxu0
  %v2926 = vadd.f32 %v2866, %v2921
  %s2927 = scalar_lea.vmem %s11, 1
  %v2928 = vld [vmem:[%s2927] sm:$0x1]
  %v2930 = vlaneseq
  %v2931 = vshrl.u32 %v2930, 7
  %v2932 = vsub.s32 0, %v2931
  %v2933 = vrot.slane %v2928, %v2932
  %v2935 = vadd.f32 %v2926, %v2933
  %v2936 = vmax.f32 %v2935, 0.0
  %v2937 = vpack.c.bf16 %v2936, %v2936
  %s2938 = scalar_lea.vmem %s12, 64
  %v2939 = vld [vmem:[%s2938] sm:$0xf]
  %v2940 = vld [vmem:[%s2938 + $0x4] sm:$0xf]
  %v2941 = vld [vmem:[%s2938 + $0x8] sm:$0xf]
  %v2942 = vld [vmem:[%s2938 + $0xc] sm:$0xf]
  %v2943 = vld [vmem:[%s2938 + $0x10] sm:$0xf]
  %v2944 = vld [vmem:[%s2938 + $0x14] sm:$0xf]
  %v2945 = vld [vmem:[%s2938 + $0x18] sm:$0xf]
  %v2946 = vld [vmem:[%s2938 + $0x1c] sm:$0xf]
  %v2947 = vld [vmem:[%s2938 + $0x20] sm:$0xf]
  %v2948 = vld [vmem:[%s2938 + $0x24] sm:$0xf]
  %v2949 = vld [vmem:[%s2938 + $0x28] sm:$0xf]
  %v2950 = vld [vmem:[%s2938 + $0x2c] sm:$0xf]
  %v2951 = vld [vmem:[%s2938 + $0x30] sm:$0xf]
  %v2952 = vld [vmem:[%s2938 + $0x34] sm:$0xf]
  %v2953 = vld [vmem:[%s2938 + $0x38] sm:$0xf]
  %v2954 = vld [vmem:[%s2938 + $0x3c] sm:$0xf]
  %s2955 = scalar_lea.vmem %s13, 1
  %v2956 = vld [vmem:[%s2955] sm:$0x1]
  %v2958 = vlaneseq
  %v2959 = vshrl.u32 %v2958, 7
  %v2960 = vsub.s32 0, %v2959
  %v2961 = vrot.slane %v2956, %v2960
  %v2979 = vunpack.c.l.b16 %v2939
  %v2980 = vunpack.c.l.b16 %v2940
  %v2981 = vunpack.c.l.b16 %v2941
  %v2982 = vunpack.c.l.b16 %v2942
  %v2983 = vunpack.c.l.b16 %v2943
  %v2984 = vunpack.c.l.b16 %v2944
  %v2985 = vunpack.c.l.b16 %v2945
  %v2986 = vunpack.c.l.b16 %v2946
  %v2987 = vunpack.c.l.b16 %v2947
  %v2988 = vunpack.c.l.b16 %v2948
  %v2989 = vunpack.c.l.b16 %v2949
  %v2990 = vunpack.c.l.b16 %v2950
  %v2991 = vunpack.c.l.b16 %v2951
  %v2992 = vunpack.c.l.b16 %v2952
  %v2993 = vunpack.c.l.b16 %v2953
  %v2994 = vunpack.c.l.b16 %v2954
  %v2995 = vpack.c.b16 %v2980, %v2979
  %v2996 = vpack.c.b16 %v2982, %v2981
  %v2997 = vpack.c.b16 %v2984, %v2983
  %v2998 = vpack.c.b16 %v2986, %v2985
  %v2999 = vpack.c.b16 %v2988, %v2987
  %v3000 = vpack.c.b16 %v2990, %v2989
  %v3001 = vpack.c.b16 %v2992, %v2991
  %v3002 = vpack.c.b16 %v2994, %v2993
  %3011 = vmatprep.subr.bf16.mxu0 0
  %3012 = vmatpush1.bf16.msra.mxu0 %v2995
  %3013 = vmatprep.subr.bf16.mxu0 0
  %3014 = vmatpush1.bf16.msra.mxu0 %v2996
  %3015 = vmatprep.subr.bf16.mxu0 0
  %3016 = vmatpush1.bf16.msra.mxu0 %v2997
  %3017 = vmatprep.subr.bf16.mxu0 0
  %3018 = vmatpush1.bf16.msra.mxu0 %v2998
  %3019 = vmatprep.subr.bf16.mxu0 0
  %3020 = vmatpush1.bf16.msra.mxu0 %v2999
  %3021 = vmatprep.subr.bf16.mxu0 0
  %3022 = vmatpush1.bf16.msra.mxu0 %v3000
  %3023 = vmatprep.subr.bf16.mxu0 0
  %3024 = vmatpush1.bf16.msra.mxu0 %v3001
  %3025 = vmatprep.subr.bf16.mxu0 0
  %3026 = vmatpush1.bf16.msra.mxu0 %v3002
  %3027 = vmatprep.subr.bf16.mxu0 0
  %3028 = vmatpush1.bf16.msra.mxu0 0
  %3029 = vmatprep.subr.bf16.mxu0 0
  %3030 = vmatpush1.bf16.msra.mxu0 0
  %3031 = vmatprep.subr.bf16.mxu0 0
  %3032 = vmatpush1.bf16.msra.mxu0 0
  %3033 = vmatprep.subr.bf16.mxu0 0
  %3034 = vmatpush1.bf16.msra.mxu0 0
  %3035 = vmatprep.subr.bf16.mxu0 0
  %3036 = vmatpush1.bf16.msra.mxu0 0
  %3037 = vmatprep.subr.bf16.mxu0 0
  %3038 = vmatpush1.bf16.msra.mxu0 0
  %3039 = vmatprep.subr.bf16.mxu0 0
  %3040 = vmatpush1.bf16.msra.mxu0 0
  %3041 = vmatprep.subr.bf16.mxu0 0
  %3042 = vmatpush1.bf16.msra.mxu0 0
  %3043 = vmatprep.mubr.bf16.mxu0 0
  %3044 = vmatmul.mubr.bf16.gmra.mrb[0].mxu0 %v2937
  %v3045 = vpop.f32.mrb[0].mxu0
  %v3046 = vadd.f32 %v2961, %v3045
  %v3047 = vpop.f32.mrb[0].mxu0
  %v3048 = vpop.f32.mrb[0].mxu0
  %v3049 = vpop.f32.mrb[0].mxu0
  %3050 = vdwg.mxu0
  %v3051 = vpack.c.bf16 %v3046, %v3046
  %s3052 = scalar_lea.vmem %s14, 64
  %v3053 = vld [vmem:[%s3052] sm:$0xf]
  %v3054 = vld [vmem:[%s3052 + $0x4] sm:$0xf]
  %v3055 = vld [vmem:[%s3052 + $0x8] sm:$0xf]
  %v3056 = vld [vmem:[%s3052 + $0xc] sm:$0xf]
  %v3057 = vld [vmem:[%s3052 + $0x10] sm:$0xf]
  %v3058 = vld [vmem:[%s3052 + $0x14] sm:$0xf]
  %v3059 = vld [vmem:[%s3052 + $0x18] sm:$0xf]
  %v3060 = vld [vmem:[%s3052 + $0x1c] sm:$0xf]
  %v3061 = vld [vmem:[%s3052 + $0x20] sm:$0xf]
  %v3062 = vld [vmem:[%s3052 + $0x24] sm:$0xf]
  %v3063 = vld [vmem:[%s3052 + $0x28] sm:$0xf]
  %v3064 = vld [vmem:[%s3052 + $0x2c] sm:$0xf]
  %v3065 = vld [vmem:[%s3052 + $0x30] sm:$0xf]
  %v3066 = vld [vmem:[%s3052 + $0x34] sm:$0xf]
  %v3067 = vld [vmem:[%s3052 + $0x38] sm:$0xf]
  %v3068 = vld [vmem:[%s3052 + $0x3c] sm:$0xf]
  %s3069 = scalar_lea.vmem %s15, 1
  %v3070 = vld [vmem:[%s3069] sm:$0x1]
  %v3072 = vlaneseq
  %v3073 = vshrl.u32 %v3072, 7
  %v3074 = vsub.s32 0, %v3073
  %v3075 = vrot.slane %v3070, %v3074
  %v3093 = vunpack.c.l.b16 %v3053
  %v3094 = vunpack.c.l.b16 %v3054
  %v3095 = vunpack.c.l.b16 %v3055
  %v3096 = vunpack.c.l.b16 %v3056
  %v3097 = vunpack.c.l.b16 %v3057
  %v3098 = vunpack.c.l.b16 %v3058
  %v3099 = vunpack.c.l.b16 %v3059
  %v3100 = vunpack.c.l.b16 %v3060
  %v3101 = vunpack.c.l.b16 %v3061
  %v3102 = vunpack.c.l.b16 %v3062
  %v3103 = vunpack.c.l.b16 %v3063
  %v3104 = vunpack.c.l.b16 %v3064
  %v3105 = vunpack.c.l.b16 %v3065
  %v3106 = vunpack.c.l.b16 %v3066
  %v3107 = vunpack.c.l.b16 %v3067
  %v3108 = vunpack.c.l.b16 %v3068
  %v3109 = vpack.c.b16 %v3094, %v3093
  %v3110 = vpack.c.b16 %v3096, %v3095
  %v3111 = vpack.c.b16 %v3098, %v3097
  %v3112 = vpack.c.b16 %v3100, %v3099
  %v3113 = vpack.c.b16 %v3102, %v3101
  %v3114 = vpack.c.b16 %v3104, %v3103
  %v3115 = vpack.c.b16 %v3106, %v3105
  %v3116 = vpack.c.b16 %v3108, %v3107
  %3125 = vmatprep.subr.bf16.mxu0 0
  %3126 = vmatpush1.bf16.msra.mxu0 %v3109
  %3127 = vmatprep.subr.bf16.mxu0 0
  %3128 = vmatpush1.bf16.msra.mxu0 %v3110
  %3129 = vmatprep.subr.bf16.mxu0 0
  %3130 = vmatpush1.bf16.msra.mxu0 %v3111
  %3131 = vmatprep.subr.bf16.mxu0 0
  %3132 = vmatpush1.bf16.msra.mxu0 %v3112
  %3133 = vmatprep.subr.bf16.mxu0 0
  %3134 = vmatpush1.bf16.msra.mxu0 %v3113
  %3135 = vmatprep.subr.bf16.mxu0 0
  %3136 = vmatpush1.bf16.msra.mxu0 %v3114
  %3137 = vmatprep.subr.bf16.mxu0 0
  %3138 = vmatpush1.bf16.msra.mxu0 %v3115
  %3139 = vmatprep.subr.bf16.mxu0 0
  %3140 = vmatpush1.bf16.msra.mxu0 %v3116
  %3141 = vmatprep.subr.bf16.mxu0 0
  %3142 = vmatpush1.bf16.msra.mxu0 0
  %3143 = vmatprep.subr.bf16.mxu0 0
  %3144 = vmatpush1.bf16.msra.mxu0 0
  %3145 = vmatprep.subr.bf16.mxu0 0
  %3146 = vmatpush1.bf16.msra.mxu0 0
  %3147 = vmatprep.subr.bf16.mxu0 0
  %3148 = vmatpush1.bf16.msra.mxu0 0
  %3149 = vmatprep.subr.bf16.mxu0 0
  %3150 = vmatpush1.bf16.msra.mxu0 0
  %3151 = vmatprep.subr.bf16.mxu0 0
  %3152 = vmatpush1.bf16.msra.mxu0 0
  %3153 = vmatprep.subr.bf16.mxu0 0
  %3154 = vmatpush1.bf16.msra.mxu0 0
  %3155 = vmatprep.subr.bf16.mxu0 0
  %3156 = vmatpush1.bf16.msra.mxu0 0
  %3157 = vmatprep.mubr.bf16.mxu0 0
  %3158 = vmatmul.mubr.bf16.gmra.mrb[0].mxu0 %v3051
  %v3159 = vpop.f32.mrb[0].mxu0
  %v3160 = vadd.f32 %v3075, %v3159
  %v3161 = vpop.f32.mrb[0].mxu0
  %v3162 = vpop.f32.mrb[0].mxu0
  %v3163 = vpop.f32.mrb[0].mxu0
  %3164 = vdwg.mxu0
  %v3165 = vadd.f32 %v3160, %v2936
  %s3166 = scalar_lea.vmem %s0, 48
  %v3167 = vld [vmem:[%s3166] sm:$0xff]
  %v3168 = vld [vmem:[%s3166 + $0x8] sm:$0xff]
  %v3169 = vld [vmem:[%s3166 + $0x10] sm:$0xff]
  %s3170 = scalar_lea.vmem %s2, 64
  %v3171 = vld [vmem:[%s3170] sm:$0xf]
  %v3172 = vld [vmem:[%s3170 + $0x4] sm:$0xf]
  %v3173 = vld [vmem:[%s3170 + $0x8] sm:$0xf]
  %v3174 = vld [vmem:[%s3170 + $0xc] sm:$0xf]
  %v3175 = vld [vmem:[%s3170 + $0x10] sm:$0xf]
  %v3176 = vld [vmem:[%s3170 + $0x14] sm:$0xf]
  %v3177 = vld [vmem:[%s3170 + $0x18] sm:$0xf]
  %v3178 = vld [vmem:[%s3170 + $0x1c] sm:$0xf]
  %s3179 = scalar_lea.vmem %s3, 128
  %v3180 = vld [vmem:[%s3179] sm:$0xff]
  %v3181 = vld [vmem:[%s3179 + $0x8] sm:$0xff]
  %v3182 = vld [vmem:[%s3179 + $0x10] sm:$0xff]
  %v3183 = vld [vmem:[%s3179 + $0x18] sm:$0xff]
  %v3184 = vld [vmem:[%s3179 + $0x20] sm:$0xff]
  %v3185 = vld [vmem:[%s3179 + $0x28] sm:$0xff]
  %v3186 = vld [vmem:[%s3179 + $0x30] sm:$0xff]
  %v3187 = vld [vmem:[%s3179 + $0x38] sm:$0xff]
  %3191 = vrot.lane.b32.xlu0 %v3167, 127
  %v3192 = vpop.permute.xlu0 %3191
  %3193 = vrot.lane.b32.xlu0 %v3168, 127
  %v3194 = vpop.permute.xlu0 %3193
  %3195 = vrot.lane.b32.xlu0 %v3169, 127
  %v3196 = vpop.permute.xlu0 %3195
  %3200 = vrot.lane.b32.xlu0 %v3167, 126
  %v3201 = vpop.permute.xlu0 %3200
  %3202 = vrot.lane.b32.xlu0 %v3168, 126
  %v3203 = vpop.permute.xlu0 %3202
  %3204 = vrot.lane.b32.xlu0 %v3169, 126
  %v3205 = vpop.permute.xlu0 %3204
  %3209 = vrot.lane.b32.xlu0 %v3167, 125
  %v3210 = vpop.permute.xlu0 %3209
  %3211 = vrot.lane.b32.xlu0 %v3168, 125
  %v3212 = vpop.permute.xlu0 %3211
  %3213 = vrot.lane.b32.xlu0 %v3169, 125
  %v3214 = vpop.permute.xlu0 %3213
  %3218 = vrot.lane.b32.xlu0 %v3167, 124
  %v3219 = vpop.permute.xlu0 %3218
  %3220 = vrot.lane.b32.xlu0 %v3168, 124
  %v3221 = vpop.permute.xlu0 %3220
  %3222 = vrot.lane.b32.xlu0 %v3169, 124
  %v3223 = vpop.permute.xlu0 %3222
  %v3227 = vpack.c.bf16 %v3168, %v3167
  %v3228 = vpack.c.bf16 %v3192, %v3169
  %v3229 = vpack.c.bf16 %v3196, %v3194
  %v3230 = vpack.c.bf16 %v3203, %v3201
  %v3231 = vpack.c.bf16 %v3210, %v3205
  %v3232 = vpack.c.bf16 %v3214, %v3212
  %v3233 = vpack.c.bf16 %v3221, %v3219
  %v3234 = vpack.c.bf16 %v3223, %v3223
  %3236 = vset.pattern.permute.xlu0 0
  %3237 = vperm.xlu0 %3236, %v3180
  %v3238 = vpop.permute.xlu0 %3237
  %3241 = vset.pattern.permute.xlu0 0
  %3242 = vperm.xlu0 %3241, %v3181
  %v3243 = vpop.permute.xlu0 %3242
  %3246 = vset.pattern.permute.xlu0 0
  %3247 = vperm.xlu0 %3246, %v3182
  %v3248 = vpop.permute.xlu0 %3247
  %3251 = vset.pattern.permute.xlu0 0
  %3252 = vperm.xlu0 %3251, %v3183
  %v3253 = vpop.permute.xlu0 %3252
  %3256 = vset.pattern.permute.xlu0 0
  %3257 = vperm.xlu0 %3256, %v3184
  %v3258 = vpop.permute.xlu0 %3257
  %3261 = vset.pattern.permute.xlu0 0
  %3262 = vperm.xlu0 %3261, %v3185
  %v3263 = vpop.permute.xlu0 %3262
  %3266 = vset.pattern.permute.xlu0 0
  %3267 = vperm.xlu0 %3266, %v3186
  %v3268 = vpop.permute.xlu0 %3267
  %3271 = vset.pattern.permute.xlu0 0
  %3272 = vperm.xlu0 %3271, %v3187
  %v3273 = vpop.permute.xlu0 %3272
  %v3283 = vunpack.c.l.b16 %v3171
  %v3284 = vunpack.c.l.b16 %v3172
  %v3285 = vunpack.c.l.b16 %v3173
  %v3286 = vunpack.c.l.b16 %v3174
  %v3287 = vunpack.c.l.b16 %v3175
  %v3288 = vunpack.c.l.b16 %v3176
  %v3289 = vunpack.c.l.b16 %v3177
  %v3290 = vunpack.c.l.b16 %v3178
  %v3291 = vpack.c.b16 %v3284, %v3283
  %v3292 = vpack.c.b16 %v3286, %v3285
  %v3293 = vpack.c.b16 %v3288, %v3287
  %v3294 = vpack.c.b16 %v3290, %v3289
  %v3296 = vsel %vm234, %v3291, 0
  %v3299 = vsel %vm234, %v3292, 0
  %v3302 = vsel %vm234, %v3293, 0
  %v3305 = vsel %vm234, %v3294, 0
  %v3308 = vsel %vm247, %v3234, 0
  %3310 = vmatprep.subr.bf16.mxu0 0
  %3311 = vmatpush1.bf16.msra.mxu0 %v3227
  %3312 = vmatprep.subr.bf16.mxu0 0
  %3313 = vmatpush1.bf16.msra.mxu0 %v3228
  %3314 = vmatprep.subr.bf16.mxu0 0
  %3315 = vmatpush1.bf16.msra.mxu0 %v3229
  %3316 = vmatprep.subr.bf16.mxu0 0
  %3317 = vmatpush1.bf16.msra.mxu0 %v3230
  %3318 = vmatprep.subr.bf16.mxu0 0
  %3319 = vmatpush1.bf16.msra.mxu0 %v3231
  %3320 = vmatprep.subr.bf16.mxu0 0
  %3321 = vmatpush1.bf16.msra.mxu0 %v3232
  %3322 = vmatprep.subr.bf16.mxu0 0
  %3323 = vmatpush1.bf16.msra.mxu0 %v3233
  %3324 = vmatprep.subr.bf16.mxu0 0
  %3325 = vmatpush1.bf16.msra.mxu0 %v3308
  %3326 = vmatprep.subr.bf16.mxu0 0
  %3327 = vmatpush1.bf16.msra.mxu0 0
  %3328 = vmatprep.subr.bf16.mxu0 0
  %3329 = vmatpush1.bf16.msra.mxu0 0
  %3330 = vmatprep.subr.bf16.mxu0 0
  %3331 = vmatpush1.bf16.msra.mxu0 0
  %3332 = vmatprep.subr.bf16.mxu0 0
  %3333 = vmatpush1.bf16.msra.mxu0 0
  %3334 = vmatprep.subr.bf16.mxu0 0
  %3335 = vmatpush1.bf16.msra.mxu0 0
  %3336 = vmatprep.subr.bf16.mxu0 0
  %3337 = vmatpush1.bf16.msra.mxu0 0
  %3338 = vmatprep.subr.bf16.mxu0 0
  %3339 = vmatpush1.bf16.msra.mxu0 0
  %3340 = vmatprep.subr.bf16.mxu0 0
  %3341 = vmatpush1.bf16.msra.mxu0 0
  %3342 = vmatprep.mubr.bf16.mxu0 0
  %3343 = vmatmul.mubr.bf16.gmra.mrb[0].mxu0 %v3296
  %v3344 = vpop.f32.mrb[0].mxu0
  %v3345 = vadd.f32 %v3238, %v3344
  %v3346 = vpop.f32.mrb[0].mxu0
  %v3347 = vpop.f32.mrb[0].mxu0
  %v3348 = vadd.f32 %v3243, %v3347
  %v3349 = vpop.f32.mrb[0].mxu0
  %3350 = vmatprep.mubr.bf16.mxu0 0
  %3351 = vmatmul.mubr.bf16.gmra.mrb[0].mxu0 %v3299
  %v3352 = vpop.f32.mrb[0].mxu0
  %v3353 = vadd.f32 %v3248, %v3352
  %v3354 = vpop.f32.mrb[0].mxu0
  %v3355 = vpop.f32.mrb[0].mxu0
  %v3356 = vadd.f32 %v3253, %v3355
  %v3357 = vpop.f32.mrb[0].mxu0
  %3358 = vmatprep.mubr.bf16.mxu0 0
  %3359 = vmatmul.mubr.bf16.gmra.mrb[0].mxu0 %v3302
  %v3360 = vpop.f32.mrb[0].mxu0
  %v3361 = vadd.f32 %v3258, %v3360
  %v3362 = vpop.f32.mrb[0].mxu0
  %v3363 = vpop.f32.mrb[0].mxu0
  %v3364 = vadd.f32 %v3263, %v3363
  %v3365 = vpop.f32.mrb[0].mxu0
  %3366 = vmatprep.mubr.bf16.mxu0 0
  %3367 = vmatmul.mubr.bf16.gmra.mrb[0].mxu0 %v3305
  %v3368 = vpop.f32.mrb[0].mxu0
  %v3369 = vadd.f32 %v3268, %v3368
  %v3370 = vpop.f32.mrb[0].mxu0
  %v3371 = vpop.f32.mrb[0].mxu0
  %v3372 = vadd.f32 %v3273, %v3371
  %v3373 = vpop.f32.mrb[0].mxu0
  %3374 = vdwg.mxu0
  %3383 = vrot.lane.b32.xlu0 %v3345, 127
  %v3384 = vpop.permute.xlu0 %3383
  %3385 = vrot.lane.b32.xlu0 %v3348, 127
  %v3386 = vpop.permute.xlu0 %3385
  %3387 = vrot.lane.b32.xlu0 %v3353, 127
  %v3388 = vpop.permute.xlu0 %3387
  %3389 = vrot.lane.b32.xlu0 %v3356, 127
  %v3390 = vpop.permute.xlu0 %3389
  %3391 = vrot.lane.b32.xlu0 %v3361, 127
  %v3392 = vpop.permute.xlu0 %3391
  %3393 = vrot.lane.b32.xlu0 %v3364, 127
  %v3394 = vpop.permute.xlu0 %3393
  %3395 = vrot.lane.b32.xlu0 %v3369, 127
  %v3396 = vpop.permute.xlu0 %3395
  %3397 = vrot.lane.b32.xlu0 %v3372, 127
  %v3398 = vpop.permute.xlu0 %3397
  %v3407 = vmax.f32 %v3345, %v3384
  %v3408 = vmax.f32 %v3348, %v3386
  %v3409 = vmax.f32 %v3353, %v3388
  %v3410 = vmax.f32 %v3356, %v3390
  %v3411 = vmax.f32 %v3361, %v3392
  %v3412 = vmax.f32 %v3364, %v3394
  %v3413 = vmax.f32 %v3369, %v3396
  %v3414 = vmax.f32 %v3372, %v3398
  %v3415 = vpack.c.bf16 %v3408, %v3407
  %v3416 = vpack.c.bf16 %v3410, %v3409
  %v3417 = vpack.c.bf16 %v3412, %v3411
  %v3418 = vpack.c.bf16 %v3414, %v3413
  %v3420 = vsel %vm405, %v3415, 0
  %v3423 = vsel %vm405, %v3416, 0
  %v3426 = vsel %vm405, %v3417, 0
  %v3429 = vsel %vm405, %v3418, 0
  %3431 = vmatprep.subr.bf16.mxu0 0
  %3432 = vmatpush1.bf16.msra.mxu0 %v390
  %3433 = vmatprep.subr.bf16.mxu0 0
  %3434 = vmatpush1.bf16.msra.mxu0 %v391
  %3435 = vmatprep.subr.bf16.mxu0 0
  %3436 = vmatpush1.bf16.msra.mxu0 %v392
  %3437 = vmatprep.subr.bf16.mxu0 0
  %3438 = vmatpush1.bf16.msra.mxu0 %v393
  %3439 = vmatprep.subr.bf16.mxu0 0
  %3440 = vmatpush1.bf16.msra.mxu0 %v394
  %3441 = vmatprep.subr.bf16.mxu0 0
  %3442 = vmatpush1.bf16.msra.mxu0 %v395
  %3443 = vmatprep.subr.bf16.mxu0 0
  %3444 = vmatpush1.bf16.msra.mxu0 %v396
  %3445 = vmatprep.subr.bf16.mxu0 0
  %3446 = vmatpush1.bf16.msra.mxu0 %v423
  %3447 = vmatprep.subr.bf16.mxu0 0
  %3448 = vmatpush1.bf16.msra.mxu0 0
  %3449 = vmatprep.subr.bf16.mxu0 0
  %3450 = vmatpush1.bf16.msra.mxu0 0
  %3451 = vmatprep.subr.bf16.mxu0 0
  %3452 = vmatpush1.bf16.msra.mxu0 0
  %3453 = vmatprep.subr.bf16.mxu0 0
  %3454 = vmatpush1.bf16.msra.mxu0 0
  %3455 = vmatprep.subr.bf16.mxu0 0
  %3456 = vmatpush1.bf16.msra.mxu0 0
  %3457 = vmatprep.subr.bf16.mxu0 0
  %3458 = vmatpush1.bf16.msra.mxu0 0
  %3459 = vmatprep.subr.bf16.mxu0 0
  %3460 = vmatpush1.bf16.msra.mxu0 0
  %3461 = vmatprep.subr.bf16.mxu0 0
  %3462 = vmatpush1.bf16.msra.mxu0 0
  %3463 = vmatprep.mubr.bf16.mxu0 0
  %3464 = vmatmul.mubr.bf16.gmra.mrb[0].mxu0 %v3420
  %v3465 = vpop.f32.mrb[0].mxu0
  %v3466 = vadd.f32 0.0, %v3465
  %v3467 = vpop.f32.mrb[0].mxu0
  %v3468 = vpop.f32.mrb[0].mxu0
  %v3469 = vadd.f32 0.0, %v3468
  %v3470 = vpop.f32.mrb[0].mxu0
  %3471 = vmatprep.mubr.bf16.mxu0 0
  %3472 = vmatmul.mubr.bf16.gmra.mrb[0].mxu0 %v3423
  %v3473 = vpop.f32.mrb[0].mxu0
  %v3474 = vadd.f32 0.0, %v3473
  %v3475 = vpop.f32.mrb[0].mxu0
  %v3476 = vpop.f32.mrb[0].mxu0
  %v3477 = vadd.f32 0.0, %v3476
  %v3478 = vpop.f32.mrb[0].mxu0
  %3479 = vmatprep.mubr.bf16.mxu0 0
  %3480 = vmatmul.mubr.bf16.gmra.mrb[0].mxu0 %v3426
  %v3481 = vpop.f32.mrb[0].mxu0
  %v3482 = vadd.f32 0.0, %v3481
  %v3483 = vpop.f32.mrb[0].mxu0
  %v3484 = vpop.f32.mrb[0].mxu0
  %v3485 = vadd.f32 0.0, %v3484
  %v3486 = vpop.f32.mrb[0].mxu0
  %3487 = vmatprep.mubr.bf16.mxu0 0
  %3488 = vmatmul.mubr.bf16.gmra.mrb[0].mxu0 %v3429
  %v3489 = vpop.f32.mrb[0].mxu0
  %v3490 = vadd.f32 0.0, %v3489
  %v3491 = vpop.f32.mrb[0].mxu0
  %v3492 = vpop.f32.mrb[0].mxu0
  %v3493 = vadd.f32 0.0, %v3492
  %v3494 = vpop.f32.mrb[0].mxu0
  %3495 = vdwg.mxu0
  %v3496 = vmax.f32 %v3466, 0.0
  %v3497 = vmax.f32 %v3469, 0.0
  %v3498 = vmax.f32 %v3474, 0.0
  %v3499 = vmax.f32 %v3477, 0.0
  %v3500 = vmax.f32 %v3482, 0.0
  %v3501 = vmax.f32 %v3485, 0.0
  %v3502 = vmax.f32 %v3490, 0.0
  %v3503 = vmax.f32 %v3493, 0.0
  %s3504 = scalar_lea.vmem %s6, 96
  %v3505 = vld [vmem:[%s3504] sm:$0xff]
  %v3506 = vld [vmem:[%s3504 + $0x8] sm:$0xf]
  %v3507 = vld [vmem:[%s3504 + $0xc] sm:$0xff]
  %v3508 = vld [vmem:[%s3504 + $0x14] sm:$0xf]
  %v3509 = vld [vmem:[%s3504 + $0x18] sm:$0xff]
  %v3510 = vld [vmem:[%s3504 + $0x20] sm:$0xf]
  %v3511 = vld [vmem:[%s3504 + $0x24] sm:$0xff]
  %v3512 = vld [vmem:[%s3504 + $0x2c] sm:$0xf]
  %s3513 = scalar_lea.vmem %s7, 64
  %v3514 = vld [vmem:[%s3513] sm:$0xff]
  %v3515 = vld [vmem:[%s3513 + $0x8] sm:$0xff]
  %v3516 = vld [vmem:[%s3513 + $0x10] sm:$0xff]
  %v3517 = vld [vmem:[%s3513 + $0x18] sm:$0xff]
  %3526 = vrot.lane.b32.xlu0 %v3496, 127
  %v3527 = vpop.permute.xlu0 %3526
  %3528 = vrot.lane.b32.xlu0 %v3497, 127
  %v3529 = vpop.permute.xlu0 %3528
  %3530 = vrot.lane.b32.xlu0 %v3498, 127
  %v3531 = vpop.permute.xlu0 %3530
  %3532 = vrot.lane.b32.xlu0 %v3499, 127
  %v3533 = vpop.permute.xlu0 %3532
  %3534 = vrot.lane.b32.xlu0 %v3500, 127
  %v3535 = vpop.permute.xlu0 %3534
  %3536 = vrot.lane.b32.xlu0 %v3501, 127
  %v3537 = vpop.permute.xlu0 %3536
  %3538 = vrot.lane.b32.xlu0 %v3502, 127
  %v3539 = vpop.permute.xlu0 %3538
  %3540 = vrot.lane.b32.xlu0 %v3503, 127
  %v3541 = vpop.permute.xlu0 %3540
  %3550 = vrot.lane.b32.xlu0 %v3496, 126
  %v3551 = vpop.permute.xlu0 %3550
  %3552 = vrot.lane.b32.xlu0 %v3497, 126
  %v3553 = vpop.permute.xlu0 %3552
  %3554 = vrot.lane.b32.xlu0 %v3498, 126
  %v3555 = vpop.permute.xlu0 %3554
  %3556 = vrot.lane.b32.xlu0 %v3499, 126
  %v3557 = vpop.permute.xlu0 %3556
  %3558 = vrot.lane.b32.xlu0 %v3500, 126
  %v3559 = vpop.permute.xlu0 %3558
  %3560 = vrot.lane.b32.xlu0 %v3501, 126
  %v3561 = vpop.permute.xlu0 %3560
  %3562 = vrot.lane.b32.xlu0 %v3502, 126
  %v3563 = vpop.permute.xlu0 %3562
  %3564 = vrot.lane.b32.xlu0 %v3503, 126
  %v3565 = vpop.permute.xlu0 %3564
  %3574 = vrot.lane.b32.xlu0 %v3496, 125
  %v3575 = vpop.permute.xlu0 %3574
  %3576 = vrot.lane.b32.xlu0 %v3497, 125
  %v3577 = vpop.permute.xlu0 %3576
  %3578 = vrot.lane.b32.xlu0 %v3498, 125
  %v3579 = vpop.permute.xlu0 %3578
  %3580 = vrot.lane.b32.xlu0 %v3499, 125
  %v3581 = vpop.permute.xlu0 %3580
  %3582 = vrot.lane.b32.xlu0 %v3500, 125
  %v3583 = vpop.permute.xlu0 %3582
  %3584 = vrot.lane.b32.xlu0 %v3501, 125
  %v3585 = vpop.permute.xlu0 %3584
  %3586 = vrot.lane.b32.xlu0 %v3502, 125
  %v3587 = vpop.permute.xlu0 %3586
  %3588 = vrot.lane.b32.xlu0 %v3503, 125
  %v3589 = vpop.permute.xlu0 %3588
  %3598 = vrot.lane.b32.xlu0 %v3496, 124
  %v3599 = vpop.permute.xlu0 %3598
  %3600 = vrot.lane.b32.xlu0 %v3497, 124
  %v3601 = vpop.permute.xlu0 %3600
  %3602 = vrot.lane.b32.xlu0 %v3498, 124
  %v3603 = vpop.permute.xlu0 %3602
  %3604 = vrot.lane.b32.xlu0 %v3499, 124
  %v3605 = vpop.permute.xlu0 %3604
  %3606 = vrot.lane.b32.xlu0 %v3500, 124
  %v3607 = vpop.permute.xlu0 %3606
  %3608 = vrot.lane.b32.xlu0 %v3501, 124
  %v3609 = vpop.permute.xlu0 %3608
  %3610 = vrot.lane.b32.xlu0 %v3502, 124
  %v3611 = vpop.permute.xlu0 %3610
  %3612 = vrot.lane.b32.xlu0 %v3503, 124
  %v3613 = vpop.permute.xlu0 %3612
  %v3622 = vpack.c.bf16 %v3497, %v3496
  %v3623 = vpack.c.bf16 %v3499, %v3498
  %v3624 = vpack.c.bf16 %v3501, %v3500
  %v3625 = vpack.c.bf16 %v3503, %v3502
  %v3626 = vpack.c.bf16 %v3529, %v3527
  %v3627 = vpack.c.bf16 %v3533, %v3531
  %v3628 = vpack.c.bf16 %v3537, %v3535
  %v3629 = vpack.c.bf16 %v3541, %v3539
  %v3630 = vpack.c.bf16 %v3553, %v3551
  %v3631 = vpack.c.bf16 %v3557, %v3555
  %v3632 = vpack.c.bf16 %v3561, %v3559
  %v3633 = vpack.c.bf16 %v3565, %v3563
  %v3634 = vpack.c.bf16 %v3577, %v3575
  %v3635 = vpack.c.bf16 %v3581, %v3579
  %v3636 = vpack.c.bf16 %v3585, %v3583
  %v3637 = vpack.c.bf16 %v3589, %v3587
  %v3638 = vpack.c.bf16 %v3601, %v3599
  %v3639 = vpack.c.bf16 %v3605, %v3603
  %v3640 = vpack.c.bf16 %v3609, %v3607
  %v3641 = vpack.c.bf16 %v3613, %v3611
  %3643 = vset.pattern.permute.xlu0 0
  %3644 = vperm.xlu0 %3643, %v3514
  %v3645 = vpop.permute.xlu0 %3644
  %3648 = vset.pattern.permute.xlu0 0
  %3649 = vperm.xlu0 %3648, %v3515
  %v3650 = vpop.permute.xlu0 %3649
  %3653 = vset.pattern.permute.xlu0 0
  %3654 = vperm.xlu0 %3653, %v3516
  %v3655 = vpop.permute.xlu0 %3654
  %3658 = vset.pattern.permute.xlu0 0
  %3659 = vperm.xlu0 %3658, %v3517
  %v3660 = vpop.permute.xlu0 %3659
  %v3670 = vunpack.c.l.b16 %v3505
  %v3671 = vunpack.c.h.b16 %v3505
  %v3672 = vunpack.c.l.b16 %v3506
  %v3673 = vunpack.c.l.b16 %v3507
  %v3674 = vunpack.c.h.b16 %v3507
  %v3675 = vunpack.c.l.b16 %v3508
  %v3676 = vunpack.c.l.b16 %v3509
  %v3677 = vunpack.c.h.b16 %v3509
  %v3678 = vunpack.c.l.b16 %v3510
  %v3679 = vunpack.c.l.b16 %v3511
  %v3680 = vunpack.c.h.b16 %v3511
  %v3681 = vunpack.c.l.b16 %v3512
  %v3682 = vpack.c.b16 %v3673, %v3670
  %v3683 = vpack.c.b16 %v3674, %v3671
  %v3684 = vpack.c.b16 %v3675, %v3672
  %v3685 = vpack.c.b16 %v3679, %v3676
  %v3686 = vpack.c.b16 %v3680, %v3677
  %v3687 = vpack.c.b16 %v3681, %v3678
  %v3693 = vsel %vm684, %v3684, 0
  %v3696 = vsel %vm684, %v3687, 0
  %3698 = vmatprep.subr.bf16.mxu0 0
  %3699 = vmatpush1.bf16.msra.mxu0 %v3622
  %3700 = vmatprep.subr.bf16.mxu0 0
  %3701 = vmatpush1.bf16.msra.mxu0 %v3623
  %3702 = vmatprep.subr.bf16.mxu0 0
  %3703 = vmatpush1.bf16.msra.mxu0 %v3624
  %3704 = vmatprep.subr.bf16.mxu0 0
  %3705 = vmatpush1.bf16.msra.mxu0 %v3625
  %3706 = vmatprep.subr.bf16.mxu0 0
  %3707 = vmatpush1.bf16.msra.mxu0 %v3626
  %3708 = vmatprep.subr.bf16.mxu0 0
  %3709 = vmatpush1.bf16.msra.mxu0 %v3627
  %3710 = vmatprep.subr.bf16.mxu0 0
  %3711 = vmatpush1.bf16.msra.mxu0 %v3628
  %3712 = vmatprep.subr.bf16.mxu0 0
  %3713 = vmatpush1.bf16.msra.mxu0 %v3629
  %3714 = vmatprep.subr.bf16.mxu0 0
  %3715 = vmatpush1.bf16.msra.mxu0 %v3630
  %3716 = vmatprep.subr.bf16.mxu0 0
  %3717 = vmatpush1.bf16.msra.mxu0 %v3631
  %3718 = vmatprep.subr.bf16.mxu0 0
  %3719 = vmatpush1.bf16.msra.mxu0 %v3632
  %3720 = vmatprep.subr.bf16.mxu0 0
  %3721 = vmatpush1.bf16.msra.mxu0 %v3633
  %3722 = vmatprep.subr.bf16.mxu0 0
  %3723 = vmatpush1.bf16.msra.mxu0 %v3634
  %3724 = vmatprep.subr.bf16.mxu0 0
  %3725 = vmatpush1.bf16.msra.mxu0 %v3635
  %3726 = vmatprep.subr.bf16.mxu0 0
  %3727 = vmatpush1.bf16.msra.mxu0 %v3636
  %3728 = vmatprep.subr.bf16.mxu0 0
  %3729 = vmatpush1.bf16.msra.mxu0 %v3637
  %3730 = vmatprep.mubr.bf16.mxu0 %v3683
  %3731 = vmatmul.mubr.bf16.gmra.mrb[0].mxu0 %v3682
  %v3732 = vpop.f32.mrb[0].mxu0
  %v3733 = vadd.f32 %v3645, %v3732
  %v3734 = vpop.f32.mrb[0].mxu0
  %v3735 = vpop.f32.mrb[0].mxu0
  %v3736 = vadd.f32 %v3650, %v3735
  %v3737 = vpop.f32.mrb[0].mxu0
  %3738 = vmatprep.mubr.bf16.mxu0 %v3686
  %3739 = vmatmul.mubr.bf16.gmra.mrb[0].mxu0 %v3685
  %v3740 = vpop.f32.mrb[0].mxu0
  %v3741 = vadd.f32 %v3655, %v3740
  %v3742 = vpop.f32.mrb[0].mxu0
  %v3743 = vpop.f32.mrb[0].mxu0
  %v3744 = vadd.f32 %v3660, %v3743
  %v3745 = vpop.f32.mrb[0].mxu0
  %3746 = vdwg.mxu0
  %3747 = vmatprep.subr.bf16.mxu0 0
  %3748 = vmatpush1.bf16.msra.mxu0 %v3638
  %3749 = vmatprep.subr.bf16.mxu0 0
  %3750 = vmatpush1.bf16.msra.mxu0 %v3639
  %3751 = vmatprep.subr.bf16.mxu0 0
  %3752 = vmatpush1.bf16.msra.mxu0 %v3640
  %3753 = vmatprep.subr.bf16.mxu0 0
  %3754 = vmatpush1.bf16.msra.mxu0 %v3641
  %3755 = vmatprep.subr.bf16.mxu0 0
  %3756 = vmatpush1.bf16.msra.mxu0 0
  %3757 = vmatprep.subr.bf16.mxu0 0
  %3758 = vmatpush1.bf16.msra.mxu0 0
  %3759 = vmatprep.subr.bf16.mxu0 0
  %3760 = vmatpush1.bf16.msra.mxu0 0
  %3761 = vmatprep.subr.bf16.mxu0 0
  %3762 = vmatpush1.bf16.msra.mxu0 0
  %3763 = vmatprep.subr.bf16.mxu0 0
  %3764 = vmatpush1.bf16.msra.mxu0 0
  %3765 = vmatprep.subr.bf16.mxu0 0
  %3766 = vmatpush1.bf16.msra.mxu0 0
  %3767 = vmatprep.subr.bf16.mxu0 0
  %3768 = vmatpush1.bf16.msra.mxu0 0
  %3769 = vmatprep.subr.bf16.mxu0 0
  %3770 = vmatpush1.bf16.msra.mxu0 0
  %3771 = vmatprep.subr.bf16.mxu0 0
  %3772 = vmatpush1.bf16.msra.mxu0 0
  %3773 = vmatprep.subr.bf16.mxu0 0
  %3774 = vmatpush1.bf16.msra.mxu0 0
  %3775 = vmatprep.subr.bf16.mxu0 0
  %3776 = vmatpush1.bf16.msra.mxu0 0
  %3777 = vmatprep.subr.bf16.mxu0 0
  %3778 = vmatpush1.bf16.msra.mxu0 0
  %3779 = vmatprep.mubr.bf16.mxu0 0
  %3780 = vmatmul.mubr.bf16.gmra.mrb[0].mxu0 %v3693
  %v3781 = vpop.f32.mrb[0].mxu0
  %v3782 = vadd.f32 %v3733, %v3781
  %v3783 = vpop.f32.mrb[0].mxu0
  %v3784 = vpop.f32.mrb[0].mxu0
  %v3785 = vadd.f32 %v3736, %v3784
  %v3786 = vpop.f32.mrb[0].mxu0
  %3787 = vmatprep.mubr.bf16.mxu0 0
  %3788 = vmatmul.mubr.bf16.gmra.mrb[0].mxu0 %v3696
  %v3789 = vpop.f32.mrb[0].mxu0
  %v3790 = vadd.f32 %v3741, %v3789
  %v3791 = vpop.f32.mrb[0].mxu0
  %v3792 = vpop.f32.mrb[0].mxu0
  %v3793 = vadd.f32 %v3744, %v3792
  %v3794 = vpop.f32.mrb[0].mxu0
  %3795 = vdwg.mxu0
  %3800 = vrot.lane.b32.xlu0 %v3782, 127
  %v3801 = vpop.permute.xlu0 %3800
  %3802 = vrot.lane.b32.xlu0 %v3785, 127
  %v3803 = vpop.permute.xlu0 %3802
  %3804 = vrot.lane.b32.xlu0 %v3790, 127
  %v3805 = vpop.permute.xlu0 %3804
  %3806 = vrot.lane.b32.xlu0 %v3793, 127
  %v3807 = vpop.permute.xlu0 %3806
  %v3812 = vmax.f32 %v3782, %v3801
  %v3813 = vmax.f32 %v3785, %v3803
  %v3814 = vmax.f32 %v3790, %v3805
  %v3815 = vmax.f32 %v3793, %v3807
  %v3816 = vpack.c.bf16 %v3813, %v3812
  %v3817 = vpack.c.bf16 %v3815, %v3814
  %v3819 = vsel %vm832, %v3816, 0
  %v3822 = vsel %vm832, %v3817, 0
  %3824 = vmatprep.subr.bf16.mxu0 0
  %3825 = vmatpush1.bf16.msra.mxu0 %v825
  %3826 = vmatprep.subr.bf16.mxu0 0
  %3827 = vmatpush1.bf16.msra.mxu0 %v826
  %3828 = vmatprep.subr.bf16.mxu0 0
  %3829 = vmatpush1.bf16.msra.mxu0 %v827
  %3830 = vmatprep.subr.bf16.mxu0 0
  %3831 = vmatpush1.bf16.msra.mxu0 %v840
  %3832 = vmatprep.subr.bf16.mxu0 0
  %3833 = vmatpush1.bf16.msra.mxu0 0
  %3834 = vmatprep.subr.bf16.mxu0 0
  %3835 = vmatpush1.bf16.msra.mxu0 0
  %3836 = vmatprep.subr.bf16.mxu0 0
  %3837 = vmatpush1.bf16.msra.mxu0 0
  %3838 = vmatprep.subr.bf16.mxu0 0
  %3839 = vmatpush1.bf16.msra.mxu0 0
  %3840 = vmatprep.subr.bf16.mxu0 0
  %3841 = vmatpush1.bf16.msra.mxu0 0
  %3842 = vmatprep.subr.bf16.mxu0 0
  %3843 = vmatpush1.bf16.msra.mxu0 0
  %3844 = vmatprep.subr.bf16.mxu0 0
  %3845 = vmatpush1.bf16.msra.mxu0 0
  %3846 = vmatprep.subr.bf16.mxu0 0
  %3847 = vmatpush1.bf16.msra.mxu0 0
  %3848 = vmatprep.subr.bf16.mxu0 0
  %3849 = vmatpush1.bf16.msra.mxu0 0
  %3850 = vmatprep.subr.bf16.mxu0 0
  %3851 = vmatpush1.bf16.msra.mxu0 0
  %3852 = vmatprep.subr.bf16.mxu0 0
  %3853 = vmatpush1.bf16.msra.mxu0 0
  %3854 = vmatprep.subr.bf16.mxu0 0
  %3855 = vmatpush1.bf16.msra.mxu0 0
  %3856 = vmatprep.mubr.bf16.mxu0 0
  %3857 = vmatmul.mubr.bf16.gmra.mrb[0].mxu0 %v3819
  %v3858 = vpop.f32.mrb[0].mxu0
  %v3859 = vadd.f32 0.0, %v3858
  %v3860 = vpop.f32.mrb[0].mxu0
  %v3861 = vpop.f32.mrb[0].mxu0
  %v3862 = vadd.f32 0.0, %v3861
  %v3863 = vpop.f32.mrb[0].mxu0
  %3864 = vmatprep.mubr.bf16.mxu0 0
  %3865 = vmatmul.mubr.bf16.gmra.mrb[0].mxu0 %v3822
  %v3866 = vpop.f32.mrb[0].mxu0
  %v3867 = vadd.f32 0.0, %v3866
  %v3868 = vpop.f32.mrb[0].mxu0
  %v3869 = vpop.f32.mrb[0].mxu0
  %v3870 = vadd.f32 0.0, %v3869
  %v3871 = vpop.f32.mrb[0].mxu0
  %3872 = vdwg.mxu0
  %v3873 = vmax.f32 %v3859, 0.0
  %v3874 = vmax.f32 %v3862, 0.0
  %v3875 = vmax.f32 %v3867, 0.0
  %v3876 = vmax.f32 %v3870, 0.0
  %s3877 = scalar_lea.vmem %s8, 64
  %v3878 = vld [vmem:[%s3877] sm:$0xff]
  %v3879 = vld [vmem:[%s3877 + $0x8] sm:$0xff]
  %v3880 = vld [vmem:[%s3877 + $0x10] sm:$0xff]
  %v3881 = vld [vmem:[%s3877 + $0x18] sm:$0xff]
  %s3882 = scalar_lea.vmem %s9, 64
  %v3883 = vld [vmem:[%s3882] sm:$0xff]
  %v3884 = vld [vmem:[%s3882 + $0x8] sm:$0xff]
  %v3885 = vld [vmem:[%s3882 + $0x10] sm:$0xff]
  %v3886 = vld [vmem:[%s3882 + $0x18] sm:$0xff]
  %3891 = vrot.lane.b32.xlu0 %v3873, 127
  %v3892 = vpop.permute.xlu0 %3891
  %3893 = vrot.lane.b32.xlu0 %v3874, 127
  %v3894 = vpop.permute.xlu0 %3893
  %3895 = vrot.lane.b32.xlu0 %v3875, 127
  %v3896 = vpop.permute.xlu0 %3895
  %3897 = vrot.lane.b32.xlu0 %v3876, 127
  %v3898 = vpop.permute.xlu0 %3897
  %3903 = vrot.lane.b32.xlu0 %v3873, 126
  %v3904 = vpop.permute.xlu0 %3903
  %3905 = vrot.lane.b32.xlu0 %v3874, 126
  %v3906 = vpop.permute.xlu0 %3905
  %3907 = vrot.lane.b32.xlu0 %v3875, 126
  %v3908 = vpop.permute.xlu0 %3907
  %3909 = vrot.lane.b32.xlu0 %v3876, 126
  %v3910 = vpop.permute.xlu0 %3909
  %3915 = vrot.lane.b32.xlu0 %v3873, 125
  %v3916 = vpop.permute.xlu0 %3915
  %3917 = vrot.lane.b32.xlu0 %v3874, 125
  %v3918 = vpop.permute.xlu0 %3917
  %3919 = vrot.lane.b32.xlu0 %v3875, 125
  %v3920 = vpop.permute.xlu0 %3919
  %3921 = vrot.lane.b32.xlu0 %v3876, 125
  %v3922 = vpop.permute.xlu0 %3921
  %3927 = vrot.lane.b32.xlu0 %v3873, 124
  %v3928 = vpop.permute.xlu0 %3927
  %3929 = vrot.lane.b32.xlu0 %v3874, 124
  %v3930 = vpop.permute.xlu0 %3929
  %3931 = vrot.lane.b32.xlu0 %v3875, 124
  %v3932 = vpop.permute.xlu0 %3931
  %3933 = vrot.lane.b32.xlu0 %v3876, 124
  %v3934 = vpop.permute.xlu0 %3933
  %v3939 = vpack.c.bf16 %v3874, %v3873
  %v3940 = vpack.c.bf16 %v3876, %v3875
  %v3941 = vpack.c.bf16 %v3894, %v3892
  %v3942 = vpack.c.bf16 %v3898, %v3896
  %v3943 = vpack.c.bf16 %v3906, %v3904
  %v3944 = vpack.c.bf16 %v3910, %v3908
  %v3945 = vpack.c.bf16 %v3918, %v3916
  %v3946 = vpack.c.bf16 %v3922, %v3920
  %v3947 = vpack.c.bf16 %v3930, %v3928
  %v3948 = vpack.c.bf16 %v3934, %v3932
  %3950 = vset.pattern.permute.xlu0 0
  %3951 = vperm.xlu0 %3950, %v3883
  %v3952 = vpop.permute.xlu0 %3951
  %3955 = vset.pattern.permute.xlu0 0
  %3956 = vperm.xlu0 %3955, %v3884
  %v3957 = vpop.permute.xlu0 %3956
  %3960 = vset.pattern.permute.xlu0 0
  %3961 = vperm.xlu0 %3960, %v3885
  %v3962 = vpop.permute.xlu0 %3961
  %3965 = vset.pattern.permute.xlu0 0
  %3966 = vperm.xlu0 %3965, %v3886
  %v3967 = vpop.permute.xlu0 %3966
  %v3973 = vunpack.c.l.b16 %v3878
  %v3974 = vunpack.c.h.b16 %v3878
  %v3975 = vunpack.c.l.b16 %v3879
  %v3976 = vunpack.c.h.b16 %v3879
  %v3977 = vunpack.c.l.b16 %v3880
  %v3978 = vunpack.c.h.b16 %v3880
  %v3979 = vunpack.c.l.b16 %v3881
  %v3980 = vunpack.c.h.b16 %v3881
  %v3981 = vpack.c.b16 %v3975, %v3973
  %v3982 = vpack.c.b16 %v3976, %v3974
  %v3983 = vpack.c.b16 %v3979, %v3977
  %v3984 = vpack.c.b16 %v3980, %v3978
  %v3988 = vsel %vm1003, %v3982, 0
  %v3991 = vsel %vm1003, %v3984, 0
  %3993 = vmatprep.subr.bf16.mxu0 0
  %3994 = vmatpush1.bf16.msra.mxu0 %v3939
  %3995 = vmatprep.subr.bf16.mxu0 0
  %3996 = vmatpush1.bf16.msra.mxu0 %v3940
  %3997 = vmatprep.subr.bf16.mxu0 0
  %3998 = vmatpush1.bf16.msra.mxu0 %v3941
  %3999 = vmatprep.subr.bf16.mxu0 0
  %4000 = vmatpush1.bf16.msra.mxu0 %v3942
  %4001 = vmatprep.subr.bf16.mxu0 0
  %4002 = vmatpush1.bf16.msra.mxu0 %v3943
  %4003 = vmatprep.subr.bf16.mxu0 0
  %4004 = vmatpush1.bf16.msra.mxu0 %v3944
  %4005 = vmatprep.subr.bf16.mxu0 0
  %4006 = vmatpush1.bf16.msra.mxu0 %v3945
  %4007 = vmatprep.subr.bf16.mxu0 0
  %4008 = vmatpush1.bf16.msra.mxu0 %v3946
  %4009 = vmatprep.subr.bf16.mxu0 0
  %4010 = vmatpush1.bf16.msra.mxu0 %v3947
  %4011 = vmatprep.subr.bf16.mxu0 0
  %4012 = vmatpush1.bf16.msra.mxu0 %v3948
  %4013 = vmatprep.subr.bf16.mxu0 0
  %4014 = vmatpush1.bf16.msra.mxu0 0
  %4015 = vmatprep.subr.bf16.mxu0 0
  %4016 = vmatpush1.bf16.msra.mxu0 0
  %4017 = vmatprep.subr.bf16.mxu0 0
  %4018 = vmatpush1.bf16.msra.mxu0 0
  %4019 = vmatprep.subr.bf16.mxu0 0
  %4020 = vmatpush1.bf16.msra.mxu0 0
  %4021 = vmatprep.subr.bf16.mxu0 0
  %4022 = vmatpush1.bf16.msra.mxu0 0
  %4023 = vmatprep.subr.bf16.mxu0 0
  %4024 = vmatpush1.bf16.msra.mxu0 0
  %4025 = vmatprep.mubr.bf16.mxu0 %v3988
  %4026 = vmatmul.mubr.bf16.gmra.mrb[0].mxu0 %v3981
  %v4027 = vpop.f32.mrb[0].mxu0
  %v4028 = vadd.f32 %v3952, %v4027
  %v4029 = vpop.f32.mrb[0].mxu0
  %v4030 = vpop.f32.mrb[0].mxu0
  %v4031 = vadd.f32 %v3957, %v4030
  %v4032 = vpop.f32.mrb[0].mxu0
  %4033 = vmatprep.mubr.bf16.mxu0 %v3991
  %4034 = vmatmul.mubr.bf16.gmra.mrb[0].mxu0 %v3983
  %v4035 = vpop.f32.mrb[0].mxu0
  %v4036 = vadd.f32 %v3962, %v4035
  %v4037 = vpop.f32.mrb[0].mxu0
  %v4038 = vpop.f32.mrb[0].mxu0
  %v4039 = vadd.f32 %v3967, %v4038
  %v4040 = vpop.f32.mrb[0].mxu0
  %4041 = vdwg.mxu0
  %4046 = vrot.lane.b32.xlu0 %v4028, 127
  %v4047 = vpop.permute.xlu0 %4046
  %4048 = vrot.lane.b32.xlu0 %v4031, 127
  %v4049 = vpop.permute.xlu0 %4048
  %4050 = vrot.lane.b32.xlu0 %v4036, 127
  %v4051 = vpop.permute.xlu0 %4050
  %4052 = vrot.lane.b32.xlu0 %v4039, 127
  %v4053 = vpop.permute.xlu0 %4052
  %v4058 = vmax.f32 %v4028, %v4047
  %v4059 = vmax.f32 %v4031, %v4049
  %v4060 = vmax.f32 %v4036, %v4051
  %v4061 = vmax.f32 %v4039, %v4053
  %v4062 = vpack.c.bf16 %v4059, %v4058
  %v4063 = vpack.c.bf16 %v4061, %v4060
  %v4065 = vsel %vm1090, %v4062, 0
  %v4068 = vsel %vm1090, %v4063, 0
  %4070 = vmatprep.subr.bf16.mxu0 0
  %4071 = vmatpush1.bf16.msra.mxu0 %v1087
  %4072 = vmatprep.subr.bf16.mxu0 0
  %4073 = vmatpush1.bf16.msra.mxu0 %v1098
  %4074 = vmatprep.subr.bf16.mxu0 0
  %4075 = vmatpush1.bf16.msra.mxu0 0
  %4076 = vmatprep.subr.bf16.mxu0 0
  %4077 = vmatpush1.bf16.msra.mxu0 0
  %4078 = vmatprep.subr.bf16.mxu0 0
  %4079 = vmatpush1.bf16.msra.mxu0 0
  %4080 = vmatprep.subr.bf16.mxu0 0
  %4081 = vmatpush1.bf16.msra.mxu0 0
  %4082 = vmatprep.subr.bf16.mxu0 0
  %4083 = vmatpush1.bf16.msra.mxu0 0
  %4084 = vmatprep.subr.bf16.mxu0 0
  %4085 = vmatpush1.bf16.msra.mxu0 0
  %4086 = vmatprep.subr.bf16.mxu0 0
  %4087 = vmatpush1.bf16.msra.mxu0 0
  %4088 = vmatprep.subr.bf16.mxu0 0
  %4089 = vmatpush1.bf16.msra.mxu0 0
  %4090 = vmatprep.subr.bf16.mxu0 0
  %4091 = vmatpush1.bf16.msra.mxu0 0
  %4092 = vmatprep.subr.bf16.mxu0 0
  %4093 = vmatpush1.bf16.msra.mxu0 0
  %4094 = vmatprep.subr.bf16.mxu0 0
  %4095 = vmatpush1.bf16.msra.mxu0 0
  %4096 = vmatprep.subr.bf16.mxu0 0
  %4097 = vmatpush1.bf16.msra.mxu0 0
  %4098 = vmatprep.subr.bf16.mxu0 0
  %4099 = vmatpush1.bf16.msra.mxu0 0
  %4100 = vmatprep.subr.bf16.mxu0 0
  %4101 = vmatpush1.bf16.msra.mxu0 0
  %4102 = vmatprep.mubr.bf16.mxu0 0
  %4103 = vmatmul.mubr.bf16.gmra.mrb[0].mxu0 %v4065
  %v4104 = vpop.f32.mrb[0].mxu0
  %v4105 = vadd.f32 0.0, %v4104
  %v4106 = vpop.f32.mrb[0].mxu0
  %v4107 = vpop.f32.mrb[0].mxu0
  %v4108 = vadd.f32 0.0, %v4107
  %v4109 = vpop.f32.mrb[0].mxu0
  %4110 = vmatprep.mubr.bf16.mxu0 0
  %4111 = vmatmul.mubr.bf16.gmra.mrb[0].mxu0 %v4068
  %v4112 = vpop.f32.mrb[0].mxu0
  %v4113 = vadd.f32 0.0, %v4112
  %v4114 = vpop.f32.mrb[0].mxu0
  %v4115 = vpop.f32.mrb[0].mxu0
  %v4116 = vadd.f32 0.0, %v4115
  %v4117 = vpop.f32.mrb[0].mxu0
  %4118 = vdwg.mxu0
  %v4119 = vmax.f32 %v4105, 0.0
  %v4120 = vmax.f32 %v4108, 0.0
  %v4121 = vmax.f32 %v4113, 0.0
  %v4122 = vmax.f32 %v4116, 0.0
  %4123 = vxpose.xlu0.b32.start [1/16] %v4119, 128
  %4124 = vxpose.xlu0.b32.cont [2/16] %v4120, 128
  %4125 = vxpose.xlu0.b32.cont [3/16] %v4121, 128
  %4126 = vxpose.xlu0.b32.cont [4/16] %v4122, 128
  %4127 = vxpose.xlu0.b32.cont [5/16] 0.0, 128
  %4128 = vxpose.xlu0.b32.cont [6/16] 0.0, 128
  %4129 = vxpose.xlu0.b32.cont [7/16] 0.0, 128
  %4130 = vxpose.xlu0.b32.cont [8/16] 0.0, 128
  %4131 = vxpose.xlu0.b32.cont [9/16] 0.0, 128
  %4132 = vxpose.xlu0.b32.cont [10/16] 0.0, 128
  %4133 = vxpose.xlu0.b32.cont [11/16] 0.0, 128
  %4134 = vxpose.xlu0.b32.cont [12/16] 0.0, 128
  %4135 = vxpose.xlu0.b32.cont [13/16] 0.0, 128
  %4136 = vxpose.xlu0.b32.cont [14/16] 0.0, 128
  %4137 = vxpose.xlu0.b32.cont [15/16] 0.0, 128
  %4138 = vxpose.xlu0.b32.end [16/16] 0.0, 128
  %v4139 = vpop.trf.xlu0
  %v4140 = vpop.trf.xlu0
  %v4141 = vpop.trf.xlu0
  %v4142 = vpop.trf.xlu0
  %v4143 = vpop.trf.xlu0
  %v4144 = vpop.trf.xlu0
  %v4145 = vpop.trf.xlu0
  %v4146 = vpop.trf.xlu0
  %v4147 = vpop.trf.xlu0
  %v4148 = vpop.trf.xlu0
  %v4149 = vpop.trf.xlu0
  %v4150 = vpop.trf.xlu0
  %v4151 = vpop.trf.xlu0
  %v4152 = vpop.trf.xlu0
  %v4153 = vpop.trf.xlu0
  %v4154 = vpop.trf.xlu0
  %s4155 = scalar_lea.vmem %s10, 128
  %v4156 = vld [vmem:[%s4155] sm:$0xf]
  %v4157 = vld [vmem:[%s4155 + $0x4] sm:$0xf]
  %v4158 = vld [vmem:[%s4155 + $0x8] sm:$0xf]
  %v4159 = vld [vmem:[%s4155 + $0xc] sm:$0xf]
  %v4160 = vld [vmem:[%s4155 + $0x10] sm:$0xf]
  %v4161 = vld [vmem:[%s4155 + $0x14] sm:$0xf]
  %v4162 = vld [vmem:[%s4155 + $0x18] sm:$0xf]
  %v4163 = vld [vmem:[%s4155 + $0x1c] sm:$0xf]
  %v4164 = vld [vmem:[%s4155 + $0x20] sm:$0xf]
  %v4165 = vld [vmem:[%s4155 + $0x24] sm:$0xf]
  %v4166 = vld [vmem:[%s4155 + $0x28] sm:$0xf]
  %v4167 = vld [vmem:[%s4155 + $0x2c] sm:$0xf]
  %v4168 = vld [vmem:[%s4155 + $0x30] sm:$0xf]
  %v4169 = vld [vmem:[%s4155 + $0x34] sm:$0xf]
  %v4170 = vld [vmem:[%s4155 + $0x38] sm:$0xf]
  %v4171 = vld [vmem:[%s4155 + $0x3c] sm:$0xf]
  %v4173 = vrot.slane %v4139, 3
  %v4175 = vsel %vm418, %v4139, %v4173
  %v4176 = vpack.c.bf16 %v4175, %v4175
  %v4177 = vrot.slane %v4139, 1
  %v4179 = vrot.slane %v4139, 4
  %v4181 = vsel %vm418, %v4177, %v4179
  %v4182 = vpack.c.bf16 %v4181, %v4181
  %v4187 = vunpack.c.l.b16 %v4160
  %v4188 = vunpack.c.l.b16 %v4161
  %v4189 = vunpack.c.l.b16 %v4162
  %v4190 = vunpack.c.l.b16 %v4163
  %v4191 = vpack.c.b16 %v4188, %v4187
  %v4192 = vpack.c.b16 %v4190, %v4189
  %v4196 = vsel %vm1003, %v4182, 0
  %4198 = vmatprep.subr.bf16.mxu0 0
  %4199 = vmatpush1.bf16.msra.mxu0 %v4191
  %4200 = vmatprep.subr.bf16.mxu0 0
  %4201 = vmatpush1.bf16.msra.mxu0 %v4192
  %4202 = vmatprep.subr.bf16.mxu0 0
  %4203 = vmatpush1.bf16.msra.mxu0 0
  %4204 = vmatprep.subr.bf16.mxu0 0
  %4205 = vmatpush1.bf16.msra.mxu0 0
  %4206 = vmatprep.subr.bf16.mxu0 0
  %4207 = vmatpush1.bf16.msra.mxu0 0
  %4208 = vmatprep.subr.bf16.mxu0 0
  %4209 = vmatpush1.bf16.msra.mxu0 0
  %4210 = vmatprep.subr.bf16.mxu0 0
  %4211 = vmatpush1.bf16.msra.mxu0 0
  %4212 = vmatprep.subr.bf16.mxu0 0
  %4213 = vmatpush1.bf16.msra.mxu0 0
  %4214 = vmatprep.subr.bf16.mxu0 0
  %4215 = vmatpush1.bf16.msra.mxu0 0
  %4216 = vmatprep.subr.bf16.mxu0 0
  %4217 = vmatpush1.bf16.msra.mxu0 0
  %4218 = vmatprep.subr.bf16.mxu0 0
  %4219 = vmatpush1.bf16.msra.mxu0 0
  %4220 = vmatprep.subr.bf16.mxu0 0
  %4221 = vmatpush1.bf16.msra.mxu0 0
  %4222 = vmatprep.subr.bf16.mxu0 0
  %4223 = vmatpush1.bf16.msra.mxu0 0
  %4224 = vmatprep.subr.bf16.mxu0 0
  %4225 = vmatpush1.bf16.msra.mxu0 0
  %4226 = vmatprep.subr.bf16.mxu0 0
  %4227 = vmatpush1.bf16.msra.mxu0 0
  %4228 = vmatprep.subr.bf16.mxu0 0
  %4229 = vmatpush1.bf16.msra.mxu0 0
  %4230 = vmatprep.mubr.bf16.mxu0 0
  %4231 = vmatmul.mubr.bf16.gmra.mrb[0].mxu0 %v4196
  %v4232 = vpop.f32.mrb[0].mxu0
  %v4233 = vadd.f32 0.0, %v4232
  %v4234 = vpop.f32.mrb[0].mxu0
  %v4235 = vpop.f32.mrb[0].mxu0
  %v4236 = vpop.f32.mrb[0].mxu0
  %4237 = vdwg.mxu0
  %v4242 = vunpack.c.l.b16 %v4156
  %v4243 = vunpack.c.l.b16 %v4157
  %v4244 = vunpack.c.l.b16 %v4158
  %v4245 = vunpack.c.l.b16 %v4159
  %v4246 = vpack.c.b16 %v4243, %v4242
  %v4247 = vpack.c.b16 %v4245, %v4244
  %v4251 = vsel %vm1003, %v4176, 0
  %4253 = vmatprep.subr.bf16.mxu0 0
  %4254 = vmatpush1.bf16.msra.mxu0 %v4246
  %4255 = vmatprep.subr.bf16.mxu0 0
  %4256 = vmatpush1.bf16.msra.mxu0 %v4247
  %4257 = vmatprep.subr.bf16.mxu0 0
  %4258 = vmatpush1.bf16.msra.mxu0 0
  %4259 = vmatprep.subr.bf16.mxu0 0
  %4260 = vmatpush1.bf16.msra.mxu0 0
  %4261 = vmatprep.subr.bf16.mxu0 0
  %4262 = vmatpush1.bf16.msra.mxu0 0
  %4263 = vmatprep.subr.bf16.mxu0 0
  %4264 = vmatpush1.bf16.msra.mxu0 0
  %4265 = vmatprep.subr.bf16.mxu0 0
  %4266 = vmatpush1.bf16.msra.mxu0 0
  %4267 = vmatprep.subr.bf16.mxu0 0
  %4268 = vmatpush1.bf16.msra.mxu0 0
  %4269 = vmatprep.subr.bf16.mxu0 0
  %4270 = vmatpush1.bf16.msra.mxu0 0
  %4271 = vmatprep.subr.bf16.mxu0 0
  %4272 = vmatpush1.bf16.msra.mxu0 0
  %4273 = vmatprep.subr.bf16.mxu0 0
  %4274 = vmatpush1.bf16.msra.mxu0 0
  %4275 = vmatprep.subr.bf16.mxu0 0
  %4276 = vmatpush1.bf16.msra.mxu0 0
  %4277 = vmatprep.subr.bf16.mxu0 0
  %4278 = vmatpush1.bf16.msra.mxu0 0
  %4279 = vmatprep.subr.bf16.mxu0 0
  %4280 = vmatpush1.bf16.msra.mxu0 0
  %4281 = vmatprep.subr.bf16.mxu0 0
  %4282 = vmatpush1.bf16.msra.mxu0 0
  %4283 = vmatprep.subr.bf16.mxu0 0
  %4284 = vmatpush1.bf16.msra.mxu0 0
  %4285 = vmatprep.mubr.bf16.mxu0 0
  %4286 = vmatmul.mubr.bf16.gmra.mrb[0].mxu0 %v4251
  %v4287 = vpop.f32.mrb[0].mxu0
  %v4288 = vadd.f32 %v4233, %v4287
  %v4289 = vpop.f32.mrb[0].mxu0
  %v4290 = vpop.f32.mrb[0].mxu0
  %v4291 = vpop.f32.mrb[0].mxu0
  %4292 = vdwg.mxu0
  %v4293 = vrot.slane %v4139, 2
  %v4295 = vrot.slane %v4139, 5
  %v4297 = vsel %vm418, %v4293, %v4295
  %v4298 = vpack.c.bf16 %v4297, %v4297
  %v4303 = vunpack.c.l.b16 %v4164
  %v4304 = vunpack.c.l.b16 %v4165
  %v4305 = vunpack.c.l.b16 %v4166
  %v4306 = vunpack.c.l.b16 %v4167
  %v4307 = vpack.c.b16 %v4304, %v4303
  %v4308 = vpack.c.b16 %v4306, %v4305
  %v4312 = vsel %vm1003, %v4298, 0
  %4314 = vmatprep.subr.bf16.mxu0 0
  %4315 = vmatpush1.bf16.msra.mxu0 %v4307
  %4316 = vmatprep.subr.bf16.mxu0 0
  %4317 = vmatpush1.bf16.msra.mxu0 %v4308
  %4318 = vmatprep.subr.bf16.mxu0 0
  %4319 = vmatpush1.bf16.msra.mxu0 0
  %4320 = vmatprep.subr.bf16.mxu0 0
  %4321 = vmatpush1.bf16.msra.mxu0 0
  %4322 = vmatprep.subr.bf16.mxu0 0
  %4323 = vmatpush1.bf16.msra.mxu0 0
  %4324 = vmatprep.subr.bf16.mxu0 0
  %4325 = vmatpush1.bf16.msra.mxu0 0
  %4326 = vmatprep.subr.bf16.mxu0 0
  %4327 = vmatpush1.bf16.msra.mxu0 0
  %4328 = vmatprep.subr.bf16.mxu0 0
  %4329 = vmatpush1.bf16.msra.mxu0 0
  %4330 = vmatprep.subr.bf16.mxu0 0
  %4331 = vmatpush1.bf16.msra.mxu0 0
  %4332 = vmatprep.subr.bf16.mxu0 0
  %4333 = vmatpush1.bf16.msra.mxu0 0
  %4334 = vmatprep.subr.bf16.mxu0 0
  %4335 = vmatpush1.bf16.msra.mxu0 0
  %4336 = vmatprep.subr.bf16.mxu0 0
  %4337 = vmatpush1.bf16.msra.mxu0 0
  %4338 = vmatprep.subr.bf16.mxu0 0
  %4339 = vmatpush1.bf16.msra.mxu0 0
  %4340 = vmatprep.subr.bf16.mxu0 0
  %4341 = vmatpush1.bf16.msra.mxu0 0
  %4342 = vmatprep.subr.bf16.mxu0 0
  %4343 = vmatpush1.bf16.msra.mxu0 0
  %4344 = vmatprep.subr.bf16.mxu0 0
  %4345 = vmatpush1.bf16.msra.mxu0 0
  %4346 = vmatprep.mubr.bf16.mxu0 0
  %4347 = vmatmul.mubr.bf16.gmra.mrb[0].mxu0 %v4312
  %v4348 = vpop.f32.mrb[0].mxu0
  %v4349 = vadd.f32 0.0, %v4348
  %v4350 = vpop.f32.mrb[0].mxu0
  %v4351 = vpop.f32.mrb[0].mxu0
  %v4352 = vpop.f32.mrb[0].mxu0
  %4353 = vdwg.mxu0
  %v4354 = vadd.f32 %v4288, %v4349
  %v4355 = vrot.slane %v4139, 6
  %v4357 = vsel %vm418, %v4173, %v4355
  %v4358 = vpack.c.bf16 %v4357, %v4357
  %v4363 = vunpack.c.l.b16 %v4168
  %v4364 = vunpack.c.l.b16 %v4169
  %v4365 = vunpack.c.l.b16 %v4170
  %v4366 = vunpack.c.l.b16 %v4171
  %v4367 = vpack.c.b16 %v4364, %v4363
  %v4368 = vpack.c.b16 %v4366, %v4365
  %v4372 = vsel %vm1003, %v4358, 0
  %4374 = vmatprep.subr.bf16.mxu0 0
  %4375 = vmatpush1.bf16.msra.mxu0 %v4367
  %4376 = vmatprep.subr.bf16.mxu0 0
  %4377 = vmatpush1.bf16.msra.mxu0 %v4368
  %4378 = vmatprep.subr.bf16.mxu0 0
  %4379 = vmatpush1.bf16.msra.mxu0 0
  %4380 = vmatprep.subr.bf16.mxu0 0
  %4381 = vmatpush1.bf16.msra.mxu0 0
  %4382 = vmatprep.subr.bf16.mxu0 0
  %4383 = vmatpush1.bf16.msra.mxu0 0
  %4384 = vmatprep.subr.bf16.mxu0 0
  %4385 = vmatpush1.bf16.msra.mxu0 0
  %4386 = vmatprep.subr.bf16.mxu0 0
  %4387 = vmatpush1.bf16.msra.mxu0 0
  %4388 = vmatprep.subr.bf16.mxu0 0
  %4389 = vmatpush1.bf16.msra.mxu0 0
  %4390 = vmatprep.subr.bf16.mxu0 0
  %4391 = vmatpush1.bf16.msra.mxu0 0
  %4392 = vmatprep.subr.bf16.mxu0 0
  %4393 = vmatpush1.bf16.msra.mxu0 0
  %4394 = vmatprep.subr.bf16.mxu0 0
  %4395 = vmatpush1.bf16.msra.mxu0 0
  %4396 = vmatprep.subr.bf16.mxu0 0
  %4397 = vmatpush1.bf16.msra.mxu0 0
  %4398 = vmatprep.subr.bf16.mxu0 0
  %4399 = vmatpush1.bf16.msra.mxu0 0
  %4400 = vmatprep.subr.bf16.mxu0 0
  %4401 = vmatpush1.bf16.msra.mxu0 0
  %4402 = vmatprep.subr.bf16.mxu0 0
  %4403 = vmatpush1.bf16.msra.mxu0 0
  %4404 = vmatprep.subr.bf16.mxu0 0
  %4405 = vmatpush1.bf16.msra.mxu0 0
  %4406 = vmatprep.mubr.bf16.mxu0 0
  %4407 = vmatmul.mubr.bf16.gmra.mrb[0].mxu0 %v4372
  %v4408 = vpop.f32.mrb[0].mxu0
  %v4409 = vadd.f32 0.0, %v4408
  %v4410 = vpop.f32.mrb[0].mxu0
  %v4411 = vpop.f32.mrb[0].mxu0
  %v4412 = vpop.f32.mrb[0].mxu0
  %4413 = vdwg.mxu0
  %v4414 = vadd.f32 %v4354, %v4409
  %s4415 = scalar_lea.vmem %s11, 2
  %v4416 = vld [vmem:[%s4415] sm:$0x1]
  %v4418 = vlaneseq
  %v4419 = vshrl.u32 %v4418, 7
  %v4420 = vsub.s32 0, %v4419
  %v4421 = vrot.slane %v4416, %v4420
  %v4423 = vadd.f32 %v4414, %v4421
  %v4424 = vmax.f32 %v4423, 0.0
  %v4425 = vpack.c.bf16 %v4424, %v4424
  %s4426 = scalar_lea.vmem %s12, 128
  %v4427 = vld [vmem:[%s4426] sm:$0xf]
  %v4428 = vld [vmem:[%s4426 + $0x4] sm:$0xf]
  %v4429 = vld [vmem:[%s4426 + $0x8] sm:$0xf]
  %v4430 = vld [vmem:[%s4426 + $0xc] sm:$0xf]
  %v4431 = vld [vmem:[%s4426 + $0x10] sm:$0xf]
  %v4432 = vld [vmem:[%s4426 + $0x14] sm:$0xf]
  %v4433 = vld [vmem:[%s4426 + $0x18] sm:$0xf]
  %v4434 = vld [vmem:[%s4426 + $0x1c] sm:$0xf]
  %v4435 = vld [vmem:[%s4426 + $0x20] sm:$0xf]
  %v4436 = vld [vmem:[%s4426 + $0x24] sm:$0xf]
  %v4437 = vld [vmem:[%s4426 + $0x28] sm:$0xf]
  %v4438 = vld [vmem:[%s4426 + $0x2c] sm:$0xf]
  %v4439 = vld [vmem:[%s4426 + $0x30] sm:$0xf]
  %v4440 = vld [vmem:[%s4426 + $0x34] sm:$0xf]
  %v4441 = vld [vmem:[%s4426 + $0x38] sm:$0xf]
  %v4442 = vld [vmem:[%s4426 + $0x3c] sm:$0xf]
  %s4443 = scalar_lea.vmem %s13, 2
  %v4444 = vld [vmem:[%s4443] sm:$0x1]
  %v4446 = vlaneseq
  %v4447 = vshrl.u32 %v4446, 7
  %v4448 = vsub.s32 0, %v4447
  %v4449 = vrot.slane %v4444, %v4448
  %v4467 = vunpack.c.l.b16 %v4427
  %v4468 = vunpack.c.l.b16 %v4428
  %v4469 = vunpack.c.l.b16 %v4429
  %v4470 = vunpack.c.l.b16 %v4430
  %v4471 = vunpack.c.l.b16 %v4431
  %v4472 = vunpack.c.l.b16 %v4432
  %v4473 = vunpack.c.l.b16 %v4433
  %v4474 = vunpack.c.l.b16 %v4434
  %v4475 = vunpack.c.l.b16 %v4435
  %v4476 = vunpack.c.l.b16 %v4436
  %v4477 = vunpack.c.l.b16 %v4437
  %v4478 = vunpack.c.l.b16 %v4438
  %v4479 = vunpack.c.l.b16 %v4439
  %v4480 = vunpack.c.l.b16 %v4440
  %v4481 = vunpack.c.l.b16 %v4441
  %v4482 = vunpack.c.l.b16 %v4442
  %v4483 = vpack.c.b16 %v4468, %v4467
  %v4484 = vpack.c.b16 %v4470, %v4469
  %v4485 = vpack.c.b16 %v4472, %v4471
  %v4486 = vpack.c.b16 %v4474, %v4473
  %v4487 = vpack.c.b16 %v4476, %v4475
  %v4488 = vpack.c.b16 %v4478, %v4477
  %v4489 = vpack.c.b16 %v4480, %v4479
  %v4490 = vpack.c.b16 %v4482, %v4481
  %4499 = vmatprep.subr.bf16.mxu0 0
  %4500 = vmatpush1.bf16.msra.mxu0 %v4483
  %4501 = vmatprep.subr.bf16.mxu0 0
  %4502 = vmatpush1.bf16.msra.mxu0 %v4484
  %4503 = vmatprep.subr.bf16.mxu0 0
  %4504 = vmatpush1.bf16.msra.mxu0 %v4485
  %4505 = vmatprep.subr.bf16.mxu0 0
  %4506 = vmatpush1.bf16.msra.mxu0 %v4486
  %4507 = vmatprep.subr.bf16.mxu0 0
  %4508 = vmatpush1.bf16.msra.mxu0 %v4487
  %4509 = vmatprep.subr.bf16.mxu0 0
  %4510 = vmatpush1.bf16.msra.mxu0 %v4488
  %4511 = vmatprep.subr.bf16.mxu0 0
  %4512 = vmatpush1.bf16.msra.mxu0 %v4489
  %4513 = vmatprep.subr.bf16.mxu0 0
  %4514 = vmatpush1.bf16.msra.mxu0 %v4490
  %4515 = vmatprep.subr.bf16.mxu0 0
  %4516 = vmatpush1.bf16.msra.mxu0 0
  %4517 = vmatprep.subr.bf16.mxu0 0
  %4518 = vmatpush1.bf16.msra.mxu0 0
  %4519 = vmatprep.subr.bf16.mxu0 0
  %4520 = vmatpush1.bf16.msra.mxu0 0
  %4521 = vmatprep.subr.bf16.mxu0 0
  %4522 = vmatpush1.bf16.msra.mxu0 0
  %4523 = vmatprep.subr.bf16.mxu0 0
  %4524 = vmatpush1.bf16.msra.mxu0 0
  %4525 = vmatprep.subr.bf16.mxu0 0
  %4526 = vmatpush1.bf16.msra.mxu0 0
  %4527 = vmatprep.subr.bf16.mxu0 0
  %4528 = vmatpush1.bf16.msra.mxu0 0
  %4529 = vmatprep.subr.bf16.mxu0 0
  %4530 = vmatpush1.bf16.msra.mxu0 0
  %4531 = vmatprep.mubr.bf16.mxu0 0
  %4532 = vmatmul.mubr.bf16.gmra.mrb[0].mxu0 %v4425
  %v4533 = vpop.f32.mrb[0].mxu0
  %v4534 = vadd.f32 %v4449, %v4533
  %v4535 = vpop.f32.mrb[0].mxu0
  %v4536 = vpop.f32.mrb[0].mxu0
  %v4537 = vpop.f32.mrb[0].mxu0
  %4538 = vdwg.mxu0
  %v4539 = vpack.c.bf16 %v4534, %v4534
  %s4540 = scalar_lea.vmem %s14, 128
  %v4541 = vld [vmem:[%s4540] sm:$0xf]
  %v4542 = vld [vmem:[%s4540 + $0x4] sm:$0xf]
  %v4543 = vld [vmem:[%s4540 + $0x8] sm:$0xf]
  %v4544 = vld [vmem:[%s4540 + $0xc] sm:$0xf]
  %v4545 = vld [vmem:[%s4540 + $0x10] sm:$0xf]
  %v4546 = vld [vmem:[%s4540 + $0x14] sm:$0xf]
  %v4547 = vld [vmem:[%s4540 + $0x18] sm:$0xf]
  %v4548 = vld [vmem:[%s4540 + $0x1c] sm:$0xf]
  %v4549 = vld [vmem:[%s4540 + $0x20] sm:$0xf]
  %v4550 = vld [vmem:[%s4540 + $0x24] sm:$0xf]
  %v4551 = vld [vmem:[%s4540 + $0x28] sm:$0xf]
  %v4552 = vld [vmem:[%s4540 + $0x2c] sm:$0xf]
  %v4553 = vld [vmem:[%s4540 + $0x30] sm:$0xf]
  %v4554 = vld [vmem:[%s4540 + $0x34] sm:$0xf]
  %v4555 = vld [vmem:[%s4540 + $0x38] sm:$0xf]
  %v4556 = vld [vmem:[%s4540 + $0x3c] sm:$0xf]
  %s4557 = scalar_lea.vmem %s15, 2
  %v4558 = vld [vmem:[%s4557] sm:$0x1]
  %v4560 = vlaneseq
  %v4561 = vshrl.u32 %v4560, 7
  %v4562 = vsub.s32 0, %v4561
  %v4563 = vrot.slane %v4558, %v4562
  %v4581 = vunpack.c.l.b16 %v4541
  %v4582 = vunpack.c.l.b16 %v4542
  %v4583 = vunpack.c.l.b16 %v4543
  %v4584 = vunpack.c.l.b16 %v4544
  %v4585 = vunpack.c.l.b16 %v4545
  %v4586 = vunpack.c.l.b16 %v4546
  %v4587 = vunpack.c.l.b16 %v4547
  %v4588 = vunpack.c.l.b16 %v4548
  %v4589 = vunpack.c.l.b16 %v4549
  %v4590 = vunpack.c.l.b16 %v4550
  %v4591 = vunpack.c.l.b16 %v4551
  %v4592 = vunpack.c.l.b16 %v4552
  %v4593 = vunpack.c.l.b16 %v4553
  %v4594 = vunpack.c.l.b16 %v4554
  %v4595 = vunpack.c.l.b16 %v4555
  %v4596 = vunpack.c.l.b16 %v4556
  %v4597 = vpack.c.b16 %v4582, %v4581
  %v4598 = vpack.c.b16 %v4584, %v4583
  %v4599 = vpack.c.b16 %v4586, %v4585
  %v4600 = vpack.c.b16 %v4588, %v4587
  %v4601 = vpack.c.b16 %v4590, %v4589
  %v4602 = vpack.c.b16 %v4592, %v4591
  %v4603 = vpack.c.b16 %v4594, %v4593
  %v4604 = vpack.c.b16 %v4596, %v4595
  %4613 = vmatprep.subr.bf16.mxu0 0
  %4614 = vmatpush1.bf16.msra.mxu0 %v4597
  %4615 = vmatprep.subr.bf16.mxu0 0
  %4616 = vmatpush1.bf16.msra.mxu0 %v4598
  %4617 = vmatprep.subr.bf16.mxu0 0
  %4618 = vmatpush1.bf16.msra.mxu0 %v4599
  %4619 = vmatprep.subr.bf16.mxu0 0
  %4620 = vmatpush1.bf16.msra.mxu0 %v4600
  %4621 = vmatprep.subr.bf16.mxu0 0
  %4622 = vmatpush1.bf16.msra.mxu0 %v4601
  %4623 = vmatprep.subr.bf16.mxu0 0
  %4624 = vmatpush1.bf16.msra.mxu0 %v4602
  %4625 = vmatprep.subr.bf16.mxu0 0
  %4626 = vmatpush1.bf16.msra.mxu0 %v4603
  %4627 = vmatprep.subr.bf16.mxu0 0
  %4628 = vmatpush1.bf16.msra.mxu0 %v4604
  %4629 = vmatprep.subr.bf16.mxu0 0
  %4630 = vmatpush1.bf16.msra.mxu0 0
  %4631 = vmatprep.subr.bf16.mxu0 0
  %4632 = vmatpush1.bf16.msra.mxu0 0
  %4633 = vmatprep.subr.bf16.mxu0 0
  %4634 = vmatpush1.bf16.msra.mxu0 0
  %4635 = vmatprep.subr.bf16.mxu0 0
  %4636 = vmatpush1.bf16.msra.mxu0 0
  %4637 = vmatprep.subr.bf16.mxu0 0
  %4638 = vmatpush1.bf16.msra.mxu0 0
  %4639 = vmatprep.subr.bf16.mxu0 0
  %4640 = vmatpush1.bf16.msra.mxu0 0
  %4641 = vmatprep.subr.bf16.mxu0 0
  %4642 = vmatpush1.bf16.msra.mxu0 0
  %4643 = vmatprep.subr.bf16.mxu0 0
  %4644 = vmatpush1.bf16.msra.mxu0 0
  %4645 = vmatprep.mubr.bf16.mxu0 0
  %4646 = vmatmul.mubr.bf16.gmra.mrb[0].mxu0 %v4539
  %v4647 = vpop.f32.mrb[0].mxu0
  %v4648 = vadd.f32 %v4563, %v4647
  %v4649 = vpop.f32.mrb[0].mxu0
  %v4650 = vpop.f32.mrb[0].mxu0
  %v4651 = vpop.f32.mrb[0].mxu0
  %4652 = vdwg.mxu0
  %v4653 = vadd.f32 %v4648, %v4424
  %v4654 = vld [vmem:[%s1] sm:$0xff]
  %v4655 = vld [vmem:[%s1 + $0x8] sm:$0xff]
  %v4656 = vld [vmem:[%s1 + $0x10] sm:$0xff]
  %v4657 = vld [vmem:[%s1 + $0x18] sm:$0xff]
  %v4658 = vld [vmem:[%s1 + $0x20] sm:$0xff]
  %v4659 = vld [vmem:[%s1 + $0x28] sm:$0xff]
  %v4660 = vld [vmem:[%s1 + $0x30] sm:$0xff]
  %v4661 = vld [vmem:[%s1 + $0x38] sm:$0xff]
  %v4662 = vld [vmem:[%s1 + $0x40] sm:$0xff]
  %v4663 = vld [vmem:[%s1 + $0x48] sm:$0xff]
  %v4664 = vld [vmem:[%s1 + $0x50] sm:$0xff]
  %v4665 = vld [vmem:[%s1 + $0x58] sm:$0xff]
  %v4666 = vld [vmem:[%s1 + $0x60] sm:$0xff]
  %v4667 = vld [vmem:[%s1 + $0x68] sm:$0xff]
  %v4668 = vld [vmem:[%s1 + $0x70] sm:$0xff]
  %v4669 = vld [vmem:[%s4] sm:$0xf]
  %v4670 = vld [vmem:[%s4 + $0x4] sm:$0xf]
  %v4671 = vld [vmem:[%s4 + $0x8] sm:$0xf]
  %v4672 = vld [vmem:[%s4 + $0xc] sm:$0xf]
  %v4673 = vld [vmem:[%s4 + $0x10] sm:$0xf]
  %v4674 = vld [vmem:[%s4 + $0x14] sm:$0xf]
  %v4675 = vld [vmem:[%s4 + $0x18] sm:$0xf]
  %v4676 = vld [vmem:[%s4 + $0x1c] sm:$0xf]
  %v4677 = vpack.c.bf16 %v4655, %v4654
  %v4678 = vpack.c.bf16 %v4657, %v4656
  %v4679 = vpack.c.bf16 %v4659, %v4658
  %v4680 = vpack.c.bf16 %v4661, %v4660
  %v4681 = vpack.c.bf16 %v4663, %v4662
  %v4682 = vpack.c.bf16 %v4665, %v4664
  %v4683 = vpack.c.bf16 %v4667, %v4666
  %v4684 = vpack.c.bf16 %v4668, %v4668
  %s4685 = scalar_lea.vmem %s4, 32
  %v4686 = vld [vmem:[%s4685] sm:$0xf]
  %v4687 = vld [vmem:[%s4685 + $0x4] sm:$0xf]
  %v4688 = vld [vmem:[%s4685 + $0x8] sm:$0xf]
  %v4689 = vld [vmem:[%s4685 + $0xc] sm:$0xf]
  %v4690 = vld [vmem:[%s4685 + $0x10] sm:$0xf]
  %v4691 = vld [vmem:[%s4685 + $0x14] sm:$0xf]
  %v4692 = vld [vmem:[%s4685 + $0x18] sm:$0xf]
  %v4693 = vld [vmem:[%s4685 + $0x1c] sm:$0xf]
  %v4702 = vunpack.c.l.b16 %v4686
  %v4703 = vunpack.c.l.b16 %v4687
  %v4704 = vunpack.c.l.b16 %v4688
  %v4705 = vunpack.c.l.b16 %v4689
  %v4706 = vunpack.c.l.b16 %v4690
  %v4707 = vunpack.c.l.b16 %v4691
  %v4708 = vunpack.c.l.b16 %v4692
  %v4709 = vunpack.c.l.b16 %v4693
  %v4710 = vpack.c.b16 %v4703, %v4702
  %v4711 = vpack.c.b16 %v4705, %v4704
  %v4712 = vpack.c.b16 %v4707, %v4706
  %v4713 = vpack.c.b16 %v4709, %v4708
  %4722 = vrot.lane.b32.xlu0 %v4677, 127
  %v4723 = vpop.permute.xlu0 %4722
  %4724 = vrot.lane.b32.xlu0 %v4678, 127
  %v4725 = vpop.permute.xlu0 %4724
  %4726 = vrot.lane.b32.xlu0 %v4679, 127
  %v4727 = vpop.permute.xlu0 %4726
  %4728 = vrot.lane.b32.xlu0 %v4680, 127
  %v4729 = vpop.permute.xlu0 %4728
  %4730 = vrot.lane.b32.xlu0 %v4681, 127
  %v4731 = vpop.permute.xlu0 %4730
  %4732 = vrot.lane.b32.xlu0 %v4682, 127
  %v4733 = vpop.permute.xlu0 %4732
  %4734 = vrot.lane.b32.xlu0 %v4683, 127
  %v4735 = vpop.permute.xlu0 %4734
  %4736 = vrot.lane.b32.xlu0 %v4684, 127
  %v4737 = vpop.permute.xlu0 %4736
  %v4746 = vsel %vm234, %v4710, 0
  %v4749 = vsel %vm234, %v4711, 0
  %v4752 = vsel %vm234, %v4712, 0
  %v4755 = vsel %vm234, %v4713, 0
  %v4758 = vsel %vm247, %v4737, 0
  %4760 = vmatprep.subr.bf16.mxu0 0
  %4761 = vmatpush1.bf16.msra.mxu0 %v4723
  %4762 = vmatprep.subr.bf16.mxu0 0
  %4763 = vmatpush1.bf16.msra.mxu0 %v4725
  %4764 = vmatprep.subr.bf16.mxu0 0
  %4765 = vmatpush1.bf16.msra.mxu0 %v4727
  %4766 = vmatprep.subr.bf16.mxu0 0
  %4767 = vmatpush1.bf16.msra.mxu0 %v4729
  %4768 = vmatprep.subr.bf16.mxu0 0
  %4769 = vmatpush1.bf16.msra.mxu0 %v4731
  %4770 = vmatprep.subr.bf16.mxu0 0
  %4771 = vmatpush1.bf16.msra.mxu0 %v4733
  %4772 = vmatprep.subr.bf16.mxu0 0
  %4773 = vmatpush1.bf16.msra.mxu0 %v4735
  %4774 = vmatprep.subr.bf16.mxu0 0
  %4775 = vmatpush1.bf16.msra.mxu0 %v4758
  %4776 = vmatprep.subr.bf16.mxu0 0
  %4777 = vmatpush1.bf16.msra.mxu0 0
  %4778 = vmatprep.subr.bf16.mxu0 0
  %4779 = vmatpush1.bf16.msra.mxu0 0
  %4780 = vmatprep.subr.bf16.mxu0 0
  %4781 = vmatpush1.bf16.msra.mxu0 0
  %4782 = vmatprep.subr.bf16.mxu0 0
  %4783 = vmatpush1.bf16.msra.mxu0 0
  %4784 = vmatprep.subr.bf16.mxu0 0
  %4785 = vmatpush1.bf16.msra.mxu0 0
  %4786 = vmatprep.subr.bf16.mxu0 0
  %4787 = vmatpush1.bf16.msra.mxu0 0
  %4788 = vmatprep.subr.bf16.mxu0 0
  %4789 = vmatpush1.bf16.msra.mxu0 0
  %4790 = vmatprep.subr.bf16.mxu0 0
  %4791 = vmatpush1.bf16.msra.mxu0 0
  %4792 = vmatprep.mubr.bf16.mxu0 0
  %4793 = vmatmul.mubr.bf16.gmra.mrb[0].mxu0 %v4746
  %v4794 = vpop.f32.mrb[0].mxu0
  %v4795 = vadd.f32 0.0, %v4794
  %v4796 = vpop.f32.mrb[0].mxu0
  %v4797 = vpop.f32.mrb[0].mxu0
  %v4798 = vadd.f32 0.0, %v4797
  %v4799 = vpop.f32.mrb[0].mxu0
  %4800 = vmatprep.mubr.bf16.mxu0 0
  %4801 = vmatmul.mubr.bf16.gmra.mrb[0].mxu0 %v4749
  %v4802 = vpop.f32.mrb[0].mxu0
  %v4803 = vadd.f32 0.0, %v4802
  %v4804 = vpop.f32.mrb[0].mxu0
  %v4805 = vpop.f32.mrb[0].mxu0
  %v4806 = vadd.f32 0.0, %v4805
  %v4807 = vpop.f32.mrb[0].mxu0
  %4808 = vmatprep.mubr.bf16.mxu0 0
  %4809 = vmatmul.mubr.bf16.gmra.mrb[0].mxu0 %v4752
  %v4810 = vpop.f32.mrb[0].mxu0
  %v4811 = vadd.f32 0.0, %v4810
  %v4812 = vpop.f32.mrb[0].mxu0
  %v4813 = vpop.f32.mrb[0].mxu0
  %v4814 = vadd.f32 0.0, %v4813
  %v4815 = vpop.f32.mrb[0].mxu0
  %4816 = vmatprep.mubr.bf16.mxu0 0
  %4817 = vmatmul.mubr.bf16.gmra.mrb[0].mxu0 %v4755
  %v4818 = vpop.f32.mrb[0].mxu0
  %v4819 = vadd.f32 0.0, %v4818
  %v4820 = vpop.f32.mrb[0].mxu0
  %v4821 = vpop.f32.mrb[0].mxu0
  %v4822 = vadd.f32 0.0, %v4821
  %v4823 = vpop.f32.mrb[0].mxu0
  %4824 = vdwg.mxu0
  %v4833 = vunpack.c.l.b16 %v4669
  %v4834 = vunpack.c.l.b16 %v4670
  %v4835 = vunpack.c.l.b16 %v4671
  %v4836 = vunpack.c.l.b16 %v4672
  %v4837 = vunpack.c.l.b16 %v4673
  %v4838 = vunpack.c.l.b16 %v4674
  %v4839 = vunpack.c.l.b16 %v4675
  %v4840 = vunpack.c.l.b16 %v4676
  %v4841 = vpack.c.b16 %v4834, %v4833
  %v4842 = vpack.c.b16 %v4836, %v4835
  %v4843 = vpack.c.b16 %v4838, %v4837
  %v4844 = vpack.c.b16 %v4840, %v4839
  %v4846 = vsel %vm234, %v4841, 0
  %v4849 = vsel %vm234, %v4842, 0
  %v4852 = vsel %vm234, %v4843, 0
  %v4855 = vsel %vm234, %v4844, 0
  %v4858 = vsel %vm247, %v4684, 0
  %4860 = vmatprep.subr.bf16.mxu0 0
  %4861 = vmatpush1.bf16.msra.mxu0 %v4677
  %4862 = vmatprep.subr.bf16.mxu0 0
  %4863 = vmatpush1.bf16.msra.mxu0 %v4678
  %4864 = vmatprep.subr.bf16.mxu0 0
  %4865 = vmatpush1.bf16.msra.mxu0 %v4679
  %4866 = vmatprep.subr.bf16.mxu0 0
  %4867 = vmatpush1.bf16.msra.mxu0 %v4680
  %4868 = vmatprep.subr.bf16.mxu0 0
  %4869 = vmatpush1.bf16.msra.mxu0 %v4681
  %4870 = vmatprep.subr.bf16.mxu0 0
  %4871 = vmatpush1.bf16.msra.mxu0 %v4682
  %4872 = vmatprep.subr.bf16.mxu0 0
  %4873 = vmatpush1.bf16.msra.mxu0 %v4683
  %4874 = vmatprep.subr.bf16.mxu0 0
  %4875 = vmatpush1.bf16.msra.mxu0 %v4858
  %4876 = vmatprep.subr.bf16.mxu0 0
  %4877 = vmatpush1.bf16.msra.mxu0 0
  %4878 = vmatprep.subr.bf16.mxu0 0
  %4879 = vmatpush1.bf16.msra.mxu0 0
  %4880 = vmatprep.subr.bf16.mxu0 0
  %4881 = vmatpush1.bf16.msra.mxu0 0
  %4882 = vmatprep.subr.bf16.mxu0 0
  %4883 = vmatpush1.bf16.msra.mxu0 0
  %4884 = vmatprep.subr.bf16.mxu0 0
  %4885 = vmatpush1.bf16.msra.mxu0 0
  %4886 = vmatprep.subr.bf16.mxu0 0
  %4887 = vmatpush1.bf16.msra.mxu0 0
  %4888 = vmatprep.subr.bf16.mxu0 0
  %4889 = vmatpush1.bf16.msra.mxu0 0
  %4890 = vmatprep.subr.bf16.mxu0 0
  %4891 = vmatpush1.bf16.msra.mxu0 0
  %4892 = vmatprep.mubr.bf16.mxu0 0
  %4893 = vmatmul.mubr.bf16.gmra.mrb[0].mxu0 %v4846
  %v4894 = vpop.f32.mrb[0].mxu0
  %v4895 = vadd.f32 %v4795, %v4894
  %v4896 = vpop.f32.mrb[0].mxu0
  %v4897 = vpop.f32.mrb[0].mxu0
  %v4898 = vadd.f32 %v4798, %v4897
  %v4899 = vpop.f32.mrb[0].mxu0
  %4900 = vmatprep.mubr.bf16.mxu0 0
  %4901 = vmatmul.mubr.bf16.gmra.mrb[0].mxu0 %v4849
  %v4902 = vpop.f32.mrb[0].mxu0
  %v4903 = vadd.f32 %v4803, %v4902
  %v4904 = vpop.f32.mrb[0].mxu0
  %v4905 = vpop.f32.mrb[0].mxu0
  %v4906 = vadd.f32 %v4806, %v4905
  %v4907 = vpop.f32.mrb[0].mxu0
  %4908 = vmatprep.mubr.bf16.mxu0 0
  %4909 = vmatmul.mubr.bf16.gmra.mrb[0].mxu0 %v4852
  %v4910 = vpop.f32.mrb[0].mxu0
  %v4911 = vadd.f32 %v4811, %v4910
  %v4912 = vpop.f32.mrb[0].mxu0
  %v4913 = vpop.f32.mrb[0].mxu0
  %v4914 = vadd.f32 %v4814, %v4913
  %v4915 = vpop.f32.mrb[0].mxu0
  %4916 = vmatprep.mubr.bf16.mxu0 0
  %4917 = vmatmul.mubr.bf16.gmra.mrb[0].mxu0 %v4855
  %v4918 = vpop.f32.mrb[0].mxu0
  %v4919 = vadd.f32 %v4819, %v4918
  %v4920 = vpop.f32.mrb[0].mxu0
  %v4921 = vpop.f32.mrb[0].mxu0
  %v4922 = vadd.f32 %v4822, %v4921
  %v4923 = vpop.f32.mrb[0].mxu0
  %4924 = vdwg.mxu0
  %s4925 = scalar_lea.vmem %s4, 64
  %v4926 = vld [vmem:[%s4925] sm:$0xf]
  %v4927 = vld [vmem:[%s4925 + $0x4] sm:$0xf]
  %v4928 = vld [vmem:[%s4925 + $0x8] sm:$0xf]
  %v4929 = vld [vmem:[%s4925 + $0xc] sm:$0xf]
  %v4930 = vld [vmem:[%s4925 + $0x10] sm:$0xf]
  %v4931 = vld [vmem:[%s4925 + $0x14] sm:$0xf]
  %v4932 = vld [vmem:[%s4925 + $0x18] sm:$0xf]
  %v4933 = vld [vmem:[%s4925 + $0x1c] sm:$0xf]
  %v4942 = vunpack.c.l.b16 %v4926
  %v4943 = vunpack.c.l.b16 %v4927
  %v4944 = vunpack.c.l.b16 %v4928
  %v4945 = vunpack.c.l.b16 %v4929
  %v4946 = vunpack.c.l.b16 %v4930
  %v4947 = vunpack.c.l.b16 %v4931
  %v4948 = vunpack.c.l.b16 %v4932
  %v4949 = vunpack.c.l.b16 %v4933
  %v4950 = vpack.c.b16 %v4943, %v4942
  %v4951 = vpack.c.b16 %v4945, %v4944
  %v4952 = vpack.c.b16 %v4947, %v4946
  %v4953 = vpack.c.b16 %v4949, %v4948
  %4954 = vrot.lane.b32.xlu0 %v4677, 126
  %v4955 = vpop.permute.xlu0 %4954
  %4956 = vrot.lane.b32.xlu0 %v4678, 126
  %v4957 = vpop.permute.xlu0 %4956
  %4958 = vrot.lane.b32.xlu0 %v4679, 126
  %v4959 = vpop.permute.xlu0 %4958
  %4960 = vrot.lane.b32.xlu0 %v4680, 126
  %v4961 = vpop.permute.xlu0 %4960
  %4962 = vrot.lane.b32.xlu0 %v4681, 126
  %v4963 = vpop.permute.xlu0 %4962
  %4964 = vrot.lane.b32.xlu0 %v4682, 126
  %v4965 = vpop.permute.xlu0 %4964
  %4966 = vrot.lane.b32.xlu0 %v4683, 126
  %v4967 = vpop.permute.xlu0 %4966
  %4968 = vrot.lane.b32.xlu0 %v4684, 126
  %v4969 = vpop.permute.xlu0 %4968
  %v4978 = vsel %vm234, %v4950, 0
  %v4981 = vsel %vm234, %v4951, 0
  %v4984 = vsel %vm234, %v4952, 0
  %v4987 = vsel %vm234, %v4953, 0
  %v4990 = vsel %vm247, %v4969, 0
  %4992 = vmatprep.subr.bf16.mxu0 0
  %4993 = vmatpush1.bf16.msra.mxu0 %v4955
  %4994 = vmatprep.subr.bf16.mxu0 0
  %4995 = vmatpush1.bf16.msra.mxu0 %v4957
  %4996 = vmatprep.subr.bf16.mxu0 0
  %4997 = vmatpush1.bf16.msra.mxu0 %v4959
  %4998 = vmatprep.subr.bf16.mxu0 0
  %4999 = vmatpush1.bf16.msra.mxu0 %v4961
  %5000 = vmatprep.subr.bf16.mxu0 0
  %5001 = vmatpush1.bf16.msra.mxu0 %v4963
  %5002 = vmatprep.subr.bf16.mxu0 0
  %5003 = vmatpush1.bf16.msra.mxu0 %v4965
  %5004 = vmatprep.subr.bf16.mxu0 0
  %5005 = vmatpush1.bf16.msra.mxu0 %v4967
  %5006 = vmatprep.subr.bf16.mxu0 0
  %5007 = vmatpush1.bf16.msra.mxu0 %v4990
  %5008 = vmatprep.subr.bf16.mxu0 0
  %5009 = vmatpush1.bf16.msra.mxu0 0
  %5010 = vmatprep.subr.bf16.mxu0 0
  %5011 = vmatpush1.bf16.msra.mxu0 0
  %5012 = vmatprep.subr.bf16.mxu0 0
  %5013 = vmatpush1.bf16.msra.mxu0 0
  %5014 = vmatprep.subr.bf16.mxu0 0
  %5015 = vmatpush1.bf16.msra.mxu0 0
  %5016 = vmatprep.subr.bf16.mxu0 0
  %5017 = vmatpush1.bf16.msra.mxu0 0
  %5018 = vmatprep.subr.bf16.mxu0 0
  %5019 = vmatpush1.bf16.msra.mxu0 0
  %5020 = vmatprep.subr.bf16.mxu0 0
  %5021 = vmatpush1.bf16.msra.mxu0 0
  %5022 = vmatprep.subr.bf16.mxu0 0
  %5023 = vmatpush1.bf16.msra.mxu0 0
  %5024 = vmatprep.mubr.bf16.mxu0 0
  %5025 = vmatmul.mubr.bf16.gmra.mrb[0].mxu0 %v4978
  %v5026 = vpop.f32.mrb[0].mxu0
  %v5027 = vadd.f32 0.0, %v5026
  %v5028 = vpop.f32.mrb[0].mxu0
  %v5029 = vpop.f32.mrb[0].mxu0
  %v5030 = vadd.f32 0.0, %v5029
  %v5031 = vpop.f32.mrb[0].mxu0
  %5032 = vmatprep.mubr.bf16.mxu0 0
  %5033 = vmatmul.mubr.bf16.gmra.mrb[0].mxu0 %v4981
  %v5034 = vpop.f32.mrb[0].mxu0
  %v5035 = vadd.f32 0.0, %v5034
  %v5036 = vpop.f32.mrb[0].mxu0
  %v5037 = vpop.f32.mrb[0].mxu0
  %v5038 = vadd.f32 0.0, %v5037
  %v5039 = vpop.f32.mrb[0].mxu0
  %5040 = vmatprep.mubr.bf16.mxu0 0
  %5041 = vmatmul.mubr.bf16.gmra.mrb[0].mxu0 %v4984
  %v5042 = vpop.f32.mrb[0].mxu0
  %v5043 = vadd.f32 0.0, %v5042
  %v5044 = vpop.f32.mrb[0].mxu0
  %v5045 = vpop.f32.mrb[0].mxu0
  %v5046 = vadd.f32 0.0, %v5045
  %v5047 = vpop.f32.mrb[0].mxu0
  %5048 = vmatprep.mubr.bf16.mxu0 0
  %5049 = vmatmul.mubr.bf16.gmra.mrb[0].mxu0 %v4987
  %v5050 = vpop.f32.mrb[0].mxu0
  %v5051 = vadd.f32 0.0, %v5050
  %v5052 = vpop.f32.mrb[0].mxu0
  %v5053 = vpop.f32.mrb[0].mxu0
  %v5054 = vadd.f32 0.0, %v5053
  %v5055 = vpop.f32.mrb[0].mxu0
  %5056 = vdwg.mxu0
  %v5057 = vadd.f32 %v4895, %v5027
  %v5058 = vadd.f32 %v4898, %v5030
  %v5059 = vadd.f32 %v4903, %v5035
  %v5060 = vadd.f32 %v4906, %v5038
  %v5061 = vadd.f32 %v4911, %v5043
  %v5062 = vadd.f32 %v4914, %v5046
  %v5063 = vadd.f32 %v4919, %v5051
  %v5064 = vadd.f32 %v4922, %v5054
  %s5065 = scalar_lea.vmem %s4, 96
  %v5066 = vld [vmem:[%s5065] sm:$0xf]
  %v5067 = vld [vmem:[%s5065 + $0x4] sm:$0xf]
  %v5068 = vld [vmem:[%s5065 + $0x8] sm:$0xf]
  %v5069 = vld [vmem:[%s5065 + $0xc] sm:$0xf]
  %v5070 = vld [vmem:[%s5065 + $0x10] sm:$0xf]
  %v5071 = vld [vmem:[%s5065 + $0x14] sm:$0xf]
  %v5072 = vld [vmem:[%s5065 + $0x18] sm:$0xf]
  %v5073 = vld [vmem:[%s5065 + $0x1c] sm:$0xf]
  %v5082 = vunpack.c.l.b16 %v5066
  %v5083 = vunpack.c.l.b16 %v5067
  %v5084 = vunpack.c.l.b16 %v5068
  %v5085 = vunpack.c.l.b16 %v5069
  %v5086 = vunpack.c.l.b16 %v5070
  %v5087 = vunpack.c.l.b16 %v5071
  %v5088 = vunpack.c.l.b16 %v5072
  %v5089 = vunpack.c.l.b16 %v5073
  %v5090 = vpack.c.b16 %v5083, %v5082
  %v5091 = vpack.c.b16 %v5085, %v5084
  %v5092 = vpack.c.b16 %v5087, %v5086
  %v5093 = vpack.c.b16 %v5089, %v5088
  %5094 = vrot.lane.b32.xlu0 %v4677, 125
  %v5095 = vpop.permute.xlu0 %5094
  %5096 = vrot.lane.b32.xlu0 %v4678, 125
  %v5097 = vpop.permute.xlu0 %5096
  %5098 = vrot.lane.b32.xlu0 %v4679, 125
  %v5099 = vpop.permute.xlu0 %5098
  %5100 = vrot.lane.b32.xlu0 %v4680, 125
  %v5101 = vpop.permute.xlu0 %5100
  %5102 = vrot.lane.b32.xlu0 %v4681, 125
  %v5103 = vpop.permute.xlu0 %5102
  %5104 = vrot.lane.b32.xlu0 %v4682, 125
  %v5105 = vpop.permute.xlu0 %5104
  %5106 = vrot.lane.b32.xlu0 %v4683, 125
  %v5107 = vpop.permute.xlu0 %5106
  %5108 = vrot.lane.b32.xlu0 %v4684, 125
  %v5109 = vpop.permute.xlu0 %5108
  %v5118 = vsel %vm234, %v5090, 0
  %v5121 = vsel %vm234, %v5091, 0
  %v5124 = vsel %vm234, %v5092, 0
  %v5127 = vsel %vm234, %v5093, 0
  %v5130 = vsel %vm247, %v5109, 0
  %5132 = vmatprep.subr.bf16.mxu0 0
  %5133 = vmatpush1.bf16.msra.mxu0 %v5095
  %5134 = vmatprep.subr.bf16.mxu0 0
  %5135 = vmatpush1.bf16.msra.mxu0 %v5097
  %5136 = vmatprep.subr.bf16.mxu0 0
  %5137 = vmatpush1.bf16.msra.mxu0 %v5099
  %5138 = vmatprep.subr.bf16.mxu0 0
  %5139 = vmatpush1.bf16.msra.mxu0 %v5101
  %5140 = vmatprep.subr.bf16.mxu0 0
  %5141 = vmatpush1.bf16.msra.mxu0 %v5103
  %5142 = vmatprep.subr.bf16.mxu0 0
  %5143 = vmatpush1.bf16.msra.mxu0 %v5105
  %5144 = vmatprep.subr.bf16.mxu0 0
  %5145 = vmatpush1.bf16.msra.mxu0 %v5107
  %5146 = vmatprep.subr.bf16.mxu0 0
  %5147 = vmatpush1.bf16.msra.mxu0 %v5130
  %5148 = vmatprep.subr.bf16.mxu0 0
  %5149 = vmatpush1.bf16.msra.mxu0 0
  %5150 = vmatprep.subr.bf16.mxu0 0
  %5151 = vmatpush1.bf16.msra.mxu0 0
  %5152 = vmatprep.subr.bf16.mxu0 0
  %5153 = vmatpush1.bf16.msra.mxu0 0
  %5154 = vmatprep.subr.bf16.mxu0 0
  %5155 = vmatpush1.bf16.msra.mxu0 0
  %5156 = vmatprep.subr.bf16.mxu0 0
  %5157 = vmatpush1.bf16.msra.mxu0 0
  %5158 = vmatprep.subr.bf16.mxu0 0
  %5159 = vmatpush1.bf16.msra.mxu0 0
  %5160 = vmatprep.subr.bf16.mxu0 0
  %5161 = vmatpush1.bf16.msra.mxu0 0
  %5162 = vmatprep.subr.bf16.mxu0 0
  %5163 = vmatpush1.bf16.msra.mxu0 0
  %5164 = vmatprep.mubr.bf16.mxu0 0
  %5165 = vmatmul.mubr.bf16.gmra.mrb[0].mxu0 %v5118
  %v5166 = vpop.f32.mrb[0].mxu0
  %v5167 = vadd.f32 0.0, %v5166
  %v5168 = vpop.f32.mrb[0].mxu0
  %v5169 = vpop.f32.mrb[0].mxu0
  %v5170 = vadd.f32 0.0, %v5169
  %v5171 = vpop.f32.mrb[0].mxu0
  %5172 = vmatprep.mubr.bf16.mxu0 0
  %5173 = vmatmul.mubr.bf16.gmra.mrb[0].mxu0 %v5121
  %v5174 = vpop.f32.mrb[0].mxu0
  %v5175 = vadd.f32 0.0, %v5174
  %v5176 = vpop.f32.mrb[0].mxu0
  %v5177 = vpop.f32.mrb[0].mxu0
  %v5178 = vadd.f32 0.0, %v5177
  %v5179 = vpop.f32.mrb[0].mxu0
  %5180 = vmatprep.mubr.bf16.mxu0 0
  %5181 = vmatmul.mubr.bf16.gmra.mrb[0].mxu0 %v5124
  %v5182 = vpop.f32.mrb[0].mxu0
  %v5183 = vadd.f32 0.0, %v5182
  %v5184 = vpop.f32.mrb[0].mxu0
  %v5185 = vpop.f32.mrb[0].mxu0
  %v5186 = vadd.f32 0.0, %v5185
  %v5187 = vpop.f32.mrb[0].mxu0
  %5188 = vmatprep.mubr.bf16.mxu0 0
  %5189 = vmatmul.mubr.bf16.gmra.mrb[0].mxu0 %v5127
  %v5190 = vpop.f32.mrb[0].mxu0
  %v5191 = vadd.f32 0.0, %v5190
  %v5192 = vpop.f32.mrb[0].mxu0
  %v5193 = vpop.f32.mrb[0].mxu0
  %v5194 = vadd.f32 0.0, %v5193
  %v5195 = vpop.f32.mrb[0].mxu0
  %5196 = vdwg.mxu0
  %v5197 = vadd.f32 %v5057, %v5167
  %v5198 = vadd.f32 %v5058, %v5170
  %v5199 = vadd.f32 %v5059, %v5175
  %v5200 = vadd.f32 %v5060, %v5178
  %v5201 = vadd.f32 %v5061, %v5183
  %v5202 = vadd.f32 %v5062, %v5186
  %v5203 = vadd.f32 %v5063, %v5191
  %v5204 = vadd.f32 %v5064, %v5194
  %s5205 = scalar_lea.vmem %s4, 128
  %v5206 = vld [vmem:[%s5205] sm:$0xf]
  %v5207 = vld [vmem:[%s5205 + $0x4] sm:$0xf]
  %v5208 = vld [vmem:[%s5205 + $0x8] sm:$0xf]
  %v5209 = vld [vmem:[%s5205 + $0xc] sm:$0xf]
  %v5210 = vld [vmem:[%s5205 + $0x10] sm:$0xf]
  %v5211 = vld [vmem:[%s5205 + $0x14] sm:$0xf]
  %v5212 = vld [vmem:[%s5205 + $0x18] sm:$0xf]
  %v5213 = vld [vmem:[%s5205 + $0x1c] sm:$0xf]
  %v5222 = vunpack.c.l.b16 %v5206
  %v5223 = vunpack.c.l.b16 %v5207
  %v5224 = vunpack.c.l.b16 %v5208
  %v5225 = vunpack.c.l.b16 %v5209
  %v5226 = vunpack.c.l.b16 %v5210
  %v5227 = vunpack.c.l.b16 %v5211
  %v5228 = vunpack.c.l.b16 %v5212
  %v5229 = vunpack.c.l.b16 %v5213
  %v5230 = vpack.c.b16 %v5223, %v5222
  %v5231 = vpack.c.b16 %v5225, %v5224
  %v5232 = vpack.c.b16 %v5227, %v5226
  %v5233 = vpack.c.b16 %v5229, %v5228
  %5234 = vrot.lane.b32.xlu0 %v4677, 124
  %v5235 = vpop.permute.xlu0 %5234
  %5236 = vrot.lane.b32.xlu0 %v4678, 124
  %v5237 = vpop.permute.xlu0 %5236
  %5238 = vrot.lane.b32.xlu0 %v4679, 124
  %v5239 = vpop.permute.xlu0 %5238
  %5240 = vrot.lane.b32.xlu0 %v4680, 124
  %v5241 = vpop.permute.xlu0 %5240
  %5242 = vrot.lane.b32.xlu0 %v4681, 124
  %v5243 = vpop.permute.xlu0 %5242
  %5244 = vrot.lane.b32.xlu0 %v4682, 124
  %v5245 = vpop.permute.xlu0 %5244
  %5246 = vrot.lane.b32.xlu0 %v4683, 124
  %v5247 = vpop.permute.xlu0 %5246
  %5248 = vrot.lane.b32.xlu0 %v4684, 124
  %v5249 = vpop.permute.xlu0 %5248
  %v5258 = vsel %vm234, %v5230, 0
  %v5261 = vsel %vm234, %v5231, 0
  %v5264 = vsel %vm234, %v5232, 0
  %v5267 = vsel %vm234, %v5233, 0
  %v5270 = vsel %vm247, %v5249, 0
  %5272 = vmatprep.subr.bf16.mxu0 0
  %5273 = vmatpush1.bf16.msra.mxu0 %v5235
  %5274 = vmatprep.subr.bf16.mxu0 0
  %5275 = vmatpush1.bf16.msra.mxu0 %v5237
  %5276 = vmatprep.subr.bf16.mxu0 0
  %5277 = vmatpush1.bf16.msra.mxu0 %v5239
  %5278 = vmatprep.subr.bf16.mxu0 0
  %5279 = vmatpush1.bf16.msra.mxu0 %v5241
  %5280 = vmatprep.subr.bf16.mxu0 0
  %5281 = vmatpush1.bf16.msra.mxu0 %v5243
  %5282 = vmatprep.subr.bf16.mxu0 0
  %5283 = vmatpush1.bf16.msra.mxu0 %v5245
  %5284 = vmatprep.subr.bf16.mxu0 0
  %5285 = vmatpush1.bf16.msra.mxu0 %v5247
  %5286 = vmatprep.subr.bf16.mxu0 0
  %5287 = vmatpush1.bf16.msra.mxu0 %v5270
  %5288 = vmatprep.subr.bf16.mxu0 0
  %5289 = vmatpush1.bf16.msra.mxu0 0
  %5290 = vmatprep.subr.bf16.mxu0 0
  %5291 = vmatpush1.bf16.msra.mxu0 0
  %5292 = vmatprep.subr.bf16.mxu0 0
  %5293 = vmatpush1.bf16.msra.mxu0 0
  %5294 = vmatprep.subr.bf16.mxu0 0
  %5295 = vmatpush1.bf16.msra.mxu0 0
  %5296 = vmatprep.subr.bf16.mxu0 0
  %5297 = vmatpush1.bf16.msra.mxu0 0
  %5298 = vmatprep.subr.bf16.mxu0 0
  %5299 = vmatpush1.bf16.msra.mxu0 0
  %5300 = vmatprep.subr.bf16.mxu0 0
  %5301 = vmatpush1.bf16.msra.mxu0 0
  %5302 = vmatprep.subr.bf16.mxu0 0
  %5303 = vmatpush1.bf16.msra.mxu0 0
  %5304 = vmatprep.mubr.bf16.mxu0 0
  %5305 = vmatmul.mubr.bf16.gmra.mrb[0].mxu0 %v5258
  %v5306 = vpop.f32.mrb[0].mxu0
  %v5307 = vadd.f32 0.0, %v5306
  %v5308 = vpop.f32.mrb[0].mxu0
  %v5309 = vpop.f32.mrb[0].mxu0
  %v5310 = vadd.f32 0.0, %v5309
  %v5311 = vpop.f32.mrb[0].mxu0
  %5312 = vmatprep.mubr.bf16.mxu0 0
  %5313 = vmatmul.mubr.bf16.gmra.mrb[0].mxu0 %v5261
  %v5314 = vpop.f32.mrb[0].mxu0
  %v5315 = vadd.f32 0.0, %v5314
  %v5316 = vpop.f32.mrb[0].mxu0
  %v5317 = vpop.f32.mrb[0].mxu0
  %v5318 = vadd.f32 0.0, %v5317
  %v5319 = vpop.f32.mrb[0].mxu0
  %5320 = vmatprep.mubr.bf16.mxu0 0
  %5321 = vmatmul.mubr.bf16.gmra.mrb[0].mxu0 %v5264
  %v5322 = vpop.f32.mrb[0].mxu0
  %v5323 = vadd.f32 0.0, %v5322
  %v5324 = vpop.f32.mrb[0].mxu0
  %v5325 = vpop.f32.mrb[0].mxu0
  %v5326 = vadd.f32 0.0, %v5325
  %v5327 = vpop.f32.mrb[0].mxu0
  %5328 = vmatprep.mubr.bf16.mxu0 0
  %5329 = vmatmul.mubr.bf16.gmra.mrb[0].mxu0 %v5267
  %v5330 = vpop.f32.mrb[0].mxu0
  %v5331 = vadd.f32 0.0, %v5330
  %v5332 = vpop.f32.mrb[0].mxu0
  %v5333 = vpop.f32.mrb[0].mxu0
  %v5334 = vadd.f32 0.0, %v5333
  %v5335 = vpop.f32.mrb[0].mxu0
  %5336 = vdwg.mxu0
  %v5337 = vadd.f32 %v5197, %v5307
  %v5338 = vadd.f32 %v5198, %v5310
  %v5339 = vadd.f32 %v5199, %v5315
  %v5340 = vadd.f32 %v5200, %v5318
  %v5341 = vadd.f32 %v5201, %v5323
  %v5342 = vadd.f32 %v5202, %v5326
  %v5343 = vadd.f32 %v5203, %v5331
  %v5344 = vadd.f32 %v5204, %v5334
  %v5345 = vld [vmem:[%s5] sm:$0xff]
  %v5346 = vld [vmem:[%s5 + $0x8] sm:$0xff]
  %v5347 = vld [vmem:[%s5 + $0x10] sm:$0xff]
  %v5348 = vld [vmem:[%s5 + $0x18] sm:$0xff]
  %v5349 = vld [vmem:[%s5 + $0x20] sm:$0xff]
  %v5350 = vld [vmem:[%s5 + $0x28] sm:$0xff]
  %v5351 = vld [vmem:[%s5 + $0x30] sm:$0xff]
  %v5352 = vld [vmem:[%s5 + $0x38] sm:$0xff]
  %5354 = vset.pattern.permute.xlu0 0
  %5355 = vperm.xlu0 %5354, %v5345
  %v5356 = vpop.permute.xlu0 %5355
  %5359 = vset.pattern.permute.xlu0 0
  %5360 = vperm.xlu0 %5359, %v5346
  %v5361 = vpop.permute.xlu0 %5360
  %5364 = vset.pattern.permute.xlu0 0
  %5365 = vperm.xlu0 %5364, %v5347
  %v5366 = vpop.permute.xlu0 %5365
  %5369 = vset.pattern.permute.xlu0 0
  %5370 = vperm.xlu0 %5369, %v5348
  %v5371 = vpop.permute.xlu0 %5370
  %5374 = vset.pattern.permute.xlu0 0
  %5375 = vperm.xlu0 %5374, %v5349
  %v5376 = vpop.permute.xlu0 %5375
  %5379 = vset.pattern.permute.xlu0 0
  %5380 = vperm.xlu0 %5379, %v5350
  %v5381 = vpop.permute.xlu0 %5380
  %5384 = vset.pattern.permute.xlu0 0
  %5385 = vperm.xlu0 %5384, %v5351
  %v5386 = vpop.permute.xlu0 %5385
  %5389 = vset.pattern.permute.xlu0 0
  %5390 = vperm.xlu0 %5389, %v5352
  %v5391 = vpop.permute.xlu0 %5390
  %v5393 = vadd.f32 %v5337, %v5356
  %v5394 = vadd.f32 %v5338, %v5361
  %v5395 = vadd.f32 %v5339, %v5366
  %v5396 = vadd.f32 %v5340, %v5371
  %v5397 = vadd.f32 %v5341, %v5376
  %v5398 = vadd.f32 %v5342, %v5381
  %v5399 = vadd.f32 %v5343, %v5386
  %v5400 = vadd.f32 %v5344, %v5391
  %5409 = vrot.lane.b32.xlu0 %v5393, 127
  %v5410 = vpop.permute.xlu0 %5409
  %5411 = vrot.lane.b32.xlu0 %v5394, 127
  %v5412 = vpop.permute.xlu0 %5411
  %5413 = vrot.lane.b32.xlu0 %v5395, 127
  %v5414 = vpop.permute.xlu0 %5413
  %5415 = vrot.lane.b32.xlu0 %v5396, 127
  %v5416 = vpop.permute.xlu0 %5415
  %5417 = vrot.lane.b32.xlu0 %v5397, 127
  %v5418 = vpop.permute.xlu0 %5417
  %5419 = vrot.lane.b32.xlu0 %v5398, 127
  %v5420 = vpop.permute.xlu0 %5419
  %5421 = vrot.lane.b32.xlu0 %v5399, 127
  %v5422 = vpop.permute.xlu0 %5421
  %5423 = vrot.lane.b32.xlu0 %v5400, 127
  %v5424 = vpop.permute.xlu0 %5423
  %v5433 = vmax.f32 %v5393, %v5410
  %v5434 = vmax.f32 %v5394, %v5412
  %v5435 = vmax.f32 %v5395, %v5414
  %v5436 = vmax.f32 %v5396, %v5416
  %v5437 = vmax.f32 %v5397, %v5418
  %v5438 = vmax.f32 %v5398, %v5420
  %v5439 = vmax.f32 %v5399, %v5422
  %v5440 = vmax.f32 %v5400, %v5424
  %v5441 = vpack.c.bf16 %v5434, %v5433
  %v5442 = vpack.c.bf16 %v5436, %v5435
  %v5443 = vpack.c.bf16 %v5438, %v5437
  %v5444 = vpack.c.bf16 %v5440, %v5439
  %v5446 = vsel %vm405, %v5441, 0
  %v5449 = vsel %vm405, %v5442, 0
  %v5452 = vsel %vm405, %v5443, 0
  %v5455 = vsel %vm405, %v5444, 0
  %5457 = vmatprep.subr.bf16.mxu0 0
  %5458 = vmatpush1.bf16.msra.mxu0 %v390
  %5459 = vmatprep.subr.bf16.mxu0 0
  %5460 = vmatpush1.bf16.msra.mxu0 %v391
  %5461 = vmatprep.subr.bf16.mxu0 0
  %5462 = vmatpush1.bf16.msra.mxu0 %v392
  %5463 = vmatprep.subr.bf16.mxu0 0
  %5464 = vmatpush1.bf16.msra.mxu0 %v393
  %5465 = vmatprep.subr.bf16.mxu0 0
  %5466 = vmatpush1.bf16.msra.mxu0 %v394
  %5467 = vmatprep.subr.bf16.mxu0 0
  %5468 = vmatpush1.bf16.msra.mxu0 %v395
  %5469 = vmatprep.subr.bf16.mxu0 0
  %5470 = vmatpush1.bf16.msra.mxu0 %v396
  %5471 = vmatprep.subr.bf16.mxu0 0
  %5472 = vmatpush1.bf16.msra.mxu0 %v423
  %5473 = vmatprep.subr.bf16.mxu0 0
  %5474 = vmatpush1.bf16.msra.mxu0 0
  %5475 = vmatprep.subr.bf16.mxu0 0
  %5476 = vmatpush1.bf16.msra.mxu0 0
  %5477 = vmatprep.subr.bf16.mxu0 0
  %5478 = vmatpush1.bf16.msra.mxu0 0
  %5479 = vmatprep.subr.bf16.mxu0 0
  %5480 = vmatpush1.bf16.msra.mxu0 0
  %5481 = vmatprep.subr.bf16.mxu0 0
  %5482 = vmatpush1.bf16.msra.mxu0 0
  %5483 = vmatprep.subr.bf16.mxu0 0
  %5484 = vmatpush1.bf16.msra.mxu0 0
  %5485 = vmatprep.subr.bf16.mxu0 0
  %5486 = vmatpush1.bf16.msra.mxu0 0
  %5487 = vmatprep.subr.bf16.mxu0 0
  %5488 = vmatpush1.bf16.msra.mxu0 0
  %5489 = vmatprep.mubr.bf16.mxu0 0
  %5490 = vmatmul.mubr.bf16.gmra.mrb[0].mxu0 %v5446
  %v5491 = vpop.f32.mrb[0].mxu0
  %v5492 = vadd.f32 0.0, %v5491
  %v5493 = vpop.f32.mrb[0].mxu0
  %v5494 = vpop.f32.mrb[0].mxu0
  %v5495 = vadd.f32 0.0, %v5494
  %v5496 = vpop.f32.mrb[0].mxu0
  %5497 = vmatprep.mubr.bf16.mxu0 0
  %5498 = vmatmul.mubr.bf16.gmra.mrb[0].mxu0 %v5449
  %v5499 = vpop.f32.mrb[0].mxu0
  %v5500 = vadd.f32 0.0, %v5499
  %v5501 = vpop.f32.mrb[0].mxu0
  %v5502 = vpop.f32.mrb[0].mxu0
  %v5503 = vadd.f32 0.0, %v5502
  %v5504 = vpop.f32.mrb[0].mxu0
  %5505 = vmatprep.mubr.bf16.mxu0 0
  %5506 = vmatmul.mubr.bf16.gmra.mrb[0].mxu0 %v5452
  %v5507 = vpop.f32.mrb[0].mxu0
  %v5508 = vadd.f32 0.0, %v5507
  %v5509 = vpop.f32.mrb[0].mxu0
  %v5510 = vpop.f32.mrb[0].mxu0
  %v5511 = vadd.f32 0.0, %v5510
  %v5512 = vpop.f32.mrb[0].mxu0
  %5513 = vmatprep.mubr.bf16.mxu0 0
  %5514 = vmatmul.mubr.bf16.gmra.mrb[0].mxu0 %v5455
  %v5515 = vpop.f32.mrb[0].mxu0
  %v5516 = vadd.f32 0.0, %v5515
  %v5517 = vpop.f32.mrb[0].mxu0
  %v5518 = vpop.f32.mrb[0].mxu0
  %v5519 = vadd.f32 0.0, %v5518
  %v5520 = vpop.f32.mrb[0].mxu0
  %5521 = vdwg.mxu0
  %v5522 = vmax.f32 %v5492, 0.0
  %v5523 = vmax.f32 %v5495, 0.0
  %v5524 = vmax.f32 %v5500, 0.0
  %v5525 = vmax.f32 %v5503, 0.0
  %v5526 = vmax.f32 %v5508, 0.0
  %v5527 = vmax.f32 %v5511, 0.0
  %v5528 = vmax.f32 %v5516, 0.0
  %v5529 = vmax.f32 %v5519, 0.0
  %s5530 = scalar_lea.vmem %s6, 144
  %v5531 = vld [vmem:[%s5530] sm:$0xff]
  %v5532 = vld [vmem:[%s5530 + $0x8] sm:$0xf]
  %v5533 = vld [vmem:[%s5530 + $0xc] sm:$0xff]
  %v5534 = vld [vmem:[%s5530 + $0x14] sm:$0xf]
  %v5535 = vld [vmem:[%s5530 + $0x18] sm:$0xff]
  %v5536 = vld [vmem:[%s5530 + $0x20] sm:$0xf]
  %v5537 = vld [vmem:[%s5530 + $0x24] sm:$0xff]
  %v5538 = vld [vmem:[%s5530 + $0x2c] sm:$0xf]
  %s5539 = scalar_lea.vmem %s7, 96
  %v5540 = vld [vmem:[%s5539] sm:$0xff]
  %v5541 = vld [vmem:[%s5539 + $0x8] sm:$0xff]
  %v5542 = vld [vmem:[%s5539 + $0x10] sm:$0xff]
  %v5543 = vld [vmem:[%s5539 + $0x18] sm:$0xff]
  %5552 = vrot.lane.b32.xlu0 %v5522, 127
  %v5553 = vpop.permute.xlu0 %5552
  %5554 = vrot.lane.b32.xlu0 %v5523, 127
  %v5555 = vpop.permute.xlu0 %5554
  %5556 = vrot.lane.b32.xlu0 %v5524, 127
  %v5557 = vpop.permute.xlu0 %5556
  %5558 = vrot.lane.b32.xlu0 %v5525, 127
  %v5559 = vpop.permute.xlu0 %5558
  %5560 = vrot.lane.b32.xlu0 %v5526, 127
  %v5561 = vpop.permute.xlu0 %5560
  %5562 = vrot.lane.b32.xlu0 %v5527, 127
  %v5563 = vpop.permute.xlu0 %5562
  %5564 = vrot.lane.b32.xlu0 %v5528, 127
  %v5565 = vpop.permute.xlu0 %5564
  %5566 = vrot.lane.b32.xlu0 %v5529, 127
  %v5567 = vpop.permute.xlu0 %5566
  %5576 = vrot.lane.b32.xlu0 %v5522, 126
  %v5577 = vpop.permute.xlu0 %5576
  %5578 = vrot.lane.b32.xlu0 %v5523, 126
  %v5579 = vpop.permute.xlu0 %5578
  %5580 = vrot.lane.b32.xlu0 %v5524, 126
  %v5581 = vpop.permute.xlu0 %5580
  %5582 = vrot.lane.b32.xlu0 %v5525, 126
  %v5583 = vpop.permute.xlu0 %5582
  %5584 = vrot.lane.b32.xlu0 %v5526, 126
  %v5585 = vpop.permute.xlu0 %5584
  %5586 = vrot.lane.b32.xlu0 %v5527, 126
  %v5587 = vpop.permute.xlu0 %5586
  %5588 = vrot.lane.b32.xlu0 %v5528, 126
  %v5589 = vpop.permute.xlu0 %5588
  %5590 = vrot.lane.b32.xlu0 %v5529, 126
  %v5591 = vpop.permute.xlu0 %5590
  %5600 = vrot.lane.b32.xlu0 %v5522, 125
  %v5601 = vpop.permute.xlu0 %5600
  %5602 = vrot.lane.b32.xlu0 %v5523, 125
  %v5603 = vpop.permute.xlu0 %5602
  %5604 = vrot.lane.b32.xlu0 %v5524, 125
  %v5605 = vpop.permute.xlu0 %5604
  %5606 = vrot.lane.b32.xlu0 %v5525, 125
  %v5607 = vpop.permute.xlu0 %5606
  %5608 = vrot.lane.b32.xlu0 %v5526, 125
  %v5609 = vpop.permute.xlu0 %5608
  %5610 = vrot.lane.b32.xlu0 %v5527, 125
  %v5611 = vpop.permute.xlu0 %5610
  %5612 = vrot.lane.b32.xlu0 %v5528, 125
  %v5613 = vpop.permute.xlu0 %5612
  %5614 = vrot.lane.b32.xlu0 %v5529, 125
  %v5615 = vpop.permute.xlu0 %5614
  %5624 = vrot.lane.b32.xlu0 %v5522, 124
  %v5625 = vpop.permute.xlu0 %5624
  %5626 = vrot.lane.b32.xlu0 %v5523, 124
  %v5627 = vpop.permute.xlu0 %5626
  %5628 = vrot.lane.b32.xlu0 %v5524, 124
  %v5629 = vpop.permute.xlu0 %5628
  %5630 = vrot.lane.b32.xlu0 %v5525, 124
  %v5631 = vpop.permute.xlu0 %5630
  %5632 = vrot.lane.b32.xlu0 %v5526, 124
  %v5633 = vpop.permute.xlu0 %5632
  %5634 = vrot.lane.b32.xlu0 %v5527, 124
  %v5635 = vpop.permute.xlu0 %5634
  %5636 = vrot.lane.b32.xlu0 %v5528, 124
  %v5637 = vpop.permute.xlu0 %5636
  %5638 = vrot.lane.b32.xlu0 %v5529, 124
  %v5639 = vpop.permute.xlu0 %5638
  %v5648 = vpack.c.bf16 %v5523, %v5522
  %v5649 = vpack.c.bf16 %v5525, %v5524
  %v5650 = vpack.c.bf16 %v5527, %v5526
  %v5651 = vpack.c.bf16 %v5529, %v5528
  %v5652 = vpack.c.bf16 %v5555, %v5553
  %v5653 = vpack.c.bf16 %v5559, %v5557
  %v5654 = vpack.c.bf16 %v5563, %v5561
  %v5655 = vpack.c.bf16 %v5567, %v5565
  %v5656 = vpack.c.bf16 %v5579, %v5577
  %v5657 = vpack.c.bf16 %v5583, %v5581
  %v5658 = vpack.c.bf16 %v5587, %v5585
  %v5659 = vpack.c.bf16 %v5591, %v5589
  %v5660 = vpack.c.bf16 %v5603, %v5601
  %v5661 = vpack.c.bf16 %v5607, %v5605
  %v5662 = vpack.c.bf16 %v5611, %v5609
  %v5663 = vpack.c.bf16 %v5615, %v5613
  %v5664 = vpack.c.bf16 %v5627, %v5625
  %v5665 = vpack.c.bf16 %v5631, %v5629
  %v5666 = vpack.c.bf16 %v5635, %v5633
  %v5667 = vpack.c.bf16 %v5639, %v5637
  %5669 = vset.pattern.permute.xlu0 0
  %5670 = vperm.xlu0 %5669, %v5540
  %v5671 = vpop.permute.xlu0 %5670
  %5674 = vset.pattern.permute.xlu0 0
  %5675 = vperm.xlu0 %5674, %v5541
  %v5676 = vpop.permute.xlu0 %5675
  %5679 = vset.pattern.permute.xlu0 0
  %5680 = vperm.xlu0 %5679, %v5542
  %v5681 = vpop.permute.xlu0 %5680
  %5684 = vset.pattern.permute.xlu0 0
  %5685 = vperm.xlu0 %5684, %v5543
  %v5686 = vpop.permute.xlu0 %5685
  %v5696 = vunpack.c.l.b16 %v5531
  %v5697 = vunpack.c.h.b16 %v5531
  %v5698 = vunpack.c.l.b16 %v5532
  %v5699 = vunpack.c.l.b16 %v5533
  %v5700 = vunpack.c.h.b16 %v5533
  %v5701 = vunpack.c.l.b16 %v5534
  %v5702 = vunpack.c.l.b16 %v5535
  %v5703 = vunpack.c.h.b16 %v5535
  %v5704 = vunpack.c.l.b16 %v5536
  %v5705 = vunpack.c.l.b16 %v5537
  %v5706 = vunpack.c.h.b16 %v5537
  %v5707 = vunpack.c.l.b16 %v5538
  %v5708 = vpack.c.b16 %v5699, %v5696
  %v5709 = vpack.c.b16 %v5700, %v5697
  %v5710 = vpack.c.b16 %v5701, %v5698
  %v5711 = vpack.c.b16 %v5705, %v5702
  %v5712 = vpack.c.b16 %v5706, %v5703
  %v5713 = vpack.c.b16 %v5707, %v5704
  %v5719 = vsel %vm684, %v5710, 0
  %v5722 = vsel %vm684, %v5713, 0
  %5724 = vmatprep.subr.bf16.mxu0 0
  %5725 = vmatpush1.bf16.msra.mxu0 %v5648
  %5726 = vmatprep.subr.bf16.mxu0 0
  %5727 = vmatpush1.bf16.msra.mxu0 %v5649
  %5728 = vmatprep.subr.bf16.mxu0 0
  %5729 = vmatpush1.bf16.msra.mxu0 %v5650
  %5730 = vmatprep.subr.bf16.mxu0 0
  %5731 = vmatpush1.bf16.msra.mxu0 %v5651
  %5732 = vmatprep.subr.bf16.mxu0 0
  %5733 = vmatpush1.bf16.msra.mxu0 %v5652
  %5734 = vmatprep.subr.bf16.mxu0 0
  %5735 = vmatpush1.bf16.msra.mxu0 %v5653
  %5736 = vmatprep.subr.bf16.mxu0 0
  %5737 = vmatpush1.bf16.msra.mxu0 %v5654
  %5738 = vmatprep.subr.bf16.mxu0 0
  %5739 = vmatpush1.bf16.msra.mxu0 %v5655
  %5740 = vmatprep.subr.bf16.mxu0 0
  %5741 = vmatpush1.bf16.msra.mxu0 %v5656
  %5742 = vmatprep.subr.bf16.mxu0 0
  %5743 = vmatpush1.bf16.msra.mxu0 %v5657
  %5744 = vmatprep.subr.bf16.mxu0 0
  %5745 = vmatpush1.bf16.msra.mxu0 %v5658
  %5746 = vmatprep.subr.bf16.mxu0 0
  %5747 = vmatpush1.bf16.msra.mxu0 %v5659
  %5748 = vmatprep.subr.bf16.mxu0 0
  %5749 = vmatpush1.bf16.msra.mxu0 %v5660
  %5750 = vmatprep.subr.bf16.mxu0 0
  %5751 = vmatpush1.bf16.msra.mxu0 %v5661
  %5752 = vmatprep.subr.bf16.mxu0 0
  %5753 = vmatpush1.bf16.msra.mxu0 %v5662
  %5754 = vmatprep.subr.bf16.mxu0 0
  %5755 = vmatpush1.bf16.msra.mxu0 %v5663
  %5756 = vmatprep.mubr.bf16.mxu0 %v5709
  %5757 = vmatmul.mubr.bf16.gmra.mrb[0].mxu0 %v5708
  %v5758 = vpop.f32.mrb[0].mxu0
  %v5759 = vadd.f32 %v5671, %v5758
  %v5760 = vpop.f32.mrb[0].mxu0
  %v5761 = vpop.f32.mrb[0].mxu0
  %v5762 = vadd.f32 %v5676, %v5761
  %v5763 = vpop.f32.mrb[0].mxu0
  %5764 = vmatprep.mubr.bf16.mxu0 %v5712
  %5765 = vmatmul.mubr.bf16.gmra.mrb[0].mxu0 %v5711
  %v5766 = vpop.f32.mrb[0].mxu0
  %v5767 = vadd.f32 %v5681, %v5766
  %v5768 = vpop.f32.mrb[0].mxu0
  %v5769 = vpop.f32.mrb[0].mxu0
  %v5770 = vadd.f32 %v5686, %v5769
  %v5771 = vpop.f32.mrb[0].mxu0
  %5772 = vdwg.mxu0
  %5773 = vmatprep.subr.bf16.mxu0 0
  %5774 = vmatpush1.bf16.msra.mxu0 %v5664
  %5775 = vmatprep.subr.bf16.mxu0 0
  %5776 = vmatpush1.bf16.msra.mxu0 %v5665
  %5777 = vmatprep.subr.bf16.mxu0 0
  %5778 = vmatpush1.bf16.msra.mxu0 %v5666
  %5779 = vmatprep.subr.bf16.mxu0 0
  %5780 = vmatpush1.bf16.msra.mxu0 %v5667
  %5781 = vmatprep.subr.bf16.mxu0 0
  %5782 = vmatpush1.bf16.msra.mxu0 0
  %5783 = vmatprep.subr.bf16.mxu0 0
  %5784 = vmatpush1.bf16.msra.mxu0 0
  %5785 = vmatprep.subr.bf16.mxu0 0
  %5786 = vmatpush1.bf16.msra.mxu0 0
  %5787 = vmatprep.subr.bf16.mxu0 0
  %5788 = vmatpush1.bf16.msra.mxu0 0
  %5789 = vmatprep.subr.bf16.mxu0 0
  %5790 = vmatpush1.bf16.msra.mxu0 0
  %5791 = vmatprep.subr.bf16.mxu0 0
  %5792 = vmatpush1.bf16.msra.mxu0 0
  %5793 = vmatprep.subr.bf16.mxu0 0
  %5794 = vmatpush1.bf16.msra.mxu0 0
  %5795 = vmatprep.subr.bf16.mxu0 0
  %5796 = vmatpush1.bf16.msra.mxu0 0
  %5797 = vmatprep.subr.bf16.mxu0 0
  %5798 = vmatpush1.bf16.msra.mxu0 0
  %5799 = vmatprep.subr.bf16.mxu0 0
  %5800 = vmatpush1.bf16.msra.mxu0 0
  %5801 = vmatprep.subr.bf16.mxu0 0
  %5802 = vmatpush1.bf16.msra.mxu0 0
  %5803 = vmatprep.subr.bf16.mxu0 0
  %5804 = vmatpush1.bf16.msra.mxu0 0
  %5805 = vmatprep.mubr.bf16.mxu0 0
  %5806 = vmatmul.mubr.bf16.gmra.mrb[0].mxu0 %v5719
  %v5807 = vpop.f32.mrb[0].mxu0
  %v5808 = vadd.f32 %v5759, %v5807
  %v5809 = vpop.f32.mrb[0].mxu0
  %v5810 = vpop.f32.mrb[0].mxu0
  %v5811 = vadd.f32 %v5762, %v5810
  %v5812 = vpop.f32.mrb[0].mxu0
  %5813 = vmatprep.mubr.bf16.mxu0 0
  %5814 = vmatmul.mubr.bf16.gmra.mrb[0].mxu0 %v5722
  %v5815 = vpop.f32.mrb[0].mxu0
  %v5816 = vadd.f32 %v5767, %v5815
  %v5817 = vpop.f32.mrb[0].mxu0
  %v5818 = vpop.f32.mrb[0].mxu0
  %v5819 = vadd.f32 %v5770, %v5818
  %v5820 = vpop.f32.mrb[0].mxu0
  %5821 = vdwg.mxu0
  %5826 = vrot.lane.b32.xlu0 %v5808, 127
  %v5827 = vpop.permute.xlu0 %5826
  %5828 = vrot.lane.b32.xlu0 %v5811, 127
  %v5829 = vpop.permute.xlu0 %5828
  %5830 = vrot.lane.b32.xlu0 %v5816, 127
  %v5831 = vpop.permute.xlu0 %5830
  %5832 = vrot.lane.b32.xlu0 %v5819, 127
  %v5833 = vpop.permute.xlu0 %5832
  %v5838 = vmax.f32 %v5808, %v5827
  %v5839 = vmax.f32 %v5811, %v5829
  %v5840 = vmax.f32 %v5816, %v5831
  %v5841 = vmax.f32 %v5819, %v5833
  %v5842 = vpack.c.bf16 %v5839, %v5838
  %v5843 = vpack.c.bf16 %v5841, %v5840
  %v5845 = vsel %vm832, %v5842, 0
  %v5848 = vsel %vm832, %v5843, 0
  %5850 = vmatprep.subr.bf16.mxu0 0
  %5851 = vmatpush1.bf16.msra.mxu0 %v825
  %5852 = vmatprep.subr.bf16.mxu0 0
  %5853 = vmatpush1.bf16.msra.mxu0 %v826
  %5854 = vmatprep.subr.bf16.mxu0 0
  %5855 = vmatpush1.bf16.msra.mxu0 %v827
  %5856 = vmatprep.subr.bf16.mxu0 0
  %5857 = vmatpush1.bf16.msra.mxu0 %v840
  %5858 = vmatprep.subr.bf16.mxu0 0
  %5859 = vmatpush1.bf16.msra.mxu0 0
  %5860 = vmatprep.subr.bf16.mxu0 0
  %5861 = vmatpush1.bf16.msra.mxu0 0
  %5862 = vmatprep.subr.bf16.mxu0 0
  %5863 = vmatpush1.bf16.msra.mxu0 0
  %5864 = vmatprep.subr.bf16.mxu0 0
  %5865 = vmatpush1.bf16.msra.mxu0 0
  %5866 = vmatprep.subr.bf16.mxu0 0
  %5867 = vmatpush1.bf16.msra.mxu0 0
  %5868 = vmatprep.subr.bf16.mxu0 0
  %5869 = vmatpush1.bf16.msra.mxu0 0
  %5870 = vmatprep.subr.bf16.mxu0 0
  %5871 = vmatpush1.bf16.msra.mxu0 0
  %5872 = vmatprep.subr.bf16.mxu0 0
  %5873 = vmatpush1.bf16.msra.mxu0 0
  %5874 = vmatprep.subr.bf16.mxu0 0
  %5875 = vmatpush1.bf16.msra.mxu0 0
  %5876 = vmatprep.subr.bf16.mxu0 0
  %5877 = vmatpush1.bf16.msra.mxu0 0
  %5878 = vmatprep.subr.bf16.mxu0 0
  %5879 = vmatpush1.bf16.msra.mxu0 0
  %5880 = vmatprep.subr.bf16.mxu0 0
  %5881 = vmatpush1.bf16.msra.mxu0 0
  %5882 = vmatprep.mubr.bf16.mxu0 0
  %5883 = vmatmul.mubr.bf16.gmra.mrb[0].mxu0 %v5845
  %v5884 = vpop.f32.mrb[0].mxu0
  %v5885 = vadd.f32 0.0, %v5884
  %v5886 = vpop.f32.mrb[0].mxu0
  %v5887 = vpop.f32.mrb[0].mxu0
  %v5888 = vadd.f32 0.0, %v5887
  %v5889 = vpop.f32.mrb[0].mxu0
  %5890 = vmatprep.mubr.bf16.mxu0 0
  %5891 = vmatmul.mubr.bf16.gmra.mrb[0].mxu0 %v5848
  %v5892 = vpop.f32.mrb[0].mxu0
  %v5893 = vadd.f32 0.0, %v5892
  %v5894 = vpop.f32.mrb[0].mxu0
  %v5895 = vpop.f32.mrb[0].mxu0
  %v5896 = vadd.f32 0.0, %v5895
  %v5897 = vpop.f32.mrb[0].mxu0
  %5898 = vdwg.mxu0
  %v5899 = vmax.f32 %v5885, 0.0
  %v5900 = vmax.f32 %v5888, 0.0
  %v5901 = vmax.f32 %v5893, 0.0
  %v5902 = vmax.f32 %v5896, 0.0
  %s5903 = scalar_lea.vmem %s8, 96
  %v5904 = vld [vmem:[%s5903] sm:$0xff]
  %v5905 = vld [vmem:[%s5903 + $0x8] sm:$0xff]
  %v5906 = vld [vmem:[%s5903 + $0x10] sm:$0xff]
  %v5907 = vld [vmem:[%s5903 + $0x18] sm:$0xff]
  %s5908 = scalar_lea.vmem %s9, 96
  %v5909 = vld [vmem:[%s5908] sm:$0xff]
  %v5910 = vld [vmem:[%s5908 + $0x8] sm:$0xff]
  %v5911 = vld [vmem:[%s5908 + $0x10] sm:$0xff]
  %v5912 = vld [vmem:[%s5908 + $0x18] sm:$0xff]
  %5917 = vrot.lane.b32.xlu0 %v5899, 127
  %v5918 = vpop.permute.xlu0 %5917
  %5919 = vrot.lane.b32.xlu0 %v5900, 127
  %v5920 = vpop.permute.xlu0 %5919
  %5921 = vrot.lane.b32.xlu0 %v5901, 127
  %v5922 = vpop.permute.xlu0 %5921
  %5923 = vrot.lane.b32.xlu0 %v5902, 127
  %v5924 = vpop.permute.xlu0 %5923
  %5929 = vrot.lane.b32.xlu0 %v5899, 126
  %v5930 = vpop.permute.xlu0 %5929
  %5931 = vrot.lane.b32.xlu0 %v5900, 126
  %v5932 = vpop.permute.xlu0 %5931
  %5933 = vrot.lane.b32.xlu0 %v5901, 126
  %v5934 = vpop.permute.xlu0 %5933
  %5935 = vrot.lane.b32.xlu0 %v5902, 126
  %v5936 = vpop.permute.xlu0 %5935
  %5941 = vrot.lane.b32.xlu0 %v5899, 125
  %v5942 = vpop.permute.xlu0 %5941
  %5943 = vrot.lane.b32.xlu0 %v5900, 125
  %v5944 = vpop.permute.xlu0 %5943
  %5945 = vrot.lane.b32.xlu0 %v5901, 125
  %v5946 = vpop.permute.xlu0 %5945
  %5947 = vrot.lane.b32.xlu0 %v5902, 125
  %v5948 = vpop.permute.xlu0 %5947
  %5953 = vrot.lane.b32.xlu0 %v5899, 124
  %v5954 = vpop.permute.xlu0 %5953
  %5955 = vrot.lane.b32.xlu0 %v5900, 124
  %v5956 = vpop.permute.xlu0 %5955
  %5957 = vrot.lane.b32.xlu0 %v5901, 124
  %v5958 = vpop.permute.xlu0 %5957
  %5959 = vrot.lane.b32.xlu0 %v5902, 124
  %v5960 = vpop.permute.xlu0 %5959
  %v5965 = vpack.c.bf16 %v5900, %v5899
  %v5966 = vpack.c.bf16 %v5902, %v5901
  %v5967 = vpack.c.bf16 %v5920, %v5918
  %v5968 = vpack.c.bf16 %v5924, %v5922
  %v5969 = vpack.c.bf16 %v5932, %v5930
  %v5970 = vpack.c.bf16 %v5936, %v5934
  %v5971 = vpack.c.bf16 %v5944, %v5942
  %v5972 = vpack.c.bf16 %v5948, %v5946
  %v5973 = vpack.c.bf16 %v5956, %v5954
  %v5974 = vpack.c.bf16 %v5960, %v5958
  %5976 = vset.pattern.permute.xlu0 0
  %5977 = vperm.xlu0 %5976, %v5909
  %v5978 = vpop.permute.xlu0 %5977
  %5981 = vset.pattern.permute.xlu0 0
  %5982 = vperm.xlu0 %5981, %v5910
  %v5983 = vpop.permute.xlu0 %5982
  %5986 = vset.pattern.permute.xlu0 0
  %5987 = vperm.xlu0 %5986, %v5911
  %v5988 = vpop.permute.xlu0 %5987
  %5991 = vset.pattern.permute.xlu0 0
  %5992 = vperm.xlu0 %5991, %v5912
  %v5993 = vpop.permute.xlu0 %5992
  %v5999 = vunpack.c.l.b16 %v5904
  %v6000 = vunpack.c.h.b16 %v5904
  %v6001 = vunpack.c.l.b16 %v5905
  %v6002 = vunpack.c.h.b16 %v5905
  %v6003 = vunpack.c.l.b16 %v5906
  %v6004 = vunpack.c.h.b16 %v5906
  %v6005 = vunpack.c.l.b16 %v5907
  %v6006 = vunpack.c.h.b16 %v5907
  %v6007 = vpack.c.b16 %v6001, %v5999
  %v6008 = vpack.c.b16 %v6002, %v6000
  %v6009 = vpack.c.b16 %v6005, %v6003
  %v6010 = vpack.c.b16 %v6006, %v6004
  %v6014 = vsel %vm1003, %v6008, 0
  %v6017 = vsel %vm1003, %v6010, 0
  %6019 = vmatprep.subr.bf16.mxu0 0
  %6020 = vmatpush1.bf16.msra.mxu0 %v5965
  %6021 = vmatprep.subr.bf16.mxu0 0
  %6022 = vmatpush1.bf16.msra.mxu0 %v5966
  %6023 = vmatprep.subr.bf16.mxu0 0
  %6024 = vmatpush1.bf16.msra.mxu0 %v5967
  %6025 = vmatprep.subr.bf16.mxu0 0
  %6026 = vmatpush1.bf16.msra.mxu0 %v5968
  %6027 = vmatprep.subr.bf16.mxu0 0
  %6028 = vmatpush1.bf16.msra.mxu0 %v5969
  %6029 = vmatprep.subr.bf16.mxu0 0
  %6030 = vmatpush1.bf16.msra.mxu0 %v5970
  %6031 = vmatprep.subr.bf16.mxu0 0
  %6032 = vmatpush1.bf16.msra.mxu0 %v5971
  %6033 = vmatprep.subr.bf16.mxu0 0
  %6034 = vmatpush1.bf16.msra.mxu0 %v5972
  %6035 = vmatprep.subr.bf16.mxu0 0
  %6036 = vmatpush1.bf16.msra.mxu0 %v5973
  %6037 = vmatprep.subr.bf16.mxu0 0
  %6038 = vmatpush1.bf16.msra.mxu0 %v5974
  %6039 = vmatprep.subr.bf16.mxu0 0
  %6040 = vmatpush1.bf16.msra.mxu0 0
  %6041 = vmatprep.subr.bf16.mxu0 0
  %6042 = vmatpush1.bf16.msra.mxu0 0
  %6043 = vmatprep.subr.bf16.mxu0 0
  %6044 = vmatpush1.bf16.msra.mxu0 0
  %6045 = vmatprep.subr.bf16.mxu0 0
  %6046 = vmatpush1.bf16.msra.mxu0 0
  %6047 = vmatprep.subr.bf16.mxu0 0
  %6048 = vmatpush1.bf16.msra.mxu0 0
  %6049 = vmatprep.subr.bf16.mxu0 0
  %6050 = vmatpush1.bf16.msra.mxu0 0
  %6051 = vmatprep.mubr.bf16.mxu0 %v6014
  %6052 = vmatmul.mubr.bf16.gmra.mrb[0].mxu0 %v6007
  %v6053 = vpop.f32.mrb[0].mxu0
  %v6054 = vadd.f32 %v5978, %v6053
  %v6055 = vpop.f32.mrb[0].mxu0
  %v6056 = vpop.f32.mrb[0].mxu0
  %v6057 = vadd.f32 %v5983, %v6056
  %v6058 = vpop.f32.mrb[0].mxu0
  %6059 = vmatprep.mubr.bf16.mxu0 %v6017
  %6060 = vmatmul.mubr.bf16.gmra.mrb[0].mxu0 %v6009
  %v6061 = vpop.f32.mrb[0].mxu0
  %v6062 = vadd.f32 %v5988, %v6061
  %v6063 = vpop.f32.mrb[0].mxu0
  %v6064 = vpop.f32.mrb[0].mxu0
  %v6065 = vadd.f32 %v5993, %v6064
  %v6066 = vpop.f32.mrb[0].mxu0
  %6067 = vdwg.mxu0
  %6072 = vrot.lane.b32.xlu0 %v6054, 127
  %v6073 = vpop.permute.xlu0 %6072
  %6074 = vrot.lane.b32.xlu0 %v6057, 127
  %v6075 = vpop.permute.xlu0 %6074
  %6076 = vrot.lane.b32.xlu0 %v6062, 127
  %v6077 = vpop.permute.xlu0 %6076
  %6078 = vrot.lane.b32.xlu0 %v6065, 127
  %v6079 = vpop.permute.xlu0 %6078
  %v6084 = vmax.f32 %v6054, %v6073
  %v6085 = vmax.f32 %v6057, %v6075
  %v6086 = vmax.f32 %v6062, %v6077
  %v6087 = vmax.f32 %v6065, %v6079
  %v6088 = vpack.c.bf16 %v6085, %v6084
  %v6089 = vpack.c.bf16 %v6087, %v6086
  %v6091 = vsel %vm1090, %v6088, 0
  %v6094 = vsel %vm1090, %v6089, 0
  %6096 = vmatprep.subr.bf16.mxu0 0
  %6097 = vmatpush1.bf16.msra.mxu0 %v1087
  %6098 = vmatprep.subr.bf16.mxu0 0
  %6099 = vmatpush1.bf16.msra.mxu0 %v1098
  %6100 = vmatprep.subr.bf16.mxu0 0
  %6101 = vmatpush1.bf16.msra.mxu0 0
  %6102 = vmatprep.subr.bf16.mxu0 0
  %6103 = vmatpush1.bf16.msra.mxu0 0
  %6104 = vmatprep.subr.bf16.mxu0 0
  %6105 = vmatpush1.bf16.msra.mxu0 0
  %6106 = vmatprep.subr.bf16.mxu0 0
  %6107 = vmatpush1.bf16.msra.mxu0 0
  %6108 = vmatprep.subr.bf16.mxu0 0
  %6109 = vmatpush1.bf16.msra.mxu0 0
  %6110 = vmatprep.subr.bf16.mxu0 0
  %6111 = vmatpush1.bf16.msra.mxu0 0
  %6112 = vmatprep.subr.bf16.mxu0 0
  %6113 = vmatpush1.bf16.msra.mxu0 0
  %6114 = vmatprep.subr.bf16.mxu0 0
  %6115 = vmatpush1.bf16.msra.mxu0 0
  %6116 = vmatprep.subr.bf16.mxu0 0
  %6117 = vmatpush1.bf16.msra.mxu0 0
  %6118 = vmatprep.subr.bf16.mxu0 0
  %6119 = vmatpush1.bf16.msra.mxu0 0
  %6120 = vmatprep.subr.bf16.mxu0 0
  %6121 = vmatpush1.bf16.msra.mxu0 0
  %6122 = vmatprep.subr.bf16.mxu0 0
  %6123 = vmatpush1.bf16.msra.mxu0 0
  %6124 = vmatprep.subr.bf16.mxu0 0
  %6125 = vmatpush1.bf16.msra.mxu0 0
  %6126 = vmatprep.subr.bf16.mxu0 0
  %6127 = vmatpush1.bf16.msra.mxu0 0
  %6128 = vmatprep.mubr.bf16.mxu0 0
  %6129 = vmatmul.mubr.bf16.gmra.mrb[0].mxu0 %v6091
  %v6130 = vpop.f32.mrb[0].mxu0
  %v6131 = vadd.f32 0.0, %v6130
  %v6132 = vpop.f32.mrb[0].mxu0
  %v6133 = vpop.f32.mrb[0].mxu0
  %v6134 = vadd.f32 0.0, %v6133
  %v6135 = vpop.f32.mrb[0].mxu0
  %6136 = vmatprep.mubr.bf16.mxu0 0
  %6137 = vmatmul.mubr.bf16.gmra.mrb[0].mxu0 %v6094
  %v6138 = vpop.f32.mrb[0].mxu0
  %v6139 = vadd.f32 0.0, %v6138
  %v6140 = vpop.f32.mrb[0].mxu0
  %v6141 = vpop.f32.mrb[0].mxu0
  %v6142 = vadd.f32 0.0, %v6141
  %v6143 = vpop.f32.mrb[0].mxu0
  %6144 = vdwg.mxu0
  %v6145 = vmax.f32 %v6131, 0.0
  %v6146 = vmax.f32 %v6134, 0.0
  %v6147 = vmax.f32 %v6139, 0.0
  %v6148 = vmax.f32 %v6142, 0.0
  %6149 = vxpose.xlu0.b32.start [1/16] %v6145, 128
  %6150 = vxpose.xlu0.b32.cont [2/16] %v6146, 128
  %6151 = vxpose.xlu0.b32.cont [3/16] %v6147, 128
  %6152 = vxpose.xlu0.b32.cont [4/16] %v6148, 128
  %6153 = vxpose.xlu0.b32.cont [5/16] 0.0, 128
  %6154 = vxpose.xlu0.b32.cont [6/16] 0.0, 128
  %6155 = vxpose.xlu0.b32.cont [7/16] 0.0, 128
  %6156 = vxpose.xlu0.b32.cont [8/16] 0.0, 128
  %6157 = vxpose.xlu0.b32.cont [9/16] 0.0, 128
  %6158 = vxpose.xlu0.b32.cont [10/16] 0.0, 128
  %6159 = vxpose.xlu0.b32.cont [11/16] 0.0, 128
  %6160 = vxpose.xlu0.b32.cont [12/16] 0.0, 128
  %6161 = vxpose.xlu0.b32.cont [13/16] 0.0, 128
  %6162 = vxpose.xlu0.b32.cont [14/16] 0.0, 128
  %6163 = vxpose.xlu0.b32.cont [15/16] 0.0, 128
  %6164 = vxpose.xlu0.b32.end [16/16] 0.0, 128
  %v6165 = vpop.trf.xlu0
  %v6166 = vpop.trf.xlu0
  %v6167 = vpop.trf.xlu0
  %v6168 = vpop.trf.xlu0
  %v6169 = vpop.trf.xlu0
  %v6170 = vpop.trf.xlu0
  %v6171 = vpop.trf.xlu0
  %v6172 = vpop.trf.xlu0
  %v6173 = vpop.trf.xlu0
  %v6174 = vpop.trf.xlu0
  %v6175 = vpop.trf.xlu0
  %v6176 = vpop.trf.xlu0
  %v6177 = vpop.trf.xlu0
  %v6178 = vpop.trf.xlu0
  %v6179 = vpop.trf.xlu0
  %v6180 = vpop.trf.xlu0
  %s6181 = scalar_lea.vmem %s10, 192
  %v6182 = vld [vmem:[%s6181] sm:$0xf]
  %v6183 = vld [vmem:[%s6181 + $0x4] sm:$0xf]
  %v6184 = vld [vmem:[%s6181 + $0x8] sm:$0xf]
  %v6185 = vld [vmem:[%s6181 + $0xc] sm:$0xf]
  %v6186 = vld [vmem:[%s6181 + $0x10] sm:$0xf]
  %v6187 = vld [vmem:[%s6181 + $0x14] sm:$0xf]
  %v6188 = vld [vmem:[%s6181 + $0x18] sm:$0xf]
  %v6189 = vld [vmem:[%s6181 + $0x1c] sm:$0xf]
  %v6190 = vld [vmem:[%s6181 + $0x20] sm:$0xf]
  %v6191 = vld [vmem:[%s6181 + $0x24] sm:$0xf]
  %v6192 = vld [vmem:[%s6181 + $0x28] sm:$0xf]
  %v6193 = vld [vmem:[%s6181 + $0x2c] sm:$0xf]
  %v6194 = vld [vmem:[%s6181 + $0x30] sm:$0xf]
  %v6195 = vld [vmem:[%s6181 + $0x34] sm:$0xf]
  %v6196 = vld [vmem:[%s6181 + $0x38] sm:$0xf]
  %v6197 = vld [vmem:[%s6181 + $0x3c] sm:$0xf]
  %v6199 = vrot.slane %v6165, 3
  %v6201 = vsel %vm418, %v6165, %v6199
  %v6202 = vpack.c.bf16 %v6201, %v6201
  %v6203 = vrot.slane %v6165, 1
  %v6205 = vrot.slane %v6165, 4
  %v6207 = vsel %vm418, %v6203, %v6205
  %v6208 = vpack.c.bf16 %v6207, %v6207
  %v6213 = vunpack.c.l.b16 %v6186
  %v6214 = vunpack.c.l.b16 %v6187
  %v6215 = vunpack.c.l.b16 %v6188
  %v6216 = vunpack.c.l.b16 %v6189
  %v6217 = vpack.c.b16 %v6214, %v6213
  %v6218 = vpack.c.b16 %v6216, %v6215
  %v6222 = vsel %vm1003, %v6208, 0
  %6224 = vmatprep.subr.bf16.mxu0 0
  %6225 = vmatpush1.bf16.msra.mxu0 %v6217
  %6226 = vmatprep.subr.bf16.mxu0 0
  %6227 = vmatpush1.bf16.msra.mxu0 %v6218
  %6228 = vmatprep.subr.bf16.mxu0 0
  %6229 = vmatpush1.bf16.msra.mxu0 0
  %6230 = vmatprep.subr.bf16.mxu0 0
  %6231 = vmatpush1.bf16.msra.mxu0 0
  %6232 = vmatprep.subr.bf16.mxu0 0
  %6233 = vmatpush1.bf16.msra.mxu0 0
  %6234 = vmatprep.subr.bf16.mxu0 0
  %6235 = vmatpush1.bf16.msra.mxu0 0
  %6236 = vmatprep.subr.bf16.mxu0 0
  %6237 = vmatpush1.bf16.msra.mxu0 0
  %6238 = vmatprep.subr.bf16.mxu0 0
  %6239 = vmatpush1.bf16.msra.mxu0 0
  %6240 = vmatprep.subr.bf16.mxu0 0
  %6241 = vmatpush1.bf16.msra.mxu0 0
  %6242 = vmatprep.subr.bf16.mxu0 0
  %6243 = vmatpush1.bf16.msra.mxu0 0
  %6244 = vmatprep.subr.bf16.mxu0 0
  %6245 = vmatpush1.bf16.msra.mxu0 0
  %6246 = vmatprep.subr.bf16.mxu0 0
  %6247 = vmatpush1.bf16.msra.mxu0 0
  %6248 = vmatprep.subr.bf16.mxu0 0
  %6249 = vmatpush1.bf16.msra.mxu0 0
  %6250 = vmatprep.subr.bf16.mxu0 0
  %6251 = vmatpush1.bf16.msra.mxu0 0
  %6252 = vmatprep.subr.bf16.mxu0 0
  %6253 = vmatpush1.bf16.msra.mxu0 0
  %6254 = vmatprep.subr.bf16.mxu0 0
  %6255 = vmatpush1.bf16.msra.mxu0 0
  %6256 = vmatprep.mubr.bf16.mxu0 0
  %6257 = vmatmul.mubr.bf16.gmra.mrb[0].mxu0 %v6222
  %v6258 = vpop.f32.mrb[0].mxu0
  %v6259 = vadd.f32 0.0, %v6258
  %v6260 = vpop.f32.mrb[0].mxu0
  %v6261 = vpop.f32.mrb[0].mxu0
  %v6262 = vpop.f32.mrb[0].mxu0
  %6263 = vdwg.mxu0
  %v6268 = vunpack.c.l.b16 %v6182
  %v6269 = vunpack.c.l.b16 %v6183
  %v6270 = vunpack.c.l.b16 %v6184
  %v6271 = vunpack.c.l.b16 %v6185
  %v6272 = vpack.c.b16 %v6269, %v6268
  %v6273 = vpack.c.b16 %v6271, %v6270
  %v6277 = vsel %vm1003, %v6202, 0
  %6279 = vmatprep.subr.bf16.mxu0 0
  %6280 = vmatpush1.bf16.msra.mxu0 %v6272
  %6281 = vmatprep.subr.bf16.mxu0 0
  %6282 = vmatpush1.bf16.msra.mxu0 %v6273
  %6283 = vmatprep.subr.bf16.mxu0 0
  %6284 = vmatpush1.bf16.msra.mxu0 0
  %6285 = vmatprep.subr.bf16.mxu0 0
  %6286 = vmatpush1.bf16.msra.mxu0 0
  %6287 = vmatprep.subr.bf16.mxu0 0
  %6288 = vmatpush1.bf16.msra.mxu0 0
  %6289 = vmatprep.subr.bf16.mxu0 0
  %6290 = vmatpush1.bf16.msra.mxu0 0
  %6291 = vmatprep.subr.bf16.mxu0 0
  %6292 = vmatpush1.bf16.msra.mxu0 0
  %6293 = vmatprep.subr.bf16.mxu0 0
  %6294 = vmatpush1.bf16.msra.mxu0 0
  %6295 = vmatprep.subr.bf16.mxu0 0
  %6296 = vmatpush1.bf16.msra.mxu0 0
  %6297 = vmatprep.subr.bf16.mxu0 0
  %6298 = vmatpush1.bf16.msra.mxu0 0
  %6299 = vmatprep.subr.bf16.mxu0 0
  %6300 = vmatpush1.bf16.msra.mxu0 0
  %6301 = vmatprep.subr.bf16.mxu0 0
  %6302 = vmatpush1.bf16.msra.mxu0 0
  %6303 = vmatprep.subr.bf16.mxu0 0
  %6304 = vmatpush1.bf16.msra.mxu0 0
  %6305 = vmatprep.subr.bf16.mxu0 0
  %6306 = vmatpush1.bf16.msra.mxu0 0
  %6307 = vmatprep.subr.bf16.mxu0 0
  %6308 = vmatpush1.bf16.msra.mxu0 0
  %6309 = vmatprep.subr.bf16.mxu0 0
  %6310 = vmatpush1.bf16.msra.mxu0 0
  %6311 = vmatprep.mubr.bf16.mxu0 0
  %6312 = vmatmul.mubr.bf16.gmra.mrb[0].mxu0 %v6277
  %v6313 = vpop.f32.mrb[0].mxu0
  %v6314 = vadd.f32 %v6259, %v6313
  %v6315 = vpop.f32.mrb[0].mxu0
  %v6316 = vpop.f32.mrb[0].mxu0
  %v6317 = vpop.f32.mrb[0].mxu0
  %6318 = vdwg.mxu0
  %v6319 = vrot.slane %v6165, 2
  %v6321 = vrot.slane %v6165, 5
  %v6323 = vsel %vm418, %v6319, %v6321
  %v6324 = vpack.c.bf16 %v6323, %v6323
  %v6329 = vunpack.c.l.b16 %v6190
  %v6330 = vunpack.c.l.b16 %v6191
  %v6331 = vunpack.c.l.b16 %v6192
  %v6332 = vunpack.c.l.b16 %v6193
  %v6333 = vpack.c.b16 %v6330, %v6329
  %v6334 = vpack.c.b16 %v6332, %v6331
  %v6338 = vsel %vm1003, %v6324, 0
  %6340 = vmatprep.subr.bf16.mxu0 0
  %6341 = vmatpush1.bf16.msra.mxu0 %v6333
  %6342 = vmatprep.subr.bf16.mxu0 0
  %6343 = vmatpush1.bf16.msra.mxu0 %v6334
  %6344 = vmatprep.subr.bf16.mxu0 0
  %6345 = vmatpush1.bf16.msra.mxu0 0
  %6346 = vmatprep.subr.bf16.mxu0 0
  %6347 = vmatpush1.bf16.msra.mxu0 0
  %6348 = vmatprep.subr.bf16.mxu0 0
  %6349 = vmatpush1.bf16.msra.mxu0 0
  %6350 = vmatprep.subr.bf16.mxu0 0
  %6351 = vmatpush1.bf16.msra.mxu0 0
  %6352 = vmatprep.subr.bf16.mxu0 0
  %6353 = vmatpush1.bf16.msra.mxu0 0
  %6354 = vmatprep.subr.bf16.mxu0 0
  %6355 = vmatpush1.bf16.msra.mxu0 0
  %6356 = vmatprep.subr.bf16.mxu0 0
  %6357 = vmatpush1.bf16.msra.mxu0 0
  %6358 = vmatprep.subr.bf16.mxu0 0
  %6359 = vmatpush1.bf16.msra.mxu0 0
  %6360 = vmatprep.subr.bf16.mxu0 0
  %6361 = vmatpush1.bf16.msra.mxu0 0
  %6362 = vmatprep.subr.bf16.mxu0 0
  %6363 = vmatpush1.bf16.msra.mxu0 0
  %6364 = vmatprep.subr.bf16.mxu0 0
  %6365 = vmatpush1.bf16.msra.mxu0 0
  %6366 = vmatprep.subr.bf16.mxu0 0
  %6367 = vmatpush1.bf16.msra.mxu0 0
  %6368 = vmatprep.subr.bf16.mxu0 0
  %6369 = vmatpush1.bf16.msra.mxu0 0
  %6370 = vmatprep.subr.bf16.mxu0 0
  %6371 = vmatpush1.bf16.msra.mxu0 0
  %6372 = vmatprep.mubr.bf16.mxu0 0
  %6373 = vmatmul.mubr.bf16.gmra.mrb[0].mxu0 %v6338
  %v6374 = vpop.f32.mrb[0].mxu0
  %v6375 = vadd.f32 0.0, %v6374
  %v6376 = vpop.f32.mrb[0].mxu0
  %v6377 = vpop.f32.mrb[0].mxu0
  %v6378 = vpop.f32.mrb[0].mxu0
  %6379 = vdwg.mxu0
  %v6380 = vadd.f32 %v6314, %v6375
  %v6381 = vrot.slane %v6165, 6
  %v6383 = vsel %vm418, %v6199, %v6381
  %v6384 = vpack.c.bf16 %v6383, %v6383
  %v6389 = vunpack.c.l.b16 %v6194
  %v6390 = vunpack.c.l.b16 %v6195
  %v6391 = vunpack.c.l.b16 %v6196
  %v6392 = vunpack.c.l.b16 %v6197
  %v6393 = vpack.c.b16 %v6390, %v6389
  %v6394 = vpack.c.b16 %v6392, %v6391
  %v6398 = vsel %vm1003, %v6384, 0
  %6400 = vmatprep.subr.bf16.mxu0 0
  %6401 = vmatpush1.bf16.msra.mxu0 %v6393
  %6402 = vmatprep.subr.bf16.mxu0 0
  %6403 = vmatpush1.bf16.msra.mxu0 %v6394
  %6404 = vmatprep.subr.bf16.mxu0 0
  %6405 = vmatpush1.bf16.msra.mxu0 0
  %6406 = vmatprep.subr.bf16.mxu0 0
  %6407 = vmatpush1.bf16.msra.mxu0 0
  %6408 = vmatprep.subr.bf16.mxu0 0
  %6409 = vmatpush1.bf16.msra.mxu0 0
  %6410 = vmatprep.subr.bf16.mxu0 0
  %6411 = vmatpush1.bf16.msra.mxu0 0
  %6412 = vmatprep.subr.bf16.mxu0 0
  %6413 = vmatpush1.bf16.msra.mxu0 0
  %6414 = vmatprep.subr.bf16.mxu0 0
  %6415 = vmatpush1.bf16.msra.mxu0 0
  %6416 = vmatprep.subr.bf16.mxu0 0
  %6417 = vmatpush1.bf16.msra.mxu0 0
  %6418 = vmatprep.subr.bf16.mxu0 0
  %6419 = vmatpush1.bf16.msra.mxu0 0
  %6420 = vmatprep.subr.bf16.mxu0 0
  %6421 = vmatpush1.bf16.msra.mxu0 0
  %6422 = vmatprep.subr.bf16.mxu0 0
  %6423 = vmatpush1.bf16.msra.mxu0 0
  %6424 = vmatprep.subr.bf16.mxu0 0
  %6425 = vmatpush1.bf16.msra.mxu0 0
  %6426 = vmatprep.subr.bf16.mxu0 0
  %6427 = vmatpush1.bf16.msra.mxu0 0
  %6428 = vmatprep.subr.bf16.mxu0 0
  %6429 = vmatpush1.bf16.msra.mxu0 0
  %6430 = vmatprep.subr.bf16.mxu0 0
  %6431 = vmatpush1.bf16.msra.mxu0 0
  %6432 = vmatprep.mubr.bf16.mxu0 0
  %6433 = vmatmul.mubr.bf16.gmra.mrb[0].mxu0 %v6398
  %v6434 = vpop.f32.mrb[0].mxu0
  %v6435 = vadd.f32 0.0, %v6434
  %v6436 = vpop.f32.mrb[0].mxu0
  %v6437 = vpop.f32.mrb[0].mxu0
  %v6438 = vpop.f32.mrb[0].mxu0
  %6439 = vdwg.mxu0
  %v6440 = vadd.f32 %v6380, %v6435
  %s6441 = scalar_lea.vmem %s11, 3
  %v6442 = vld [vmem:[%s6441] sm:$0x1]
  %v6444 = vlaneseq
  %v6445 = vshrl.u32 %v6444, 7
  %v6446 = vsub.s32 0, %v6445
  %v6447 = vrot.slane %v6442, %v6446
  %v6449 = vadd.f32 %v6440, %v6447
  %v6450 = vmax.f32 %v6449, 0.0
  %v6451 = vpack.c.bf16 %v6450, %v6450
  %s6452 = scalar_lea.vmem %s12, 192
  %v6453 = vld [vmem:[%s6452] sm:$0xf]
  %v6454 = vld [vmem:[%s6452 + $0x4] sm:$0xf]
  %v6455 = vld [vmem:[%s6452 + $0x8] sm:$0xf]
  %v6456 = vld [vmem:[%s6452 + $0xc] sm:$0xf]
  %v6457 = vld [vmem:[%s6452 + $0x10] sm:$0xf]
  %v6458 = vld [vmem:[%s6452 + $0x14] sm:$0xf]
  %v6459 = vld [vmem:[%s6452 + $0x18] sm:$0xf]
  %v6460 = vld [vmem:[%s6452 + $0x1c] sm:$0xf]
  %v6461 = vld [vmem:[%s6452 + $0x20] sm:$0xf]
  %v6462 = vld [vmem:[%s6452 + $0x24] sm:$0xf]
  %v6463 = vld [vmem:[%s6452 + $0x28] sm:$0xf]
  %v6464 = vld [vmem:[%s6452 + $0x2c] sm:$0xf]
  %v6465 = vld [vmem:[%s6452 + $0x30] sm:$0xf]
  %v6466 = vld [vmem:[%s6452 + $0x34] sm:$0xf]
  %v6467 = vld [vmem:[%s6452 + $0x38] sm:$0xf]
  %v6468 = vld [vmem:[%s6452 + $0x3c] sm:$0xf]
  %s6469 = scalar_lea.vmem %s13, 3
  %v6470 = vld [vmem:[%s6469] sm:$0x1]
  %v6472 = vlaneseq
  %v6473 = vshrl.u32 %v6472, 7
  %v6474 = vsub.s32 0, %v6473
  %v6475 = vrot.slane %v6470, %v6474
  %v6493 = vunpack.c.l.b16 %v6453
  %v6494 = vunpack.c.l.b16 %v6454
  %v6495 = vunpack.c.l.b16 %v6455
  %v6496 = vunpack.c.l.b16 %v6456
  %v6497 = vunpack.c.l.b16 %v6457
  %v6498 = vunpack.c.l.b16 %v6458
  %v6499 = vunpack.c.l.b16 %v6459
  %v6500 = vunpack.c.l.b16 %v6460
  %v6501 = vunpack.c.l.b16 %v6461
  %v6502 = vunpack.c.l.b16 %v6462
  %v6503 = vunpack.c.l.b16 %v6463
  %v6504 = vunpack.c.l.b16 %v6464
  %v6505 = vunpack.c.l.b16 %v6465
  %v6506 = vunpack.c.l.b16 %v6466
  %v6507 = vunpack.c.l.b16 %v6467
  %v6508 = vunpack.c.l.b16 %v6468
  %v6509 = vpack.c.b16 %v6494, %v6493
  %v6510 = vpack.c.b16 %v6496, %v6495
  %v6511 = vpack.c.b16 %v6498, %v6497
  %v6512 = vpack.c.b16 %v6500, %v6499
  %v6513 = vpack.c.b16 %v6502, %v6501
  %v6514 = vpack.c.b16 %v6504, %v6503
  %v6515 = vpack.c.b16 %v6506, %v6505
  %v6516 = vpack.c.b16 %v6508, %v6507
  %6525 = vmatprep.subr.bf16.mxu0 0
  %6526 = vmatpush1.bf16.msra.mxu0 %v6509
  %6527 = vmatprep.subr.bf16.mxu0 0
  %6528 = vmatpush1.bf16.msra.mxu0 %v6510
  %6529 = vmatprep.subr.bf16.mxu0 0
  %6530 = vmatpush1.bf16.msra.mxu0 %v6511
  %6531 = vmatprep.subr.bf16.mxu0 0
  %6532 = vmatpush1.bf16.msra.mxu0 %v6512
  %6533 = vmatprep.subr.bf16.mxu0 0
  %6534 = vmatpush1.bf16.msra.mxu0 %v6513
  %6535 = vmatprep.subr.bf16.mxu0 0
  %6536 = vmatpush1.bf16.msra.mxu0 %v6514
  %6537 = vmatprep.subr.bf16.mxu0 0
  %6538 = vmatpush1.bf16.msra.mxu0 %v6515
  %6539 = vmatprep.subr.bf16.mxu0 0
  %6540 = vmatpush1.bf16.msra.mxu0 %v6516
  %6541 = vmatprep.subr.bf16.mxu0 0
  %6542 = vmatpush1.bf16.msra.mxu0 0
  %6543 = vmatprep.subr.bf16.mxu0 0
  %6544 = vmatpush1.bf16.msra.mxu0 0
  %6545 = vmatprep.subr.bf16.mxu0 0
  %6546 = vmatpush1.bf16.msra.mxu0 0
  %6547 = vmatprep.subr.bf16.mxu0 0
  %6548 = vmatpush1.bf16.msra.mxu0 0
  %6549 = vmatprep.subr.bf16.mxu0 0
  %6550 = vmatpush1.bf16.msra.mxu0 0
  %6551 = vmatprep.subr.bf16.mxu0 0
  %6552 = vmatpush1.bf16.msra.mxu0 0
  %6553 = vmatprep.subr.bf16.mxu0 0
  %6554 = vmatpush1.bf16.msra.mxu0 0
  %6555 = vmatprep.subr.bf16.mxu0 0
  %6556 = vmatpush1.bf16.msra.mxu0 0
  %6557 = vmatprep.mubr.bf16.mxu0 0
  %6558 = vmatmul.mubr.bf16.gmra.mrb[0].mxu0 %v6451
  %v6559 = vpop.f32.mrb[0].mxu0
  %v6560 = vadd.f32 %v6475, %v6559
  %v6561 = vpop.f32.mrb[0].mxu0
  %v6562 = vpop.f32.mrb[0].mxu0
  %v6563 = vpop.f32.mrb[0].mxu0
  %6564 = vdwg.mxu0
  %v6565 = vpack.c.bf16 %v6560, %v6560
  %s6566 = scalar_lea.vmem %s14, 192
  %v6567 = vld [vmem:[%s6566] sm:$0xf]
  %v6568 = vld [vmem:[%s6566 + $0x4] sm:$0xf]
  %v6569 = vld [vmem:[%s6566 + $0x8] sm:$0xf]
  %v6570 = vld [vmem:[%s6566 + $0xc] sm:$0xf]
  %v6571 = vld [vmem:[%s6566 + $0x10] sm:$0xf]
  %v6572 = vld [vmem:[%s6566 + $0x14] sm:$0xf]
  %v6573 = vld [vmem:[%s6566 + $0x18] sm:$0xf]
  %v6574 = vld [vmem:[%s6566 + $0x1c] sm:$0xf]
  %v6575 = vld [vmem:[%s6566 + $0x20] sm:$0xf]
  %v6576 = vld [vmem:[%s6566 + $0x24] sm:$0xf]
  %v6577 = vld [vmem:[%s6566 + $0x28] sm:$0xf]
  %v6578 = vld [vmem:[%s6566 + $0x2c] sm:$0xf]
  %v6579 = vld [vmem:[%s6566 + $0x30] sm:$0xf]
  %v6580 = vld [vmem:[%s6566 + $0x34] sm:$0xf]
  %v6581 = vld [vmem:[%s6566 + $0x38] sm:$0xf]
  %v6582 = vld [vmem:[%s6566 + $0x3c] sm:$0xf]
  %s6583 = scalar_lea.vmem %s15, 3
  %v6584 = vld [vmem:[%s6583] sm:$0x1]
  %v6586 = vlaneseq
  %v6587 = vshrl.u32 %v6586, 7
  %v6588 = vsub.s32 0, %v6587
  %v6589 = vrot.slane %v6584, %v6588
  %v6607 = vunpack.c.l.b16 %v6567
  %v6608 = vunpack.c.l.b16 %v6568
  %v6609 = vunpack.c.l.b16 %v6569
  %v6610 = vunpack.c.l.b16 %v6570
  %v6611 = vunpack.c.l.b16 %v6571
  %v6612 = vunpack.c.l.b16 %v6572
  %v6613 = vunpack.c.l.b16 %v6573
  %v6614 = vunpack.c.l.b16 %v6574
  %v6615 = vunpack.c.l.b16 %v6575
  %v6616 = vunpack.c.l.b16 %v6576
  %v6617 = vunpack.c.l.b16 %v6577
  %v6618 = vunpack.c.l.b16 %v6578
  %v6619 = vunpack.c.l.b16 %v6579
  %v6620 = vunpack.c.l.b16 %v6580
  %v6621 = vunpack.c.l.b16 %v6581
  %v6622 = vunpack.c.l.b16 %v6582
  %v6623 = vpack.c.b16 %v6608, %v6607
  %v6624 = vpack.c.b16 %v6610, %v6609
  %v6625 = vpack.c.b16 %v6612, %v6611
  %v6626 = vpack.c.b16 %v6614, %v6613
  %v6627 = vpack.c.b16 %v6616, %v6615
  %v6628 = vpack.c.b16 %v6618, %v6617
  %v6629 = vpack.c.b16 %v6620, %v6619
  %v6630 = vpack.c.b16 %v6622, %v6621
  %6639 = vmatprep.subr.bf16.mxu0 0
  %6640 = vmatpush1.bf16.msra.mxu0 %v6623
  %6641 = vmatprep.subr.bf16.mxu0 0
  %6642 = vmatpush1.bf16.msra.mxu0 %v6624
  %6643 = vmatprep.subr.bf16.mxu0 0
  %6644 = vmatpush1.bf16.msra.mxu0 %v6625
  %6645 = vmatprep.subr.bf16.mxu0 0
  %6646 = vmatpush1.bf16.msra.mxu0 %v6626
  %6647 = vmatprep.subr.bf16.mxu0 0
  %6648 = vmatpush1.bf16.msra.mxu0 %v6627
  %6649 = vmatprep.subr.bf16.mxu0 0
  %6650 = vmatpush1.bf16.msra.mxu0 %v6628
  %6651 = vmatprep.subr.bf16.mxu0 0
  %6652 = vmatpush1.bf16.msra.mxu0 %v6629
  %6653 = vmatprep.subr.bf16.mxu0 0
  %6654 = vmatpush1.bf16.msra.mxu0 %v6630
  %6655 = vmatprep.subr.bf16.mxu0 0
  %6656 = vmatpush1.bf16.msra.mxu0 0
  %6657 = vmatprep.subr.bf16.mxu0 0
  %6658 = vmatpush1.bf16.msra.mxu0 0
  %6659 = vmatprep.subr.bf16.mxu0 0
  %6660 = vmatpush1.bf16.msra.mxu0 0
  %6661 = vmatprep.subr.bf16.mxu0 0
  %6662 = vmatpush1.bf16.msra.mxu0 0
  %6663 = vmatprep.subr.bf16.mxu0 0
  %6664 = vmatpush1.bf16.msra.mxu0 0
  %6665 = vmatprep.subr.bf16.mxu0 0
  %6666 = vmatpush1.bf16.msra.mxu0 0
  %6667 = vmatprep.subr.bf16.mxu0 0
  %6668 = vmatpush1.bf16.msra.mxu0 0
  %6669 = vmatprep.subr.bf16.mxu0 0
  %6670 = vmatpush1.bf16.msra.mxu0 0
  %6671 = vmatprep.mubr.bf16.mxu0 0
  %6672 = vmatmul.mubr.bf16.gmra.mrb[0].mxu0 %v6565
  %v6673 = vpop.f32.mrb[0].mxu0
  %v6674 = vadd.f32 %v6589, %v6673
  %v6675 = vpop.f32.mrb[0].mxu0
  %v6676 = vpop.f32.mrb[0].mxu0
  %v6677 = vpop.f32.mrb[0].mxu0
  %6678 = vdwg.mxu0
  %v6679 = vadd.f32 %v6674, %v6450
  %v6680 = vpack.c.bf16 %v1677, %v1677
  %v6681 = vpack.c.bf16 %v3165, %v3165
  %v6682 = vpack.c.bf16 %v4653, %v4653
  %v6683 = vpack.c.bf16 %v6679, %v6679
  %v6684 = vld [vmem:[%s19] sm:$0xf]
  %v6685 = vld [vmem:[%s19 + $0x4] sm:$0xf]
  %v6686 = vld [vmem:[%s19 + $0x8] sm:$0xf]
  %v6687 = vld [vmem:[%s19 + $0xc] sm:$0xf]
  %v6688 = vld [vmem:[%s19 + $0x10] sm:$0xf]
  %v6689 = vld [vmem:[%s19 + $0x14] sm:$0xf]
  %v6690 = vld [vmem:[%s19 + $0x18] sm:$0xf]
  %v6691 = vld [vmem:[%s19 + $0x1c] sm:$0xf]
  %v6692 = vld [vmem:[%s19 + $0x20] sm:$0xf]
  %v6693 = vld [vmem:[%s19 + $0x24] sm:$0xf]
  %v6694 = vld [vmem:[%s19 + $0x28] sm:$0xf]
  %v6695 = vld [vmem:[%s19 + $0x2c] sm:$0xf]
  %v6696 = vld [vmem:[%s19 + $0x30] sm:$0xf]
  %v6697 = vld [vmem:[%s19 + $0x34] sm:$0xf]
  %v6698 = vld [vmem:[%s19 + $0x38] sm:$0xf]
  %v6699 = vld [vmem:[%s19 + $0x3c] sm:$0xf]
  %v6700 = vld [vmem:[%s19 + $0x40] sm:$0xf]
  %v6701 = vld [vmem:[%s19 + $0x44] sm:$0xf]
  %v6702 = vld [vmem:[%s19 + $0x48] sm:$0xf]
  %v6703 = vld [vmem:[%s19 + $0x4c] sm:$0xf]
  %v6704 = vld [vmem:[%s19 + $0x50] sm:$0xf]
  %v6705 = vld [vmem:[%s19 + $0x54] sm:$0xf]
  %v6706 = vld [vmem:[%s19 + $0x58] sm:$0xf]
  %v6707 = vld [vmem:[%s19 + $0x5c] sm:$0xf]
  %v6708 = vld [vmem:[%s19 + $0x60] sm:$0xf]
  %v6709 = vld [vmem:[%s19 + $0x64] sm:$0xf]
  %v6710 = vld [vmem:[%s19 + $0x68] sm:$0xf]
  %v6711 = vld [vmem:[%s19 + $0x6c] sm:$0xf]
  %v6712 = vld [vmem:[%s19 + $0x70] sm:$0xf]
  %v6713 = vld [vmem:[%s19 + $0x74] sm:$0xf]
  %v6714 = vld [vmem:[%s19 + $0x78] sm:$0xf]
  %v6715 = vld [vmem:[%s19 + $0x7c] sm:$0xf]
  %v6716 = vld [vmem:[%s19 + $0x80] sm:$0xf]
  %v6717 = vld [vmem:[%s19 + $0x84] sm:$0xf]
  %v6718 = vld [vmem:[%s19 + $0x88] sm:$0xf]
  %v6719 = vld [vmem:[%s19 + $0x8c] sm:$0xf]
  %v6720 = vld [vmem:[%s19 + $0x90] sm:$0xf]
  %v6721 = vld [vmem:[%s19 + $0x94] sm:$0xf]
  %v6722 = vld [vmem:[%s19 + $0x98] sm:$0xf]
  %v6723 = vld [vmem:[%s19 + $0x9c] sm:$0xf]
  %v6724 = vld [vmem:[%s19 + $0xa0] sm:$0xf]
  %v6725 = vld [vmem:[%s19 + $0xa4] sm:$0xf]
  %v6726 = vld [vmem:[%s19 + $0xa8] sm:$0xf]
  %v6727 = vld [vmem:[%s19 + $0xac] sm:$0xf]
  %v6728 = vld [vmem:[%s19 + $0xb0] sm:$0xf]
  %v6729 = vld [vmem:[%s19 + $0xb4] sm:$0xf]
  %v6730 = vld [vmem:[%s19 + $0xb8] sm:$0xf]
  %v6731 = vld [vmem:[%s19 + $0xbc] sm:$0xf]
  %v6732 = vld [vmem:[%s19 + $0xc0] sm:$0xf]
  %v6733 = vld [vmem:[%s19 + $0xc4] sm:$0xf]
  %v6734 = vld [vmem:[%s19 + $0xc8] sm:$0xf]
  %v6735 = vld [vmem:[%s19 + $0xcc] sm:$0xf]
  %v6736 = vld [vmem:[%s19 + $0xd0] sm:$0xf]
  %v6737 = vld [vmem:[%s19 + $0xd4] sm:$0xf]
  %v6738 = vld [vmem:[%s19 + $0xd8] sm:$0xf]
  %v6739 = vld [vmem:[%s19 + $0xdc] sm:$0xf]
  %v6740 = vld [vmem:[%s19 + $0xe0] sm:$0xf]
  %v6741 = vld [vmem:[%s19 + $0xe4] sm:$0xf]
  %v6742 = vld [vmem:[%s19 + $0xe8] sm:$0xf]
  %v6743 = vld [vmem:[%s19 + $0xec] sm:$0xf]
  %v6744 = vld [vmem:[%s19 + $0xf0] sm:$0xf]
  %v6745 = vld [vmem:[%s19 + $0xf4] sm:$0xf]
  %v6746 = vld [vmem:[%s19 + $0xf8] sm:$0xf]
  %v6747 = vld [vmem:[%s19 + $0xfc] sm:$0xf]
  %v6748 = vld [vmem:[%s20] sm:$0x1]
  %v6750 = vlaneseq
  %v6751 = vshrl.u32 %v6750, 7
  %v6752 = vsub.s32 0, %v6751
  %v6753 = vrot.slane %v6748, %v6752
  %v6819 = vunpack.c.l.b16 %v6684
  %v6820 = vunpack.c.l.b16 %v6685
  %v6821 = vunpack.c.l.b16 %v6686
  %v6822 = vunpack.c.l.b16 %v6687
  %v6823 = vunpack.c.l.b16 %v6688
  %v6824 = vunpack.c.l.b16 %v6689
  %v6825 = vunpack.c.l.b16 %v6690
  %v6826 = vunpack.c.l.b16 %v6691
  %v6827 = vunpack.c.l.b16 %v6692
  %v6828 = vunpack.c.l.b16 %v6693
  %v6829 = vunpack.c.l.b16 %v6694
  %v6830 = vunpack.c.l.b16 %v6695
  %v6831 = vunpack.c.l.b16 %v6696
  %v6832 = vunpack.c.l.b16 %v6697
  %v6833 = vunpack.c.l.b16 %v6698
  %v6834 = vunpack.c.l.b16 %v6699
  %v6835 = vunpack.c.l.b16 %v6700
  %v6836 = vunpack.c.l.b16 %v6701
  %v6837 = vunpack.c.l.b16 %v6702
  %v6838 = vunpack.c.l.b16 %v6703
  %v6839 = vunpack.c.l.b16 %v6704
  %v6840 = vunpack.c.l.b16 %v6705
  %v6841 = vunpack.c.l.b16 %v6706
  %v6842 = vunpack.c.l.b16 %v6707
  %v6843 = vunpack.c.l.b16 %v6708
  %v6844 = vunpack.c.l.b16 %v6709
  %v6845 = vunpack.c.l.b16 %v6710
  %v6846 = vunpack.c.l.b16 %v6711
  %v6847 = vunpack.c.l.b16 %v6712
  %v6848 = vunpack.c.l.b16 %v6713
  %v6849 = vunpack.c.l.b16 %v6714
  %v6850 = vunpack.c.l.b16 %v6715
  %v6851 = vunpack.c.l.b16 %v6716
  %v6852 = vunpack.c.l.b16 %v6717
  %v6853 = vunpack.c.l.b16 %v6718
  %v6854 = vunpack.c.l.b16 %v6719
  %v6855 = vunpack.c.l.b16 %v6720
  %v6856 = vunpack.c.l.b16 %v6721
  %v6857 = vunpack.c.l.b16 %v6722
  %v6858 = vunpack.c.l.b16 %v6723
  %v6859 = vunpack.c.l.b16 %v6724
  %v6860 = vunpack.c.l.b16 %v6725
  %v6861 = vunpack.c.l.b16 %v6726
  %v6862 = vunpack.c.l.b16 %v6727
  %v6863 = vunpack.c.l.b16 %v6728
  %v6864 = vunpack.c.l.b16 %v6729
  %v6865 = vunpack.c.l.b16 %v6730
  %v6866 = vunpack.c.l.b16 %v6731
  %v6867 = vunpack.c.l.b16 %v6732
  %v6868 = vunpack.c.l.b16 %v6733
  %v6869 = vunpack.c.l.b16 %v6734
  %v6870 = vunpack.c.l.b16 %v6735
  %v6871 = vunpack.c.l.b16 %v6736
  %v6872 = vunpack.c.l.b16 %v6737
  %v6873 = vunpack.c.l.b16 %v6738
  %v6874 = vunpack.c.l.b16 %v6739
  %v6875 = vunpack.c.l.b16 %v6740
  %v6876 = vunpack.c.l.b16 %v6741
  %v6877 = vunpack.c.l.b16 %v6742
  %v6878 = vunpack.c.l.b16 %v6743
  %v6879 = vunpack.c.l.b16 %v6744
  %v6880 = vunpack.c.l.b16 %v6745
  %v6881 = vunpack.c.l.b16 %v6746
  %v6882 = vunpack.c.l.b16 %v6747
  %v6883 = vpack.c.b16 %v6820, %v6819
  %v6884 = vpack.c.b16 %v6822, %v6821
  %v6885 = vpack.c.b16 %v6824, %v6823
  %v6886 = vpack.c.b16 %v6826, %v6825
  %v6887 = vpack.c.b16 %v6828, %v6827
  %v6888 = vpack.c.b16 %v6830, %v6829
  %v6889 = vpack.c.b16 %v6832, %v6831
  %v6890 = vpack.c.b16 %v6834, %v6833
  %v6891 = vpack.c.b16 %v6836, %v6835
  %v6892 = vpack.c.b16 %v6838, %v6837
  %v6893 = vpack.c.b16 %v6840, %v6839
  %v6894 = vpack.c.b16 %v6842, %v6841
  %v6895 = vpack.c.b16 %v6844, %v6843
  %v6896 = vpack.c.b16 %v6846, %v6845
  %v6897 = vpack.c.b16 %v6848, %v6847
  %v6898 = vpack.c.b16 %v6850, %v6849
  %v6899 = vpack.c.b16 %v6852, %v6851
  %v6900 = vpack.c.b16 %v6854, %v6853
  %v6901 = vpack.c.b16 %v6856, %v6855
  %v6902 = vpack.c.b16 %v6858, %v6857
  %v6903 = vpack.c.b16 %v6860, %v6859
  %v6904 = vpack.c.b16 %v6862, %v6861
  %v6905 = vpack.c.b16 %v6864, %v6863
  %v6906 = vpack.c.b16 %v6866, %v6865
  %v6907 = vpack.c.b16 %v6868, %v6867
  %v6908 = vpack.c.b16 %v6870, %v6869
  %v6909 = vpack.c.b16 %v6872, %v6871
  %v6910 = vpack.c.b16 %v6874, %v6873
  %v6911 = vpack.c.b16 %v6876, %v6875
  %v6912 = vpack.c.b16 %v6878, %v6877
  %v6913 = vpack.c.b16 %v6880, %v6879
  %v6914 = vpack.c.b16 %v6882, %v6881
  %6947 = vmatprep.subr.bf16.mxu0 0
  %6948 = vmatpush1.bf16.msra.mxu0 %v6883
  %6949 = vmatprep.subr.bf16.mxu0 0
  %6950 = vmatpush1.bf16.msra.mxu0 %v6884
  %6951 = vmatprep.subr.bf16.mxu0 0
  %6952 = vmatpush1.bf16.msra.mxu0 %v6885
  %6953 = vmatprep.subr.bf16.mxu0 0
  %6954 = vmatpush1.bf16.msra.mxu0 %v6886
  %6955 = vmatprep.subr.bf16.mxu0 0
  %6956 = vmatpush1.bf16.msra.mxu0 %v6887
  %6957 = vmatprep.subr.bf16.mxu0 0
  %6958 = vmatpush1.bf16.msra.mxu0 %v6888
  %6959 = vmatprep.subr.bf16.mxu0 0
  %6960 = vmatpush1.bf16.msra.mxu0 %v6889
  %6961 = vmatprep.subr.bf16.mxu0 0
  %6962 = vmatpush1.bf16.msra.mxu0 %v6890
  %6963 = vmatprep.subr.bf16.mxu0 0
  %6964 = vmatpush1.bf16.msra.mxu0 %v6891
  %6965 = vmatprep.subr.bf16.mxu0 0
  %6966 = vmatpush1.bf16.msra.mxu0 %v6892
  %6967 = vmatprep.subr.bf16.mxu0 0
  %6968 = vmatpush1.bf16.msra.mxu0 %v6893
  %6969 = vmatprep.subr.bf16.mxu0 0
  %6970 = vmatpush1.bf16.msra.mxu0 %v6894
  %6971 = vmatprep.subr.bf16.mxu0 0
  %6972 = vmatpush1.bf16.msra.mxu0 %v6895
  %6973 = vmatprep.subr.bf16.mxu0 0
  %6974 = vmatpush1.bf16.msra.mxu0 %v6896
  %6975 = vmatprep.subr.bf16.mxu0 0
  %6976 = vmatpush1.bf16.msra.mxu0 %v6897
  %6977 = vmatprep.subr.bf16.mxu0 0
  %6978 = vmatpush1.bf16.msra.mxu0 %v6898
  %6979 = vmatprep.mubr.bf16.mxu0 %v6681
  %6980 = vmatmul.mubr.bf16.gmra.mrb[0].mxu0 %v6680
  %v6981 = vpop.f32.mrb[0].mxu0
  %v6982 = vadd.f32 %v6753, %v6981
  %v6983 = vpop.f32.mrb[0].mxu0
  %v6984 = vpop.f32.mrb[0].mxu0
  %v6985 = vpop.f32.mrb[0].mxu0
  %6986 = vdwg.mxu0
  %6987 = vmatprep.subr.bf16.mxu0 0
  %6988 = vmatpush1.bf16.msra.mxu0 %v6899
  %6989 = vmatprep.subr.bf16.mxu0 0
  %6990 = vmatpush1.bf16.msra.mxu0 %v6900
  %6991 = vmatprep.subr.bf16.mxu0 0
  %6992 = vmatpush1.bf16.msra.mxu0 %v6901
  %6993 = vmatprep.subr.bf16.mxu0 0
  %6994 = vmatpush1.bf16.msra.mxu0 %v6902
  %6995 = vmatprep.subr.bf16.mxu0 0
  %6996 = vmatpush1.bf16.msra.mxu0 %v6903
  %6997 = vmatprep.subr.bf16.mxu0 0
  %6998 = vmatpush1.bf16.msra.mxu0 %v6904
  %6999 = vmatprep.subr.bf16.mxu0 0
  %7000 = vmatpush1.bf16.msra.mxu0 %v6905
  %7001 = vmatprep.subr.bf16.mxu0 0
  %7002 = vmatpush1.bf16.msra.mxu0 %v6906
  %7003 = vmatprep.subr.bf16.mxu0 0
  %7004 = vmatpush1.bf16.msra.mxu0 %v6907
  %7005 = vmatprep.subr.bf16.mxu0 0
  %7006 = vmatpush1.bf16.msra.mxu0 %v6908
  %7007 = vmatprep.subr.bf16.mxu0 0
  %7008 = vmatpush1.bf16.msra.mxu0 %v6909
  %7009 = vmatprep.subr.bf16.mxu0 0
  %7010 = vmatpush1.bf16.msra.mxu0 %v6910
  %7011 = vmatprep.subr.bf16.mxu0 0
  %7012 = vmatpush1.bf16.msra.mxu0 %v6911
  %7013 = vmatprep.subr.bf16.mxu0 0
  %7014 = vmatpush1.bf16.msra.mxu0 %v6912
  %7015 = vmatprep.subr.bf16.mxu0 0
  %7016 = vmatpush1.bf16.msra.mxu0 %v6913
  %7017 = vmatprep.subr.bf16.mxu0 0
  %7018 = vmatpush1.bf16.msra.mxu0 %v6914
  %7019 = vmatprep.mubr.bf16.mxu0 %v6683
  %7020 = vmatmul.mubr.bf16.gmra.mrb[0].mxu0 %v6682
  %v7021 = vpop.f32.mrb[0].mxu0
  %v7022 = vadd.f32 %v6982, %v7021
  %v7023 = vpop.f32.mrb[0].mxu0
  %v7024 = vpop.f32.mrb[0].mxu0
  %v7025 = vpop.f32.mrb[0].mxu0
  %7026 = vdwg.mxu0
  %v7027 = vmax.f32 %v7022, 0.0
  %v7028 = vpack.c.bf16 %v7027, %v7027
  %v7029 = vld [vmem:[%s21] sm:$0xf]
  %v7030 = vld [vmem:[%s21 + $0x4] sm:$0xf]
  %v7031 = vld [vmem:[%s21 + $0x8] sm:$0xf]
  %v7032 = vld [vmem:[%s21 + $0xc] sm:$0xf]
  %v7033 = vld [vmem:[%s22] sm:$0x1]
  %v7035 = vlaneseq
  %v7036 = vshrl.u32 %v7035, 7
  %v7037 = vsub.s32 0, %v7036
  %v7038 = vrot.slane %v7033, %v7037
  %v7044 = vunpack.c.l.b16 %v7029
  %v7045 = vunpack.c.l.b16 %v7030
  %v7046 = vunpack.c.l.b16 %v7031
  %v7047 = vunpack.c.l.b16 %v7032
  %v7048 = vpack.c.b16 %v7045, %v7044
  %v7049 = vpack.c.b16 %v7047, %v7046
  %v7053 = vsel %vm1003, %v7028, 0
  %7055 = vmatprep.subr.bf16.mxu0 0
  %7056 = vmatpush1.bf16.msra.mxu0 %v7048
  %7057 = vmatprep.subr.bf16.mxu0 0
  %7058 = vmatpush1.bf16.msra.mxu0 %v7049
  %7059 = vmatprep.subr.bf16.mxu0 0
  %7060 = vmatpush1.bf16.msra.mxu0 0
  %7061 = vmatprep.subr.bf16.mxu0 0
  %7062 = vmatpush1.bf16.msra.mxu0 0
  %7063 = vmatprep.subr.bf16.mxu0 0
  %7064 = vmatpush1.bf16.msra.mxu0 0
  %7065 = vmatprep.subr.bf16.mxu0 0
  %7066 = vmatpush1.bf16.msra.mxu0 0
  %7067 = vmatprep.subr.bf16.mxu0 0
  %7068 = vmatpush1.bf16.msra.mxu0 0
  %7069 = vmatprep.subr.bf16.mxu0 0
  %7070 = vmatpush1.bf16.msra.mxu0 0
  %7071 = vmatprep.subr.bf16.mxu0 0
  %7072 = vmatpush1.bf16.msra.mxu0 0
  %7073 = vmatprep.subr.bf16.mxu0 0
  %7074 = vmatpush1.bf16.msra.mxu0 0
  %7075 = vmatprep.subr.bf16.mxu0 0
  %7076 = vmatpush1.bf16.msra.mxu0 0
  %7077 = vmatprep.subr.bf16.mxu0 0
  %7078 = vmatpush1.bf16.msra.mxu0 0
  %7079 = vmatprep.subr.bf16.mxu0 0
  %7080 = vmatpush1.bf16.msra.mxu0 0
  %7081 = vmatprep.subr.bf16.mxu0 0
  %7082 = vmatpush1.bf16.msra.mxu0 0
  %7083 = vmatprep.subr.bf16.mxu0 0
  %7084 = vmatpush1.bf16.msra.mxu0 0
  %7085 = vmatprep.subr.bf16.mxu0 0
  %7086 = vmatpush1.bf16.msra.mxu0 0
  %7087 = vmatprep.mubr.bf16.mxu0 0
  %7088 = vmatmul.mubr.bf16.gmra.mrb[0].mxu0 %v7053
  %v7089 = vpop.f32.mrb[0].mxu0
  %v7090 = vadd.f32 %v7038, %v7089
  %v7091 = vpop.f32.mrb[0].mxu0
  %v7092 = vpop.f32.mrb[0].mxu0
  %v7093 = vpop.f32.mrb[0].mxu0
  %7094 = vdwg.mxu0
  %v7095 = vmax.f32 %v7090, 0.0
  %v7096 = vpack.c.bf16 %v7095, %v7095
  %v7097 = vld [vmem:[%s23] sm:$0xf]
  %v7098 = vld [vmem:[%s23 + $0x4] sm:$0xf]
  %v7099 = vld [vmem:[%s23 + $0x8] sm:$0xf]
  %v7100 = vld [vmem:[%s23 + $0xc] sm:$0xf]
  %v7101 = vld [vmem:[#allocation2] sm:$0x1]
  %v7103 = vlaneseq
  %v7104 = vshrl.u32 %v7103, 7
  %v7105 = vsub.s32 0, %v7104
  %v7106 = vrot.slane %v7101, %v7105
  %v7112 = vunpack.c.l.b16 %v7097
  %v7113 = vunpack.c.l.b16 %v7098
  %v7114 = vunpack.c.l.b16 %v7099
  %v7115 = vunpack.c.l.b16 %v7100
  %v7116 = vpack.c.b16 %v7113, %v7112
  %v7117 = vpack.c.b16 %v7115, %v7114
  %v7121 = vsel %vm1003, %v7096, 0
  %7123 = vmatprep.subr.bf16.mxu0 0
  %7124 = vmatpush1.bf16.msra.mxu0 %v7116
  %7125 = vmatprep.subr.bf16.mxu0 0
  %7126 = vmatpush1.bf16.msra.mxu0 %v7117
  %7127 = vmatprep.subr.bf16.mxu0 0
  %7128 = vmatpush1.bf16.msra.mxu0 0
  %7129 = vmatprep.subr.bf16.mxu0 0
  %7130 = vmatpush1.bf16.msra.mxu0 0
  %7131 = vmatprep.subr.bf16.mxu0 0
  %7132 = vmatpush1.bf16.msra.mxu0 0
  %7133 = vmatprep.subr.bf16.mxu0 0
  %7134 = vmatpush1.bf16.msra.mxu0 0
  %7135 = vmatprep.subr.bf16.mxu0 0
  %7136 = vmatpush1.bf16.msra.mxu0 0
  %7137 = vmatprep.subr.bf16.mxu0 0
  %7138 = vmatpush1.bf16.msra.mxu0 0
  %7139 = vmatprep.subr.bf16.mxu0 0
  %7140 = vmatpush1.bf16.msra.mxu0 0
  %7141 = vmatprep.subr.bf16.mxu0 0
  %7142 = vmatpush1.bf16.msra.mxu0 0
  %7143 = vmatprep.subr.bf16.mxu0 0
  %7144 = vmatpush1.bf16.msra.mxu0 0
  %7145 = vmatprep.subr.bf16.mxu0 0
  %7146 = vmatpush1.bf16.msra.mxu0 0
  %7147 = vmatprep.subr.bf16.mxu0 0
  %7148 = vmatpush1.bf16.msra.mxu0 0
  %7149 = vmatprep.subr.bf16.mxu0 0
  %7150 = vmatpush1.bf16.msra.mxu0 0
  %7151 = vmatprep.subr.bf16.mxu0 0
  %7152 = vmatpush1.bf16.msra.mxu0 0
  %7153 = vmatprep.subr.bf16.mxu0 0
  %7154 = vmatpush1.bf16.msra.mxu0 0
  %7155 = vmatprep.mubr.bf16.mxu0 0
  %7156 = vmatmul.mubr.bf16.gmra.mrb[0].mxu0 %v7121
  %v7157 = vpop.f32.mrb[0].mxu0
  %v7158 = vadd.f32 %v7106, %v7157
  %v7159 = vpop.f32.mrb[0].mxu0
  %v7160 = vpop.f32.mrb[0].mxu0
  %v7161 = vpop.f32.mrb[0].mxu0
  %7162 = vdwg.mxu0
  %vm7163 = vcmask 1024
  %7164 = vst.msk [vmem:[%s25] sm:$0x3] %vm7163, %v7158
  // Predicated region
  $region102: #{bert_binding_forward.1} parent=0 // pred_check
    _
  $region103: #{bert_binding_forward.1} parent=0 // pred_check_branch
    %7166 = sbr.rel (0) target = $region105
  $region104: #{bert_binding_forward.1} parent=0 // pred_region
    _
  $region105: #{bert_binding_forward.1} parent=0 // pred_fallthru
    _
  // Predicated region
  $region106: #{bert_binding_forward.1} parent=0 // pred_check
    _
  $region107: #{bert_binding_forward.1} parent=0 // pred_check_branch
    %7168 = sbr.rel (0) target = $region109
  $region108: #{bert_binding_forward.1} parent=0 // pred_region
    _
  $region109: #{bert_binding_forward.1} parent=0 // pred_fallthru
    _

</llo_original>
